<compile_context>
chip_gen: v7x
topology: tpu7x:2x2x1
jax: 0.10.0
libtpu: 0.0.40
codegen_flags: <defaults>
</compile_context>

<pallas_src>
import math
import functools

import jax
import jax.numpy as jnp
from jax.experimental import pallas as pl
from jax.experimental.pallas import tpu as pltpu

MIB = 1024 * 1024


# --------------------------------------------------------------------------
# Pallas kernels
# --------------------------------------------------------------------------

def _mha_ln_kernel(xq_ref, xkv_ref, wq_ref, bq_ref, wkv_ref, bkv_ref,
                   wo_ref, bo_ref, g_ref, beta_ref, *rest,
                   n_heads, mask_mode):
    """Fused MHA + residual + LayerNorm for one (batch, query-tile) grid cell.

    xq:(1,TQ,D) bf16   xkv:(1,Sk,D) bf16   wq:(D,D) bf16 (1/sqrt(dk) pre-folded)
    wkv:(D,2D) bf16 (fused K|V)   wo:(D,D) bf16   biases / LN params: f32
    optional mask:(1,TQ,Sk) int8.  Output (1,TQ,D) bf16 = LN(xq + MHA(xq, xkv, xkv)).
    """
    if mask_mode == "tensor":
        mask_ref, o_ref = rest
    else:
        (o_ref,) = rest

    xq = xq_ref[0]                         # (TQ, D) bf16 -- residual input & MXU operand
    xkv = xkv_ref[0]                       # (Sk, D) bf16
    TQ, D = xq.shape
    Sk = xkv.shape[0]
    dk = D // n_heads

    # Fused projections: bf16 MXU operands, f32 accumulation (scale already in wq/bq).
    q = jnp.dot(xq, wq_ref[...], preferred_element_type=jnp.float32) + bq_ref[...]     # (TQ, D)
    kv = jnp.dot(xkv, wkv_ref[...], preferred_element_type=jnp.float32) + bkv_ref[...]  # (Sk, 2D)

    # Head-batched attention: single batched dot_general over heads (no per-head slicing).
    q3 = q.reshape(TQ, n_heads, dk)
    k3 = kv[:, :D].reshape(Sk, n_heads, dk)
    v3 = kv[:, D:].reshape(Sk, n_heads, dk)
    s = jnp.einsum("qhd,khd->hqk", q3, k3,
                   preferred_element_type=jnp.float32)                                  # (H, TQ, Sk)

    if mask_mode == "causal":
        # Causal mask generated in-kernel (absolute query row vs. key column).
        q0 = pl.program_id(1) * TQ
        rows = q0 + jax.lax.broadcasted_iota(jnp.int32, (TQ, Sk), 0)
        cols = jax.lax.broadcasted_iota(jnp.int32, (TQ, Sk), 1)
        s = jnp.where((cols > rows)[None], -1e9, s)
    elif mask_mode == "tensor":
        s = jnp.where((mask_ref[0] == 0)[None], -1e9, s)

    s = s - jnp.max(s, axis=-1, keepdims=True)
    p = jnp.exp(s)
    p = p / jnp.sum(p, axis=-1, keepdims=True)
    ctx = jnp.einsum("hqk,khd->qhd", p, v3,
                     preferred_element_type=jnp.float32).reshape(TQ, D)                 # (TQ, D)

    # Output projection + fused residual add + LayerNorm (f32), stored back as bf16.
    out = jnp.dot(ctx.astype(jnp.bfloat16), wo_ref[...],
                  preferred_element_type=jnp.float32) + bo_ref[...]
    z = xq.astype(jnp.float32) + out
    mu = jnp.mean(z, axis=-1, keepdims=True)
    var = jnp.mean((z - mu) ** 2, axis=-1, keepdims=True)
    y = (z - mu) * jax.lax.rsqrt(var + 1e-5) * g_ref[...] + beta_ref[...]
    o_ref[0] = y.astype(o_ref.dtype)


def _ffn_ln_kernel(x_ref, w1_ref, b1_ref, w2_ref, b2_ref, g_ref, beta_ref, o_ref):
    """Fused linear1 -> ReLU -> linear2 -> residual add -> LayerNorm on a bf16 row tile."""
    x = x_ref[...]                                                          # (TM, D) bf16
    h = jnp.dot(x, w1_ref[...], preferred_element_type=jnp.float32) + b1_ref[...]
    h = jnp.maximum(h, 0.0)
    y = jnp.dot(h.astype(jnp.bfloat16), w2_ref[...],
                preferred_element_type=jnp.float32) + b2_ref[...]
    z = x.astype(jnp.float32) + y
    mu = jnp.mean(z, axis=-1, keepdims=True)
    var = jnp.mean((z - mu) ** 2, axis=-1, keepdims=True)
    o_ref[...] = ((z - mu) * jax.lax.rsqrt(var + 1e-5) * g_ref[...]
                  + beta_ref[...]).astype(o_ref.dtype)


def _ln_kernel(x_ref, g_ref, beta_ref, o_ref):
    """Final LayerNorm only (bf16 in, f32 out)."""
    z = x_ref[...].astype(jnp.float32)
    mu = jnp.mean(z, axis=-1, keepdims=True)
    var = jnp.mean((z - mu) ** 2, axis=-1, keepdims=True)
    o_ref[...] = ((z - mu) * jax.lax.rsqrt(var + 1e-5) * g_ref[...]
                  + beta_ref[...]).astype(o_ref.dtype)


# --------------------------------------------------------------------------
# pallas_call wrappers
# --------------------------------------------------------------------------

def _tile(m, cap):
    if m <= cap:
        return m
    for t in (cap, 256, 128, 64, 32, 16, 8):
        if t <= cap and m % t == 0:
            return t
    return cap  # ragged last block: Pallas masks the out-of-bounds rows on writeback


def fused_mha_ln(p, x_q, x_kv, mask, gamma, beta, n_heads, *, causal=False):
    """LayerNorm(x_q + MHA(x_q, x_kv, x_kv, mask)).  x_q / x_kv bf16; output bf16.

    Masks are head-uniform only; with causal=True the mask is generated in-kernel
    and `mask` is ignored.
    """
    B, Sq, D = x_q.shape
    Sk = x_kv.shape[1]
    assert D % n_heads == 0
    TQ = _tile(Sq, 256)
    nq = pl.cdiv(Sq, TQ)

    if causal:
        mask_mode = "causal"
    elif mask is not None:
        mask_mode = "tensor"
    else:
        mask_mode = "none"

    kernel = functools.partial(_mha_ln_kernel, n_heads=n_heads, mask_mode=mask_mode)

    def resident(shape):
        # Constant-index block (weights / biases / LN params): single VMEM buffer.
        return pl.BlockSpec(shape, lambda b, qi: (0,) * len(shape),
                            pipeline_mode=pl.Buffered(1))

    in_specs = [
        pl.BlockSpec((1, TQ, D), lambda b, qi: (b, qi, 0)),    # x_q (residual + Q input)
        pl.BlockSpec((1, Sk, D), lambda b, qi: (b, 0, 0)),     # x_kv (K|V input)
        resident((D, D)),                                      # wq (bf16, scale folded)
        resident((1, D)),                                      # bq
        resident((D, 2 * D)),                                  # wkv (bf16, fused K|V)
        resident((1, 2 * D)),                                  # bkv
        resident((D, D)),                                      # wo (bf16)
        resident((1, D)),                                      # bo
        resident((1, D)),                                      # LN gamma
        resident((1, D)),                                      # LN beta
    ]
    args = [x_q, x_kv, p["wq"], p["bq"].reshape(1, D), p["wkv"],
            p["bkv"].reshape(1, 2 * D), p["wo"], p["bo"].reshape(1, D),
            gamma.reshape(1, D), beta.reshape(1, D)]

    mask_bytes = 0
    if mask_mode == "tensor":
        # TODO(synk): per-head (B,H,Sq,Sk) masks are not supported; head-uniform only.
        m = mask
        if m.ndim == 4:
            assert m.shape[1] == 1, "per-head attention masks are unsupported"
            m = m[:, 0]
        m = jnp.broadcast_to(m, (B, Sq, Sk)).astype(jnp.int8)
        in_specs.append(pl.BlockSpec((1, TQ, Sk), lambda b, qi: (b, qi, 0)))
        args.append(m)
        mask_bytes = B * Sq * Sk

    # VMEM budget: single-buffered bf16 weights + double-buffered activation blocks
    # + in-kernel f32 temporaries (q, kv, scores, ctx, LN).
    vmem = int(1.5 * (
        2 * (D * D + 2 * D * D + D * D)              # weights (bf16, 1 buffer)
        + 2 * 2 * (TQ * D + Sk * D + TQ * D)         # xq / xkv / out blocks (bf16, 2 bufs)
        + 2 * 2 * TQ * Sk                            # optional int8 mask block
        + 4 * (TQ * D + 2 * Sk * D)                  # q, kv (f32)
        + 4 * 3 * n_heads * TQ * Sk                  # scores / probs (f32)
        + 4 * 3 * TQ * D))                           # ctx / z / y (f32)
    vmem = max(min(vmem, 56 * MIB), 32 * MIB)

    cost = pl.CostEstimate(
        flops=int(4 * B * D * D * (Sq + Sk) + 4 * B * Sq * Sk * D),
        transcendentals=int(B * n_heads * Sq * Sk),
        bytes_accessed=int(2 * B * D * (2 * Sq + Sk) + 8 * D * D + mask_bytes),
    )

    return pl.pallas_call(
        kernel,
        out_shape=jax.ShapeDtypeStruct((B, Sq, D), jnp.bfloat16),
        grid=(B, nq),
        in_specs=in_specs,
        out_specs=pl.BlockSpec((1, TQ, D), lambda b, qi: (b, qi, 0)),
        compiler_params=pltpu.CompilerParams(
            dimension_semantics=("parallel", "parallel"),
            vmem_limit_bytes=vmem),
        cost_estimate=cost,
    )(*args)


def ffn_ln(x2d, w1, b1, w2, b2, gamma, beta):
    M, D = x2d.shape
    F = w1.shape[1]
    # 512-row tiles: near HBM-roofline pipelining on v5e/v6e (128 MiB VMEM); still fits v7x.
    TM = _tile(M, 512)

    def resident(shape):
        return pl.BlockSpec(shape, lambda i: (0,) * len(shape),
                            pipeline_mode=pl.Buffered(1))

    vmem = int(1.5 * (
        2 * 2 * D * F                   # w1 / w2 (bf16, single buffer)
        + 2 * 2 * (TM * D + TM * D)     # x / out blocks (bf16, double-buffered)
        + 4 * TM * F                    # ReLU intermediate (f32)
        + 4 * 2 * TM * D))              # y / z (f32)
    vmem = max(min(vmem, 56 * MIB), 32 * MIB)

    cost = pl.CostEstimate(
        flops=int(4 * M * D * F),
        transcendentals=0,
        bytes_accessed=int(2 * (2 * M * D + 2 * D * F)),
    )

    return pl.pallas_call(
        _ffn_ln_kernel,
        out_shape=jax.ShapeDtypeStruct((M, D), jnp.bfloat16),
        grid=(pl.cdiv(M, TM),),
        in_specs=[
            pl.BlockSpec((TM, D), lambda i: (i, 0)),           # activations (bf16, tiled)
            resident((D, F)),                                  # w1 (bf16)
            resident((1, F)),
            resident((F, D)),                                  # w2 (bf16)
            resident((1, D)),
            resident((1, D)),                                  # LN gamma
            resident((1, D)),                                  # LN beta
        ],
        out_specs=pl.BlockSpec((TM, D), lambda i: (i, 0)),
        compiler_params=pltpu.CompilerParams(
            dimension_semantics=("parallel",),
            vmem_limit_bytes=vmem),
        cost_estimate=cost,
    )(x2d, w1, b1.reshape(1, F), w2, b2.reshape(1, D),
      gamma.reshape(1, D), beta.reshape(1, D))


def layer_norm(x2d, gamma, beta):
    M, D = x2d.shape
    TM = _tile(M, 512)
    return pl.pallas_call(
        _ln_kernel,
        out_shape=jax.ShapeDtypeStruct((M, D), jnp.float32),
        grid=(pl.cdiv(M, TM),),
        in_specs=[
            pl.BlockSpec((TM, D), lambda i: (i, 0)),
            pl.BlockSpec((1, D), lambda i: (0, 0), pipeline_mode=pl.Buffered(1)),
            pl.BlockSpec((1, D), lambda i: (0, 0), pipeline_mode=pl.Buffered(1)),
        ],
        out_specs=pl.BlockSpec((TM, D), lambda i: (i, 0)),
        compiler_params=pltpu.CompilerParams(dimension_semantics=("parallel",)),
    )(x2d, gamma.reshape(1, D), beta.reshape(1, D))


# --------------------------------------------------------------------------
# Decoder composition (3 pallas_calls per layer + final LN)
# --------------------------------------------------------------------------

def decoder_forward(params, x, enc_output, src_mask=None, tgt_mask=None, *,
                    n_heads, causal_tgt=False):
    B, S, D = x.shape
    x = x.astype(jnp.bfloat16)                      # bf16 activation stream between kernels
    enc_bf16 = enc_output.astype(jnp.bfloat16)
    for p in params["layers"]:
        x = fused_mha_ln(p["self_attn"], x, x, tgt_mask,
                         p["norm1_g"], p["norm1_b"], n_heads, causal=causal_tgt)
        x = fused_mha_ln(p["enc_attn"], x, enc_bf16, src_mask,
                         p["norm2_g"], p["norm2_b"], n_heads)
        x = ffn_ln(x.reshape(B * S, D), p["ff_w1"], p["ff_b1"],
                   p["ff_w2"], p["ff_b2"],
                   p["norm3_g"], p["norm3_b"]).reshape(B, S, D)
    return layer_norm(x.reshape(B * S, D),
                      params["norm_g"], params["norm_b"]).reshape(B, S, D)


# --------------------------------------------------------------------------
# Deterministic parameter init (nn.Linear-style; matmul weights stored in bf16;
# 1/sqrt(d_k) folded into the Q projection)
# --------------------------------------------------------------------------

def init_linear(key, fan_in, fan_out):
    kw, kb = jax.random.split(key)
    bound = 1.0 / math.sqrt(fan_in)
    w = jax.random.uniform(kw, (fan_in, fan_out), jnp.float32, -bound, bound)
    b = jax.random.uniform(kb, (fan_out,), jnp.float32, -bound, bound)
    return w, b


def init_mha(key, d_model, n_heads):
    ks = jax.random.split(key, 4)
    wq, bq = init_linear(ks[0], d_model, d_model)
    wk, bk = init_linear(ks[1], d_model, d_model)
    wv, bv = init_linear(ks[2], d_model, d_model)
    wo, bo = init_linear(ks[3], d_model, d_model)
    scale = 1.0 / math.sqrt(d_model // n_heads)     # folded into the Q projection
    return dict(
        wq=(wq * scale).astype(jnp.bfloat16), bq=bq * scale,
        wkv=jnp.concatenate([wk, wv], axis=1).astype(jnp.bfloat16),
        bkv=jnp.concatenate([bk, bv], axis=0),
        wo=wo.astype(jnp.bfloat16), bo=bo,
    )


def init_decoder(key, d_model, n_heads, d_ff, n_layers):
    layers = []
    for _ in range(n_layers):
        key, k1, k2, k3, k4 = jax.random.split(key, 5)
        w1, b1 = init_linear(k3, d_model, d_ff)
        w2, b2 = init_linear(k4, d_ff, d_model)
        layers.append(dict(
            self_attn=init_mha(k1, d_model, n_heads),
            enc_attn=init_mha(k2, d_model, n_heads),
            ff_w1=w1.astype(jnp.bfloat16), ff_b1=b1,
            ff_w2=w2.astype(jnp.bfloat16), ff_b2=b2,
            norm1_g=jnp.ones((d_model,), jnp.float32),
            norm1_b=jnp.zeros((d_model,), jnp.float32),
            norm2_g=jnp.ones((d_model,), jnp.float32),
            norm2_b=jnp.zeros((d_model,), jnp.float32),
            norm3_g=jnp.ones((d_model,), jnp.float32),
            norm3_b=jnp.zeros((d_model,), jnp.float32),
        ))
    return dict(layers=layers,
                norm_g=jnp.ones((d_model,), jnp.float32),
                norm_b=jnp.zeros((d_model,), jnp.float32))


# --------------------------------------------------------------------------
# Pure-JAX reference (same forward semantics; mirrors the bf16 MXU-operand casts
# and bf16 inter-block activation carry so the kernels are checked tightly)
# --------------------------------------------------------------------------

def _ref_ln(z, g, b):
    mu = z.mean(-1, keepdims=True)
    var = ((z - mu) ** 2).mean(-1, keepdims=True)
    return (z - mu) / jnp.sqrt(var + 1e-5) * g + b


def _ref_mha_ln(p, xq_bf, xkv_bf, mask, g, b, n_heads, causal):
    B, Sq, D = xq_bf.shape
    Sk = xkv_bf.shape[1]
    dk = D // n_heads
    q = jnp.dot(xq_bf, p["wq"], preferred_element_type=jnp.float32) + p["bq"]
    kv = jnp.dot(xkv_bf, p["wkv"], preferred_element_type=jnp.float32) + p["bkv"]
    k, v = kv[..., :D], kv[..., D:]
    q = q.reshape(B, Sq, n_heads, dk).transpose(0, 2, 1, 3)
    k = k.reshape(B, Sk, n_heads, dk).transpose(0, 2, 1, 3)
    v = v.reshape(B, Sk, n_heads, dk).transpose(0, 2, 1, 3)
    s = jnp.einsum("bhqd,bhkd->bhqk", q, k)   # 1/sqrt(dk) already folded into wq/bq
    if causal:
        cm = jnp.tril(jnp.ones((Sq, Sk), jnp.float32))
        s = jnp.where(cm[None, None] == 0, -1e9, s)
    elif mask is not None:
        s = jnp.where(mask == 0, -1e9, s)
    a = jax.nn.softmax(s, axis=-1)
    ctx = jnp.einsum("bhqk,bhkd->bhqd", a, v).transpose(0, 2, 1, 3).reshape(B, Sq, D)
    out = jnp.dot(ctx.astype(jnp.bfloat16), p["wo"],
                  preferred_element_type=jnp.float32) + p["bo"]
    z = xq_bf.astype(jnp.float32) + out
    return _ref_ln(z, g, b).astype(jnp.bfloat16)


def _ref_ffn_ln(x_bf, w1, b1, w2, b2, g, b):
    h = jnp.maximum(jnp.dot(x_bf, w1, preferred_element_type=jnp.float32) + b1, 0.0)
    y = jnp.dot(h.astype(jnp.bfloat16), w2, preferred_element_type=jnp.float32) + b2
    z = x_bf.astype(jnp.float32) + y
    return _ref_ln(z, g, b).astype(jnp.bfloat16)


def _ref_decoder(params, x, enc, src_mask, tgt_mask, n_heads, causal_tgt):
    x = x.astype(jnp.bfloat16)
    enc = enc.astype(jnp.bfloat16)
    for p in params["layers"]:
        x = _ref_mha_ln(p["self_attn"], x, x, tgt_mask,
                        p["norm1_g"], p["norm1_b"], n_heads, causal_tgt)
        x = _ref_mha_ln(p["enc_attn"], x, enc, src_mask,
                        p["norm2_g"], p["norm2_b"], n_heads, False)
        x = _ref_ffn_ln(x, p["ff_w1"], p["ff_b1"], p["ff_w2"], p["ff_b2"],
                        p["norm3_g"], p["norm3_b"])
    return _ref_ln(x.astype(jnp.float32), params["norm_g"], params["norm_b"])


# --------------------------------------------------------------------------
# Main
# --------------------------------------------------------------------------

if __name__ == "__main__":
    # Small-but-consistent hyperparameters (the Decoder module is fully parameterized;
    # production sizes are d_model=512, n_heads=8, d_ff=2048, n_layers=6).
    d_model, n_heads, d_ff, n_layers = 128, 4, 256, 2
    B, S_tgt, S_src = 2, 8, 16

    key = jax.random.PRNGKey(0)
    k_params, k_x, k_enc = jax.random.split(key, 3)

    params = init_decoder(k_params, d_model, n_heads, d_ff, n_layers)
    x = jax.random.normal(k_x, (B, S_tgt, d_model), jnp.float32)
    enc_output = jax.random.normal(k_enc, (B, S_src, d_model), jnp.float32)

    # Causal target mask is generated inside the kernel (causal_tgt=True); src_mask=None.
    fwd = jax.jit(decoder_forward, static_argnames=("n_heads", "causal_tgt"))
    out = jax.block_until_ready(
        fwd(params, x, enc_output, None, None, n_heads=n_heads, causal_tgt=True))

    ref = _ref_decoder(params, x, enc_output, None, None, n_heads, True)

    assert out.shape == (B, S_tgt, d_model)
    assert out.dtype == jnp.float32
    # Kernel and reference both use bf16 MXU operands and a bf16 inter-block activation
    # stream, so they can be compared at moderately tight tolerance.
    assert jnp.allclose(out, ref, atol=3e-2, rtol=3e-2), float(jnp.max(jnp.abs(out - ref)))
    print("KERNEL_OK")
</pallas_src>

<mosaic_0001>
module attributes {stable_mosaic.version = 11 : i64} {
  func.func @_mha_ln_kernel(%arg0: i32, %arg1: i32, %arg2: memref<1x8x128xbf16, #tpu.memory_space<vmem>>, %arg3: memref<1x8x128xbf16, #tpu.memory_space<vmem>>, %arg4: memref<128x128xbf16, #tpu.memory_space<vmem>>, %arg5: memref<1x128xf32, #tpu.memory_space<vmem>>, %arg6: memref<128x256xbf16, #tpu.memory_space<vmem>>, %arg7: memref<1x256xf32, #tpu.memory_space<vmem>>, %arg8: memref<128x128xbf16, #tpu.memory_space<vmem>>, %arg9: memref<1x128xf32, #tpu.memory_space<vmem>>, %arg10: memref<1x128xf32, #tpu.memory_space<vmem>>, %arg11: memref<1x128xf32, #tpu.memory_space<vmem>>, %arg12: memref<1x8x128xbf16, #tpu.memory_space<vmem>>) attributes {dimension_semantics = [#tpu.dimension_semantics<parallel>, #tpu.dimension_semantics<parallel>], iteration_bounds = array<i64: 2, 1>, scalar_prefetch = 0 : i64, scratch_operands = 0 : i64, tpu.core_type = #tpu.core_type<tc>, window_params = [{transform_indices = @transform_0, window_bounds = array<i64: 1, 8, 128>}, {transform_indices = @transform_1, window_bounds = array<i64: 1, 8, 128>}, {pipeline_mode = #tpu.pipeline_mode<synchronous>, transform_indices = @transform_2, window_bounds = array<i64: 128, 128>}, {pipeline_mode = #tpu.pipeline_mode<synchronous>, transform_indices = @transform_3, window_bounds = array<i64: 1, 128>}, {pipeline_mode = #tpu.pipeline_mode<synchronous>, transform_indices = @transform_4, window_bounds = array<i64: 128, 256>}, {pipeline_mode = #tpu.pipeline_mode<synchronous>, transform_indices = @transform_5, window_bounds = array<i64: 1, 256>}, {pipeline_mode = #tpu.pipeline_mode<synchronous>, transform_indices = @transform_6, window_bounds = array<i64: 128, 128>}, {pipeline_mode = #tpu.pipeline_mode<synchronous>, transform_indices = @transform_7, window_bounds = array<i64: 1, 128>}, {pipeline_mode = #tpu.pipeline_mode<synchronous>, transform_indices = @transform_8, window_bounds = array<i64: 1, 128>}, {pipeline_mode = #tpu.pipeline_mode<synchronous>, transform_indices = @transform_9, window_bounds = array<i64: 1, 128>}, {transform_indices = @transform_10, window_bounds = array<i64: 1, 8, 128>}]} {
    %c0 = arith.constant 0 : index
    %c0_0 = arith.constant 0 : index
    %c0_1 = arith.constant 0 : index
    %0 = vector.load %arg2[%c0, %c0_0, %c0_1] : memref<1x8x128xbf16, #tpu.memory_space<vmem>>, vector<1x8x128xbf16>
    %1 = vector.shape_cast %0 : vector<1x8x128xbf16> to vector<8x128xbf16>
    %c0_2 = arith.constant 0 : index
    %c0_3 = arith.constant 0 : index
    %c0_4 = arith.constant 0 : index
    %2 = vector.load %arg3[%c0_2, %c0_3, %c0_4] : memref<1x8x128xbf16, #tpu.memory_space<vmem>>, vector<1x8x128xbf16>
    %3 = vector.shape_cast %2 : vector<1x8x128xbf16> to vector<8x128xbf16>
    %c0_5 = arith.constant 0 : index
    %c0_6 = arith.constant 0 : index
    %4 = vector.load %arg4[%c0_5, %c0_6] : memref<128x128xbf16, #tpu.memory_space<vmem>>, vector<128x128xbf16>
    %cst = arith.constant dense<0.000000e+00> : vector<8x128xf32>
    %5 = tpu.matmul %1, %4, %cst {dimension_numbers = #tpu.dot_dimension_numbers<[1], [0], [0], [1], [0, 0, 1, 1], [], []>} : vector<8x128xbf16>, vector<128x128xbf16>, vector<8x128xf32> -> vector<8x128xf32>
    %c0_7 = arith.constant 0 : index
    %c0_8 = arith.constant 0 : index
    %6 = vector.load %arg5[%c0_7, %c0_8] : memref<1x128xf32, #tpu.memory_space<vmem>>, vector<1x128xf32>
    %7 = vector.broadcast %6 : vector<1x128xf32> to vector<8x128xf32>
    %8 = arith.addf %5, %7 : vector<8x128xf32>
    %c0_9 = arith.constant 0 : index
    %c0_10 = arith.constant 0 : index
    %9 = vector.load %arg6[%c0_9, %c0_10] : memref<128x256xbf16, #tpu.memory_space<vmem>>, vector<128x256xbf16>
    %cst_11 = arith.constant dense<0.000000e+00> : vector<8x256xf32>
    %10 = tpu.matmul %3, %9, %cst_11 {dimension_numbers = #tpu.dot_dimension_numbers<[1], [0], [0], [1], [0, 0, 1, 1], [], []>} : vector<8x128xbf16>, vector<128x256xbf16>, vector<8x256xf32> -> vector<8x256xf32>
    %c0_12 = arith.constant 0 : index
    %c0_13 = arith.constant 0 : index
    %11 = vector.load %arg7[%c0_12, %c0_13] : memref<1x256xf32, #tpu.memory_space<vmem>>, vector<1x256xf32>
    %12 = vector.broadcast %11 : vector<1x256xf32> to vector<8x256xf32>
    %13 = arith.addf %10, %12 : vector<8x256xf32>
    %14 = vector.shape_cast %8 : vector<8x128xf32> to vector<8x4x32xf32>
    %15 = vector.extract_strided_slice %13 {offsets = [0, 0], sizes = [8, 128], strides = [1, 1]} : vector<8x256xf32> to vector<8x128xf32>
    %16 = vector.shape_cast %15 : vector<8x128xf32> to vector<8x4x32xf32>
    %17 = vector.extract_strided_slice %13 {offsets = [0, 128], sizes = [8, 128], strides = [1, 1]} : vector<8x256xf32> to vector<8x128xf32>
    %18 = vector.shape_cast %17 : vector<8x128xf32> to vector<8x4x32xf32>
    "tpu.trace_start"() <{level = 10 : i32, message = "qhd,khd->hqk"}> : () -> ()
    %cst_14 = arith.constant dense<0.000000e+00> : vector<4x8x8xf32>
    %19 = tpu.matmul %14, %16, %cst_14 {dimension_numbers = #tpu.dot_dimension_numbers<[2], [2], [0], [0], [0, 1, 0, 0, 1, 0], [1], [1]>} : vector<8x4x32xf32>, vector<8x4x32xf32>, vector<4x8x8xf32> -> vector<4x8x8xf32>
    "tpu.trace_stop"() : () -> ()
    %c8_i32 = arith.constant 8 : i32
    %20 = arith.muli %arg1, %c8_i32 : i32
    %21 = tpu.iota {dimensions = array<i32: 0>} : vector<8x8xi32>
    %22 = vector.broadcast %20 : i32 to vector<8x8xi32>
    %23 = arith.addi %22, %21 : vector<8x8xi32>
    %24 = tpu.iota {dimensions = array<i32: 1>} : vector<8x8xi32>
    %25 = arith.cmpi sgt, %24, %23 : vector<8x8xi32>
    %26 = vector.shape_cast %25 : vector<8x8xi1> to vector<1x8x8xi1>
    %cst_15 = arith.constant -1.000000e+09 : f32
    %27 = vector.shape_cast %26 : vector<1x8x8xi1> to vector<1x8x8xi1>
    %28 = vector.broadcast %27 : vector<1x8x8xi1> to vector<4x8x8xi1>
    %29 = vector.broadcast %cst_15 : f32 to vector<4x8x8xf32>
    %30 = arith.select %28, %29, %19 : vector<4x8x8xi1>, vector<4x8x8xf32>
    %cst_16 = arith.constant dense<0xFF800000> : vector<4x8xf32>
    %31 = vector.multi_reduction <maximumf>, %30, %cst_16 [2] : vector<4x8x8xf32> to vector<4x8xf32>
    %32 = vector.shape_cast %31 : vector<4x8xf32> to vector<4x8x1xf32>
    %33 = vector.broadcast %32 : vector<4x8x1xf32> to vector<4x8x8xf32>
    %34 = arith.subf %30, %33 : vector<4x8x8xf32>
    %35 = math.exp %34 : vector<4x8x8xf32>
    %cst_17 = arith.constant dense<0.000000e+00> : vector<4x8xf32>
    %36 = vector.multi_reduction <add>, %35, %cst_17 [2] : vector<4x8x8xf32> to vector<4x8xf32>
    %37 = vector.shape_cast %36 : vector<4x8xf32> to vector<4x8x1xf32>
    %38 = vector.broadcast %37 : vector<4x8x1xf32> to vector<4x8x8xf32>
    %39 = arith.divf %35, %38 : vector<4x8x8xf32>
    "tpu.trace_start"() <{level = 10 : i32, message = "hqk,khd->qhd"}> : () -> ()
    %cst_18 = arith.constant dense<0.000000e+00> : vector<4x32x8xf32>
    %40 = tpu.matmul %18, %39, %cst_18 {dimension_numbers = #tpu.dot_dimension_numbers<[0], [2], [2], [1], [0, 1, 0, 2, 1, 1], [1], [0]>} : vector<8x4x32xf32>, vector<4x8x8xf32>, vector<4x32x8xf32> -> vector<4x32x8xf32>
    %41 = tpu.transpose %40, [2, 0, 1] : vector<4x32x8xf32> -> vector<8x4x32xf32>
    "tpu.trace_stop"() : () -> ()
    %42 = vector.shape_cast %41 : vector<8x4x32xf32> to vector<8x128xf32>
    %43 = arith.truncf %42 : vector<8x128xf32> to vector<8x128xbf16>
    %c0_19 = arith.constant 0 : index
    %c0_20 = arith.constant 0 : index
    %44 = vector.load %arg8[%c0_19, %c0_20] : memref<128x128xbf16, #tpu.memory_space<vmem>>, vector<128x128xbf16>
    %cst_21 = arith.constant dense<0.000000e+00> : vector<8x128xf32>
    %45 = tpu.matmul %43, %44, %cst_21 {dimension_numbers = #tpu.dot_dimension_numbers<[1], [0], [0], [1], [0, 0, 1, 1], [], []>} : vector<8x128xbf16>, vector<128x128xbf16>, vector<8x128xf32> -> vector<8x128xf32>
    %c0_22 = arith.constant 0 : index
    %c0_23 = arith.constant 0 : index
    %46 = vector.load %arg9[%c0_22, %c0_23] : memref<1x128xf32, #tpu.memory_space<vmem>>, vector<1x128xf32>
    %47 = vector.broadcast %46 : vector<1x128xf32> to vector<8x128xf32>
    %48 = arith.addf %45, %47 : vector<8x128xf32>
    %49 = arith.extf %1 : vector<8x128xbf16> to vector<8x128xf32>
    %50 = arith.addf %49, %48 : vector<8x128xf32>
    %cst_24 = arith.constant dense<0.000000e+00> : vector<8xf32>
    %51 = vector.multi_reduction <add>, %50, %cst_24 [1] : vector<8x128xf32> to vector<8xf32>
    %52 = vector.shape_cast %51 : vector<8xf32> to vector<8x1xf32>
    %cst_25 = arith.constant 1.280000e+02 : f32
    %53 = vector.broadcast %cst_25 : f32 to vector<8x1xf32>
    %54 = arith.divf %52, %53 : vector<8x1xf32>
    %55 = vector.broadcast %54 : vector<8x1xf32> to vector<8x128xf32>
    %56 = arith.subf %50, %55 : vector<8x128xf32>
    %57 = arith.mulf %56, %56 : vector<8x128xf32>
    %cst_26 = arith.constant dense<0.000000e+00> : vector<8xf32>
    %58 = vector.multi_reduction <add>, %57, %cst_26 [1] : vector<8x128xf32> to vector<8xf32>
    %59 = vector.shape_cast %58 : vector<8xf32> to vector<8x1xf32>
    %cst_27 = arith.constant 1.280000e+02 : f32
    %60 = vector.broadcast %cst_27 : f32 to vector<8x1xf32>
    %61 = arith.divf %59, %60 : vector<8x1xf32>
    %62 = vector.broadcast %54 : vector<8x1xf32> to vector<8x128xf32>
    %63 = arith.subf %50, %62 : vector<8x128xf32>
    %cst_28 = arith.constant 9.99999974E-6 : f32
    %64 = vector.broadcast %cst_28 : f32 to vector<8x1xf32>
    %65 = arith.addf %61, %64 : vector<8x1xf32>
    %66 = math.rsqrt %65 : vector<8x1xf32>
    %67 = vector.broadcast %66 : vector<8x1xf32> to vector<8x128xf32>
    %68 = arith.mulf %63, %67 : vector<8x128xf32>
    %c0_29 = arith.constant 0 : index
    %c0_30 = arith.constant 0 : index
    %69 = vector.load %arg10[%c0_29, %c0_30] : memref<1x128xf32, #tpu.memory_space<vmem>>, vector<1x128xf32>
    %70 = vector.broadcast %69 : vector<1x128xf32> to vector<8x128xf32>
    %71 = arith.mulf %68, %70 : vector<8x128xf32>
    %c0_31 = arith.constant 0 : index
    %c0_32 = arith.constant 0 : index
    %72 = vector.load %arg11[%c0_31, %c0_32] : memref<1x128xf32, #tpu.memory_space<vmem>>, vector<1x128xf32>
    %73 = vector.broadcast %72 : vector<1x128xf32> to vector<8x128xf32>
    %74 = arith.addf %71, %73 : vector<8x128xf32>
    %75 = arith.truncf %74 : vector<8x128xf32> to vector<8x128xbf16>
    %c0_33 = arith.constant 0 : index
    %c0_34 = arith.constant 0 : index
    %c0_35 = arith.constant 0 : index
    %76 = vector.load %arg12[%c0_33, %c0_34, %c0_35] : memref<1x8x128xbf16, #tpu.memory_space<vmem>>, vector<1x8x128xbf16>
    %77 = vector.shape_cast %76 : vector<1x8x128xbf16> to vector<8x128xbf16>
    %78 = vector.shape_cast %75 : vector<8x128xbf16> to vector<1x8x128xbf16>
    tpu.vector_store %arg12[%c0_33, %c0_34, %c0_35], %78 {strides = array<i32>} : memref<1x8x128xbf16, #tpu.memory_space<vmem>>, vector<1x8x128xbf16>,
    return
  }
  func.func @transform_0(%arg0: i32, %arg1: i32) -> (i32, i32, i32) {
    %c0_i32 = arith.constant 0 : i32
    %c0_i32_0 = arith.constant 0 : i32
    return %arg0, %arg1, %c0_i32 : i32, i32, i32
  }
  func.func @transform_1(%arg0: i32, %arg1: i32) -> (i32, i32, i32) {
    %c0_i32 = arith.constant 0 : i32
    %c0_i32_0 = arith.constant 0 : i32
    %c0_i32_1 = arith.constant 0 : i32
    return %arg0, %c0_i32, %c0_i32_0 : i32, i32, i32
  }
  func.func @transform_2(%arg0: i32, %arg1: i32) -> (i32, i32) {
    %c0_i32 = arith.constant 0 : i32
    %c0_i32_0 = arith.constant 0 : i32
    %c0_i32_1 = arith.constant 0 : i32
    return %c0_i32, %c0_i32_0 : i32, i32
  }
  func.func @transform_3(%arg0: i32, %arg1: i32) -> (i32, i32) {
    %c0_i32 = arith.constant 0 : i32
    %c0_i32_0 = arith.constant 0 : i32
    %c0_i32_1 = arith.constant 0 : i32
    return %c0_i32, %c0_i32_0 : i32, i32
  }
  func.func @transform_4(%arg0: i32, %arg1: i32) -> (i32, i32) {
    %c0_i32 = arith.constant 0 : i32
    %c0_i32_0 = arith.constant 0 : i32
    %c0_i32_1 = arith.constant 0 : i32
    return %c0_i32, %c0_i32_0 : i32, i32
  }
  func.func @transform_5(%arg0: i32, %arg1: i32) -> (i32, i32) {
    %c0_i32 = arith.constant 0 : i32
    %c0_i32_0 = arith.constant 0 : i32
    %c0_i32_1 = arith.constant 0 : i32
    return %c0_i32, %c0_i32_0 : i32, i32
  }
  func.func @transform_6(%arg0: i32, %arg1: i32) -> (i32, i32) {
    %c0_i32 = arith.constant 0 : i32
    %c0_i32_0 = arith.constant 0 : i32
    %c0_i32_1 = arith.constant 0 : i32
    return %c0_i32, %c0_i32_0 : i32, i32
  }
  func.func @transform_7(%arg0: i32, %arg1: i32) -> (i32, i32) {
    %c0_i32 = arith.constant 0 : i32
    %c0_i32_0 = arith.constant 0 : i32
    %c0_i32_1 = arith.constant 0 : i32
    return %c0_i32, %c0_i32_0 : i32, i32
  }
  func.func @transform_8(%arg0: i32, %arg1: i32) -> (i32, i32) {
    %c0_i32 = arith.constant 0 : i32
    %c0_i32_0 = arith.constant 0 : i32
    %c0_i32_1 = arith.constant 0 : i32
    return %c0_i32, %c0_i32_0 : i32, i32
  }
  func.func @transform_9(%arg0: i32, %arg1: i32) -> (i32, i32) {
    %c0_i32 = arith.constant 0 : i32
    %c0_i32_0 = arith.constant 0 : i32
    %c0_i32_1 = arith.constant 0 : i32
    return %c0_i32, %c0_i32_0 : i32, i32
  }
  func.func @transform_10(%arg0: i32, %arg1: i32) -> (i32, i32, i32) {
    %c0_i32 = arith.constant 0 : i32
    %c0_i32_0 = arith.constant 0 : i32
    return %arg0, %arg1, %c0_i32 : i32, i32, i32
  }
}

module attributes {stable_mosaic.version = 11 : i64} {
  func.func @_mha_ln_kernel(%arg0: i32, %arg1: i32, %arg2: memref<1x8x128xbf16, #tpu.memory_space<vmem>>, %arg3: memref<1x16x128xbf16, #tpu.memory_space<vmem>>, %arg4: memref<128x128xbf16, #tpu.memory_space<vmem>>, %arg5: memref<1x128xf32, #tpu.memory_space<vmem>>, %arg6: memref<128x256xbf16, #tpu.memory_space<vmem>>, %arg7: memref<1x256xf32, #tpu.memory_space<vmem>>, %arg8: memref<128x128xbf16, #tpu.memory_space<vmem>>, %arg9: memref<1x128xf32, #tpu.memory_space<vmem>>, %arg10: memref<1x128xf32, #tpu.memory_space<vmem>>, %arg11: memref<1x128xf32, #tpu.memory_space<vmem>>, %arg12: memref<1x8x128xbf16, #tpu.memory_space<vmem>>) attributes {dimension_semantics = [#tpu.dimension_semantics<parallel>, #tpu.dimension_semantics<parallel>], iteration_bounds = array<i64: 2, 1>, scalar_prefetch = 0 : i64, scratch_operands = 0 : i64, tpu.core_type = #tpu.core_type<tc>, window_params = [{transform_indices = @transform_0, window_bounds = array<i64: 1, 8, 128>}, {transform_indices = @transform_1, window_bounds = array<i64: 1, 16, 128>}, {pipeline_mode = #tpu.pipeline_mode<synchronous>, transform_indices = @transform_2, window_bounds = array<i64: 128, 128>}, {pipeline_mode = #tpu.pipeline_mode<synchronous>, transform_indices = @transform_3, window_bounds = array<i64: 1, 128>}, {pipeline_mode = #tpu.pipeline_mode<synchronous>, transform_indices = @transform_4, window_bounds = array<i64: 128, 256>}, {pipeline_mode = #tpu.pipeline_mode<synchronous>, transform_indices = @transform_5, window_bounds = array<i64: 1, 256>}, {pipeline_mode = #tpu.pipeline_mode<synchronous>, transform_indices = @transform_6, window_bounds = array<i64: 128, 128>}, {pipeline_mode = #tpu.pipeline_mode<synchronous>, transform_indices = @transform_7, window_bounds = array<i64: 1, 128>}, {pipeline_mode = #tpu.pipeline_mode<synchronous>, transform_indices = @transform_8, window_bounds = array<i64: 1, 128>}, {pipeline_mode = #tpu.pipeline_mode<synchronous>, transform_indices = @transform_9, window_bounds = array<i64: 1, 128>}, {transform_indices = @transform_10, window_bounds = array<i64: 1, 8, 128>}]} {
    %c0 = arith.constant 0 : index
    %c0_0 = arith.constant 0 : index
    %c0_1 = arith.constant 0 : index
    %0 = vector.load %arg2[%c0, %c0_0, %c0_1] : memref<1x8x128xbf16, #tpu.memory_space<vmem>>, vector<1x8x128xbf16>
    %1 = vector.shape_cast %0 : vector<1x8x128xbf16> to vector<8x128xbf16>
    %c0_2 = arith.constant 0 : index
    %c0_3 = arith.constant 0 : index
    %c0_4 = arith.constant 0 : index
    %2 = vector.load %arg3[%c0_2, %c0_3, %c0_4] : memref<1x16x128xbf16, #tpu.memory_space<vmem>>, vector<1x16x128xbf16>
    %3 = vector.shape_cast %2 : vector<1x16x128xbf16> to vector<16x128xbf16>
    %c0_5 = arith.constant 0 : index
    %c0_6 = arith.constant 0 : index
    %4 = vector.load %arg4[%c0_5, %c0_6] : memref<128x128xbf16, #tpu.memory_space<vmem>>, vector<128x128xbf16>
    %cst = arith.constant dense<0.000000e+00> : vector<8x128xf32>
    %5 = tpu.matmul %1, %4, %cst {dimension_numbers = #tpu.dot_dimension_numbers<[1], [0], [0], [1], [0, 0, 1, 1], [], []>} : vector<8x128xbf16>, vector<128x128xbf16>, vector<8x128xf32> -> vector<8x128xf32>
    %c0_7 = arith.constant 0 : index
    %c0_8 = arith.constant 0 : index
    %6 = vector.load %arg5[%c0_7, %c0_8] : memref<1x128xf32, #tpu.memory_space<vmem>>, vector<1x128xf32>
    %7 = vector.broadcast %6 : vector<1x128xf32> to vector<8x128xf32>
    %8 = arith.addf %5, %7 : vector<8x128xf32>
    %c0_9 = arith.constant 0 : index
    %c0_10 = arith.constant 0 : index
    %9 = vector.load %arg6[%c0_9, %c0_10] : memref<128x256xbf16, #tpu.memory_space<vmem>>, vector<128x256xbf16>
    %cst_11 = arith.constant dense<0.000000e+00> : vector<16x256xf32>
    %10 = tpu.matmul %3, %9, %cst_11 {dimension_numbers = #tpu.dot_dimension_numbers<[1], [0], [0], [1], [0, 0, 1, 1], [], []>} : vector<16x128xbf16>, vector<128x256xbf16>, vector<16x256xf32> -> vector<16x256xf32>
    %c0_12 = arith.constant 0 : index
    %c0_13 = arith.constant 0 : index
    %11 = vector.load %arg7[%c0_12, %c0_13] : memref<1x256xf32, #tpu.memory_space<vmem>>, vector<1x256xf32>
    %12 = vector.broadcast %11 : vector<1x256xf32> to vector<16x256xf32>
    %13 = arith.addf %10, %12 : vector<16x256xf32>
    %14 = vector.shape_cast %8 : vector<8x128xf32> to vector<8x4x32xf32>
    %15 = vector.extract_strided_slice %13 {offsets = [0, 0], sizes = [16, 128], strides = [1, 1]} : vector<16x256xf32> to vector<16x128xf32>
    %16 = vector.shape_cast %15 : vector<16x128xf32> to vector<16x4x32xf32>
    %17 = vector.extract_strided_slice %13 {offsets = [0, 128], sizes = [16, 128], strides = [1, 1]} : vector<16x256xf32> to vector<16x128xf32>
    %18 = vector.shape_cast %17 : vector<16x128xf32> to vector<16x4x32xf32>
    "tpu.trace_start"() <{level = 10 : i32, message = "qhd,khd->hqk"}> : () -> ()
    %cst_14 = arith.constant dense<0.000000e+00> : vector<4x8x16xf32>
    %19 = tpu.matmul %14, %16, %cst_14 {dimension_numbers = #tpu.dot_dimension_numbers<[2], [2], [0], [0], [0, 1, 0, 0, 1, 0], [1], [1]>} : vector<8x4x32xf32>, vector<16x4x32xf32>, vector<4x8x16xf32> -> vector<4x8x16xf32>
    "tpu.trace_stop"() : () -> ()
    %cst_15 = arith.constant dense<0xFF800000> : vector<4x8xf32>
    %20 = vector.multi_reduction <maximumf>, %19, %cst_15 [2] : vector<4x8x16xf32> to vector<4x8xf32>
    %21 = vector.shape_cast %20 : vector<4x8xf32> to vector<4x8x1xf32>
    %22 = vector.broadcast %21 : vector<4x8x1xf32> to vector<4x8x16xf32>
    %23 = arith.subf %19, %22 : vector<4x8x16xf32>
    %24 = math.exp %23 : vector<4x8x16xf32>
    %cst_16 = arith.constant dense<0.000000e+00> : vector<4x8xf32>
    %25 = vector.multi_reduction <add>, %24, %cst_16 [2] : vector<4x8x16xf32> to vector<4x8xf32>
    %26 = vector.shape_cast %25 : vector<4x8xf32> to vector<4x8x1xf32>
    %27 = vector.broadcast %26 : vector<4x8x1xf32> to vector<4x8x16xf32>
    %28 = arith.divf %24, %27 : vector<4x8x16xf32>
    "tpu.trace_start"() <{level = 10 : i32, message = "hqk,khd->qhd"}> : () -> ()
    %cst_17 = arith.constant dense<0.000000e+00> : vector<4x32x8xf32>
    %29 = tpu.matmul %18, %28, %cst_17 {dimension_numbers = #tpu.dot_dimension_numbers<[0], [2], [2], [1], [0, 1, 0, 2, 1, 1], [1], [0]>} : vector<16x4x32xf32>, vector<4x8x16xf32>, vector<4x32x8xf32> -> vector<4x32x8xf32>
    %30 = tpu.transpose %29, [2, 0, 1] : vector<4x32x8xf32> -> vector<8x4x32xf32>
    "tpu.trace_stop"() : () -> ()
    %31 = vector.shape_cast %30 : vector<8x4x32xf32> to vector<8x128xf32>
    %32 = arith.truncf %31 : vector<8x128xf32> to vector<8x128xbf16>
    %c0_18 = arith.constant 0 : index
    %c0_19 = arith.constant 0 : index
    %33 = vector.load %arg8[%c0_18, %c0_19] : memref<128x128xbf16, #tpu.memory_space<vmem>>, vector<128x128xbf16>
    %cst_20 = arith.constant dense<0.000000e+00> : vector<8x128xf32>
    %34 = tpu.matmul %32, %33, %cst_20 {dimension_numbers = #tpu.dot_dimension_numbers<[1], [0], [0], [1], [0, 0, 1, 1], [], []>} : vector<8x128xbf16>, vector<128x128xbf16>, vector<8x128xf32> -> vector<8x128xf32>
    %c0_21 = arith.constant 0 : index
    %c0_22 = arith.constant 0 : index
    %35 = vector.load %arg9[%c0_21, %c0_22] : memref<1x128xf32, #tpu.memory_space<vmem>>, vector<1x128xf32>
    %36 = vector.broadcast %35 : vector<1x128xf32> to vector<8x128xf32>
    %37 = arith.addf %34, %36 : vector<8x128xf32>
    %38 = arith.extf %1 : vector<8x128xbf16> to vector<8x128xf32>
    %39 = arith.addf %38, %37 : vector<8x128xf32>
    %cst_23 = arith.constant dense<0.000000e+00> : vector<8xf32>
    %40 = vector.multi_reduction <add>, %39, %cst_23 [1] : vector<8x128xf32> to vector<8xf32>
    %41 = vector.shape_cast %40 : vector<8xf32> to vector<8x1xf32>
    %cst_24 = arith.constant 1.280000e+02 : f32
    %42 = vector.broadcast %cst_24 : f32 to vector<8x1xf32>
    %43 = arith.divf %41, %42 : vector<8x1xf32>
    %44 = vector.broadcast %43 : vector<8x1xf32> to vector<8x128xf32>
    %45 = arith.subf %39, %44 : vector<8x128xf32>
    %46 = arith.mulf %45, %45 : vector<8x128xf32>
    %cst_25 = arith.constant dense<0.000000e+00> : vector<8xf32>
    %47 = vector.multi_reduction <add>, %46, %cst_25 [1] : vector<8x128xf32> to vector<8xf32>
    %48 = vector.shape_cast %47 : vector<8xf32> to vector<8x1xf32>
    %cst_26 = arith.constant 1.280000e+02 : f32
    %49 = vector.broadcast %cst_26 : f32 to vector<8x1xf32>
    %50 = arith.divf %48, %49 : vector<8x1xf32>
    %51 = vector.broadcast %43 : vector<8x1xf32> to vector<8x128xf32>
    %52 = arith.subf %39, %51 : vector<8x128xf32>
    %cst_27 = arith.constant 9.99999974E-6 : f32
    %53 = vector.broadcast %cst_27 : f32 to vector<8x1xf32>
    %54 = arith.addf %50, %53 : vector<8x1xf32>
    %55 = math.rsqrt %54 : vector<8x1xf32>
    %56 = vector.broadcast %55 : vector<8x1xf32> to vector<8x128xf32>
    %57 = arith.mulf %52, %56 : vector<8x128xf32>
    %c0_28 = arith.constant 0 : index
    %c0_29 = arith.constant 0 : index
    %58 = vector.load %arg10[%c0_28, %c0_29] : memref<1x128xf32, #tpu.memory_space<vmem>>, vector<1x128xf32>
    %59 = vector.broadcast %58 : vector<1x128xf32> to vector<8x128xf32>
    %60 = arith.mulf %57, %59 : vector<8x128xf32>
    %c0_30 = arith.constant 0 : index
    %c0_31 = arith.constant 0 : index
    %61 = vector.load %arg11[%c0_30, %c0_31] : memref<1x128xf32, #tpu.memory_space<vmem>>, vector<1x128xf32>
    %62 = vector.broadcast %61 : vector<1x128xf32> to vector<8x128xf32>
    %63 = arith.addf %60, %62 : vector<8x128xf32>
    %64 = arith.truncf %63 : vector<8x128xf32> to vector<8x128xbf16>
    %c0_32 = arith.constant 0 : index
    %c0_33 = arith.constant 0 : index
    %c0_34 = arith.constant 0 : index
    %65 = vector.load %arg12[%c0_32, %c0_33, %c0_34] : memref<1x8x128xbf16, #tpu.memory_space<vmem>>, vector<1x8x128xbf16>
    %66 = vector.shape_cast %65 : vector<1x8x128xbf16> to vector<8x128xbf16>
    %67 = vector.shape_cast %64 : vector<8x128xbf16> to vector<1x8x128xbf16>
    tpu.vector_store %arg12[%c0_32, %c0_33, %c0_34], %67 {strides = array<i32>} : memref<1x8x128xbf16, #tpu.memory_space<vmem>>, vector<1x8x128xbf16>,
    return
  }
  func.func @transform_0(%arg0: i32, %arg1: i32) -> (i32, i32, i32) {
    %c0_i32 = arith.constant 0 : i32
    %c0_i32_0 = arith.constant 0 : i32
    return %arg0, %arg1, %c0_i32 : i32, i32, i32
  }
  func.func @transform_1(%arg0: i32, %arg1: i32) -> (i32, i32, i32) {
    %c0_i32 = arith.constant 0 : i32
    %c0_i32_0 = arith.constant 0 : i32
    %c0_i32_1 = arith.constant 0 : i32
    return %arg0, %c0_i32, %c0_i32_0 : i32, i32, i32
  }
  func.func @transform_2(%arg0: i32, %arg1: i32) -> (i32, i32) {
    %c0_i32 = arith.constant 0 : i32
    %c0_i32_0 = arith.constant 0 : i32
    %c0_i32_1 = arith.constant 0 : i32
    return %c0_i32, %c0_i32_0 : i32, i32
  }
  func.func @transform_3(%arg0: i32, %arg1: i32) -> (i32, i32) {
    %c0_i32 = arith.constant 0 : i32
    %c0_i32_0 = arith.constant 0 : i32
    %c0_i32_1 = arith.constant 0 : i32
    return %c0_i32, %c0_i32_0 : i32, i32
  }
  func.func @transform_4(%arg0: i32, %arg1: i32) -> (i32, i32) {
    %c0_i32 = arith.constant 0 : i32
    %c0_i32_0 = arith.constant 0 : i32
    %c0_i32_1 = arith.constant 0 : i32
    return %c0_i32, %c0_i32_0 : i32, i32
  }
  func.func @transform_5(%arg0: i32, %arg1: i32) -> (i32, i32) {
    %c0_i32 = arith.constant 0 : i32
    %c0_i32_0 = arith.constant 0 : i32
    %c0_i32_1 = arith.constant 0 : i32
    return %c0_i32, %c0_i32_0 : i32, i32
  }
  func.func @transform_6(%arg0: i32, %arg1: i32) -> (i32, i32) {
    %c0_i32 = arith.constant 0 : i32
    %c0_i32_0 = arith.constant 0 : i32
    %c0_i32_1 = arith.constant 0 : i32
    return %c0_i32, %c0_i32_0 : i32, i32
  }
  func.func @transform_7(%arg0: i32, %arg1: i32) -> (i32, i32) {
    %c0_i32 = arith.constant 0 : i32
    %c0_i32_0 = arith.constant 0 : i32
    %c0_i32_1 = arith.constant 0 : i32
    return %c0_i32, %c0_i32_0 : i32, i32
  }
  func.func @transform_8(%arg0: i32, %arg1: i32) -> (i32, i32) {
    %c0_i32 = arith.constant 0 : i32
    %c0_i32_0 = arith.constant 0 : i32
    %c0_i32_1 = arith.constant 0 : i32
    return %c0_i32, %c0_i32_0 : i32, i32
  }
  func.func @transform_9(%arg0: i32, %arg1: i32) -> (i32, i32) {
    %c0_i32 = arith.constant 0 : i32
    %c0_i32_0 = arith.constant 0 : i32
    %c0_i32_1 = arith.constant 0 : i32
    return %c0_i32, %c0_i32_0 : i32, i32
  }
  func.func @transform_10(%arg0: i32, %arg1: i32) -> (i32, i32, i32) {
    %c0_i32 = arith.constant 0 : i32
    %c0_i32_0 = arith.constant 0 : i32
    return %arg0, %arg1, %c0_i32 : i32, i32, i32
  }
}

module attributes {stable_mosaic.version = 11 : i64} {
  func.func @_mha_ln_kernel(%arg0: i32, %arg1: i32, %arg2: memref<1x8x128xbf16, #tpu.memory_space<vmem>>, %arg3: memref<1x8x128xbf16, #tpu.memory_space<vmem>>, %arg4: memref<128x128xbf16, #tpu.memory_space<vmem>>, %arg5: memref<1x128xf32, #tpu.memory_space<vmem>>, %arg6: memref<128x256xbf16, #tpu.memory_space<vmem>>, %arg7: memref<1x256xf32, #tpu.memory_space<vmem>>, %arg8: memref<128x128xbf16, #tpu.memory_space<vmem>>, %arg9: memref<1x128xf32, #tpu.memory_space<vmem>>, %arg10: memref<1x128xf32, #tpu.memory_space<vmem>>, %arg11: memref<1x128xf32, #tpu.memory_space<vmem>>, %arg12: memref<1x8x128xbf16, #tpu.memory_space<vmem>>) attributes {dimension_semantics = [#tpu.dimension_semantics<parallel>, #tpu.dimension_semantics<parallel>], iteration_bounds = array<i64: 2, 1>, scalar_prefetch = 0 : i64, scratch_operands = 0 : i64, tpu.core_type = #tpu.core_type<tc>, window_params = [{transform_indices = @transform_0, window_bounds = array<i64: 1, 8, 128>}, {transform_indices = @transform_1, window_bounds = array<i64: 1, 8, 128>}, {pipeline_mode = #tpu.pipeline_mode<synchronous>, transform_indices = @transform_2, window_bounds = array<i64: 128, 128>}, {pipeline_mode = #tpu.pipeline_mode<synchronous>, transform_indices = @transform_3, window_bounds = array<i64: 1, 128>}, {pipeline_mode = #tpu.pipeline_mode<synchronous>, transform_indices = @transform_4, window_bounds = array<i64: 128, 256>}, {pipeline_mode = #tpu.pipeline_mode<synchronous>, transform_indices = @transform_5, window_bounds = array<i64: 1, 256>}, {pipeline_mode = #tpu.pipeline_mode<synchronous>, transform_indices = @transform_6, window_bounds = array<i64: 128, 128>}, {pipeline_mode = #tpu.pipeline_mode<synchronous>, transform_indices = @transform_7, window_bounds = array<i64: 1, 128>}, {pipeline_mode = #tpu.pipeline_mode<synchronous>, transform_indices = @transform_8, window_bounds = array<i64: 1, 128>}, {pipeline_mode = #tpu.pipeline_mode<synchronous>, transform_indices = @transform_9, window_bounds = array<i64: 1, 128>}, {transform_indices = @transform_10, window_bounds = array<i64: 1, 8, 128>}]} {
    %c0 = arith.constant 0 : index
    %c0_0 = arith.constant 0 : index
    %c0_1 = arith.constant 0 : index
    %0 = vector.load %arg2[%c0, %c0_0, %c0_1] : memref<1x8x128xbf16, #tpu.memory_space<vmem>>, vector<1x8x128xbf16>
    %1 = vector.shape_cast %0 : vector<1x8x128xbf16> to vector<8x128xbf16>
    %c0_2 = arith.constant 0 : index
    %c0_3 = arith.constant 0 : index
    %c0_4 = arith.constant 0 : index
    %2 = vector.load %arg3[%c0_2, %c0_3, %c0_4] : memref<1x8x128xbf16, #tpu.memory_space<vmem>>, vector<1x8x128xbf16>
    %3 = vector.shape_cast %2 : vector<1x8x128xbf16> to vector<8x128xbf16>
    %c0_5 = arith.constant 0 : index
    %c0_6 = arith.constant 0 : index
    %4 = vector.load %arg4[%c0_5, %c0_6] : memref<128x128xbf16, #tpu.memory_space<vmem>>, vector<128x128xbf16>
    %cst = arith.constant dense<0.000000e+00> : vector<8x128xf32>
    %5 = tpu.matmul %1, %4, %cst {dimension_numbers = #tpu.dot_dimension_numbers<[1], [0], [0], [1], [0, 0, 1, 1], [], []>} : vector<8x128xbf16>, vector<128x128xbf16>, vector<8x128xf32> -> vector<8x128xf32>
    %c0_7 = arith.constant 0 : index
    %c0_8 = arith.constant 0 : index
    %6 = vector.load %arg5[%c0_7, %c0_8] : memref<1x128xf32, #tpu.memory_space<vmem>>, vector<1x128xf32>
    %7 = vector.broadcast %6 : vector<1x128xf32> to vector<8x128xf32>
    %8 = arith.addf %5, %7 : vector<8x128xf32>
    %c0_9 = arith.constant 0 : index
    %c0_10 = arith.constant 0 : index
    %9 = vector.load %arg6[%c0_9, %c0_10] : memref<128x256xbf16, #tpu.memory_space<vmem>>, vector<128x256xbf16>
    %cst_11 = arith.constant dense<0.000000e+00> : vector<8x256xf32>
    %10 = tpu.matmul %3, %9, %cst_11 {dimension_numbers = #tpu.dot_dimension_numbers<[1], [0], [0], [1], [0, 0, 1, 1], [], []>} : vector<8x128xbf16>, vector<128x256xbf16>, vector<8x256xf32> -> vector<8x256xf32>
    %c0_12 = arith.constant 0 : index
    %c0_13 = arith.constant 0 : index
    %11 = vector.load %arg7[%c0_12, %c0_13] : memref<1x256xf32, #tpu.memory_space<vmem>>, vector<1x256xf32>
    %12 = vector.broadcast %11 : vector<1x256xf32> to vector<8x256xf32>
    %13 = arith.addf %10, %12 : vector<8x256xf32>
    %14 = vector.shape_cast %8 : vector<8x128xf32> to vector<8x4x32xf32>
    %15 = vector.extract_strided_slice %13 {offsets = [0, 0], sizes = [8, 128], strides = [1, 1]} : vector<8x256xf32> to vector<8x128xf32>
    %16 = vector.shape_cast %15 : vector<8x128xf32> to vector<8x4x32xf32>
    %17 = vector.extract_strided_slice %13 {offsets = [0, 128], sizes = [8, 128], strides = [1, 1]} : vector<8x256xf32> to vector<8x128xf32>
    %18 = vector.shape_cast %17 : vector<8x128xf32> to vector<8x4x32xf32>
    "tpu.trace_start"() <{level = 10 : i32, message = "qhd,khd->hqk"}> : () -> ()
    %cst_14 = arith.constant dense<0.000000e+00> : vector<4x8x8xf32>
    %19 = tpu.matmul %14, %16, %cst_14 {dimension_numbers = #tpu.dot_dimension_numbers<[2], [2], [0], [0], [0, 1, 0, 0, 1, 0], [1], [1]>} : vector<8x4x32xf32>, vector<8x4x32xf32>, vector<4x8x8xf32> -> vector<4x8x8xf32>
    "tpu.trace_stop"() : () -> ()
    %c8_i32 = arith.constant 8 : i32
    %20 = arith.muli %arg1, %c8_i32 : i32
    %21 = tpu.iota {dimensions = array<i32: 0>} : vector<8x8xi32>
    %22 = vector.broadcast %20 : i32 to vector<8x8xi32>
    %23 = arith.addi %22, %21 : vector<8x8xi32>
    %24 = tpu.iota {dimensions = array<i32: 1>} : vector<8x8xi32>
    %25 = arith.cmpi sgt, %24, %23 : vector<8x8xi32>
    %26 = vector.shape_cast %25 : vector<8x8xi1> to vector<1x8x8xi1>
    %cst_15 = arith.constant -1.000000e+09 : f32
    %27 = vector.shape_cast %26 : vector<1x8x8xi1> to vector<1x8x8xi1>
    %28 = vector.broadcast %27 : vector<1x8x8xi1> to vector<4x8x8xi1>
    %29 = vector.broadcast %cst_15 : f32 to vector<4x8x8xf32>
    %30 = arith.select %28, %29, %19 : vector<4x8x8xi1>, vector<4x8x8xf32>
    %cst_16 = arith.constant dense<0xFF800000> : vector<4x8xf32>
    %31 = vector.multi_reduction <maximumf>, %30, %cst_16 [2] : vector<4x8x8xf32> to vector<4x8xf32>
    %32 = vector.shape_cast %31 : vector<4x8xf32> to vector<4x8x1xf32>
    %33 = vector.broadcast %32 : vector<4x8x1xf32> to vector<4x8x8xf32>
    %34 = arith.subf %30, %33 : vector<4x8x8xf32>
    %35 = math.exp %34 : vector<4x8x8xf32>
    %cst_17 = arith.constant dense<0.000000e+00> : vector<4x8xf32>
    %36 = vector.multi_reduction <add>, %35, %cst_17 [2] : vector<4x8x8xf32> to vector<4x8xf32>
    %37 = vector.shape_cast %36 : vector<4x8xf32> to vector<4x8x1xf32>
    %38 = vector.broadcast %37 : vector<4x8x1xf32> to vector<4x8x8xf32>
    %39 = arith.divf %35, %38 : vector<4x8x8xf32>
    "tpu.trace_start"() <{level = 10 : i32, message = "hqk,khd->qhd"}> : () -> ()
    %cst_18 = arith.constant dense<0.000000e+00> : vector<4x32x8xf32>
    %40 = tpu.matmul %18, %39, %cst_18 {dimension_numbers = #tpu.dot_dimension_numbers<[0], [2], [2], [1], [0, 1, 0, 2, 1, 1], [1], [0]>} : vector<8x4x32xf32>, vector<4x8x8xf32>, vector<4x32x8xf32> -> vector<4x32x8xf32>
    %41 = tpu.transpose %40, [2, 0, 1] : vector<4x32x8xf32> -> vector<8x4x32xf32>
    "tpu.trace_stop"() : () -> ()
    %42 = vector.shape_cast %41 : vector<8x4x32xf32> to vector<8x128xf32>
    %43 = arith.truncf %42 : vector<8x128xf32> to vector<8x128xbf16>
    %c0_19 = arith.constant 0 : index
    %c0_20 = arith.constant 0 : index
    %44 = vector.load %arg8[%c0_19, %c0_20] : memref<128x128xbf16, #tpu.memory_space<vmem>>, vector<128x128xbf16>
    %cst_21 = arith.constant dense<0.000000e+00> : vector<8x128xf32>
    %45 = tpu.matmul %43, %44, %cst_21 {dimension_numbers = #tpu.dot_dimension_numbers<[1], [0], [0], [1], [0, 0, 1, 1], [], []>} : vector<8x128xbf16>, vector<128x128xbf16>, vector<8x128xf32> -> vector<8x128xf32>
    %c0_22 = arith.constant 0 : index
    %c0_23 = arith.constant 0 : index
    %46 = vector.load %arg9[%c0_22, %c0_23] : memref<1x128xf32, #tpu.memory_space<vmem>>, vector<1x128xf32>
    %47 = vector.broadcast %46 : vector<1x128xf32> to vector<8x128xf32>
    %48 = arith.addf %45, %47 : vector<8x128xf32>
    %49 = arith.extf %1 : vector<8x128xbf16> to vector<8x128xf32>
    %50 = arith.addf %49, %48 : vector<8x128xf32>
    %cst_24 = arith.constant dense<0.000000e+00> : vector<8xf32>
    %51 = vector.multi_reduction <add>, %50, %cst_24 [1] : vector<8x128xf32> to vector<8xf32>
    %52 = vector.shape_cast %51 : vector<8xf32> to vector<8x1xf32>
    %cst_25 = arith.constant 1.280000e+02 : f32
    %53 = vector.broadcast %cst_25 : f32 to vector<8x1xf32>
    %54 = arith.divf %52, %53 : vector<8x1xf32>
    %55 = vector.broadcast %54 : vector<8x1xf32> to vector<8x128xf32>
    %56 = arith.subf %50, %55 : vector<8x128xf32>
    %57 = arith.mulf %56, %56 : vector<8x128xf32>
    %cst_26 = arith.constant dense<0.000000e+00> : vector<8xf32>
    %58 = vector.multi_reduction <add>, %57, %cst_26 [1] : vector<8x128xf32> to vector<8xf32>
    %59 = vector.shape_cast %58 : vector<8xf32> to vector<8x1xf32>
    %cst_27 = arith.constant 1.280000e+02 : f32
    %60 = vector.broadcast %cst_27 : f32 to vector<8x1xf32>
    %61 = arith.divf %59, %60 : vector<8x1xf32>
    %62 = vector.broadcast %54 : vector<8x1xf32> to vector<8x128xf32>
    %63 = arith.subf %50, %62 : vector<8x128xf32>
    %cst_28 = arith.constant 9.99999974E-6 : f32
    %64 = vector.broadcast %cst_28 : f32 to vector<8x1xf32>
    %65 = arith.addf %61, %64 : vector<8x1xf32>
    %66 = math.rsqrt %65 : vector<8x1xf32>
    %67 = vector.broadcast %66 : vector<8x1xf32> to vector<8x128xf32>
    %68 = arith.mulf %63, %67 : vector<8x128xf32>
    %c0_29 = arith.constant 0 : index
    %c0_30 = arith.constant 0 : index
    %69 = vector.load %arg10[%c0_29, %c0_30] : memref<1x128xf32, #tpu.memory_space<vmem>>, vector<1x128xf32>
    %70 = vector.broadcast %69 : vector<1x128xf32> to vector<8x128xf32>
    %71 = arith.mulf %68, %70 : vector<8x128xf32>
    %c0_31 = arith.constant 0 : index
    %c0_32 = arith.constant 0 : index
    %72 = vector.load %arg11[%c0_31, %c0_32] : memref<1x128xf32, #tpu.memory_space<vmem>>, vector<1x128xf32>
    %73 = vector.broadcast %72 : vector<1x128xf32> to vector<8x128xf32>
    %74 = arith.addf %71, %73 : vector<8x128xf32>
    %75 = arith.truncf %74 : vector<8x128xf32> to vector<8x128xbf16>
    %c0_33 = arith.constant 0 : index
    %c0_34 = arith.constant 0 : index
    %c0_35 = arith.constant 0 : index
    %76 = vector.load %arg12[%c0_33, %c0_34, %c0_35] : memref<1x8x128xbf16, #tpu.memory_space<vmem>>, vector<1x8x128xbf16>
    %77 = vector.shape_cast %76 : vector<1x8x128xbf16> to vector<8x128xbf16>
    %78 = vector.shape_cast %75 : vector<8x128xbf16> to vector<1x8x128xbf16>
    tpu.vector_store %arg12[%c0_33, %c0_34, %c0_35], %78 {strides = array<i32>} : memref<1x8x128xbf16, #tpu.memory_space<vmem>>, vector<1x8x128xbf16>,
    return
  }
  func.func @transform_0(%arg0: i32, %arg1: i32) -> (i32, i32, i32) {
    %c0_i32 = arith.constant 0 : i32
    %c0_i32_0 = arith.constant 0 : i32
    return %arg0, %arg1, %c0_i32 : i32, i32, i32
  }
  func.func @transform_1(%arg0: i32, %arg1: i32) -> (i32, i32, i32) {
    %c0_i32 = arith.constant 0 : i32
    %c0_i32_0 = arith.constant 0 : i32
    %c0_i32_1 = arith.constant 0 : i32
    return %arg0, %c0_i32, %c0_i32_0 : i32, i32, i32
  }
  func.func @transform_2(%arg0: i32, %arg1: i32) -> (i32, i32) {
    %c0_i32 = arith.constant 0 : i32
    %c0_i32_0 = arith.constant 0 : i32
    %c0_i32_1 = arith.constant 0 : i32
    return %c0_i32, %c0_i32_0 : i32, i32
  }
  func.func @transform_3(%arg0: i32, %arg1: i32) -> (i32, i32) {
    %c0_i32 = arith.constant 0 : i32
    %c0_i32_0 = arith.constant 0 : i32
    %c0_i32_1 = arith.constant 0 : i32
    return %c0_i32, %c0_i32_0 : i32, i32
  }
  func.func @transform_4(%arg0: i32, %arg1: i32) -> (i32, i32) {
    %c0_i32 = arith.constant 0 : i32
    %c0_i32_0 = arith.constant 0 : i32
    %c0_i32_1 = arith.constant 0 : i32
    return %c0_i32, %c0_i32_0 : i32, i32
  }
  func.func @transform_5(%arg0: i32, %arg1: i32) -> (i32, i32) {
    %c0_i32 = arith.constant 0 : i32
    %c0_i32_0 = arith.constant 0 : i32
    %c0_i32_1 = arith.constant 0 : i32
    return %c0_i32, %c0_i32_0 : i32, i32
  }
  func.func @transform_6(%arg0: i32, %arg1: i32) -> (i32, i32) {
    %c0_i32 = arith.constant 0 : i32
    %c0_i32_0 = arith.constant 0 : i32
    %c0_i32_1 = arith.constant 0 : i32
    return %c0_i32, %c0_i32_0 : i32, i32
  }
  func.func @transform_7(%arg0: i32, %arg1: i32) -> (i32, i32) {
    %c0_i32 = arith.constant 0 : i32
    %c0_i32_0 = arith.constant 0 : i32
    %c0_i32_1 = arith.constant 0 : i32
    return %c0_i32, %c0_i32_0 : i32, i32
  }
  func.func @transform_8(%arg0: i32, %arg1: i32) -> (i32, i32) {
    %c0_i32 = arith.constant 0 : i32
    %c0_i32_0 = arith.constant 0 : i32
    %c0_i32_1 = arith.constant 0 : i32
    return %c0_i32, %c0_i32_0 : i32, i32
  }
  func.func @transform_9(%arg0: i32, %arg1: i32) -> (i32, i32) {
    %c0_i32 = arith.constant 0 : i32
    %c0_i32_0 = arith.constant 0 : i32
    %c0_i32_1 = arith.constant 0 : i32
    return %c0_i32, %c0_i32_0 : i32, i32
  }
  func.func @transform_10(%arg0: i32, %arg1: i32) -> (i32, i32, i32) {
    %c0_i32 = arith.constant 0 : i32
    %c0_i32_0 = arith.constant 0 : i32
    return %arg0, %arg1, %c0_i32 : i32, i32, i32
  }
}

module attributes {stable_mosaic.version = 11 : i64} {
  func.func @_ffn_ln_kernel(%arg0: i32, %arg1: memref<16x128xbf16, #tpu.memory_space<vmem>>, %arg2: memref<128x256xbf16, #tpu.memory_space<vmem>>, %arg3: memref<1x256xf32, #tpu.memory_space<vmem>>, %arg4: memref<256x128xbf16, #tpu.memory_space<vmem>>, %arg5: memref<1x128xf32, #tpu.memory_space<vmem>>, %arg6: memref<1x128xf32, #tpu.memory_space<vmem>>, %arg7: memref<1x128xf32, #tpu.memory_space<vmem>>, %arg8: memref<16x128xbf16, #tpu.memory_space<vmem>>) attributes {dimension_semantics = [#tpu.dimension_semantics<parallel>], iteration_bounds = array<i64: 1>, scalar_prefetch = 0 : i64, scratch_operands = 0 : i64, tpu.core_type = #tpu.core_type<tc>, window_params = [{transform_indices = @transform_0, window_bounds = array<i64: 16, 128>}, {pipeline_mode = #tpu.pipeline_mode<synchronous>, transform_indices = @transform_1, window_bounds = array<i64: 128, 256>}, {pipeline_mode = #tpu.pipeline_mode<synchronous>, transform_indices = @transform_2, window_bounds = array<i64: 1, 256>}, {pipeline_mode = #tpu.pipeline_mode<synchronous>, transform_indices = @transform_3, window_bounds = array<i64: 256, 128>}, {pipeline_mode = #tpu.pipeline_mode<synchronous>, transform_indices = @transform_4, window_bounds = array<i64: 1, 128>}, {pipeline_mode = #tpu.pipeline_mode<synchronous>, transform_indices = @transform_5, window_bounds = array<i64: 1, 128>}, {pipeline_mode = #tpu.pipeline_mode<synchronous>, transform_indices = @transform_6, window_bounds = array<i64: 1, 128>}, {transform_indices = @transform_7, window_bounds = array<i64: 16, 128>}]} {
    %c0 = arith.constant 0 : index
    %c0_0 = arith.constant 0 : index
    %0 = vector.load %arg1[%c0, %c0_0] : memref<16x128xbf16, #tpu.memory_space<vmem>>, vector<16x128xbf16>
    %c0_1 = arith.constant 0 : index
    %c0_2 = arith.constant 0 : index
    %1 = vector.load %arg2[%c0_1, %c0_2] : memref<128x256xbf16, #tpu.memory_space<vmem>>, vector<128x256xbf16>
    %cst = arith.constant dense<0.000000e+00> : vector<16x256xf32>
    %2 = tpu.matmul %0, %1, %cst {dimension_numbers = #tpu.dot_dimension_numbers<[1], [0], [0], [1], [0, 0, 1, 1], [], []>} : vector<16x128xbf16>, vector<128x256xbf16>, vector<16x256xf32> -> vector<16x256xf32>
    %c0_3 = arith.constant 0 : index
    %c0_4 = arith.constant 0 : index
    %3 = vector.load %arg3[%c0_3, %c0_4] : memref<1x256xf32, #tpu.memory_space<vmem>>, vector<1x256xf32>
    %4 = vector.broadcast %3 : vector<1x256xf32> to vector<16x256xf32>
    %5 = arith.addf %2, %4 : vector<16x256xf32>
    %cst_5 = arith.constant 0.000000e+00 : f32
    %6 = vector.broadcast %cst_5 : f32 to vector<16x256xf32>
    %7 = arith.maximumf %5, %6 : vector<16x256xf32>
    %8 = arith.truncf %7 : vector<16x256xf32> to vector<16x256xbf16>
    %c0_6 = arith.constant 0 : index
    %c0_7 = arith.constant 0 : index
    %9 = vector.load %arg4[%c0_6, %c0_7] : memref<256x128xbf16, #tpu.memory_space<vmem>>, vector<256x128xbf16>
    %cst_8 = arith.constant dense<0.000000e+00> : vector<16x128xf32>
    %10 = tpu.matmul %8, %9, %cst_8 {dimension_numbers = #tpu.dot_dimension_numbers<[1], [0], [0], [1], [0, 0, 1, 1], [], []>} : vector<16x256xbf16>, vector<256x128xbf16>, vector<16x128xf32> -> vector<16x128xf32>
    %c0_9 = arith.constant 0 : index
    %c0_10 = arith.constant 0 : index
    %11 = vector.load %arg5[%c0_9, %c0_10] : memref<1x128xf32, #tpu.memory_space<vmem>>, vector<1x128xf32>
    %12 = vector.broadcast %11 : vector<1x128xf32> to vector<16x128xf32>
    %13 = arith.addf %10, %12 : vector<16x128xf32>
    %14 = arith.extf %0 : vector<16x128xbf16> to vector<16x128xf32>
    %15 = arith.addf %14, %13 : vector<16x128xf32>
    %cst_11 = arith.constant dense<0.000000e+00> : vector<16xf32>
    %16 = vector.multi_reduction <add>, %15, %cst_11 [1] : vector<16x128xf32> to vector<16xf32>
    %17 = vector.shape_cast %16 : vector<16xf32> to vector<16x1xf32>
    %cst_12 = arith.constant 1.280000e+02 : f32
    %18 = vector.broadcast %cst_12 : f32 to vector<16x1xf32>
    %19 = arith.divf %17, %18 : vector<16x1xf32>
    %20 = vector.broadcast %19 : vector<16x1xf32> to vector<16x128xf32>
    %21 = arith.subf %15, %20 : vector<16x128xf32>
    %22 = arith.mulf %21, %21 : vector<16x128xf32>
    %cst_13 = arith.constant dense<0.000000e+00> : vector<16xf32>
    %23 = vector.multi_reduction <add>, %22, %cst_13 [1] : vector<16x128xf32> to vector<16xf32>
    %24 = vector.shape_cast %23 : vector<16xf32> to vector<16x1xf32>
    %cst_14 = arith.constant 1.280000e+02 : f32
    %25 = vector.broadcast %cst_14 : f32 to vector<16x1xf32>
    %26 = arith.divf %24, %25 : vector<16x1xf32>
    %27 = vector.broadcast %19 : vector<16x1xf32> to vector<16x128xf32>
    %28 = arith.subf %15, %27 : vector<16x128xf32>
    %cst_15 = arith.constant 9.99999974E-6 : f32
    %29 = vector.broadcast %cst_15 : f32 to vector<16x1xf32>
    %30 = arith.addf %26, %29 : vector<16x1xf32>
    %31 = math.rsqrt %30 : vector<16x1xf32>
    %32 = vector.broadcast %31 : vector<16x1xf32> to vector<16x128xf32>
    %33 = arith.mulf %28, %32 : vector<16x128xf32>
    %c0_16 = arith.constant 0 : index
    %c0_17 = arith.constant 0 : index
    %34 = vector.load %arg6[%c0_16, %c0_17] : memref<1x128xf32, #tpu.memory_space<vmem>>, vector<1x128xf32>
    %35 = vector.broadcast %34 : vector<1x128xf32> to vector<16x128xf32>
    %36 = arith.mulf %33, %35 : vector<16x128xf32>
    %c0_18 = arith.constant 0 : index
    %c0_19 = arith.constant 0 : index
    %37 = vector.load %arg7[%c0_18, %c0_19] : memref<1x128xf32, #tpu.memory_space<vmem>>, vector<1x128xf32>
    %38 = vector.broadcast %37 : vector<1x128xf32> to vector<16x128xf32>
    %39 = arith.addf %36, %38 : vector<16x128xf32>
    %40 = arith.truncf %39 : vector<16x128xf32> to vector<16x128xbf16>
    %c0_20 = arith.constant 0 : index
    %c0_21 = arith.constant 0 : index
    %41 = vector.load %arg8[%c0_20, %c0_21] : memref<16x128xbf16, #tpu.memory_space<vmem>>, vector<16x128xbf16>
    tpu.vector_store %arg8[%c0_20, %c0_21], %40 {strides = array<i32>} : memref<16x128xbf16, #tpu.memory_space<vmem>>, vector<16x128xbf16>,
    return
  }
  func.func @transform_0(%arg0: i32) -> (i32, i32) {
    %c0_i32 = arith.constant 0 : i32
    %c0_i32_0 = arith.constant 0 : i32
    return %arg0, %c0_i32 : i32, i32
  }
  func.func @transform_1(%arg0: i32) -> (i32, i32) {
    %c0_i32 = arith.constant 0 : i32
    %c0_i32_0 = arith.constant 0 : i32
    %c0_i32_1 = arith.constant 0 : i32
    return %c0_i32, %c0_i32_0 : i32, i32
  }
  func.func @transform_2(%arg0: i32) -> (i32, i32) {
    %c0_i32 = arith.constant 0 : i32
    %c0_i32_0 = arith.constant 0 : i32
    %c0_i32_1 = arith.constant 0 : i32
    return %c0_i32, %c0_i32_0 : i32, i32
  }
  func.func @transform_3(%arg0: i32) -> (i32, i32) {
    %c0_i32 = arith.constant 0 : i32
    %c0_i32_0 = arith.constant 0 : i32
    %c0_i32_1 = arith.constant 0 : i32
    return %c0_i32, %c0_i32_0 : i32, i32
  }
  func.func @transform_4(%arg0: i32) -> (i32, i32) {
    %c0_i32 = arith.constant 0 : i32
    %c0_i32_0 = arith.constant 0 : i32
    %c0_i32_1 = arith.constant 0 : i32
    return %c0_i32, %c0_i32_0 : i32, i32
  }
  func.func @transform_5(%arg0: i32) -> (i32, i32) {
    %c0_i32 = arith.constant 0 : i32
    %c0_i32_0 = arith.constant 0 : i32
    %c0_i32_1 = arith.constant 0 : i32
    return %c0_i32, %c0_i32_0 : i32, i32
  }
  func.func @transform_6(%arg0: i32) -> (i32, i32) {
    %c0_i32 = arith.constant 0 : i32
    %c0_i32_0 = arith.constant 0 : i32
    %c0_i32_1 = arith.constant 0 : i32
    return %c0_i32, %c0_i32_0 : i32, i32
  }
  func.func @transform_7(%arg0: i32) -> (i32, i32) {
    %c0_i32 = arith.constant 0 : i32
    %c0_i32_0 = arith.constant 0 : i32
    return %arg0, %c0_i32 : i32, i32
  }
}

module attributes {stable_mosaic.version = 11 : i64} {
  func.func @_ln_kernel(%arg0: i32, %arg1: memref<16x128xbf16, #tpu.memory_space<vmem>>, %arg2: memref<1x128xf32, #tpu.memory_space<vmem>>, %arg3: memref<1x128xf32, #tpu.memory_space<vmem>>, %arg4: memref<16x128xf32, #tpu.memory_space<vmem>>) attributes {dimension_semantics = [#tpu.dimension_semantics<parallel>], iteration_bounds = array<i64: 1>, scalar_prefetch = 0 : i64, scratch_operands = 0 : i64, tpu.core_type = #tpu.core_type<tc>, window_params = [{transform_indices = @transform_0, window_bounds = array<i64: 16, 128>}, {pipeline_mode = #tpu.pipeline_mode<synchronous>, transform_indices = @transform_1, window_bounds = array<i64: 1, 128>}, {pipeline_mode = #tpu.pipeline_mode<synchronous>, transform_indices = @transform_2, window_bounds = array<i64: 1, 128>}, {transform_indices = @transform_3, window_bounds = array<i64: 16, 128>}]} {
    %c0 = arith.constant 0 : index
    %c0_0 = arith.constant 0 : index
    %0 = vector.load %arg1[%c0, %c0_0] : memref<16x128xbf16, #tpu.memory_space<vmem>>, vector<16x128xbf16>
    %1 = arith.extf %0 : vector<16x128xbf16> to vector<16x128xf32>
    %cst = arith.constant dense<0.000000e+00> : vector<16xf32>
    %2 = vector.multi_reduction <add>, %1, %cst [1] : vector<16x128xf32> to vector<16xf32>
    %3 = vector.shape_cast %2 : vector<16xf32> to vector<16x1xf32>
    %cst_1 = arith.constant 1.280000e+02 : f32
    %4 = vector.broadcast %cst_1 : f32 to vector<16x1xf32>
    %5 = arith.divf %3, %4 : vector<16x1xf32>
    %6 = vector.broadcast %5 : vector<16x1xf32> to vector<16x128xf32>
    %7 = arith.subf %1, %6 : vector<16x128xf32>
    %8 = arith.mulf %7, %7 : vector<16x128xf32>
    %cst_2 = arith.constant dense<0.000000e+00> : vector<16xf32>
    %9 = vector.multi_reduction <add>, %8, %cst_2 [1] : vector<16x128xf32> to vector<16xf32>
    %10 = vector.shape_cast %9 : vector<16xf32> to vector<16x1xf32>
    %cst_3 = arith.constant 1.280000e+02 : f32
    %11 = vector.broadcast %cst_3 : f32 to vector<16x1xf32>
    %12 = arith.divf %10, %11 : vector<16x1xf32>
    %13 = vector.broadcast %5 : vector<16x1xf32> to vector<16x128xf32>
    %14 = arith.subf %1, %13 : vector<16x128xf32>
    %cst_4 = arith.constant 9.99999974E-6 : f32
    %15 = vector.broadcast %cst_4 : f32 to vector<16x1xf32>
    %16 = arith.addf %12, %15 : vector<16x1xf32>
    %17 = math.rsqrt %16 : vector<16x1xf32>
    %18 = vector.broadcast %17 : vector<16x1xf32> to vector<16x128xf32>
    %19 = arith.mulf %14, %18 : vector<16x128xf32>
    %c0_5 = arith.constant 0 : index
    %c0_6 = arith.constant 0 : index
    %20 = vector.load %arg2[%c0_5, %c0_6] : memref<1x128xf32, #tpu.memory_space<vmem>>, vector<1x128xf32>
    %21 = vector.broadcast %20 : vector<1x128xf32> to vector<16x128xf32>
    %22 = arith.mulf %19, %21 : vector<16x128xf32>
    %c0_7 = arith.constant 0 : index
    %c0_8 = arith.constant 0 : index
    %23 = vector.load %arg3[%c0_7, %c0_8] : memref<1x128xf32, #tpu.memory_space<vmem>>, vector<1x128xf32>
    %24 = vector.broadcast %23 : vector<1x128xf32> to vector<16x128xf32>
    %25 = arith.addf %22, %24 : vector<16x128xf32>
    %c0_9 = arith.constant 0 : index
    %c0_10 = arith.constant 0 : index
    %26 = vector.load %arg4[%c0_9, %c0_10] : memref<16x128xf32, #tpu.memory_space<vmem>>, vector<16x128xf32>
    tpu.vector_store %arg4[%c0_9, %c0_10], %25 {strides = array<i32>} : memref<16x128xf32, #tpu.memory_space<vmem>>, vector<16x128xf32>,
    return
  }
  func.func @transform_0(%arg0: i32) -> (i32, i32) {
    %c0_i32 = arith.constant 0 : i32
    %c0_i32_0 = arith.constant 0 : i32
    return %arg0, %c0_i32 : i32, i32
  }
  func.func @transform_1(%arg0: i32) -> (i32, i32) {
    %c0_i32 = arith.constant 0 : i32
    %c0_i32_0 = arith.constant 0 : i32
    %c0_i32_1 = arith.constant 0 : i32
    return %c0_i32, %c0_i32_0 : i32, i32
  }
  func.func @transform_2(%arg0: i32) -> (i32, i32) {
    %c0_i32 = arith.constant 0 : i32
    %c0_i32_0 = arith.constant 0 : i32
    %c0_i32_1 = arith.constant 0 : i32
    return %c0_i32, %c0_i32_0 : i32, i32
  }
  func.func @transform_3(%arg0: i32) -> (i32, i32) {
    %c0_i32 = arith.constant 0 : i32
    %c0_i32_0 = arith.constant 0 : i32
    return %arg0, %c0_i32 : i32, i32
  }
}

</mosaic_0001>

<llo_original>
// kernel: decoder_forward.9
$region0: #{decoder_forward.9}
  #allocation0 [shape = 'u32[]', space=smem, size = 0x4, offset = 0x4, fixed_abs, tag = 'smem constant byte address 0x4 - core index']
  #allocation1 [shape = 'u32[144,128]{1,0:T(1,128)}', space=vmem, size = 0x12000, scoped, tag = 'internal scratch']
  %s0 = inlined_call_operand.vmem [shape: bf16[16,128], index: 0, kind: input, shape index: {}]
  %s1 = inlined_call_operand.vmem [shape: bf16[128,256], index: 1, kind: input, shape index: {}]
  %s2 = inlined_call_operand.vmem [shape: f32[1,256], index: 2, kind: input, shape index: {}]
  %s3 = inlined_call_operand.vmem [shape: bf16[256,128], index: 3, kind: input, shape index: {}]
  %s4 = inlined_call_operand.vmem [shape: f32[1,128], index: 4, kind: input, shape index: {}]
  %s5 = inlined_call_operand.vmem [shape: f32[1,128], index: 5, kind: input, shape index: {}]
  %s6 = inlined_call_operand.vmem [shape: f32[1,128], index: 6, kind: input, shape index: {}]
  %s7 = inlined_call_operand.vmem [shape: bf16[16,128], index: 7, kind: output, shape index: {}]
  %s8 = sld [smem:[#allocation0]]
  $region38: #{decoder_forward.9} parent=0
    _
  %s10 = ssub.s32 1, %s8
  %s11 = scalar_select 0, %s10, %s8
  // Predicated region
  $region2: #{decoder_forward.9} parent=0 // pred_check
    _
  $region3: #{decoder_forward.9} parent=0 // pred_check_branch
    %13 = sbr.rel (0) target = $region5
  $region4: #{decoder_forward.9} parent=0 // pred_region
    _
  $region5: #{decoder_forward.9} parent=0 // pred_fallthru
    _
  // Predicated region
  $region6: #{decoder_forward.9} parent=0 // pred_check
    _
  $region7: #{decoder_forward.9} parent=0 // pred_check_branch
    %15 = sbr.rel (0) target = $region9
  $region8: #{decoder_forward.9} parent=0 // pred_region
    _
  $region9: #{decoder_forward.9} parent=0 // pred_fallthru
    _
  // Predicated region
  $region10: #{decoder_forward.9} parent=0 // pred_check
    _
  $region11: #{decoder_forward.9} parent=0 // pred_check_branch
    %17 = sbr.rel (0) target = $region13
  $region12: #{decoder_forward.9} parent=0 // pred_region
    _
  $region13: #{decoder_forward.9} parent=0 // pred_fallthru
    _
  // Predicated region
  $region14: #{decoder_forward.9} parent=0 // pred_check
    _
  $region15: #{decoder_forward.9} parent=0 // pred_check_branch
    %19 = sbr.rel (0) target = $region17
  $region16: #{decoder_forward.9} parent=0 // pred_region
    _
  $region17: #{decoder_forward.9} parent=0 // pred_fallthru
    _
  // Predicated region
  $region18: #{decoder_forward.9} parent=0 // pred_check
    _
  $region19: #{decoder_forward.9} parent=0 // pred_check_branch
    %21 = sbr.rel (0) target = $region21
  $region20: #{decoder_forward.9} parent=0 // pred_region
    _
  $region21: #{decoder_forward.9} parent=0 // pred_fallthru
    _
  // Predicated region
  $region22: #{decoder_forward.9} parent=0 // pred_check
    _
  $region23: #{decoder_forward.9} parent=0 // pred_check_branch
    %23 = sbr.rel (0) target = $region25
  $region24: #{decoder_forward.9} parent=0 // pred_region
    _
  $region25: #{decoder_forward.9} parent=0 // pred_fallthru
    _
  // Predicated region
  $region26: #{decoder_forward.9} parent=0 // pred_check
    _
  $region27: #{decoder_forward.9} parent=0 // pred_check_branch
    %25 = sbr.rel (0) target = $region29
  $region28: #{decoder_forward.9} parent=0 // pred_region
    _
  $region29: #{decoder_forward.9} parent=0 // pred_fallthru
    _
  %v27 = vld [vmem:[%s0] sm:$0xf]
  %v28 = vld [vmem:[%s0 + $0x4] sm:$0xf]
  %v29 = vld [vmem:[%s1] sm:$0xff]
  %v30 = vld [vmem:[%s1 + $0x8] sm:$0xff]
  %v31 = vld [vmem:[%s1 + $0x10] sm:$0xff]
  %v32 = vld [vmem:[%s1 + $0x18] sm:$0xff]
  %v33 = vld [vmem:[%s1 + $0x20] sm:$0xff]
  %v34 = vld [vmem:[%s1 + $0x28] sm:$0xff]
  %v35 = vld [vmem:[%s1 + $0x30] sm:$0xff]
  %v36 = vld [vmem:[%s1 + $0x38] sm:$0xff]
  %v37 = vld [vmem:[%s1 + $0x40] sm:$0xff]
  %v38 = vld [vmem:[%s1 + $0x48] sm:$0xff]
  %v39 = vld [vmem:[%s1 + $0x50] sm:$0xff]
  %v40 = vld [vmem:[%s1 + $0x58] sm:$0xff]
  %v41 = vld [vmem:[%s1 + $0x60] sm:$0xff]
  %v42 = vld [vmem:[%s1 + $0x68] sm:$0xff]
  %v43 = vld [vmem:[%s1 + $0x70] sm:$0xff]
  %v44 = vld [vmem:[%s1 + $0x78] sm:$0xff]
  %v45 = vld [vmem:[%s2] sm:$0x3]
  %v47 = vlaneseq
  %v48 = vshrl.u32 %v47, 7
  %v49 = vsub.s32 0, %v48
  %v50 = vrot.slane %v45, %v49
  %v51 = vlaneseq
  %v52 = vshrl.u32 %v51, 7
  %v53 = vsub.s32 1, %v52
  %v54 = vrot.slane %v45, %v53
  %v59 = vunpack.c.l.b16 %v27
  %v60 = vunpack.c.l.b16 %v28
  %v61 = vpack.c.b16 %v60, %v59
  %v79 = vunpack.c.l.b16 %v29
  %v80 = vunpack.c.h.b16 %v29
  %v81 = vunpack.c.l.b16 %v30
  %v82 = vunpack.c.h.b16 %v30
  %v83 = vunpack.c.l.b16 %v31
  %v84 = vunpack.c.h.b16 %v31
  %v85 = vunpack.c.l.b16 %v32
  %v86 = vunpack.c.h.b16 %v32
  %v87 = vunpack.c.l.b16 %v33
  %v88 = vunpack.c.h.b16 %v33
  %v89 = vunpack.c.l.b16 %v34
  %v90 = vunpack.c.h.b16 %v34
  %v91 = vunpack.c.l.b16 %v35
  %v92 = vunpack.c.h.b16 %v35
  %v93 = vunpack.c.l.b16 %v36
  %v94 = vunpack.c.h.b16 %v36
  %v95 = vunpack.c.l.b16 %v37
  %v96 = vunpack.c.h.b16 %v37
  %v97 = vunpack.c.l.b16 %v38
  %v98 = vunpack.c.h.b16 %v38
  %v99 = vunpack.c.l.b16 %v39
  %v100 = vunpack.c.h.b16 %v39
  %v101 = vunpack.c.l.b16 %v40
  %v102 = vunpack.c.h.b16 %v40
  %v103 = vunpack.c.l.b16 %v41
  %v104 = vunpack.c.h.b16 %v41
  %v105 = vunpack.c.l.b16 %v42
  %v106 = vunpack.c.h.b16 %v42
  %v107 = vunpack.c.l.b16 %v43
  %v108 = vunpack.c.h.b16 %v43
  %v109 = vunpack.c.l.b16 %v44
  %v110 = vunpack.c.h.b16 %v44
  %v111 = vpack.c.b16 %v81, %v79
  %v112 = vpack.c.b16 %v82, %v80
  %v113 = vpack.c.b16 %v85, %v83
  %v114 = vpack.c.b16 %v86, %v84
  %v115 = vpack.c.b16 %v89, %v87
  %v116 = vpack.c.b16 %v90, %v88
  %v117 = vpack.c.b16 %v93, %v91
  %v118 = vpack.c.b16 %v94, %v92
  %v119 = vpack.c.b16 %v97, %v95
  %v120 = vpack.c.b16 %v98, %v96
  %v121 = vpack.c.b16 %v101, %v99
  %v122 = vpack.c.b16 %v102, %v100
  %v123 = vpack.c.b16 %v105, %v103
  %v124 = vpack.c.b16 %v106, %v104
  %v125 = vpack.c.b16 %v109, %v107
  %v126 = vpack.c.b16 %v110, %v108
  %143 = vmatprep.subr.bf16.mxu0 %v112
  %144 = vmatpush1.bf16.msra.mxu0 %v111
  %145 = vmatprep.subr.bf16.mxu0 %v114
  %146 = vmatpush1.bf16.msra.mxu0 %v113
  %147 = vmatprep.subr.bf16.mxu0 %v116
  %148 = vmatpush1.bf16.msra.mxu0 %v115
  %149 = vmatprep.subr.bf16.mxu0 %v118
  %150 = vmatpush1.bf16.msra.mxu0 %v117
  %151 = vmatprep.subr.bf16.mxu0 %v120
  %152 = vmatpush1.bf16.msra.mxu0 %v119
  %153 = vmatprep.subr.bf16.mxu0 %v122
  %154 = vmatpush1.bf16.msra.mxu0 %v121
  %155 = vmatprep.subr.bf16.mxu0 %v124
  %156 = vmatpush1.bf16.msra.mxu0 %v123
  %157 = vmatprep.subr.bf16.mxu0 %v126
  %158 = vmatpush1.bf16.msra.mxu0 %v125
  %159 = vmatprep.subr.bf16.mxu0 0
  %160 = vmatpush1.bf16.msra.mxu0 0
  %161 = vmatprep.subr.bf16.mxu0 0
  %162 = vmatpush1.bf16.msra.mxu0 0
  %163 = vmatprep.subr.bf16.mxu0 0
  %164 = vmatpush1.bf16.msra.mxu0 0
  %165 = vmatprep.subr.bf16.mxu0 0
  %166 = vmatpush1.bf16.msra.mxu0 0
  %167 = vmatprep.subr.bf16.mxu0 0
  %168 = vmatpush1.bf16.msra.mxu0 0
  %169 = vmatprep.subr.bf16.mxu0 0
  %170 = vmatpush1.bf16.msra.mxu0 0
  %171 = vmatprep.subr.bf16.mxu0 0
  %172 = vmatpush1.bf16.msra.mxu0 0
  %173 = vmatprep.subr.bf16.mxu0 0
  %174 = vmatpush1.bf16.msra.mxu0 0
  %175 = vmatprep.mubr.bf16.mxu0 0
  %176 = vmatmul.mubr.bf16.gmra.mrb[0].mxu0 %v61
  %v177 = vpop.f32.mrb[0].mxu0
  %v178 = vadd.f32 %v50, %v177
  %v179 = vpop.f32.mrb[0].mxu0
  %v180 = vadd.f32 %v54, %v179
  %v181 = vpop.f32.mrb[0].mxu0
  %v182 = vadd.f32 %v50, %v181
  %v183 = vpop.f32.mrb[0].mxu0
  %v184 = vadd.f32 %v54, %v183
  %185 = vdwg.mxu0
  %v186 = vmax.f32 %v178, 0.0
  %v187 = vmax.f32 %v180, 0.0
  %v188 = vmax.f32 %v182, 0.0
  %v189 = vmax.f32 %v184, 0.0
  %v190 = vpack.c.bf16 %v188, %v186
  %v191 = vpack.c.bf16 %v189, %v187
  %v192 = vld [vmem:[%s3] sm:$0xf]
  %v193 = vld [vmem:[%s3 + $0x4] sm:$0xf]
  %v194 = vld [vmem:[%s3 + $0x8] sm:$0xf]
  %v195 = vld [vmem:[%s3 + $0xc] sm:$0xf]
  %v196 = vld [vmem:[%s3 + $0x10] sm:$0xf]
  %v197 = vld [vmem:[%s3 + $0x14] sm:$0xf]
  %v198 = vld [vmem:[%s3 + $0x18] sm:$0xf]
  %v199 = vld [vmem:[%s3 + $0x1c] sm:$0xf]
  %v200 = vld [vmem:[%s3 + $0x20] sm:$0xf]
  %v201 = vld [vmem:[%s3 + $0x24] sm:$0xf]
  %v202 = vld [vmem:[%s3 + $0x28] sm:$0xf]
  %v203 = vld [vmem:[%s3 + $0x2c] sm:$0xf]
  %v204 = vld [vmem:[%s3 + $0x30] sm:$0xf]
  %v205 = vld [vmem:[%s3 + $0x34] sm:$0xf]
  %v206 = vld [vmem:[%s3 + $0x38] sm:$0xf]
  %v207 = vld [vmem:[%s3 + $0x3c] sm:$0xf]
  %v208 = vld [vmem:[%s3 + $0x40] sm:$0xf]
  %v209 = vld [vmem:[%s3 + $0x44] sm:$0xf]
  %v210 = vld [vmem:[%s3 + $0x48] sm:$0xf]
  %v211 = vld [vmem:[%s3 + $0x4c] sm:$0xf]
  %v212 = vld [vmem:[%s3 + $0x50] sm:$0xf]
  %v213 = vld [vmem:[%s3 + $0x54] sm:$0xf]
  %v214 = vld [vmem:[%s3 + $0x58] sm:$0xf]
  %v215 = vld [vmem:[%s3 + $0x5c] sm:$0xf]
  %v216 = vld [vmem:[%s3 + $0x60] sm:$0xf]
  %v217 = vld [vmem:[%s3 + $0x64] sm:$0xf]
  %v218 = vld [vmem:[%s3 + $0x68] sm:$0xf]
  %v219 = vld [vmem:[%s3 + $0x6c] sm:$0xf]
  %v220 = vld [vmem:[%s3 + $0x70] sm:$0xf]
  %v221 = vld [vmem:[%s3 + $0x74] sm:$0xf]
  %v222 = vld [vmem:[%s3 + $0x78] sm:$0xf]
  %v223 = vld [vmem:[%s3 + $0x7c] sm:$0xf]
  %v224 = vld [vmem:[%s4] sm:$0x1]
  %v226 = vlaneseq
  %v227 = vshrl.u32 %v226, 7
  %v228 = vsub.s32 0, %v227
  %v229 = vrot.slane %v224, %v228
  %v263 = vunpack.c.l.b16 %v192
  %v264 = vunpack.c.l.b16 %v193
  %v265 = vunpack.c.l.b16 %v194
  %v266 = vunpack.c.l.b16 %v195
  %v267 = vunpack.c.l.b16 %v196
  %v268 = vunpack.c.l.b16 %v197
  %v269 = vunpack.c.l.b16 %v198
  %v270 = vunpack.c.l.b16 %v199
  %v271 = vunpack.c.l.b16 %v200
  %v272 = vunpack.c.l.b16 %v201
  %v273 = vunpack.c.l.b16 %v202
  %v274 = vunpack.c.l.b16 %v203
  %v275 = vunpack.c.l.b16 %v204
  %v276 = vunpack.c.l.b16 %v205
  %v277 = vunpack.c.l.b16 %v206
  %v278 = vunpack.c.l.b16 %v207
  %v279 = vunpack.c.l.b16 %v208
  %v280 = vunpack.c.l.b16 %v209
  %v281 = vunpack.c.l.b16 %v210
  %v282 = vunpack.c.l.b16 %v211
  %v283 = vunpack.c.l.b16 %v212
  %v284 = vunpack.c.l.b16 %v213
  %v285 = vunpack.c.l.b16 %v214
  %v286 = vunpack.c.l.b16 %v215
  %v287 = vunpack.c.l.b16 %v216
  %v288 = vunpack.c.l.b16 %v217
  %v289 = vunpack.c.l.b16 %v218
  %v290 = vunpack.c.l.b16 %v219
  %v291 = vunpack.c.l.b16 %v220
  %v292 = vunpack.c.l.b16 %v221
  %v293 = vunpack.c.l.b16 %v222
  %v294 = vunpack.c.l.b16 %v223
  %v295 = vpack.c.b16 %v264, %v263
  %v296 = vpack.c.b16 %v266, %v265
  %v297 = vpack.c.b16 %v268, %v267
  %v298 = vpack.c.b16 %v270, %v269
  %v299 = vpack.c.b16 %v272, %v271
  %v300 = vpack.c.b16 %v274, %v273
  %v301 = vpack.c.b16 %v276, %v275
  %v302 = vpack.c.b16 %v278, %v277
  %v303 = vpack.c.b16 %v280, %v279
  %v304 = vpack.c.b16 %v282, %v281
  %v305 = vpack.c.b16 %v284, %v283
  %v306 = vpack.c.b16 %v286, %v285
  %v307 = vpack.c.b16 %v288, %v287
  %v308 = vpack.c.b16 %v290, %v289
  %v309 = vpack.c.b16 %v292, %v291
  %v310 = vpack.c.b16 %v294, %v293
  %327 = vmatprep.subr.bf16.mxu0 0
  %328 = vmatpush1.bf16.msra.mxu0 %v295
  %329 = vmatprep.subr.bf16.mxu0 0
  %330 = vmatpush1.bf16.msra.mxu0 %v296
  %331 = vmatprep.subr.bf16.mxu0 0
  %332 = vmatpush1.bf16.msra.mxu0 %v297
  %333 = vmatprep.subr.bf16.mxu0 0
  %334 = vmatpush1.bf16.msra.mxu0 %v298
  %335 = vmatprep.subr.bf16.mxu0 0
  %336 = vmatpush1.bf16.msra.mxu0 %v299
  %337 = vmatprep.subr.bf16.mxu0 0
  %338 = vmatpush1.bf16.msra.mxu0 %v300
  %339 = vmatprep.subr.bf16.mxu0 0
  %340 = vmatpush1.bf16.msra.mxu0 %v301
  %341 = vmatprep.subr.bf16.mxu0 0
  %342 = vmatpush1.bf16.msra.mxu0 %v302
  %343 = vmatprep.subr.bf16.mxu0 0
  %344 = vmatpush1.bf16.msra.mxu0 %v303
  %345 = vmatprep.subr.bf16.mxu0 0
  %346 = vmatpush1.bf16.msra.mxu0 %v304
  %347 = vmatprep.subr.bf16.mxu0 0
  %348 = vmatpush1.bf16.msra.mxu0 %v305
  %349 = vmatprep.subr.bf16.mxu0 0
  %350 = vmatpush1.bf16.msra.mxu0 %v306
  %351 = vmatprep.subr.bf16.mxu0 0
  %352 = vmatpush1.bf16.msra.mxu0 %v307
  %353 = vmatprep.subr.bf16.mxu0 0
  %354 = vmatpush1.bf16.msra.mxu0 %v308
  %355 = vmatprep.subr.bf16.mxu0 0
  %356 = vmatpush1.bf16.msra.mxu0 %v309
  %357 = vmatprep.subr.bf16.mxu0 0
  %358 = vmatpush1.bf16.msra.mxu0 %v310
  %359 = vmatprep.mubr.bf16.mxu0 %v191
  %360 = vmatmul.mubr.bf16.gmra.mrb[0].mxu0 %v190
  %v361 = vpop.f32.mrb[0].mxu0
  %v362 = vadd.f32 %v229, %v361
  %v363 = vpop.f32.mrb[0].mxu0
  %v364 = vpop.f32.mrb[0].mxu0
  %v365 = vadd.f32 %v229, %v364
  %v366 = vpop.f32.mrb[0].mxu0
  %367 = vdwg.mxu0
  %v368 = vunpack.c.l.bf16 %v27
  %v369 = vunpack.c.l.bf16 %v28
  %v370 = vadd.f32 %v368, %v362
  %v371 = vadd.f32 %v369, %v365
  %372 = vadd.xlane.f32.xlu0 %v370
  %v373 = vpop.xlane.xlu0 %372
  %374 = vadd.xlane.f32.xlu0 %v371
  %v375 = vpop.xlane.xlu0 %374
  %v376 = vrcp.pop 128.0
  %v377 = vmul.f32 %v373, %v376
  %v378 = vmul.f32 %v375, %v376
  %v379 = vsub.f32 %v370, %v377
  %v380 = vsub.f32 %v371, %v378
  %v381 = vmul.f32 %v379, %v379
  %v382 = vmul.f32 %v380, %v380
  %383 = vadd.xlane.f32.xlu0 %v381
  %v384 = vpop.xlane.xlu0 %383
  %385 = vadd.xlane.f32.xlu0 %v382
  %v386 = vpop.xlane.xlu0 %385
  %v387 = vmul.f32 %v384, %v376
  %v388 = vmul.f32 %v386, %v376
  %v389 = vadd.f32 %v387, 1e-05
  %v390 = vadd.f32 %v388, 1e-05
  %v391 = vrsqrt.pop %v389
  %v392 = vrsqrt.pop %v390
  %v393 = vmul.f32 %v379, %v391
  %v394 = vmul.f32 %v380, %v392
  %v395 = vld [vmem:[%s5] sm:$0x1]
  %v397 = vlaneseq
  %v398 = vshrl.u32 %v397, 7
  %v399 = vsub.s32 0, %v398
  %v400 = vrot.slane %v395, %v399
  %v402 = vmul.f32 %v393, %v400
  %v403 = vmul.f32 %v394, %v400
  %v404 = vld [vmem:[%s6] sm:$0x1]
  %v406 = vlaneseq
  %v407 = vshrl.u32 %v406, 7
  %v408 = vsub.s32 0, %v407
  %v409 = vrot.slane %v404, %v408
  %v411 = vadd.f32 %v402, %v409
  %v412 = vadd.f32 %v403, %v409
  %v413 = vpack.c.bf16 %v412, %v411
  %v415 = vunpack.c.l.b16 %v413
  %v416 = vunpack.c.h.b16 %v413
  %v417 = vpack.c.b16 %v415, %v415
  %v418 = vpack.c.b16 %v416, %v416
  %421 = vst [vmem:[%s7] sm:$0xf] %v417
  %422 = vst [vmem:[%s7 + $0x4] sm:$0xf] %v418
  // Predicated region
  $region30: #{decoder_forward.9} parent=0 // pred_check
    _
  $region31: #{decoder_forward.9} parent=0 // pred_check_branch
    %424 = sbr.rel (0) target = $region33
  $region32: #{decoder_forward.9} parent=0 // pred_region
    _
  $region33: #{decoder_forward.9} parent=0 // pred_fallthru
    _
  // Predicated region
  $region34: #{decoder_forward.9} parent=0 // pred_check
    _
  $region35: #{decoder_forward.9} parent=0 // pred_check_branch
    %426 = sbr.rel (0) target = $region37
  $region36: #{decoder_forward.9} parent=0 // pred_region
    _
  $region37: #{decoder_forward.9} parent=0 // pred_fallthru
    _

// kernel: decoder_forward.10
$region0: #{decoder_forward.10}
  #allocation0 [shape = 'u32[]', space=smem, size = 0x4, offset = 0x4, fixed_abs, tag = 'smem constant byte address 0x4 - core index']
  #allocation1 [shape = 'u32[144,128]{1,0:T(1,128)}', space=vmem, size = 0x12000, scoped, tag = 'internal scratch']
  %s0 = inlined_call_operand.vmem [shape: bf16[2,8,128], index: 0, kind: input, shape index: {}, may-alias: {0,1}]
  %s1 = inlined_call_operand.vmem [shape: bf16[2,8,128], index: 1, kind: input, shape index: {}, may-alias: {0,1}]
  %s2 = inlined_call_operand.vmem [shape: bf16[128,128], index: 2, kind: input, shape index: {}]
  %s3 = inlined_call_operand.vmem [shape: f32[1,128], index: 3, kind: input, shape index: {}]
  %s4 = inlined_call_operand.vmem [shape: bf16[128,256], index: 4, kind: input, shape index: {}]
  %s5 = inlined_call_operand.vmem [shape: f32[1,256], index: 5, kind: input, shape index: {}]
  %s6 = inlined_call_operand.vmem [shape: bf16[128,128], index: 6, kind: input, shape index: {}]
  %s7 = inlined_call_operand.vmem [shape: f32[1,128], index: 7, kind: input, shape index: {}]
  %s8 = inlined_call_operand.vmem [shape: f32[1,128], index: 8, kind: input, shape index: {}]
  %s9 = inlined_call_operand.vmem [shape: f32[1,128], index: 9, kind: input, shape index: {}]
  %s10 = inlined_call_operand.vmem [shape: bf16[2,8,128], index: 10, kind: output, shape index: {}]
  %s11 = sld [smem:[#allocation0]]
  $region73: #{decoder_forward.10} parent=0
    _
  %s13 = ssub.s32 1, %s11
  %s14 = scalar_select 0, %s13, %s11
  loop: start=0, step=1, limit=4
  $region2: #{decoder_forward.10} parent=0 // loop_pre_header
    _
  $region3: #{decoder_forward.10} parent=0 // loop_header
    %s16 = sphi 0, %s20
    %p17 = scmp.ge.s32.totalorder %s16, 4
    %s23 = sphi 0, %s35
    %s24 = sphi 0, %s31
    %s25 = sphi 0, %s23
    %s26 = sphi 0, %s24
    %s27 = sphi 0, %s25
    %s28 = sphi 0, %s26
    %s40 = sphi 0, %s42
    %s43 = sphi 0, %s40
    %s44 = sphi 0, %s43
    %s60 = sphi 0, %s44
    %s66 = sphi 0, %s68
    %s69 = sphi 0, %s66
    %s70 = sphi 0, %s69
    %s86 = sphi 0, %s70
    %s90 = sphi 0, %s90
    %s92 = sphi 0, %s90
    %s93 = sphi 0, %s92
    %s107 = sphi 0, %s93
    %s111 = sphi 0, %s111
    %s113 = sphi 0, %s111
    %s114 = sphi 0, %s113
    %s128 = sphi 0, %s114
    %s132 = sphi 0, %s132
    %s134 = sphi 0, %s132
    %s135 = sphi 0, %s134
    %s149 = sphi 0, %s135
    %s153 = sphi 0, %s153
    %s155 = sphi 0, %s153
    %s156 = sphi 0, %s155
    %s170 = sphi 0, %s156
    %s174 = sphi 0, %s174
    %s176 = sphi 0, %s174
    %s177 = sphi 0, %s176
    %s191 = sphi 0, %s177
    %s195 = sphi 0, %s195
    %s197 = sphi 0, %s195
    %s198 = sphi 0, %s197
    %s212 = sphi 0, %s198
    %s216 = sphi 0, %s216
    %s218 = sphi 0, %s216
    %s219 = sphi 0, %s218
    %s233 = sphi 0, %s219
    %s237 = sphi 0, %s237
    %s239 = sphi 0, %s237
    %s240 = sphi 0, %s239
    %s254 = sphi 0, %s240
    %s262 = sphi 0, %s264
    %s265 = sphi 0, %s262
    %s266 = sphi 0, %s265
    %s282 = sphi 0, %s266
  $region4: #{decoder_forward.10} parent=0 // loop_header_branch
    %19 = sbr.rel (%p17) target = $region8
  $region5: #{decoder_forward.10} parent=0 // loop_body
    %s21 = ssub.s32 %s16, 1
    %s22 = ssub.s32 %s16, 2
    %s29 = sadd.s32 1, %s24
    %p30 = scmp.ge.s32.totalorder %s29, 1
    %s31 = scalar_select %p30, 0, %s29
    %s32 = sadd.s32 1, %s23
    %s33 = scalar_select %p30, %s32, %s23
    %p34 = scmp.ge.s32.totalorder %s33, 2
    %s35 = scalar_select %p34, 0, %s33
    %s36 = ssub.s32 %s23, %s35
    %s37 = ssub.s32 %s24, %s31
    %s38 = sor.u32 %s36, %s37
    %p39 = scmp.eq.s32.totalorder %s38, 0
    %s41 = sadd.s32 %s40, 1
    %s42 = scalar_select %p39, %s40, %s41
    %p45 = pneg %p39
    %p46 = scmp.eq.s32.totalorder %s16, 1
    %p47 = por %p45, %p46
    %p48 = scmp.ne.s32.totalorder %s40, %s43
    %p49 = scmp.eq.s32.totalorder %s16, 0
    %p50 = por %p48, %p49
    %p51 = scmp.ne.s32.totalorder %s40, %s43
    %p52 = scmp.eq.s32.totalorder %s21, 1
    %p53 = por %p51, %p52
    %p54 = scmp.ne.s32.totalorder %s43, %s44
    %p55 = scmp.eq.s32.totalorder %s21, 0
    %p56 = por %p54, %p55
    %p57 = scmp.ne.s32.totalorder %s43, %s44
    %p58 = scmp.eq.s32.totalorder %s22, 1
    %p59 = por %p57, %p58
    %p61 = scmp.ne.s32.totalorder %s44, %s60
    %p62 = scmp.eq.s32.totalorder %s22, 0
    %p63 = por %p61, %p62
    %s64 = ssub.s32 %s23, %s35
    %p65 = scmp.eq.s32.totalorder %s64, 0
    %s67 = sadd.s32 %s66, 1
    %s68 = scalar_select %p65, %s66, %s67
    %p71 = pneg %p65
    %p72 = scmp.eq.s32.totalorder %s16, 1
    %p73 = por %p71, %p72
    %p74 = scmp.ne.s32.totalorder %s66, %s69
    %p75 = scmp.eq.s32.totalorder %s16, 0
    %p76 = por %p74, %p75
    %p77 = scmp.ne.s32.totalorder %s66, %s69
    %p78 = scmp.eq.s32.totalorder %s21, 1
    %p79 = por %p77, %p78
    %p80 = scmp.ne.s32.totalorder %s69, %s70
    %p81 = scmp.eq.s32.totalorder %s21, 0
    %p82 = por %p80, %p81
    %p83 = scmp.ne.s32.totalorder %s69, %s70
    %p84 = scmp.eq.s32.totalorder %s22, 1
    %p85 = por %p83, %p84
    %p87 = scmp.ne.s32.totalorder %s70, %s86
    %p88 = scmp.eq.s32.totalorder %s22, 0
    %p89 = por %p87, %p88
    %s91 = sadd.s32 %s90, 1
    %p94 = scmp.eq.s32.totalorder %s16, 1
    %p95 = scmp.ne.s32.totalorder %s90, %s92
    %p96 = scmp.eq.s32.totalorder %s16, 0
    %p97 = por %p95, %p96
    %p98 = scmp.ne.s32.totalorder %s90, %s92
    %p99 = scmp.eq.s32.totalorder %s21, 1
    %p100 = por %p98, %p99
    %p101 = scmp.ne.s32.totalorder %s92, %s93
    %p102 = scmp.eq.s32.totalorder %s21, 0
    %p103 = por %p101, %p102
    %p104 = scmp.ne.s32.totalorder %s92, %s93
    %p105 = scmp.eq.s32.totalorder %s22, 1
    %p106 = por %p104, %p105
    %p108 = scmp.ne.s32.totalorder %s93, %s107
    %p109 = scmp.eq.s32.totalorder %s22, 0
    %p110 = por %p108, %p109
    %s112 = sadd.s32 %s111, 1
    %p115 = scmp.eq.s32.totalorder %s16, 1
    %p116 = scmp.ne.s32.totalorder %s111, %s113
    %p117 = scmp.eq.s32.totalorder %s16, 0
    %p118 = por %p116, %p117
    %p119 = scmp.ne.s32.totalorder %s111, %s113
    %p120 = scmp.eq.s32.totalorder %s21, 1
    %p121 = por %p119, %p120
    %p122 = scmp.ne.s32.totalorder %s113, %s114
    %p123 = scmp.eq.s32.totalorder %s21, 0
    %p124 = por %p122, %p123
    %p125 = scmp.ne.s32.totalorder %s113, %s114
    %p126 = scmp.eq.s32.totalorder %s22, 1
    %p127 = por %p125, %p126
    %p129 = scmp.ne.s32.totalorder %s114, %s128
    %p130 = scmp.eq.s32.totalorder %s22, 0
    %p131 = por %p129, %p130
    %s133 = sadd.s32 %s132, 1
    %p136 = scmp.eq.s32.totalorder %s16, 1
    %p137 = scmp.ne.s32.totalorder %s132, %s134
    %p138 = scmp.eq.s32.totalorder %s16, 0
    %p139 = por %p137, %p138
    %p140 = scmp.ne.s32.totalorder %s132, %s134
    %p141 = scmp.eq.s32.totalorder %s21, 1
    %p142 = por %p140, %p141
    %p143 = scmp.ne.s32.totalorder %s134, %s135
    %p144 = scmp.eq.s32.totalorder %s21, 0
    %p145 = por %p143, %p144
    %p146 = scmp.ne.s32.totalorder %s134, %s135
    %p147 = scmp.eq.s32.totalorder %s22, 1
    %p148 = por %p146, %p147
    %p150 = scmp.ne.s32.totalorder %s135, %s149
    %p151 = scmp.eq.s32.totalorder %s22, 0
    %p152 = por %p150, %p151
    %s154 = sadd.s32 %s153, 1
    %p157 = scmp.eq.s32.totalorder %s16, 1
    %p158 = scmp.ne.s32.totalorder %s153, %s155
    %p159 = scmp.eq.s32.totalorder %s16, 0
    %p160 = por %p158, %p159
    %p161 = scmp.ne.s32.totalorder %s153, %s155
    %p162 = scmp.eq.s32.totalorder %s21, 1
    %p163 = por %p161, %p162
    %p164 = scmp.ne.s32.totalorder %s155, %s156
    %p165 = scmp.eq.s32.totalorder %s21, 0
    %p166 = por %p164, %p165
    %p167 = scmp.ne.s32.totalorder %s155, %s156
    %p168 = scmp.eq.s32.totalorder %s22, 1
    %p169 = por %p167, %p168
    %p171 = scmp.ne.s32.totalorder %s156, %s170
    %p172 = scmp.eq.s32.totalorder %s22, 0
    %p173 = por %p171, %p172
    %s175 = sadd.s32 %s174, 1
    %p178 = scmp.eq.s32.totalorder %s16, 1
    %p179 = scmp.ne.s32.totalorder %s174, %s176
    %p180 = scmp.eq.s32.totalorder %s16, 0
    %p181 = por %p179, %p180
    %p182 = scmp.ne.s32.totalorder %s174, %s176
    %p183 = scmp.eq.s32.totalorder %s21, 1
    %p184 = por %p182, %p183
    %p185 = scmp.ne.s32.totalorder %s176, %s177
    %p186 = scmp.eq.s32.totalorder %s21, 0
    %p187 = por %p185, %p186
    %p188 = scmp.ne.s32.totalorder %s176, %s177
    %p189 = scmp.eq.s32.totalorder %s22, 1
    %p190 = por %p188, %p189
    %p192 = scmp.ne.s32.totalorder %s177, %s191
    %p193 = scmp.eq.s32.totalorder %s22, 0
    %p194 = por %p192, %p193
    %s196 = sadd.s32 %s195, 1
    %p199 = scmp.eq.s32.totalorder %s16, 1
    %p200 = scmp.ne.s32.totalorder %s195, %s197
    %p201 = scmp.eq.s32.totalorder %s16, 0
    %p202 = por %p200, %p201
    %p203 = scmp.ne.s32.totalorder %s195, %s197
    %p204 = scmp.eq.s32.totalorder %s21, 1
    %p205 = por %p203, %p204
    %p206 = scmp.ne.s32.totalorder %s197, %s198
    %p207 = scmp.eq.s32.totalorder %s21, 0
    %p208 = por %p206, %p207
    %p209 = scmp.ne.s32.totalorder %s197, %s198
    %p210 = scmp.eq.s32.totalorder %s22, 1
    %p211 = por %p209, %p210
    %p213 = scmp.ne.s32.totalorder %s198, %s212
    %p214 = scmp.eq.s32.totalorder %s22, 0
    %p215 = por %p213, %p214
    %s217 = sadd.s32 %s216, 1
    %p220 = scmp.eq.s32.totalorder %s16, 1
    %p221 = scmp.ne.s32.totalorder %s216, %s218
    %p222 = scmp.eq.s32.totalorder %s16, 0
    %p223 = por %p221, %p222
    %p224 = scmp.ne.s32.totalorder %s216, %s218
    %p225 = scmp.eq.s32.totalorder %s21, 1
    %p226 = por %p224, %p225
    %p227 = scmp.ne.s32.totalorder %s218, %s219
    %p228 = scmp.eq.s32.totalorder %s21, 0
    %p229 = por %p227, %p228
    %p230 = scmp.ne.s32.totalorder %s218, %s219
    %p231 = scmp.eq.s32.totalorder %s22, 1
    %p232 = por %p230, %p231
    %p234 = scmp.ne.s32.totalorder %s219, %s233
    %p235 = scmp.eq.s32.totalorder %s22, 0
    %p236 = por %p234, %p235
    %s238 = sadd.s32 %s237, 1
    %p241 = scmp.eq.s32.totalorder %s16, 1
    %p242 = scmp.ne.s32.totalorder %s237, %s239
    %p243 = scmp.eq.s32.totalorder %s16, 0
    %p244 = por %p242, %p243
    %p245 = scmp.ne.s32.totalorder %s237, %s239
    %p246 = scmp.eq.s32.totalorder %s21, 1
    %p247 = por %p245, %p246
    %p248 = scmp.ne.s32.totalorder %s239, %s240
    %p249 = scmp.eq.s32.totalorder %s21, 0
    %p250 = por %p248, %p249
    %p251 = scmp.ne.s32.totalorder %s239, %s240
    %p252 = scmp.eq.s32.totalorder %s22, 1
    %p253 = por %p251, %p252
    %p255 = scmp.ne.s32.totalorder %s240, %s254
    %p256 = scmp.eq.s32.totalorder %s22, 0
    %p257 = por %p255, %p256
    %s258 = ssub.s32 %s23, %s35
    %s259 = ssub.s32 %s24, %s31
    %s260 = sor.u32 %s258, %s259
    %p261 = scmp.eq.s32.totalorder %s260, 0
    %s263 = sadd.s32 %s262, 1
    %s264 = scalar_select %p261, %s262, %s263
    %p267 = pneg %p261
    %p268 = scmp.eq.s32.totalorder %s16, 1
    %p269 = por %p267, %p268
    %p270 = scmp.ne.s32.totalorder %s262, %s265
    %p271 = scmp.eq.s32.totalorder %s16, 0
    %p272 = por %p270, %p271
    %p273 = scmp.ne.s32.totalorder %s262, %s265
    %p274 = scmp.eq.s32.totalorder %s21, 1
    %p275 = por %p273, %p274
    %p276 = scmp.ne.s32.totalorder %s265, %s266
    %p277 = scmp.eq.s32.totalorder %s21, 0
    %p278 = por %p276, %p277
    %p279 = scmp.ne.s32.totalorder %s265, %s266
    %p280 = scmp.eq.s32.totalorder %s22, 1
    %p281 = por %p279, %p280
    %p283 = scmp.ne.s32.totalorder %s266, %s282
    %p284 = scmp.eq.s32.totalorder %s22, 0
    %p285 = por %p283, %p284
    %p286 = scmp.le.s32.totalorder 1, %s16
    %p287 = scmp.lt.s32.totalorder %s16, 3
    %p288 = pnand %p286, %p287
    %p289 = pneg %p288
    // Predicated region
    $region9: #{decoder_forward.10} parent=5 // pred_check
      _
    $region10: #{decoder_forward.10} parent=5 // pred_check_branch
      %291 = sbr.rel (%p288) target = $region12
    $region11: #{decoder_forward.10} parent=5 // pred_region
      %s292 = ssub.s32 %s16, 1
      // Predicated region
      $region13: #{decoder_forward.10} parent=11 // pred_check
        %p293 = pneg %p103
      $region14: #{decoder_forward.10} parent=11 // pred_check_branch
        %295 = sbr.rel (%p293) target = $region16
      $region15: #{decoder_forward.10} parent=11 // pred_region
        _
      $region16: #{decoder_forward.10} parent=11 // pred_fallthru
        _
      // Predicated region
      $region17: #{decoder_forward.10} parent=11 // pred_check
        %p296 = pneg %p124
      $region18: #{decoder_forward.10} parent=11 // pred_check_branch
        %298 = sbr.rel (%p296) target = $region20
      $region19: #{decoder_forward.10} parent=11 // pred_region
        _
      $region20: #{decoder_forward.10} parent=11 // pred_fallthru
        _
      // Predicated region
      $region21: #{decoder_forward.10} parent=11 // pred_check
        %p299 = pneg %p145
      $region22: #{decoder_forward.10} parent=11 // pred_check_branch
        %301 = sbr.rel (%p299) target = $region24
      $region23: #{decoder_forward.10} parent=11 // pred_region
        _
      $region24: #{decoder_forward.10} parent=11 // pred_fallthru
        _
      // Predicated region
      $region25: #{decoder_forward.10} parent=11 // pred_check
        %p302 = pneg %p166
      $region26: #{decoder_forward.10} parent=11 // pred_check_branch
        %304 = sbr.rel (%p302) target = $region28
      $region27: #{decoder_forward.10} parent=11 // pred_region
        _
      $region28: #{decoder_forward.10} parent=11 // pred_fallthru
        _
      // Predicated region
      $region29: #{decoder_forward.10} parent=11 // pred_check
        %p305 = pneg %p187
      $region30: #{decoder_forward.10} parent=11 // pred_check_branch
        %307 = sbr.rel (%p305) target = $region32
      $region31: #{decoder_forward.10} parent=11 // pred_region
        _
      $region32: #{decoder_forward.10} parent=11 // pred_fallthru
        _
      // Predicated region
      $region33: #{decoder_forward.10} parent=11 // pred_check
        %p308 = pneg %p208
      $region34: #{decoder_forward.10} parent=11 // pred_check_branch
        %310 = sbr.rel (%p308) target = $region36
      $region35: #{decoder_forward.10} parent=11 // pred_region
        _
      $region36: #{decoder_forward.10} parent=11 // pred_fallthru
        _
      // Predicated region
      $region37: #{decoder_forward.10} parent=11 // pred_check
        %p311 = pneg %p229
      $region38: #{decoder_forward.10} parent=11 // pred_check_branch
        %313 = sbr.rel (%p311) target = $region40
      $region39: #{decoder_forward.10} parent=11 // pred_region
        _
      $region40: #{decoder_forward.10} parent=11 // pred_fallthru
        _
      // Predicated region
      $region41: #{decoder_forward.10} parent=11 // pred_check
        %p314 = pneg %p250
      $region42: #{decoder_forward.10} parent=11 // pred_check_branch
        %316 = sbr.rel (%p314) target = $region44
      $region43: #{decoder_forward.10} parent=11 // pred_region
        _
      $region44: #{decoder_forward.10} parent=11 // pred_fallthru
        _
    $region12: #{decoder_forward.10} parent=5 // pred_fallthru
      _
    %p317 = scmp.lt.s32.totalorder %s16, 2
    // Predicated region
    $region45: #{decoder_forward.10} parent=5 // pred_check
      %p318 = pneg %p317
    $region46: #{decoder_forward.10} parent=5 // pred_check_branch
      %320 = sbr.rel (%p318) target = $region48
    $region47: #{decoder_forward.10} parent=5 // pred_region
      // Predicated region
      $region49: #{decoder_forward.10} parent=47 // pred_check
        %p321 = pneg %p50
      $region50: #{decoder_forward.10} parent=47 // pred_check_branch
        %323 = sbr.rel (%p321) target = $region52
      $region51: #{decoder_forward.10} parent=47 // pred_region
        %p324 = scmp.lt.s32.totalorder %s23, 1
        %s325 = scalar_select %p324, %s23, 1
        %p326 = scmp.lt.s32.totalorder %s24, 0
        %s327 = scalar_select %p326, %s24, 0
        %s328 = sadd.s32 %s327, %s325
        %s329 = smul.addr %s328, 4
        %s330 = scalar_lea.vmem %s0, %s329
      $region52: #{decoder_forward.10} parent=47 // pred_fallthru
        _
      // Predicated region
      $region53: #{decoder_forward.10} parent=47 // pred_check
        %p331 = pneg %p76
      $region54: #{decoder_forward.10} parent=47 // pred_check_branch
        %333 = sbr.rel (%p331) target = $region56
      $region55: #{decoder_forward.10} parent=47 // pred_region
        %p334 = scmp.lt.s32.totalorder %s23, 1
        %s335 = scalar_select %p334, %s23, 1
        %s336 = smul.addr %s335, 4
        %s337 = scalar_lea.vmem %s1, %s336
      $region56: #{decoder_forward.10} parent=47 // pred_fallthru
        _
    $region48: #{decoder_forward.10} parent=5 // pred_fallthru
      _
    %p338 = scmp.le.s32.totalorder 1, %s16
    %p339 = scmp.lt.s32.totalorder %s16, 3
    %p340 = pnand %p338, %p339
    %p341 = pneg %p340
    // Predicated region
    $region57: #{decoder_forward.10} parent=5 // pred_check
      _
    $region58: #{decoder_forward.10} parent=5 // pred_check_branch
      %343 = sbr.rel (%p340) target = $region60
    $region59: #{decoder_forward.10} parent=5 // pred_region
      %s344 = ssub.s32 %s16, 1
      %p345 = scmp.lt.s32.totalorder %s25, 1
      %s346 = scalar_select %p345, %s25, 1
      %p347 = scmp.lt.s32.totalorder %s26, 0
      %s348 = scalar_select %p347, %s26, 0
      %s349 = sadd.s32 %s348, %s346
      %s350 = smul.addr %s349, 4
      %s351 = scalar_lea.vmem %s0, %s350
      %p352 = pneg %p56
      %p353 = pneg %p53
      %p354 = scmp.lt.s32.totalorder %s25, 1
      %s355 = scalar_select %p354, %s25, 1
      %s356 = smul.addr %s355, 4
      %s357 = scalar_lea.vmem %s1, %s356
      %p358 = pneg %p82
      %p359 = pneg %p79
      %p360 = pneg %p103
      %p361 = pneg %p100
      %p362 = pneg %p124
      %p363 = pneg %p121
      %p364 = pneg %p145
      %p365 = pneg %p142
      %p366 = pneg %p166
      %p367 = pneg %p163
      %p368 = pneg %p187
      %p369 = pneg %p184
      %p370 = pneg %p208
      %p371 = pneg %p205
      %p372 = pneg %p229
      %p373 = pneg %p226
      %p374 = pneg %p250
      %p375 = pneg %p247
      %p376 = pneg %p278
      %p377 = pneg %p275
      %p378 = scmp.lt.s32.totalorder %s25, 1
      %s379 = scalar_select %p378, %s25, 1
      %p380 = scmp.lt.s32.totalorder %s26, 0
      %s381 = scalar_select %p380, %s26, 0
      %s382 = sadd.s32 %s381, %s379
      %s383 = smul.addr %s382, 4
      %s384 = scalar_lea.vmem %s10, %s383
      %p385 = scmp.lt.s32.totalorder %s25, 1
      %s386 = scalar_select %p385, %s25, 1
      %p387 = scmp.lt.s32.totalorder %s26, 0
      %s388 = scalar_select %p387, %s26, 0
      %s389 = sadd.s32 %s388, %s386
      %s390 = smul.addr %s389, 4
      %s391 = scalar_lea.vmem %s0, %s390
      %p392 = scmp.lt.s32.totalorder %s25, 1
      %s393 = scalar_select %p392, %s25, 1
      %s394 = smul.addr %s393, 4
      %s395 = scalar_lea.vmem %s1, %s394
      %p396 = scmp.lt.s32.totalorder %s25, 1
      %s397 = scalar_select %p396, %s25, 1
      %p398 = scmp.lt.s32.totalorder %s26, 0
      %s399 = scalar_select %p398, %s26, 0
      %s400 = sadd.s32 %s399, %s397
      %s401 = smul.addr %s400, 4
      %s402 = scalar_lea.vmem %s10, %s401
      %v404 = vld [vmem:[%s391] sm:$0xf]
      %v405 = vld [vmem:[%s395] sm:$0xf]
      %v406 = vld [vmem:[%s2] sm:$0xf]
      %v407 = vld [vmem:[%s2 + $0x4] sm:$0xf]
      %v408 = vld [vmem:[%s2 + $0x8] sm:$0xf]
      %v409 = vld [vmem:[%s2 + $0xc] sm:$0xf]
      %v410 = vld [vmem:[%s2 + $0x10] sm:$0xf]
      %v411 = vld [vmem:[%s2 + $0x14] sm:$0xf]
      %v412 = vld [vmem:[%s2 + $0x18] sm:$0xf]
      %v413 = vld [vmem:[%s2 + $0x1c] sm:$0xf]
      %v414 = vld [vmem:[%s2 + $0x20] sm:$0xf]
      %v415 = vld [vmem:[%s2 + $0x24] sm:$0xf]
      %v416 = vld [vmem:[%s2 + $0x28] sm:$0xf]
      %v417 = vld [vmem:[%s2 + $0x2c] sm:$0xf]
      %v418 = vld [vmem:[%s2 + $0x30] sm:$0xf]
      %v419 = vld [vmem:[%s2 + $0x34] sm:$0xf]
      %v420 = vld [vmem:[%s2 + $0x38] sm:$0xf]
      %v421 = vld [vmem:[%s2 + $0x3c] sm:$0xf]
      %v422 = vld [vmem:[%s3] sm:$0x1]
      %v424 = vlaneseq
      %v425 = vshrl.u32 %v424, 7
      %v426 = vsub.s32 0, %v425
      %v427 = vrot.slane %v422, %v426
      %v445 = vunpack.c.l.b16 %v406
      %v446 = vunpack.c.l.b16 %v407
      %v447 = vunpack.c.l.b16 %v408
      %v448 = vunpack.c.l.b16 %v409
      %v449 = vunpack.c.l.b16 %v410
      %v450 = vunpack.c.l.b16 %v411
      %v451 = vunpack.c.l.b16 %v412
      %v452 = vunpack.c.l.b16 %v413
      %v453 = vunpack.c.l.b16 %v414
      %v454 = vunpack.c.l.b16 %v415
      %v455 = vunpack.c.l.b16 %v416
      %v456 = vunpack.c.l.b16 %v417
      %v457 = vunpack.c.l.b16 %v418
      %v458 = vunpack.c.l.b16 %v419
      %v459 = vunpack.c.l.b16 %v420
      %v460 = vunpack.c.l.b16 %v421
      %v461 = vpack.c.b16 %v446, %v445
      %v462 = vpack.c.b16 %v448, %v447
      %v463 = vpack.c.b16 %v450, %v449
      %v464 = vpack.c.b16 %v452, %v451
      %v465 = vpack.c.b16 %v454, %v453
      %v466 = vpack.c.b16 %v456, %v455
      %v467 = vpack.c.b16 %v458, %v457
      %v468 = vpack.c.b16 %v460, %v459
      %477 = vmatprep.subr.bf16.mxu0 0
      %478 = vmatpush1.bf16.msra.mxu0 %v461
      %479 = vmatprep.subr.bf16.mxu0 0
      %480 = vmatpush1.bf16.msra.mxu0 %v462
      %481 = vmatprep.subr.bf16.mxu0 0
      %482 = vmatpush1.bf16.msra.mxu0 %v463
      %483 = vmatprep.subr.bf16.mxu0 0
      %484 = vmatpush1.bf16.msra.mxu0 %v464
      %485 = vmatprep.subr.bf16.mxu0 0
      %486 = vmatpush1.bf16.msra.mxu0 %v465
      %487 = vmatprep.subr.bf16.mxu0 0
      %488 = vmatpush1.bf16.msra.mxu0 %v466
      %489 = vmatprep.subr.bf16.mxu0 0
      %490 = vmatpush1.bf16.msra.mxu0 %v467
      %491 = vmatprep.subr.bf16.mxu0 0
      %492 = vmatpush1.bf16.msra.mxu0 %v468
      %493 = vmatprep.subr.bf16.mxu0 0
      %494 = vmatpush1.bf16.msra.mxu0 0
      %495 = vmatprep.subr.bf16.mxu0 0
      %496 = vmatpush1.bf16.msra.mxu0 0
      %497 = vmatprep.subr.bf16.mxu0 0
      %498 = vmatpush1.bf16.msra.mxu0 0
      %499 = vmatprep.subr.bf16.mxu0 0
      %500 = vmatpush1.bf16.msra.mxu0 0
      %501 = vmatprep.subr.bf16.mxu0 0
      %502 = vmatpush1.bf16.msra.mxu0 0
      %503 = vmatprep.subr.bf16.mxu0 0
      %504 = vmatpush1.bf16.msra.mxu0 0
      %505 = vmatprep.subr.bf16.mxu0 0
      %506 = vmatpush1.bf16.msra.mxu0 0
      %507 = vmatprep.subr.bf16.mxu0 0
      %508 = vmatpush1.bf16.msra.mxu0 0
      %509 = vmatprep.mubr.bf16.mxu0 0
      %510 = vmatmul.mubr.bf16.gmra.mrb[0].mxu0 %v404
      %v511 = vpop.f32.mrb[0].mxu0
      %v512 = vadd.f32 %v427, %v511
      %v513 = vpop.f32.mrb[0].mxu0
      %v514 = vpop.f32.mrb[0].mxu0
      %v515 = vpop.f32.mrb[0].mxu0
      %516 = vdwg.mxu0
      %v517 = vld [vmem:[%s4] sm:$0xff]
      %v518 = vld [vmem:[%s4 + $0x8] sm:$0xff]
      %v519 = vld [vmem:[%s4 + $0x10] sm:$0xff]
      %v520 = vld [vmem:[%s4 + $0x18] sm:$0xff]
      %v521 = vld [vmem:[%s4 + $0x20] sm:$0xff]
      %v522 = vld [vmem:[%s4 + $0x28] sm:$0xff]
      %v523 = vld [vmem:[%s4 + $0x30] sm:$0xff]
      %v524 = vld [vmem:[%s4 + $0x38] sm:$0xff]
      %v525 = vld [vmem:[%s4 + $0x40] sm:$0xff]
      %v526 = vld [vmem:[%s4 + $0x48] sm:$0xff]
      %v527 = vld [vmem:[%s4 + $0x50] sm:$0xff]
      %v528 = vld [vmem:[%s4 + $0x58] sm:$0xff]
      %v529 = vld [vmem:[%s4 + $0x60] sm:$0xff]
      %v530 = vld [vmem:[%s4 + $0x68] sm:$0xff]
      %v531 = vld [vmem:[%s4 + $0x70] sm:$0xff]
      %v532 = vld [vmem:[%s4 + $0x78] sm:$0xff]
      %v533 = vld [vmem:[%s5] sm:$0x3]
      %v535 = vlaneseq
      %v536 = vshrl.u32 %v535, 7
      %v537 = vsub.s32 0, %v536
      %v538 = vrot.slane %v533, %v537
      %v539 = vlaneseq
      %v540 = vshrl.u32 %v539, 7
      %v541 = vsub.s32 1, %v540
      %v542 = vrot.slane %v533, %v541
      %v561 = vunpack.c.l.b16 %v517
      %v562 = vunpack.c.h.b16 %v517
      %v563 = vunpack.c.l.b16 %v518
      %v564 = vunpack.c.h.b16 %v518
      %v565 = vunpack.c.l.b16 %v519
      %v566 = vunpack.c.h.b16 %v519
      %v567 = vunpack.c.l.b16 %v520
      %v568 = vunpack.c.h.b16 %v520
      %v569 = vunpack.c.l.b16 %v521
      %v570 = vunpack.c.h.b16 %v521
      %v571 = vunpack.c.l.b16 %v522
      %v572 = vunpack.c.h.b16 %v522
      %v573 = vunpack.c.l.b16 %v523
      %v574 = vunpack.c.h.b16 %v523
      %v575 = vunpack.c.l.b16 %v524
      %v576 = vunpack.c.h.b16 %v524
      %v577 = vunpack.c.l.b16 %v525
      %v578 = vunpack.c.h.b16 %v525
      %v579 = vunpack.c.l.b16 %v526
      %v580 = vunpack.c.h.b16 %v526
      %v581 = vunpack.c.l.b16 %v527
      %v582 = vunpack.c.h.b16 %v527
      %v583 = vunpack.c.l.b16 %v528
      %v584 = vunpack.c.h.b16 %v528
      %v585 = vunpack.c.l.b16 %v529
      %v586 = vunpack.c.h.b16 %v529
      %v587 = vunpack.c.l.b16 %v530
      %v588 = vunpack.c.h.b16 %v530
      %v589 = vunpack.c.l.b16 %v531
      %v590 = vunpack.c.h.b16 %v531
      %v591 = vunpack.c.l.b16 %v532
      %v592 = vunpack.c.h.b16 %v532
      %v593 = vpack.c.b16 %v563, %v561
      %v594 = vpack.c.b16 %v564, %v562
      %v595 = vpack.c.b16 %v567, %v565
      %v596 = vpack.c.b16 %v568, %v566
      %v597 = vpack.c.b16 %v571, %v569
      %v598 = vpack.c.b16 %v572, %v570
      %v599 = vpack.c.b16 %v575, %v573
      %v600 = vpack.c.b16 %v576, %v574
      %v601 = vpack.c.b16 %v579, %v577
      %v602 = vpack.c.b16 %v580, %v578
      %v603 = vpack.c.b16 %v583, %v581
      %v604 = vpack.c.b16 %v584, %v582
      %v605 = vpack.c.b16 %v587, %v585
      %v606 = vpack.c.b16 %v588, %v586
      %v607 = vpack.c.b16 %v591, %v589
      %v608 = vpack.c.b16 %v592, %v590
      %625 = vmatprep.subr.bf16.mxu0 %v594
      %626 = vmatpush1.bf16.msra.mxu0 %v593
      %627 = vmatprep.subr.bf16.mxu0 %v596
      %628 = vmatpush1.bf16.msra.mxu0 %v595
      %629 = vmatprep.subr.bf16.mxu0 %v598
      %630 = vmatpush1.bf16.msra.mxu0 %v597
      %631 = vmatprep.subr.bf16.mxu0 %v600
      %632 = vmatpush1.bf16.msra.mxu0 %v599
      %633 = vmatprep.subr.bf16.mxu0 %v602
      %634 = vmatpush1.bf16.msra.mxu0 %v601
      %635 = vmatprep.subr.bf16.mxu0 %v604
      %636 = vmatpush1.bf16.msra.mxu0 %v603
      %637 = vmatprep.subr.bf16.mxu0 %v606
      %638 = vmatpush1.bf16.msra.mxu0 %v605
      %639 = vmatprep.subr.bf16.mxu0 %v608
      %640 = vmatpush1.bf16.msra.mxu0 %v607
      %641 = vmatprep.subr.bf16.mxu0 0
      %642 = vmatpush1.bf16.msra.mxu0 0
      %643 = vmatprep.subr.bf16.mxu0 0
      %644 = vmatpush1.bf16.msra.mxu0 0
      %645 = vmatprep.subr.bf16.mxu0 0
      %646 = vmatpush1.bf16.msra.mxu0 0
      %647 = vmatprep.subr.bf16.mxu0 0
      %648 = vmatpush1.bf16.msra.mxu0 0
      %649 = vmatprep.subr.bf16.mxu0 0
      %650 = vmatpush1.bf16.msra.mxu0 0
      %651 = vmatprep.subr.bf16.mxu0 0
      %652 = vmatpush1.bf16.msra.mxu0 0
      %653 = vmatprep.subr.bf16.mxu0 0
      %654 = vmatpush1.bf16.msra.mxu0 0
      %655 = vmatprep.subr.bf16.mxu0 0
      %656 = vmatpush1.bf16.msra.mxu0 0
      %657 = vmatprep.mubr.bf16.mxu0 0
      %658 = vmatmul.mubr.bf16.gmra.mrb[0].mxu0 %v405
      %v659 = vpop.f32.mrb[0].mxu0
      %v660 = vadd.f32 %v538, %v659
      %v661 = vpop.f32.mrb[0].mxu0
      %v662 = vadd.f32 %v542, %v661
      %v663 = vpop.f32.mrb[0].mxu0
      %v664 = vpop.f32.mrb[0].mxu0
      %665 = vdwg.mxu0
      %667 = vrot.lane.b32.xlu0 %v512, 96
      %v668 = vpop.permute.xlu0 %667
      %669 = vrot.lane.b32.xlu0 %v512, 64
      %v670 = vpop.permute.xlu0 %669
      %671 = vrot.lane.b32.xlu0 %v512, 32
      %v672 = vpop.permute.xlu0 %671
      %674 = vrot.lane.b32.xlu0 %v660, 96
      %v675 = vpop.permute.xlu0 %674
      %677 = vrot.lane.b32.xlu0 %v660, 64
      %v678 = vpop.permute.xlu0 %677
      %680 = vrot.lane.b32.xlu0 %v660, 32
      %v681 = vpop.permute.xlu0 %680
      %684 = vrot.lane.b32.xlu0 %v662, 96
      %v685 = vpop.permute.xlu0 %684
      %687 = vrot.lane.b32.xlu0 %v662, 64
      %v688 = vpop.permute.xlu0 %687
      %690 = vrot.lane.b32.xlu0 %v662, 32
      %v691 = vpop.permute.xlu0 %690
      %693 = vxpose.xlu0.b32.start [1/16] %v660, 128
      %694 = vxpose.xlu0.b32.cont [2/16] 0.0, 128
      %695 = vxpose.xlu0.b32.cont [3/16] 0.0, 128
      %696 = vxpose.xlu0.b32.cont [4/16] 0.0, 128
      %697 = vxpose.xlu0.b32.cont [5/16] 0.0, 128
      %698 = vxpose.xlu0.b32.cont [6/16] 0.0, 128
      %699 = vxpose.xlu0.b32.cont [7/16] 0.0, 128
      %700 = vxpose.xlu0.b32.cont [8/16] 0.0, 128
      %701 = vxpose.xlu0.b32.cont [9/16] 0.0, 128
      %702 = vxpose.xlu0.b32.cont [10/16] 0.0, 128
      %703 = vxpose.xlu0.b32.cont [11/16] 0.0, 128
      %704 = vxpose.xlu0.b32.cont [12/16] 0.0, 128
      %705 = vxpose.xlu0.b32.cont [13/16] 0.0, 128
      %706 = vxpose.xlu0.b32.cont [14/16] 0.0, 128
      %707 = vxpose.xlu0.b32.cont [15/16] 0.0, 128
      %708 = vxpose.xlu0.b32.end [16/16] 0.0, 128
      %v709 = vpop.trf.xlu0
      %v710 = vpop.trf.xlu0
      %v711 = vpop.trf.xlu0
      %v712 = vpop.trf.xlu0
      %v713 = vpop.trf.xlu0
      %v714 = vpop.trf.xlu0
      %v715 = vpop.trf.xlu0
      %v716 = vpop.trf.xlu0
      %v717 = vpop.trf.xlu0
      %v718 = vpop.trf.xlu0
      %v719 = vpop.trf.xlu0
      %v720 = vpop.trf.xlu0
      %v721 = vpop.trf.xlu0
      %v722 = vpop.trf.xlu0
      %v723 = vpop.trf.xlu0
      %v724 = vpop.trf.xlu0
      %725 = vxpose.xlu0.b32.start [1/16] %v675, 128
      %726 = vxpose.xlu0.b32.cont [2/16] 0.0, 128
      %727 = vxpose.xlu0.b32.cont [3/16] 0.0, 128
      %728 = vxpose.xlu0.b32.cont [4/16] 0.0, 128
      %729 = vxpose.xlu0.b32.cont [5/16] 0.0, 128
      %730 = vxpose.xlu0.b32.cont [6/16] 0.0, 128
      %731 = vxpose.xlu0.b32.cont [7/16] 0.0, 128
      %732 = vxpose.xlu0.b32.cont [8/16] 0.0, 128
      %733 = vxpose.xlu0.b32.cont [9/16] 0.0, 128
      %734 = vxpose.xlu0.b32.cont [10/16] 0.0, 128
      %735 = vxpose.xlu0.b32.cont [11/16] 0.0, 128
      %736 = vxpose.xlu0.b32.cont [12/16] 0.0, 128
      %737 = vxpose.xlu0.b32.cont [13/16] 0.0, 128
      %738 = vxpose.xlu0.b32.cont [14/16] 0.0, 128
      %739 = vxpose.xlu0.b32.cont [15/16] 0.0, 128
      %740 = vxpose.xlu0.b32.end [16/16] 0.0, 128
      %v741 = vpop.trf.xlu0
      %v742 = vpop.trf.xlu0
      %v743 = vpop.trf.xlu0
      %v744 = vpop.trf.xlu0
      %v745 = vpop.trf.xlu0
      %v746 = vpop.trf.xlu0
      %v747 = vpop.trf.xlu0
      %v748 = vpop.trf.xlu0
      %v749 = vpop.trf.xlu0
      %v750 = vpop.trf.xlu0
      %v751 = vpop.trf.xlu0
      %v752 = vpop.trf.xlu0
      %v753 = vpop.trf.xlu0
      %v754 = vpop.trf.xlu0
      %v755 = vpop.trf.xlu0
      %v756 = vpop.trf.xlu0
      %757 = vxpose.xlu0.b32.start [1/16] %v678, 128
      %758 = vxpose.xlu0.b32.cont [2/16] 0.0, 128
      %759 = vxpose.xlu0.b32.cont [3/16] 0.0, 128
      %760 = vxpose.xlu0.b32.cont [4/16] 0.0, 128
      %761 = vxpose.xlu0.b32.cont [5/16] 0.0, 128
      %762 = vxpose.xlu0.b32.cont [6/16] 0.0, 128
      %763 = vxpose.xlu0.b32.cont [7/16] 0.0, 128
      %764 = vxpose.xlu0.b32.cont [8/16] 0.0, 128
      %765 = vxpose.xlu0.b32.cont [9/16] 0.0, 128
      %766 = vxpose.xlu0.b32.cont [10/16] 0.0, 128
      %767 = vxpose.xlu0.b32.cont [11/16] 0.0, 128
      %768 = vxpose.xlu0.b32.cont [12/16] 0.0, 128
      %769 = vxpose.xlu0.b32.cont [13/16] 0.0, 128
      %770 = vxpose.xlu0.b32.cont [14/16] 0.0, 128
      %771 = vxpose.xlu0.b32.cont [15/16] 0.0, 128
      %772 = vxpose.xlu0.b32.end [16/16] 0.0, 128
      %v773 = vpop.trf.xlu0
      %v774 = vpop.trf.xlu0
      %v775 = vpop.trf.xlu0
      %v776 = vpop.trf.xlu0
      %v777 = vpop.trf.xlu0
      %v778 = vpop.trf.xlu0
      %v779 = vpop.trf.xlu0
      %v780 = vpop.trf.xlu0
      %v781 = vpop.trf.xlu0
      %v782 = vpop.trf.xlu0
      %v783 = vpop.trf.xlu0
      %v784 = vpop.trf.xlu0
      %v785 = vpop.trf.xlu0
      %v786 = vpop.trf.xlu0
      %v787 = vpop.trf.xlu0
      %v788 = vpop.trf.xlu0
      %789 = vxpose.xlu0.b32.start [1/16] %v681, 128
      %790 = vxpose.xlu0.b32.cont [2/16] 0.0, 128
      %791 = vxpose.xlu0.b32.cont [3/16] 0.0, 128
      %792 = vxpose.xlu0.b32.cont [4/16] 0.0, 128
      %793 = vxpose.xlu0.b32.cont [5/16] 0.0, 128
      %794 = vxpose.xlu0.b32.cont [6/16] 0.0, 128
      %795 = vxpose.xlu0.b32.cont [7/16] 0.0, 128
      %796 = vxpose.xlu0.b32.cont [8/16] 0.0, 128
      %797 = vxpose.xlu0.b32.cont [9/16] 0.0, 128
      %798 = vxpose.xlu0.b32.cont [10/16] 0.0, 128
      %799 = vxpose.xlu0.b32.cont [11/16] 0.0, 128
      %800 = vxpose.xlu0.b32.cont [12/16] 0.0, 128
      %801 = vxpose.xlu0.b32.cont [13/16] 0.0, 128
      %802 = vxpose.xlu0.b32.cont [14/16] 0.0, 128
      %803 = vxpose.xlu0.b32.cont [15/16] 0.0, 128
      %804 = vxpose.xlu0.b32.end [16/16] 0.0, 128
      %v805 = vpop.trf.xlu0
      %v806 = vpop.trf.xlu0
      %v807 = vpop.trf.xlu0
      %v808 = vpop.trf.xlu0
      %v809 = vpop.trf.xlu0
      %v810 = vpop.trf.xlu0
      %v811 = vpop.trf.xlu0
      %v812 = vpop.trf.xlu0
      %v813 = vpop.trf.xlu0
      %v814 = vpop.trf.xlu0
      %v815 = vpop.trf.xlu0
      %v816 = vpop.trf.xlu0
      %v817 = vpop.trf.xlu0
      %v818 = vpop.trf.xlu0
      %v819 = vpop.trf.xlu0
      %v820 = vpop.trf.xlu0
      %vm821 = vcmask 261120
      %v822 = vsel %vm821, %v512, 0
      %824 = vmatprep.subr.mxu0 0.0
      %825 = vmatpush1.msra.mxu0 %v709
      %826 = vmatprep.subr.mxu0 0.0
      %827 = vmatpush1.msra.mxu0 %v710
      %828 = vmatprep.subr.mxu0 0.0
      %829 = vmatpush1.msra.mxu0 %v711
      %830 = vmatprep.subr.mxu0 0.0
      %831 = vmatpush1.msra.mxu0 %v712
      %832 = vmatprep.subr.mxu0 0.0
      %833 = vmatpush1.msra.mxu0 0.0
      %834 = vmatprep.subr.mxu0 0.0
      %835 = vmatpush1.msra.mxu0 0.0
      %836 = vmatprep.subr.mxu0 0.0
      %837 = vmatpush1.msra.mxu0 0.0
      %838 = vmatprep.subr.mxu0 0.0
      %839 = vmatpush1.msra.mxu0 0.0
      %840 = vmatprep.subr.mxu0 0.0
      %841 = vmatpush1.msra.mxu0 0.0
      %842 = vmatprep.subr.mxu0 0.0
      %843 = vmatpush1.msra.mxu0 0.0
      %844 = vmatprep.subr.mxu0 0.0
      %845 = vmatpush1.msra.mxu0 0.0
      %846 = vmatprep.subr.mxu0 0.0
      %847 = vmatpush1.msra.mxu0 0.0
      %848 = vmatprep.subr.mxu0 0.0
      %849 = vmatpush1.msra.mxu0 0.0
      %850 = vmatprep.subr.mxu0 0.0
      %851 = vmatpush1.msra.mxu0 0.0
      %852 = vmatprep.subr.mxu0 0.0
      %853 = vmatpush1.msra.mxu0 0.0
      %854 = vmatprep.subr.mxu0 0.0
      %855 = vmatpush1.msra.mxu0 0.0
      %856 = vmatprep.subr.mxu0 0.0
      %857 = vmatpush1.msra.mxu0 0.0
      %858 = vmatprep.subr.mxu0 0.0
      %859 = vmatpush1.msra.mxu0 0.0
      %860 = vmatprep.subr.mxu0 0.0
      %861 = vmatpush1.msra.mxu0 0.0
      %862 = vmatprep.subr.mxu0 0.0
      %863 = vmatpush1.msra.mxu0 0.0
      %864 = vmatprep.subr.mxu0 0.0
      %865 = vmatpush1.msra.mxu0 0.0
      %866 = vmatprep.subr.mxu0 0.0
      %867 = vmatpush1.msra.mxu0 0.0
      %868 = vmatprep.subr.mxu0 0.0
      %869 = vmatpush1.msra.mxu0 0.0
      %870 = vmatprep.subr.mxu0 0.0
      %871 = vmatpush1.msra.mxu0 0.0
      %872 = vmatprep.subr.mxu0 0.0
      %873 = vmatpush1.msra.mxu0 0.0
      %874 = vmatprep.subr.mxu0 0.0
      %875 = vmatpush1.msra.mxu0 0.0
      %876 = vmatprep.subr.mxu0 0.0
      %877 = vmatpush1.msra.mxu0 0.0
      %878 = vmatprep.subr.mxu0 0.0
      %879 = vmatpush1.msra.mxu0 0.0
      %880 = vmatprep.subr.mxu0 0.0
      %881 = vmatpush1.msra.mxu0 0.0
      %882 = vmatprep.subr.mxu0 0.0
      %883 = vmatpush1.msra.mxu0 0.0
      %884 = vmatprep.subr.mxu0 0.0
      %885 = vmatpush1.msra.mxu0 0.0
      %886 = vmatprep.subr.mxu0 0.0
      %887 = vmatpush1.msra.mxu0 0.0
      %888 = vmatprep.mubr.f32.mxu0 0.0
      %889 = vmatmul.mubr.f32.gmra.mrb[0].mxu0 %v822
      %v890 = vpop.f32.mrb[0].mxu0
      %v891 = vadd.f32 0.0, %v890
      %v892 = vpop.f32.mrb[0].mxu0
      %893 = vdwg.mxu0
      %v894 = vsel %vm821, %v668, 0
      %896 = vmatprep.subr.mxu0 0.0
      %897 = vmatpush1.msra.mxu0 %v741
      %898 = vmatprep.subr.mxu0 0.0
      %899 = vmatpush1.msra.mxu0 %v742
      %900 = vmatprep.subr.mxu0 0.0
      %901 = vmatpush1.msra.mxu0 %v743
      %902 = vmatprep.subr.mxu0 0.0
      %903 = vmatpush1.msra.mxu0 %v744
      %904 = vmatprep.subr.mxu0 0.0
      %905 = vmatpush1.msra.mxu0 0.0
      %906 = vmatprep.subr.mxu0 0.0
      %907 = vmatpush1.msra.mxu0 0.0
      %908 = vmatprep.subr.mxu0 0.0
      %909 = vmatpush1.msra.mxu0 0.0
      %910 = vmatprep.subr.mxu0 0.0
      %911 = vmatpush1.msra.mxu0 0.0
      %912 = vmatprep.subr.mxu0 0.0
      %913 = vmatpush1.msra.mxu0 0.0
      %914 = vmatprep.subr.mxu0 0.0
      %915 = vmatpush1.msra.mxu0 0.0
      %916 = vmatprep.subr.mxu0 0.0
      %917 = vmatpush1.msra.mxu0 0.0
      %918 = vmatprep.subr.mxu0 0.0
      %919 = vmatpush1.msra.mxu0 0.0
      %920 = vmatprep.subr.mxu0 0.0
      %921 = vmatpush1.msra.mxu0 0.0
      %922 = vmatprep.subr.mxu0 0.0
      %923 = vmatpush1.msra.mxu0 0.0
      %924 = vmatprep.subr.mxu0 0.0
      %925 = vmatpush1.msra.mxu0 0.0
      %926 = vmatprep.subr.mxu0 0.0
      %927 = vmatpush1.msra.mxu0 0.0
      %928 = vmatprep.subr.mxu0 0.0
      %929 = vmatpush1.msra.mxu0 0.0
      %930 = vmatprep.subr.mxu0 0.0
      %931 = vmatpush1.msra.mxu0 0.0
      %932 = vmatprep.subr.mxu0 0.0
      %933 = vmatpush1.msra.mxu0 0.0
      %934 = vmatprep.subr.mxu0 0.0
      %935 = vmatpush1.msra.mxu0 0.0
      %936 = vmatprep.subr.mxu0 0.0
      %937 = vmatpush1.msra.mxu0 0.0
      %938 = vmatprep.subr.mxu0 0.0
      %939 = vmatpush1.msra.mxu0 0.0
      %940 = vmatprep.subr.mxu0 0.0
      %941 = vmatpush1.msra.mxu0 0.0
      %942 = vmatprep.subr.mxu0 0.0
      %943 = vmatpush1.msra.mxu0 0.0
      %944 = vmatprep.subr.mxu0 0.0
      %945 = vmatpush1.msra.mxu0 0.0
      %946 = vmatprep.subr.mxu0 0.0
      %947 = vmatpush1.msra.mxu0 0.0
      %948 = vmatprep.subr.mxu0 0.0
      %949 = vmatpush1.msra.mxu0 0.0
      %950 = vmatprep.subr.mxu0 0.0
      %951 = vmatpush1.msra.mxu0 0.0
      %952 = vmatprep.subr.mxu0 0.0
      %953 = vmatpush1.msra.mxu0 0.0
      %954 = vmatprep.subr.mxu0 0.0
      %955 = vmatpush1.msra.mxu0 0.0
      %956 = vmatprep.subr.mxu0 0.0
      %957 = vmatpush1.msra.mxu0 0.0
      %958 = vmatprep.subr.mxu0 0.0
      %959 = vmatpush1.msra.mxu0 0.0
      %960 = vmatprep.mubr.f32.mxu0 0.0
      %961 = vmatmul.mubr.f32.gmra.mrb[0].mxu0 %v894
      %v962 = vpop.f32.mrb[0].mxu0
      %v963 = vadd.f32 0.0, %v962
      %v964 = vpop.f32.mrb[0].mxu0
      %965 = vdwg.mxu0
      %v966 = vsel %vm821, %v670, 0
      %968 = vmatprep.subr.mxu0 0.0
      %969 = vmatpush1.msra.mxu0 %v773
      %970 = vmatprep.subr.mxu0 0.0
      %971 = vmatpush1.msra.mxu0 %v774
      %972 = vmatprep.subr.mxu0 0.0
      %973 = vmatpush1.msra.mxu0 %v775
      %974 = vmatprep.subr.mxu0 0.0
      %975 = vmatpush1.msra.mxu0 %v776
      %976 = vmatprep.subr.mxu0 0.0
      %977 = vmatpush1.msra.mxu0 0.0
      %978 = vmatprep.subr.mxu0 0.0
      %979 = vmatpush1.msra.mxu0 0.0
      %980 = vmatprep.subr.mxu0 0.0
      %981 = vmatpush1.msra.mxu0 0.0
      %982 = vmatprep.subr.mxu0 0.0
      %983 = vmatpush1.msra.mxu0 0.0
      %984 = vmatprep.subr.mxu0 0.0
      %985 = vmatpush1.msra.mxu0 0.0
      %986 = vmatprep.subr.mxu0 0.0
      %987 = vmatpush1.msra.mxu0 0.0
      %988 = vmatprep.subr.mxu0 0.0
      %989 = vmatpush1.msra.mxu0 0.0
      %990 = vmatprep.subr.mxu0 0.0
      %991 = vmatpush1.msra.mxu0 0.0
      %992 = vmatprep.subr.mxu0 0.0
      %993 = vmatpush1.msra.mxu0 0.0
      %994 = vmatprep.subr.mxu0 0.0
      %995 = vmatpush1.msra.mxu0 0.0
      %996 = vmatprep.subr.mxu0 0.0
      %997 = vmatpush1.msra.mxu0 0.0
      %998 = vmatprep.subr.mxu0 0.0
      %999 = vmatpush1.msra.mxu0 0.0
      %1000 = vmatprep.subr.mxu0 0.0
      %1001 = vmatpush1.msra.mxu0 0.0
      %1002 = vmatprep.subr.mxu0 0.0
      %1003 = vmatpush1.msra.mxu0 0.0
      %1004 = vmatprep.subr.mxu0 0.0
      %1005 = vmatpush1.msra.mxu0 0.0
      %1006 = vmatprep.subr.mxu0 0.0
      %1007 = vmatpush1.msra.mxu0 0.0
      %1008 = vmatprep.subr.mxu0 0.0
      %1009 = vmatpush1.msra.mxu0 0.0
      %1010 = vmatprep.subr.mxu0 0.0
      %1011 = vmatpush1.msra.mxu0 0.0
      %1012 = vmatprep.subr.mxu0 0.0
      %1013 = vmatpush1.msra.mxu0 0.0
      %1014 = vmatprep.subr.mxu0 0.0
      %1015 = vmatpush1.msra.mxu0 0.0
      %1016 = vmatprep.subr.mxu0 0.0
      %1017 = vmatpush1.msra.mxu0 0.0
      %1018 = vmatprep.subr.mxu0 0.0
      %1019 = vmatpush1.msra.mxu0 0.0
      %1020 = vmatprep.subr.mxu0 0.0
      %1021 = vmatpush1.msra.mxu0 0.0
      %1022 = vmatprep.subr.mxu0 0.0
      %1023 = vmatpush1.msra.mxu0 0.0
      %1024 = vmatprep.subr.mxu0 0.0
      %1025 = vmatpush1.msra.mxu0 0.0
      %1026 = vmatprep.subr.mxu0 0.0
      %1027 = vmatpush1.msra.mxu0 0.0
      %1028 = vmatprep.subr.mxu0 0.0
      %1029 = vmatpush1.msra.mxu0 0.0
      %1030 = vmatprep.subr.mxu0 0.0
      %1031 = vmatpush1.msra.mxu0 0.0
      %1032 = vmatprep.mubr.f32.mxu0 0.0
      %1033 = vmatmul.mubr.f32.gmra.mrb[0].mxu0 %v966
      %v1034 = vpop.f32.mrb[0].mxu0
      %v1035 = vadd.f32 0.0, %v1034
      %v1036 = vpop.f32.mrb[0].mxu0
      %1037 = vdwg.mxu0
      %v1038 = vsel %vm821, %v672, 0
      %1040 = vmatprep.subr.mxu0 0.0
      %1041 = vmatpush1.msra.mxu0 %v805
      %1042 = vmatprep.subr.mxu0 0.0
      %1043 = vmatpush1.msra.mxu0 %v806
      %1044 = vmatprep.subr.mxu0 0.0
      %1045 = vmatpush1.msra.mxu0 %v807
      %1046 = vmatprep.subr.mxu0 0.0
      %1047 = vmatpush1.msra.mxu0 %v808
      %1048 = vmatprep.subr.mxu0 0.0
      %1049 = vmatpush1.msra.mxu0 0.0
      %1050 = vmatprep.subr.mxu0 0.0
      %1051 = vmatpush1.msra.mxu0 0.0
      %1052 = vmatprep.subr.mxu0 0.0
      %1053 = vmatpush1.msra.mxu0 0.0
      %1054 = vmatprep.subr.mxu0 0.0
      %1055 = vmatpush1.msra.mxu0 0.0
      %1056 = vmatprep.subr.mxu0 0.0
      %1057 = vmatpush1.msra.mxu0 0.0
      %1058 = vmatprep.subr.mxu0 0.0
      %1059 = vmatpush1.msra.mxu0 0.0
      %1060 = vmatprep.subr.mxu0 0.0
      %1061 = vmatpush1.msra.mxu0 0.0
      %1062 = vmatprep.subr.mxu0 0.0
      %1063 = vmatpush1.msra.mxu0 0.0
      %1064 = vmatprep.subr.mxu0 0.0
      %1065 = vmatpush1.msra.mxu0 0.0
      %1066 = vmatprep.subr.mxu0 0.0
      %1067 = vmatpush1.msra.mxu0 0.0
      %1068 = vmatprep.subr.mxu0 0.0
      %1069 = vmatpush1.msra.mxu0 0.0
      %1070 = vmatprep.subr.mxu0 0.0
      %1071 = vmatpush1.msra.mxu0 0.0
      %1072 = vmatprep.subr.mxu0 0.0
      %1073 = vmatpush1.msra.mxu0 0.0
      %1074 = vmatprep.subr.mxu0 0.0
      %1075 = vmatpush1.msra.mxu0 0.0
      %1076 = vmatprep.subr.mxu0 0.0
      %1077 = vmatpush1.msra.mxu0 0.0
      %1078 = vmatprep.subr.mxu0 0.0
      %1079 = vmatpush1.msra.mxu0 0.0
      %1080 = vmatprep.subr.mxu0 0.0
      %1081 = vmatpush1.msra.mxu0 0.0
      %1082 = vmatprep.subr.mxu0 0.0
      %1083 = vmatpush1.msra.mxu0 0.0
      %1084 = vmatprep.subr.mxu0 0.0
      %1085 = vmatpush1.msra.mxu0 0.0
      %1086 = vmatprep.subr.mxu0 0.0
      %1087 = vmatpush1.msra.mxu0 0.0
      %1088 = vmatprep.subr.mxu0 0.0
      %1089 = vmatpush1.msra.mxu0 0.0
      %1090 = vmatprep.subr.mxu0 0.0
      %1091 = vmatpush1.msra.mxu0 0.0
      %1092 = vmatprep.subr.mxu0 0.0
      %1093 = vmatpush1.msra.mxu0 0.0
      %1094 = vmatprep.subr.mxu0 0.0
      %1095 = vmatpush1.msra.mxu0 0.0
      %1096 = vmatprep.subr.mxu0 0.0
      %1097 = vmatpush1.msra.mxu0 0.0
      %1098 = vmatprep.subr.mxu0 0.0
      %1099 = vmatpush1.msra.mxu0 0.0
      %1100 = vmatprep.subr.mxu0 0.0
      %1101 = vmatpush1.msra.mxu0 0.0
      %1102 = vmatprep.subr.mxu0 0.0
      %1103 = vmatpush1.msra.mxu0 0.0
      %1104 = vmatprep.mubr.f32.mxu0 0.0
      %1105 = vmatmul.mubr.f32.gmra.mrb[0].mxu0 %v1038
      %v1106 = vpop.f32.mrb[0].mxu0
      %v1107 = vadd.f32 0.0, %v1106
      %v1108 = vpop.f32.mrb[0].mxu0
      %1109 = vdwg.mxu0
      %s1110 = smul.u32 %s26, 8
      %v1111 = vlaneseq
      %v1112 = vshrl.u32 %v1111, 7
      %v1113 = vstv %s1110
      %v1114 = vadd.s32 %v1113, %v1112
      %v1115 = vlaneseq
      %v1116 = vand.u32 %v1115, 127
      %vm1117 = vcmp.gt.s32.totalorder %v1116, %v1114
      %v1118 = vsel %vm1117, 1, 0
      %vm1119 = vcmp.eq.s32.totalorder %v1118, 1
      %v1120 = vsel %vm1119, -1e+09, %v891
      %v1121 = vsel %vm1119, -1e+09, %v963
      %v1122 = vsel %vm1119, -1e+09, %v1035
      %v1123 = vsel %vm1119, -1e+09, %v1107
      %vm1124 = vcmask 64512
      %v1125 = vsel %vm1124, %v1120, -inf
      %1126 = vmax.xlane.f32.xlu0 %v1125
      %v1127 = vpop.xlane.xlu0 %1126
      %v1128 = vsel %vm1124, %v1121, -inf
      %1129 = vmax.xlane.f32.xlu0 %v1128
      %v1130 = vpop.xlane.xlu0 %1129
      %v1131 = vsel %vm1124, %v1122, -inf
      %1132 = vmax.xlane.f32.xlu0 %v1131
      %v1133 = vpop.xlane.xlu0 %1132
      %v1134 = vsel %vm1124, %v1123, -inf
      %1135 = vmax.xlane.f32.xlu0 %v1134
      %v1136 = vpop.xlane.xlu0 %1135
      %v1137 = vsub.f32 %v1120, %v1127
      %v1138 = vsub.f32 %v1121, %v1130
      %v1139 = vsub.f32 %v1122, %v1133
      %v1140 = vsub.f32 %v1123, %v1136
      %v1141 = vmul.f32 %v1137, 1.442695
      %v1142 = vpow.pop %v1141
      %v1143 = vmul.f32 %v1138, 1.442695
      %v1144 = vpow.pop %v1143
      %v1145 = vmul.f32 %v1139, 1.442695
      %v1146 = vpow.pop %v1145
      %v1147 = vmul.f32 %v1140, 1.442695
      %v1148 = vpow.pop %v1147
      %v1149 = vsel %vm1124, %v1142, 0.0
      %1150 = vadd.xlane.f32.xlu0 %v1149
      %v1151 = vpop.xlane.xlu0 %1150
      %v1152 = vsel %vm1124, %v1144, 0.0
      %1153 = vadd.xlane.f32.xlu0 %v1152
      %v1154 = vpop.xlane.xlu0 %1153
      %v1155 = vsel %vm1124, %v1146, 0.0
      %1156 = vadd.xlane.f32.xlu0 %v1155
      %v1157 = vpop.xlane.xlu0 %1156
      %v1158 = vsel %vm1124, %v1148, 0.0
      %1159 = vadd.xlane.f32.xlu0 %v1158
      %v1160 = vpop.xlane.xlu0 %1159
      %v1161 = vrcp.pop %v1151
      %v1162 = vmul.f32 %v1142, %v1161
      %v1163 = vrcp.pop %v1154
      %v1164 = vmul.f32 %v1144, %v1163
      %v1165 = vrcp.pop %v1157
      %v1166 = vmul.f32 %v1146, %v1165
      %v1167 = vrcp.pop %v1160
      %v1168 = vmul.f32 %v1148, %v1167
      %1169 = vxpose.xlu0.b32.start [1/16] %v662, 128
      %1170 = vxpose.xlu0.b32.cont [2/16] 0.0, 128
      %1171 = vxpose.xlu0.b32.cont [3/16] 0.0, 128
      %1172 = vxpose.xlu0.b32.cont [4/16] 0.0, 128
      %1173 = vxpose.xlu0.b32.cont [5/16] 0.0, 128
      %1174 = vxpose.xlu0.b32.cont [6/16] 0.0, 128
      %1175 = vxpose.xlu0.b32.cont [7/16] 0.0, 128
      %1176 = vxpose.xlu0.b32.cont [8/16] 0.0, 128
      %1177 = vxpose.xlu0.b32.cont [9/16] 0.0, 128
      %1178 = vxpose.xlu0.b32.cont [10/16] 0.0, 128
      %1179 = vxpose.xlu0.b32.cont [11/16] 0.0, 128
      %1180 = vxpose.xlu0.b32.cont [12/16] 0.0, 128
      %1181 = vxpose.xlu0.b32.cont [13/16] 0.0, 128
      %1182 = vxpose.xlu0.b32.cont [14/16] 0.0, 128
      %1183 = vxpose.xlu0.b32.cont [15/16] 0.0, 128
      %1184 = vxpose.xlu0.b32.end [16/16] 0.0, 128
      %v1185 = vpop.trf.xlu0
      %v1186 = vpop.trf.xlu0
      %v1187 = vpop.trf.xlu0
      %v1188 = vpop.trf.xlu0
      %v1189 = vpop.trf.xlu0
      %v1190 = vpop.trf.xlu0
      %v1191 = vpop.trf.xlu0
      %v1192 = vpop.trf.xlu0
      %v1193 = vpop.trf.xlu0
      %v1194 = vpop.trf.xlu0
      %v1195 = vpop.trf.xlu0
      %v1196 = vpop.trf.xlu0
      %v1197 = vpop.trf.xlu0
      %v1198 = vpop.trf.xlu0
      %v1199 = vpop.trf.xlu0
      %v1200 = vpop.trf.xlu0
      %1201 = vxpose.xlu0.b32.start [1/16] %v685, 128
      %1202 = vxpose.xlu0.b32.cont [2/16] 0.0, 128
      %1203 = vxpose.xlu0.b32.cont [3/16] 0.0, 128
      %1204 = vxpose.xlu0.b32.cont [4/16] 0.0, 128
      %1205 = vxpose.xlu0.b32.cont [5/16] 0.0, 128
      %1206 = vxpose.xlu0.b32.cont [6/16] 0.0, 128
      %1207 = vxpose.xlu0.b32.cont [7/16] 0.0, 128
      %1208 = vxpose.xlu0.b32.cont [8/16] 0.0, 128
      %1209 = vxpose.xlu0.b32.cont [9/16] 0.0, 128
      %1210 = vxpose.xlu0.b32.cont [10/16] 0.0, 128
      %1211 = vxpose.xlu0.b32.cont [11/16] 0.0, 128
      %1212 = vxpose.xlu0.b32.cont [12/16] 0.0, 128
      %1213 = vxpose.xlu0.b32.cont [13/16] 0.0, 128
      %1214 = vxpose.xlu0.b32.cont [14/16] 0.0, 128
      %1215 = vxpose.xlu0.b32.cont [15/16] 0.0, 128
      %1216 = vxpose.xlu0.b32.end [16/16] 0.0, 128
      %v1217 = vpop.trf.xlu0
      %v1218 = vpop.trf.xlu0
      %v1219 = vpop.trf.xlu0
      %v1220 = vpop.trf.xlu0
      %v1221 = vpop.trf.xlu0
      %v1222 = vpop.trf.xlu0
      %v1223 = vpop.trf.xlu0
      %v1224 = vpop.trf.xlu0
      %v1225 = vpop.trf.xlu0
      %v1226 = vpop.trf.xlu0
      %v1227 = vpop.trf.xlu0
      %v1228 = vpop.trf.xlu0
      %v1229 = vpop.trf.xlu0
      %v1230 = vpop.trf.xlu0
      %v1231 = vpop.trf.xlu0
      %v1232 = vpop.trf.xlu0
      %1233 = vxpose.xlu0.b32.start [1/16] %v688, 128
      %1234 = vxpose.xlu0.b32.cont [2/16] 0.0, 128
      %1235 = vxpose.xlu0.b32.cont [3/16] 0.0, 128
      %1236 = vxpose.xlu0.b32.cont [4/16] 0.0, 128
      %1237 = vxpose.xlu0.b32.cont [5/16] 0.0, 128
      %1238 = vxpose.xlu0.b32.cont [6/16] 0.0, 128
      %1239 = vxpose.xlu0.b32.cont [7/16] 0.0, 128
      %1240 = vxpose.xlu0.b32.cont [8/16] 0.0, 128
      %1241 = vxpose.xlu0.b32.cont [9/16] 0.0, 128
      %1242 = vxpose.xlu0.b32.cont [10/16] 0.0, 128
      %1243 = vxpose.xlu0.b32.cont [11/16] 0.0, 128
      %1244 = vxpose.xlu0.b32.cont [12/16] 0.0, 128
      %1245 = vxpose.xlu0.b32.cont [13/16] 0.0, 128
      %1246 = vxpose.xlu0.b32.cont [14/16] 0.0, 128
      %1247 = vxpose.xlu0.b32.cont [15/16] 0.0, 128
      %1248 = vxpose.xlu0.b32.end [16/16] 0.0, 128
      %v1249 = vpop.trf.xlu0
      %v1250 = vpop.trf.xlu0
      %v1251 = vpop.trf.xlu0
      %v1252 = vpop.trf.xlu0
      %v1253 = vpop.trf.xlu0
      %v1254 = vpop.trf.xlu0
      %v1255 = vpop.trf.xlu0
      %v1256 = vpop.trf.xlu0
      %v1257 = vpop.trf.xlu0
      %v1258 = vpop.trf.xlu0
      %v1259 = vpop.trf.xlu0
      %v1260 = vpop.trf.xlu0
      %v1261 = vpop.trf.xlu0
      %v1262 = vpop.trf.xlu0
      %v1263 = vpop.trf.xlu0
      %v1264 = vpop.trf.xlu0
      %1265 = vxpose.xlu0.b32.start [1/16] %v691, 128
      %1266 = vxpose.xlu0.b32.cont [2/16] 0.0, 128
      %1267 = vxpose.xlu0.b32.cont [3/16] 0.0, 128
      %1268 = vxpose.xlu0.b32.cont [4/16] 0.0, 128
      %1269 = vxpose.xlu0.b32.cont [5/16] 0.0, 128
      %1270 = vxpose.xlu0.b32.cont [6/16] 0.0, 128
      %1271 = vxpose.xlu0.b32.cont [7/16] 0.0, 128
      %1272 = vxpose.xlu0.b32.cont [8/16] 0.0, 128
      %1273 = vxpose.xlu0.b32.cont [9/16] 0.0, 128
      %1274 = vxpose.xlu0.b32.cont [10/16] 0.0, 128
      %1275 = vxpose.xlu0.b32.cont [11/16] 0.0, 128
      %1276 = vxpose.xlu0.b32.cont [12/16] 0.0, 128
      %1277 = vxpose.xlu0.b32.cont [13/16] 0.0, 128
      %1278 = vxpose.xlu0.b32.cont [14/16] 0.0, 128
      %1279 = vxpose.xlu0.b32.cont [15/16] 0.0, 128
      %1280 = vxpose.xlu0.b32.end [16/16] 0.0, 128
      %v1281 = vpop.trf.xlu0
      %v1282 = vpop.trf.xlu0
      %v1283 = vpop.trf.xlu0
      %v1284 = vpop.trf.xlu0
      %v1285 = vpop.trf.xlu0
      %v1286 = vpop.trf.xlu0
      %v1287 = vpop.trf.xlu0
      %v1288 = vpop.trf.xlu0
      %v1289 = vpop.trf.xlu0
      %v1290 = vpop.trf.xlu0
      %v1291 = vpop.trf.xlu0
      %v1292 = vpop.trf.xlu0
      %v1293 = vpop.trf.xlu0
      %v1294 = vpop.trf.xlu0
      %v1295 = vpop.trf.xlu0
      %v1296 = vpop.trf.xlu0
      %v1298 = vsel %vm1124, %v1185, 0
      %v1301 = vsel %vm1124, %v1186, 0
      %v1304 = vsel %vm1124, %v1187, 0
      %v1307 = vsel %vm1124, %v1188, 0
      %v1310 = vsel %vm1124, %v1162, 0
      %1312 = vmatprep.subr.mxu0 0.0
      %1313 = vmatpush1.xpose.msra.mxu0 %v1310
      %1314 = vmatprep.subr.mxu0 0.0
      %1315 = vmatpush1.xpose.msra.mxu0 0.0
      %1316 = vmatprep.subr.mxu0 0.0
      %1317 = vmatpush1.xpose.msra.mxu0 0.0
      %1318 = vmatprep.subr.mxu0 0.0
      %1319 = vmatpush1.xpose.msra.mxu0 0.0
      %1320 = vmatprep.subr.mxu0 0.0
      %1321 = vmatpush1.xpose.msra.mxu0 0.0
      %1322 = vmatprep.subr.mxu0 0.0
      %1323 = vmatpush1.xpose.msra.mxu0 0.0
      %1324 = vmatprep.subr.mxu0 0.0
      %1325 = vmatpush1.xpose.msra.mxu0 0.0
      %1326 = vmatprep.subr.mxu0 0.0
      %1327 = vmatpush1.xpose.msra.mxu0 0.0
      %1328 = vmatprep.subr.mxu0 0.0
      %1329 = vmatpush1.xpose.msra.mxu0 0.0
      %1330 = vmatprep.subr.mxu0 0.0
      %1331 = vmatpush1.xpose.msra.mxu0 0.0
      %1332 = vmatprep.subr.mxu0 0.0
      %1333 = vmatpush1.xpose.msra.mxu0 0.0
      %1334 = vmatprep.subr.mxu0 0.0
      %1335 = vmatpush1.xpose.msra.mxu0 0.0
      %1336 = vmatprep.subr.mxu0 0.0
      %1337 = vmatpush1.xpose.msra.mxu0 0.0
      %1338 = vmatprep.subr.mxu0 0.0
      %1339 = vmatpush1.xpose.msra.mxu0 0.0
      %1340 = vmatprep.subr.mxu0 0.0
      %1341 = vmatpush1.xpose.msra.mxu0 0.0
      %1342 = vmatprep.subr.mxu0 0.0
      %1343 = vmatpush1.xpose.msra.mxu0 0.0
      %1344 = vmatprep.subr.mxu0 0.0
      %1345 = vmatpush1.xpose.msra.mxu0 0.0
      %1346 = vmatprep.subr.mxu0 0.0
      %1347 = vmatpush1.xpose.msra.mxu0 0.0
      %1348 = vmatprep.subr.mxu0 0.0
      %1349 = vmatpush1.xpose.msra.mxu0 0.0
      %1350 = vmatprep.subr.mxu0 0.0
      %1351 = vmatpush1.xpose.msra.mxu0 0.0
      %1352 = vmatprep.subr.mxu0 0.0
      %1353 = vmatpush1.xpose.msra.mxu0 0.0
      %1354 = vmatprep.subr.mxu0 0.0
      %1355 = vmatpush1.xpose.msra.mxu0 0.0
      %1356 = vmatprep.subr.mxu0 0.0
      %1357 = vmatpush1.xpose.msra.mxu0 0.0
      %1358 = vmatprep.subr.mxu0 0.0
      %1359 = vmatpush1.xpose.msra.mxu0 0.0
      %1360 = vmatprep.subr.mxu0 0.0
      %1361 = vmatpush1.xpose.msra.mxu0 0.0
      %1362 = vmatprep.subr.mxu0 0.0
      %1363 = vmatpush1.xpose.msra.mxu0 0.0
      %1364 = vmatprep.subr.mxu0 0.0
      %1365 = vmatpush1.xpose.msra.mxu0 0.0
      %1366 = vmatprep.subr.mxu0 0.0
      %1367 = vmatpush1.xpose.msra.mxu0 0.0
      %1368 = vmatprep.subr.mxu0 0.0
      %1369 = vmatpush1.xpose.msra.mxu0 0.0
      %1370 = vmatprep.subr.mxu0 0.0
      %1371 = vmatpush1.xpose.msra.mxu0 0.0
      %1372 = vmatprep.subr.mxu0 0.0
      %1373 = vmatpush1.xpose.msra.mxu0 0.0
      %1374 = vmatprep.subr.mxu0 0.0
      %1375 = vmatpush1.xpose.msra.mxu0 0.0
      %1376 = vmatprep.mubr.f32.mxu0 0.0
      %1377 = vmatmul.mubr.f32.gmra.mrb[0].mxu0 %v1298
      %v1378 = vpop.f32.mrb[0].mxu0
      %v1379 = vadd.f32 0.0, %v1378
      %v1380 = vpop.f32.mrb[0].mxu0
      %1381 = vmatprep.mubr.f32.mxu0 0.0
      %1382 = vmatmul.mubr.f32.gmra.mrb[0].mxu0 %v1301
      %v1383 = vpop.f32.mrb[0].mxu0
      %v1384 = vadd.f32 0.0, %v1383
      %v1385 = vpop.f32.mrb[0].mxu0
      %1386 = vmatprep.mubr.f32.mxu0 0.0
      %1387 = vmatmul.mubr.f32.gmra.mrb[0].mxu0 %v1304
      %v1388 = vpop.f32.mrb[0].mxu0
      %v1389 = vadd.f32 0.0, %v1388
      %v1390 = vpop.f32.mrb[0].mxu0
      %1391 = vmatprep.mubr.f32.mxu0 0.0
      %1392 = vmatmul.mubr.f32.gmra.mrb[0].mxu0 %v1307
      %v1393 = vpop.f32.mrb[0].mxu0
      %v1394 = vadd.f32 0.0, %v1393
      %v1395 = vpop.f32.mrb[0].mxu0
      %1396 = vdwg.mxu0
      %v1398 = vsel %vm1124, %v1217, 0
      %v1401 = vsel %vm1124, %v1218, 0
      %v1404 = vsel %vm1124, %v1219, 0
      %v1407 = vsel %vm1124, %v1220, 0
      %v1410 = vsel %vm1124, %v1164, 0
      %1412 = vmatprep.subr.mxu0 0.0
      %1413 = vmatpush1.xpose.msra.mxu0 %v1410
      %1414 = vmatprep.subr.mxu0 0.0
      %1415 = vmatpush1.xpose.msra.mxu0 0.0
      %1416 = vmatprep.subr.mxu0 0.0
      %1417 = vmatpush1.xpose.msra.mxu0 0.0
      %1418 = vmatprep.subr.mxu0 0.0
      %1419 = vmatpush1.xpose.msra.mxu0 0.0
      %1420 = vmatprep.subr.mxu0 0.0
      %1421 = vmatpush1.xpose.msra.mxu0 0.0
      %1422 = vmatprep.subr.mxu0 0.0
      %1423 = vmatpush1.xpose.msra.mxu0 0.0
      %1424 = vmatprep.subr.mxu0 0.0
      %1425 = vmatpush1.xpose.msra.mxu0 0.0
      %1426 = vmatprep.subr.mxu0 0.0
      %1427 = vmatpush1.xpose.msra.mxu0 0.0
      %1428 = vmatprep.subr.mxu0 0.0
      %1429 = vmatpush1.xpose.msra.mxu0 0.0
      %1430 = vmatprep.subr.mxu0 0.0
      %1431 = vmatpush1.xpose.msra.mxu0 0.0
      %1432 = vmatprep.subr.mxu0 0.0
      %1433 = vmatpush1.xpose.msra.mxu0 0.0
      %1434 = vmatprep.subr.mxu0 0.0
      %1435 = vmatpush1.xpose.msra.mxu0 0.0
      %1436 = vmatprep.subr.mxu0 0.0
      %1437 = vmatpush1.xpose.msra.mxu0 0.0
      %1438 = vmatprep.subr.mxu0 0.0
      %1439 = vmatpush1.xpose.msra.mxu0 0.0
      %1440 = vmatprep.subr.mxu0 0.0
      %1441 = vmatpush1.xpose.msra.mxu0 0.0
      %1442 = vmatprep.subr.mxu0 0.0
      %1443 = vmatpush1.xpose.msra.mxu0 0.0
      %1444 = vmatprep.subr.mxu0 0.0
      %1445 = vmatpush1.xpose.msra.mxu0 0.0
      %1446 = vmatprep.subr.mxu0 0.0
      %1447 = vmatpush1.xpose.msra.mxu0 0.0
      %1448 = vmatprep.subr.mxu0 0.0
      %1449 = vmatpush1.xpose.msra.mxu0 0.0
      %1450 = vmatprep.subr.mxu0 0.0
      %1451 = vmatpush1.xpose.msra.mxu0 0.0
      %1452 = vmatprep.subr.mxu0 0.0
      %1453 = vmatpush1.xpose.msra.mxu0 0.0
      %1454 = vmatprep.subr.mxu0 0.0
      %1455 = vmatpush1.xpose.msra.mxu0 0.0
      %1456 = vmatprep.subr.mxu0 0.0
      %1457 = vmatpush1.xpose.msra.mxu0 0.0
      %1458 = vmatprep.subr.mxu0 0.0
      %1459 = vmatpush1.xpose.msra.mxu0 0.0
      %1460 = vmatprep.subr.mxu0 0.0
      %1461 = vmatpush1.xpose.msra.mxu0 0.0
      %1462 = vmatprep.subr.mxu0 0.0
      %1463 = vmatpush1.xpose.msra.mxu0 0.0
      %1464 = vmatprep.subr.mxu0 0.0
      %1465 = vmatpush1.xpose.msra.mxu0 0.0
      %1466 = vmatprep.subr.mxu0 0.0
      %1467 = vmatpush1.xpose.msra.mxu0 0.0
      %1468 = vmatprep.subr.mxu0 0.0
      %1469 = vmatpush1.xpose.msra.mxu0 0.0
      %1470 = vmatprep.subr.mxu0 0.0
      %1471 = vmatpush1.xpose.msra.mxu0 0.0
      %1472 = vmatprep.subr.mxu0 0.0
      %1473 = vmatpush1.xpose.msra.mxu0 0.0
      %1474 = vmatprep.subr.mxu0 0.0
      %1475 = vmatpush1.xpose.msra.mxu0 0.0
      %1476 = vmatprep.mubr.f32.mxu0 0.0
      %1477 = vmatmul.mubr.f32.gmra.mrb[0].mxu0 %v1398
      %v1478 = vpop.f32.mrb[0].mxu0
      %v1479 = vadd.f32 0.0, %v1478
      %v1480 = vpop.f32.mrb[0].mxu0
      %1481 = vmatprep.mubr.f32.mxu0 0.0
      %1482 = vmatmul.mubr.f32.gmra.mrb[0].mxu0 %v1401
      %v1483 = vpop.f32.mrb[0].mxu0
      %v1484 = vadd.f32 0.0, %v1483
      %v1485 = vpop.f32.mrb[0].mxu0
      %1486 = vmatprep.mubr.f32.mxu0 0.0
      %1487 = vmatmul.mubr.f32.gmra.mrb[0].mxu0 %v1404
      %v1488 = vpop.f32.mrb[0].mxu0
      %v1489 = vadd.f32 0.0, %v1488
      %v1490 = vpop.f32.mrb[0].mxu0
      %1491 = vmatprep.mubr.f32.mxu0 0.0
      %1492 = vmatmul.mubr.f32.gmra.mrb[0].mxu0 %v1407
      %v1493 = vpop.f32.mrb[0].mxu0
      %v1494 = vadd.f32 0.0, %v1493
      %v1495 = vpop.f32.mrb[0].mxu0
      %1496 = vdwg.mxu0
      %v1498 = vsel %vm1124, %v1249, 0
      %v1501 = vsel %vm1124, %v1250, 0
      %v1504 = vsel %vm1124, %v1251, 0
      %v1507 = vsel %vm1124, %v1252, 0
      %v1510 = vsel %vm1124, %v1166, 0
      %1512 = vmatprep.subr.mxu0 0.0
      %1513 = vmatpush1.xpose.msra.mxu0 %v1510
      %1514 = vmatprep.subr.mxu0 0.0
      %1515 = vmatpush1.xpose.msra.mxu0 0.0
      %1516 = vmatprep.subr.mxu0 0.0
      %1517 = vmatpush1.xpose.msra.mxu0 0.0
      %1518 = vmatprep.subr.mxu0 0.0
      %1519 = vmatpush1.xpose.msra.mxu0 0.0
      %1520 = vmatprep.subr.mxu0 0.0
      %1521 = vmatpush1.xpose.msra.mxu0 0.0
      %1522 = vmatprep.subr.mxu0 0.0
      %1523 = vmatpush1.xpose.msra.mxu0 0.0
      %1524 = vmatprep.subr.mxu0 0.0
      %1525 = vmatpush1.xpose.msra.mxu0 0.0
      %1526 = vmatprep.subr.mxu0 0.0
      %1527 = vmatpush1.xpose.msra.mxu0 0.0
      %1528 = vmatprep.subr.mxu0 0.0
      %1529 = vmatpush1.xpose.msra.mxu0 0.0
      %1530 = vmatprep.subr.mxu0 0.0
      %1531 = vmatpush1.xpose.msra.mxu0 0.0
      %1532 = vmatprep.subr.mxu0 0.0
      %1533 = vmatpush1.xpose.msra.mxu0 0.0
      %1534 = vmatprep.subr.mxu0 0.0
      %1535 = vmatpush1.xpose.msra.mxu0 0.0
      %1536 = vmatprep.subr.mxu0 0.0
      %1537 = vmatpush1.xpose.msra.mxu0 0.0
      %1538 = vmatprep.subr.mxu0 0.0
      %1539 = vmatpush1.xpose.msra.mxu0 0.0
      %1540 = vmatprep.subr.mxu0 0.0
      %1541 = vmatpush1.xpose.msra.mxu0 0.0
      %1542 = vmatprep.subr.mxu0 0.0
      %1543 = vmatpush1.xpose.msra.mxu0 0.0
      %1544 = vmatprep.subr.mxu0 0.0
      %1545 = vmatpush1.xpose.msra.mxu0 0.0
      %1546 = vmatprep.subr.mxu0 0.0
      %1547 = vmatpush1.xpose.msra.mxu0 0.0
      %1548 = vmatprep.subr.mxu0 0.0
      %1549 = vmatpush1.xpose.msra.mxu0 0.0
      %1550 = vmatprep.subr.mxu0 0.0
      %1551 = vmatpush1.xpose.msra.mxu0 0.0
      %1552 = vmatprep.subr.mxu0 0.0
      %1553 = vmatpush1.xpose.msra.mxu0 0.0
      %1554 = vmatprep.subr.mxu0 0.0
      %1555 = vmatpush1.xpose.msra.mxu0 0.0
      %1556 = vmatprep.subr.mxu0 0.0
      %1557 = vmatpush1.xpose.msra.mxu0 0.0
      %1558 = vmatprep.subr.mxu0 0.0
      %1559 = vmatpush1.xpose.msra.mxu0 0.0
      %1560 = vmatprep.subr.mxu0 0.0
      %1561 = vmatpush1.xpose.msra.mxu0 0.0
      %1562 = vmatprep.subr.mxu0 0.0
      %1563 = vmatpush1.xpose.msra.mxu0 0.0
      %1564 = vmatprep.subr.mxu0 0.0
      %1565 = vmatpush1.xpose.msra.mxu0 0.0
      %1566 = vmatprep.subr.mxu0 0.0
      %1567 = vmatpush1.xpose.msra.mxu0 0.0
      %1568 = vmatprep.subr.mxu0 0.0
      %1569 = vmatpush1.xpose.msra.mxu0 0.0
      %1570 = vmatprep.subr.mxu0 0.0
      %1571 = vmatpush1.xpose.msra.mxu0 0.0
      %1572 = vmatprep.subr.mxu0 0.0
      %1573 = vmatpush1.xpose.msra.mxu0 0.0
      %1574 = vmatprep.subr.mxu0 0.0
      %1575 = vmatpush1.xpose.msra.mxu0 0.0
      %1576 = vmatprep.mubr.f32.mxu0 0.0
      %1577 = vmatmul.mubr.f32.gmra.mrb[0].mxu0 %v1498
      %v1578 = vpop.f32.mrb[0].mxu0
      %v1579 = vadd.f32 0.0, %v1578
      %v1580 = vpop.f32.mrb[0].mxu0
      %1581 = vmatprep.mubr.f32.mxu0 0.0
      %1582 = vmatmul.mubr.f32.gmra.mrb[0].mxu0 %v1501
      %v1583 = vpop.f32.mrb[0].mxu0
      %v1584 = vadd.f32 0.0, %v1583
      %v1585 = vpop.f32.mrb[0].mxu0
      %1586 = vmatprep.mubr.f32.mxu0 0.0
      %1587 = vmatmul.mubr.f32.gmra.mrb[0].mxu0 %v1504
      %v1588 = vpop.f32.mrb[0].mxu0
      %v1589 = vadd.f32 0.0, %v1588
      %v1590 = vpop.f32.mrb[0].mxu0
      %1591 = vmatprep.mubr.f32.mxu0 0.0
      %1592 = vmatmul.mubr.f32.gmra.mrb[0].mxu0 %v1507
      %v1593 = vpop.f32.mrb[0].mxu0
      %v1594 = vadd.f32 0.0, %v1593
      %v1595 = vpop.f32.mrb[0].mxu0
      %1596 = vdwg.mxu0
      %v1598 = vsel %vm1124, %v1281, 0
      %v1601 = vsel %vm1124, %v1282, 0
      %v1604 = vsel %vm1124, %v1283, 0
      %v1607 = vsel %vm1124, %v1284, 0
      %v1610 = vsel %vm1124, %v1168, 0
      %1612 = vmatprep.subr.mxu0 0.0
      %1613 = vmatpush1.xpose.msra.mxu0 %v1610
      %1614 = vmatprep.subr.mxu0 0.0
      %1615 = vmatpush1.xpose.msra.mxu0 0.0
      %1616 = vmatprep.subr.mxu0 0.0
      %1617 = vmatpush1.xpose.msra.mxu0 0.0
      %1618 = vmatprep.subr.mxu0 0.0
      %1619 = vmatpush1.xpose.msra.mxu0 0.0
      %1620 = vmatprep.subr.mxu0 0.0
      %1621 = vmatpush1.xpose.msra.mxu0 0.0
      %1622 = vmatprep.subr.mxu0 0.0
      %1623 = vmatpush1.xpose.msra.mxu0 0.0
      %1624 = vmatprep.subr.mxu0 0.0
      %1625 = vmatpush1.xpose.msra.mxu0 0.0
      %1626 = vmatprep.subr.mxu0 0.0
      %1627 = vmatpush1.xpose.msra.mxu0 0.0
      %1628 = vmatprep.subr.mxu0 0.0
      %1629 = vmatpush1.xpose.msra.mxu0 0.0
      %1630 = vmatprep.subr.mxu0 0.0
      %1631 = vmatpush1.xpose.msra.mxu0 0.0
      %1632 = vmatprep.subr.mxu0 0.0
      %1633 = vmatpush1.xpose.msra.mxu0 0.0
      %1634 = vmatprep.subr.mxu0 0.0
      %1635 = vmatpush1.xpose.msra.mxu0 0.0
      %1636 = vmatprep.subr.mxu0 0.0
      %1637 = vmatpush1.xpose.msra.mxu0 0.0
      %1638 = vmatprep.subr.mxu0 0.0
      %1639 = vmatpush1.xpose.msra.mxu0 0.0
      %1640 = vmatprep.subr.mxu0 0.0
      %1641 = vmatpush1.xpose.msra.mxu0 0.0
      %1642 = vmatprep.subr.mxu0 0.0
      %1643 = vmatpush1.xpose.msra.mxu0 0.0
      %1644 = vmatprep.subr.mxu0 0.0
      %1645 = vmatpush1.xpose.msra.mxu0 0.0
      %1646 = vmatprep.subr.mxu0 0.0
      %1647 = vmatpush1.xpose.msra.mxu0 0.0
      %1648 = vmatprep.subr.mxu0 0.0
      %1649 = vmatpush1.xpose.msra.mxu0 0.0
      %1650 = vmatprep.subr.mxu0 0.0
      %1651 = vmatpush1.xpose.msra.mxu0 0.0
      %1652 = vmatprep.subr.mxu0 0.0
      %1653 = vmatpush1.xpose.msra.mxu0 0.0
      %1654 = vmatprep.subr.mxu0 0.0
      %1655 = vmatpush1.xpose.msra.mxu0 0.0
      %1656 = vmatprep.subr.mxu0 0.0
      %1657 = vmatpush1.xpose.msra.mxu0 0.0
      %1658 = vmatprep.subr.mxu0 0.0
      %1659 = vmatpush1.xpose.msra.mxu0 0.0
      %1660 = vmatprep.subr.mxu0 0.0
      %1661 = vmatpush1.xpose.msra.mxu0 0.0
      %1662 = vmatprep.subr.mxu0 0.0
      %1663 = vmatpush1.xpose.msra.mxu0 0.0
      %1664 = vmatprep.subr.mxu0 0.0
      %1665 = vmatpush1.xpose.msra.mxu0 0.0
      %1666 = vmatprep.subr.mxu0 0.0
      %1667 = vmatpush1.xpose.msra.mxu0 0.0
      %1668 = vmatprep.subr.mxu0 0.0
      %1669 = vmatpush1.xpose.msra.mxu0 0.0
      %1670 = vmatprep.subr.mxu0 0.0
      %1671 = vmatpush1.xpose.msra.mxu0 0.0
      %1672 = vmatprep.subr.mxu0 0.0
      %1673 = vmatpush1.xpose.msra.mxu0 0.0
      %1674 = vmatprep.subr.mxu0 0.0
      %1675 = vmatpush1.xpose.msra.mxu0 0.0
      %1676 = vmatprep.mubr.f32.mxu0 0.0
      %1677 = vmatmul.mubr.f32.gmra.mrb[0].mxu0 %v1598
      %v1678 = vpop.f32.mrb[0].mxu0
      %v1679 = vadd.f32 0.0, %v1678
      %v1680 = vpop.f32.mrb[0].mxu0
      %1681 = vmatprep.mubr.f32.mxu0 0.0
      %1682 = vmatmul.mubr.f32.gmra.mrb[0].mxu0 %v1601
      %v1683 = vpop.f32.mrb[0].mxu0
      %v1684 = vadd.f32 0.0, %v1683
      %v1685 = vpop.f32.mrb[0].mxu0
      %1686 = vmatprep.mubr.f32.mxu0 0.0
      %1687 = vmatmul.mubr.f32.gmra.mrb[0].mxu0 %v1604
      %v1688 = vpop.f32.mrb[0].mxu0
      %v1689 = vadd.f32 0.0, %v1688
      %v1690 = vpop.f32.mrb[0].mxu0
      %1691 = vmatprep.mubr.f32.mxu0 0.0
      %1692 = vmatmul.mubr.f32.gmra.mrb[0].mxu0 %v1607
      %v1693 = vpop.f32.mrb[0].mxu0
      %v1694 = vadd.f32 0.0, %v1693
      %v1695 = vpop.f32.mrb[0].mxu0
      %1696 = vdwg.mxu0
      %1697 = vxpose.xlu0.b32.start [1/16] %v1379, 128
      %1698 = vxpose.xlu0.b32.cont [2/16] %v1384, 128
      %1699 = vxpose.xlu0.b32.cont [3/16] %v1389, 128
      %1700 = vxpose.xlu0.b32.cont [4/16] %v1394, 128
      %1701 = vxpose.xlu0.b32.cont [5/16] 0.0, 128
      %1702 = vxpose.xlu0.b32.cont [6/16] 0.0, 128
      %1703 = vxpose.xlu0.b32.cont [7/16] 0.0, 128
      %1704 = vxpose.xlu0.b32.cont [8/16] 0.0, 128
      %1705 = vxpose.xlu0.b32.cont [9/16] 0.0, 128
      %1706 = vxpose.xlu0.b32.cont [10/16] 0.0, 128
      %1707 = vxpose.xlu0.b32.cont [11/16] 0.0, 128
      %1708 = vxpose.xlu0.b32.cont [12/16] 0.0, 128
      %1709 = vxpose.xlu0.b32.cont [13/16] 0.0, 128
      %1710 = vxpose.xlu0.b32.cont [14/16] 0.0, 128
      %1711 = vxpose.xlu0.b32.cont [15/16] 0.0, 128
      %1712 = vxpose.xlu0.b32.end [16/16] 0.0, 128
      %v1713 = vpop.trf.xlu0
      %v1714 = vpop.trf.xlu0
      %v1715 = vpop.trf.xlu0
      %v1716 = vpop.trf.xlu0
      %v1717 = vpop.trf.xlu0
      %v1718 = vpop.trf.xlu0
      %v1719 = vpop.trf.xlu0
      %v1720 = vpop.trf.xlu0
      %v1721 = vpop.trf.xlu0
      %v1722 = vpop.trf.xlu0
      %v1723 = vpop.trf.xlu0
      %v1724 = vpop.trf.xlu0
      %v1725 = vpop.trf.xlu0
      %v1726 = vpop.trf.xlu0
      %v1727 = vpop.trf.xlu0
      %v1728 = vpop.trf.xlu0
      %1729 = vxpose.xlu0.b32.start [1/16] %v1479, 128
      %1730 = vxpose.xlu0.b32.cont [2/16] %v1484, 128
      %1731 = vxpose.xlu0.b32.cont [3/16] %v1489, 128
      %1732 = vxpose.xlu0.b32.cont [4/16] %v1494, 128
      %1733 = vxpose.xlu0.b32.cont [5/16] 0.0, 128
      %1734 = vxpose.xlu0.b32.cont [6/16] 0.0, 128
      %1735 = vxpose.xlu0.b32.cont [7/16] 0.0, 128
      %1736 = vxpose.xlu0.b32.cont [8/16] 0.0, 128
      %1737 = vxpose.xlu0.b32.cont [9/16] 0.0, 128
      %1738 = vxpose.xlu0.b32.cont [10/16] 0.0, 128
      %1739 = vxpose.xlu0.b32.cont [11/16] 0.0, 128
      %1740 = vxpose.xlu0.b32.cont [12/16] 0.0, 128
      %1741 = vxpose.xlu0.b32.cont [13/16] 0.0, 128
      %1742 = vxpose.xlu0.b32.cont [14/16] 0.0, 128
      %1743 = vxpose.xlu0.b32.cont [15/16] 0.0, 128
      %1744 = vxpose.xlu0.b32.end [16/16] 0.0, 128
      %v1745 = vpop.trf.xlu0
      %v1746 = vpop.trf.xlu0
      %v1747 = vpop.trf.xlu0
      %v1748 = vpop.trf.xlu0
      %v1749 = vpop.trf.xlu0
      %v1750 = vpop.trf.xlu0
      %v1751 = vpop.trf.xlu0
      %v1752 = vpop.trf.xlu0
      %v1753 = vpop.trf.xlu0
      %v1754 = vpop.trf.xlu0
      %v1755 = vpop.trf.xlu0
      %v1756 = vpop.trf.xlu0
      %v1757 = vpop.trf.xlu0
      %v1758 = vpop.trf.xlu0
      %v1759 = vpop.trf.xlu0
      %v1760 = vpop.trf.xlu0
      %1761 = vxpose.xlu0.b32.start [1/16] %v1579, 128
      %1762 = vxpose.xlu0.b32.cont [2/16] %v1584, 128
      %1763 = vxpose.xlu0.b32.cont [3/16] %v1589, 128
      %1764 = vxpose.xlu0.b32.cont [4/16] %v1594, 128
      %1765 = vxpose.xlu0.b32.cont [5/16] 0.0, 128
      %1766 = vxpose.xlu0.b32.cont [6/16] 0.0, 128
      %1767 = vxpose.xlu0.b32.cont [7/16] 0.0, 128
      %1768 = vxpose.xlu0.b32.cont [8/16] 0.0, 128
      %1769 = vxpose.xlu0.b32.cont [9/16] 0.0, 128
      %1770 = vxpose.xlu0.b32.cont [10/16] 0.0, 128
      %1771 = vxpose.xlu0.b32.cont [11/16] 0.0, 128
      %1772 = vxpose.xlu0.b32.cont [12/16] 0.0, 128
      %1773 = vxpose.xlu0.b32.cont [13/16] 0.0, 128
      %1774 = vxpose.xlu0.b32.cont [14/16] 0.0, 128
      %1775 = vxpose.xlu0.b32.cont [15/16] 0.0, 128
      %1776 = vxpose.xlu0.b32.end [16/16] 0.0, 128
      %v1777 = vpop.trf.xlu0
      %v1778 = vpop.trf.xlu0
      %v1779 = vpop.trf.xlu0
      %v1780 = vpop.trf.xlu0
      %v1781 = vpop.trf.xlu0
      %v1782 = vpop.trf.xlu0
      %v1783 = vpop.trf.xlu0
      %v1784 = vpop.trf.xlu0
      %v1785 = vpop.trf.xlu0
      %v1786 = vpop.trf.xlu0
      %v1787 = vpop.trf.xlu0
      %v1788 = vpop.trf.xlu0
      %v1789 = vpop.trf.xlu0
      %v1790 = vpop.trf.xlu0
      %v1791 = vpop.trf.xlu0
      %v1792 = vpop.trf.xlu0
      %1793 = vxpose.xlu0.b32.start [1/16] %v1679, 128
      %1794 = vxpose.xlu0.b32.cont [2/16] %v1684, 128
      %1795 = vxpose.xlu0.b32.cont [3/16] %v1689, 128
      %1796 = vxpose.xlu0.b32.cont [4/16] %v1694, 128
      %1797 = vxpose.xlu0.b32.cont [5/16] 0.0, 128
      %1798 = vxpose.xlu0.b32.cont [6/16] 0.0, 128
      %1799 = vxpose.xlu0.b32.cont [7/16] 0.0, 128
      %1800 = vxpose.xlu0.b32.cont [8/16] 0.0, 128
      %1801 = vxpose.xlu0.b32.cont [9/16] 0.0, 128
      %1802 = vxpose.xlu0.b32.cont [10/16] 0.0, 128
      %1803 = vxpose.xlu0.b32.cont [11/16] 0.0, 128
      %1804 = vxpose.xlu0.b32.cont [12/16] 0.0, 128
      %1805 = vxpose.xlu0.b32.cont [13/16] 0.0, 128
      %1806 = vxpose.xlu0.b32.cont [14/16] 0.0, 128
      %1807 = vxpose.xlu0.b32.cont [15/16] 0.0, 128
      %1808 = vxpose.xlu0.b32.end [16/16] 0.0, 128
      %v1809 = vpop.trf.xlu0
      %v1810 = vpop.trf.xlu0
      %v1811 = vpop.trf.xlu0
      %v1812 = vpop.trf.xlu0
      %v1813 = vpop.trf.xlu0
      %v1814 = vpop.trf.xlu0
      %v1815 = vpop.trf.xlu0
      %v1816 = vpop.trf.xlu0
      %v1817 = vpop.trf.xlu0
      %v1818 = vpop.trf.xlu0
      %v1819 = vpop.trf.xlu0
      %v1820 = vpop.trf.xlu0
      %v1821 = vpop.trf.xlu0
      %v1822 = vpop.trf.xlu0
      %v1823 = vpop.trf.xlu0
      %v1824 = vpop.trf.xlu0
      %v1825 = vcombine.low %v1713, %v1777
      %v1826 = vcombine.high %v1713, %v1777
      %v1828 = vunpack.c.l.s4 1983009808
      %v1829 = vunpack.c.0.s8 %v1828
      %v1830 = vlaneseq
      %v1831 = vshrl.u32 %v1830, 7
      %v1832 = vsub.s32 %v1829, %v1831
      %v1833 = vrot.slane %v1825, %v1832
      %v1835 = vunpack.c.l.s4 1983009808
      %v1836 = vunpack.c.0.s8 %v1835
      %v1837 = vlaneseq
      %v1838 = vshrl.u32 %v1837, 7
      %v1839 = vsub.s32 %v1836, %v1838
      %v1840 = vrot.slane %v1826, %v1839
      %v1841 = vcombine.low %v1745, %v1809
      %v1842 = vcombine.high %v1745, %v1809
      %v1844 = vunpack.c.l.s4 1983009808
      %v1845 = vunpack.c.0.s8 %v1844
      %v1846 = vlaneseq
      %v1847 = vshrl.u32 %v1846, 7
      %v1848 = vsub.s32 %v1845, %v1847
      %v1849 = vrot.slane %v1841, %v1848
      %v1851 = vunpack.c.l.s4 1983009808
      %v1852 = vunpack.c.0.s8 %v1851
      %v1853 = vlaneseq
      %v1854 = vshrl.u32 %v1853, 7
      %v1855 = vsub.s32 %v1852, %v1854
      %v1856 = vrot.slane %v1842, %v1855
      %v1857 = vcombine.low %v1833, %v1849
      %v1858 = vcombine.high %v1833, %v1849
      %v1860 = vunpack.c.l.s4 1934713408
      %v1861 = vunpack.c.0.s8 %v1860
      %v1862 = vlaneseq
      %v1863 = vshrl.u32 %v1862, 7
      %v1864 = vsub.s32 %v1861, %v1863
      %v1865 = vrot.slane %v1857, %v1864
      %v1867 = vunpack.c.l.s4 1934713408
      %v1868 = vunpack.c.0.s8 %v1867
      %v1869 = vlaneseq
      %v1870 = vshrl.u32 %v1869, 7
      %v1871 = vsub.s32 %v1868, %v1870
      %v1872 = vrot.slane %v1858, %v1871
      %v1873 = vcombine.low %v1840, %v1856
      %v1874 = vcombine.high %v1840, %v1856
      %v1876 = vunpack.c.l.s4 1934713408
      %v1877 = vunpack.c.0.s8 %v1876
      %v1878 = vlaneseq
      %v1879 = vshrl.u32 %v1878, 7
      %v1880 = vsub.s32 %v1877, %v1879
      %v1881 = vrot.slane %v1873, %v1880
      %v1883 = vunpack.c.l.s4 1934713408
      %v1884 = vunpack.c.0.s8 %v1883
      %v1885 = vlaneseq
      %v1886 = vshrl.u32 %v1885, 7
      %v1887 = vsub.s32 %v1884, %v1886
      %v1888 = vrot.slane %v1874, %v1887
      %v1889 = vcombine.high %v1865, 0.0
      %v1890 = vcombine.high %v1872, 0.0
      %v1891 = vcombine.high %v1881, 0.0
      %v1892 = vcombine.high %v1888, 0.0
      %v1893 = vcombine.low %v1865, %v1872
      %v1895 = vunpack.c.l.s4 1983009808
      %v1896 = vunpack.c.0.s8 %v1895
      %v1897 = vlaneseq
      %v1898 = vshrl.u32 %v1897, 7
      %v1899 = vsub.s32 %v1896, %v1898
      %v1900 = vrot.slane %v1893, %v1899
      %v1901 = vcombine.low %v1889, %v1890
      %v1903 = vunpack.c.l.s4 1983009808
      %v1904 = vunpack.c.0.s8 %v1903
      %v1905 = vlaneseq
      %v1906 = vshrl.u32 %v1905, 7
      %v1907 = vsub.s32 %v1904, %v1906
      %v1908 = vrot.slane %v1901, %v1907
      %v1909 = vcombine.low %v1881, %v1888
      %v1911 = vunpack.c.l.s4 1983009808
      %v1912 = vunpack.c.0.s8 %v1911
      %v1913 = vlaneseq
      %v1914 = vshrl.u32 %v1913, 7
      %v1915 = vsub.s32 %v1912, %v1914
      %v1916 = vrot.slane %v1909, %v1915
      %v1917 = vcombine.low %v1891, %v1892
      %v1919 = vunpack.c.l.s4 1983009808
      %v1920 = vunpack.c.0.s8 %v1919
      %v1921 = vlaneseq
      %v1922 = vshrl.u32 %v1921, 7
      %v1923 = vsub.s32 %v1920, %v1922
      %v1924 = vrot.slane %v1917, %v1923
      %v1925 = vcombine.low %v1900, %v1908
      %v1926 = vcombine.high %v1900, %v1908
      %v1928 = vunpack.c.l.s4 1934713408
      %v1929 = vunpack.c.0.s8 %v1928
      %v1930 = vlaneseq
      %v1931 = vshrl.u32 %v1930, 7
      %v1932 = vsub.s32 %v1929, %v1931
      %v1933 = vrot.slane %v1925, %v1932
      %v1935 = vunpack.c.l.s4 1934713408
      %v1936 = vunpack.c.0.s8 %v1935
      %v1937 = vlaneseq
      %v1938 = vshrl.u32 %v1937, 7
      %v1939 = vsub.s32 %v1936, %v1938
      %v1940 = vrot.slane %v1926, %v1939
      %v1941 = vcombine.low %v1916, %v1924
      %v1942 = vcombine.high %v1916, %v1924
      %v1944 = vunpack.c.l.s4 1934713408
      %v1945 = vunpack.c.0.s8 %v1944
      %v1946 = vlaneseq
      %v1947 = vshrl.u32 %v1946, 7
      %v1948 = vsub.s32 %v1945, %v1947
      %v1949 = vrot.slane %v1941, %v1948
      %v1951 = vunpack.c.l.s4 1934713408
      %v1952 = vunpack.c.0.s8 %v1951
      %v1953 = vlaneseq
      %v1954 = vshrl.u32 %v1953, 7
      %v1955 = vsub.s32 %v1952, %v1954
      %v1956 = vrot.slane %v1942, %v1955
      %v1957 = vcombine.low %v1933, %v1949
      %v1958 = vcombine.high %v1933, %v1949
      %v1959 = vcombine.low %v1940, %v1956
      %v1960 = vcombine.high %v1940, %v1956
      %1962 = vrot.lane.b32.xlu0 %v1958, 32
      %v1963 = vpop.permute.xlu0 %1962
      %1966 = vrot.lane.b32.xlu0 %v1959, 64
      %v1967 = vpop.permute.xlu0 %1966
      %1970 = vrot.lane.b32.xlu0 %v1960, 96
      %v1971 = vpop.permute.xlu0 %1970
      %v1973 = vsel %vm821, %v1957, %v1963
      %vm1974 = vcmask 523264
      %v1975 = vsel %vm1974, %v1973, %v1967
      %vm1976 = vcmask 785408
      %v1977 = vsel %vm1976, %v1975, %v1971
      %v1978 = vpack.c.bf16 %v1977, %v1977
      %v1979 = vld [vmem:[%s6] sm:$0xf]
      %v1980 = vld [vmem:[%s6 + $0x4] sm:$0xf]
      %v1981 = vld [vmem:[%s6 + $0x8] sm:$0xf]
      %v1982 = vld [vmem:[%s6 + $0xc] sm:$0xf]
      %v1983 = vld [vmem:[%s6 + $0x10] sm:$0xf]
      %v1984 = vld [vmem:[%s6 + $0x14] sm:$0xf]
      %v1985 = vld [vmem:[%s6 + $0x18] sm:$0xf]
      %v1986 = vld [vmem:[%s6 + $0x1c] sm:$0xf]
      %v1987 = vld [vmem:[%s6 + $0x20] sm:$0xf]
      %v1988 = vld [vmem:[%s6 + $0x24] sm:$0xf]
      %v1989 = vld [vmem:[%s6 + $0x28] sm:$0xf]
      %v1990 = vld [vmem:[%s6 + $0x2c] sm:$0xf]
      %v1991 = vld [vmem:[%s6 + $0x30] sm:$0xf]
      %v1992 = vld [vmem:[%s6 + $0x34] sm:$0xf]
      %v1993 = vld [vmem:[%s6 + $0x38] sm:$0xf]
      %v1994 = vld [vmem:[%s6 + $0x3c] sm:$0xf]
      %v1995 = vld [vmem:[%s7] sm:$0x1]
      %v1997 = vlaneseq
      %v1998 = vshrl.u32 %v1997, 7
      %v1999 = vsub.s32 0, %v1998
      %v2000 = vrot.slane %v1995, %v1999
      %v2018 = vunpack.c.l.b16 %v1979
      %v2019 = vunpack.c.l.b16 %v1980
      %v2020 = vunpack.c.l.b16 %v1981
      %v2021 = vunpack.c.l.b16 %v1982
      %v2022 = vunpack.c.l.b16 %v1983
      %v2023 = vunpack.c.l.b16 %v1984
      %v2024 = vunpack.c.l.b16 %v1985
      %v2025 = vunpack.c.l.b16 %v1986
      %v2026 = vunpack.c.l.b16 %v1987
      %v2027 = vunpack.c.l.b16 %v1988
      %v2028 = vunpack.c.l.b16 %v1989
      %v2029 = vunpack.c.l.b16 %v1990
      %v2030 = vunpack.c.l.b16 %v1991
      %v2031 = vunpack.c.l.b16 %v1992
      %v2032 = vunpack.c.l.b16 %v1993
      %v2033 = vunpack.c.l.b16 %v1994
      %v2034 = vpack.c.b16 %v2019, %v2018
      %v2035 = vpack.c.b16 %v2021, %v2020
      %v2036 = vpack.c.b16 %v2023, %v2022
      %v2037 = vpack.c.b16 %v2025, %v2024
      %v2038 = vpack.c.b16 %v2027, %v2026
      %v2039 = vpack.c.b16 %v2029, %v2028
      %v2040 = vpack.c.b16 %v2031, %v2030
      %v2041 = vpack.c.b16 %v2033, %v2032
      %2050 = vmatprep.subr.bf16.mxu0 0
      %2051 = vmatpush1.bf16.msra.mxu0 %v2034
      %2052 = vmatprep.subr.bf16.mxu0 0
      %2053 = vmatpush1.bf16.msra.mxu0 %v2035
      %2054 = vmatprep.subr.bf16.mxu0 0
      %2055 = vmatpush1.bf16.msra.mxu0 %v2036
      %2056 = vmatprep.subr.bf16.mxu0 0
      %2057 = vmatpush1.bf16.msra.mxu0 %v2037
      %2058 = vmatprep.subr.bf16.mxu0 0
      %2059 = vmatpush1.bf16.msra.mxu0 %v2038
      %2060 = vmatprep.subr.bf16.mxu0 0
      %2061 = vmatpush1.bf16.msra.mxu0 %v2039
      %2062 = vmatprep.subr.bf16.mxu0 0
      %2063 = vmatpush1.bf16.msra.mxu0 %v2040
      %2064 = vmatprep.subr.bf16.mxu0 0
      %2065 = vmatpush1.bf16.msra.mxu0 %v2041
      %2066 = vmatprep.subr.bf16.mxu0 0
      %2067 = vmatpush1.bf16.msra.mxu0 0
      %2068 = vmatprep.subr.bf16.mxu0 0
      %2069 = vmatpush1.bf16.msra.mxu0 0
      %2070 = vmatprep.subr.bf16.mxu0 0
      %2071 = vmatpush1.bf16.msra.mxu0 0
      %2072 = vmatprep.subr.bf16.mxu0 0
      %2073 = vmatpush1.bf16.msra.mxu0 0
      %2074 = vmatprep.subr.bf16.mxu0 0
      %2075 = vmatpush1.bf16.msra.mxu0 0
      %2076 = vmatprep.subr.bf16.mxu0 0
      %2077 = vmatpush1.bf16.msra.mxu0 0
      %2078 = vmatprep.subr.bf16.mxu0 0
      %2079 = vmatpush1.bf16.msra.mxu0 0
      %2080 = vmatprep.subr.bf16.mxu0 0
      %2081 = vmatpush1.bf16.msra.mxu0 0
      %2082 = vmatprep.mubr.bf16.mxu0 0
      %2083 = vmatmul.mubr.bf16.gmra.mrb[0].mxu0 %v1978
      %v2084 = vpop.f32.mrb[0].mxu0
      %v2085 = vadd.f32 %v2000, %v2084
      %v2086 = vpop.f32.mrb[0].mxu0
      %v2087 = vpop.f32.mrb[0].mxu0
      %v2088 = vpop.f32.mrb[0].mxu0
      %2089 = vdwg.mxu0
      %v2090 = vunpack.c.l.bf16 %v404
      %v2091 = vadd.f32 %v2090, %v2085
      %2092 = vadd.xlane.f32.xlu0 %v2091
      %v2093 = vpop.xlane.xlu0 %2092
      %v2094 = vrcp.pop 128.0
      %v2095 = vmul.f32 %v2093, %v2094
      %v2096 = vsub.f32 %v2091, %v2095
      %v2097 = vmul.f32 %v2096, %v2096
      %2098 = vadd.xlane.f32.xlu0 %v2097
      %v2099 = vpop.xlane.xlu0 %2098
      %v2100 = vmul.f32 %v2099, %v2094
      %v2101 = vadd.f32 %v2100, 1e-05
      %v2102 = vrsqrt.pop %v2101
      %v2103 = vmul.f32 %v2096, %v2102
      %v2104 = vld [vmem:[%s8] sm:$0x1]
      %v2106 = vlaneseq
      %v2107 = vshrl.u32 %v2106, 7
      %v2108 = vsub.s32 0, %v2107
      %v2109 = vrot.slane %v2104, %v2108
      %v2111 = vmul.f32 %v2103, %v2109
      %v2112 = vld [vmem:[%s9] sm:$0x1]
      %v2114 = vlaneseq
      %v2115 = vshrl.u32 %v2114, 7
      %v2116 = vsub.s32 0, %v2115
      %v2117 = vrot.slane %v2112, %v2116
      %v2119 = vadd.f32 %v2111, %v2117
      %v2120 = vpack.c.bf16 %v2119, %v2119
      %2121 = vst [vmem:[%s402] sm:$0xf] %v2120
      %p2122 = scmp.lt.s32.totalorder %s25, 1
      %s2123 = scalar_select %p2122, %s25, 1
      %p2124 = scmp.lt.s32.totalorder %s26, 0
      %s2125 = scalar_select %p2124, %s26, 0
      %s2126 = sadd.s32 %s2125, %s2123
      %s2127 = smul.addr %s2126, 4
      %s2128 = scalar_lea.vmem %s10, %s2127
      // Predicated region
      $region61: #{decoder_forward.10} parent=59 // pred_check
        %p2129 = pneg %p275
      $region62: #{decoder_forward.10} parent=59 // pred_check_branch
        %2131 = sbr.rel (%p2129) target = $region64
      $region63: #{decoder_forward.10} parent=59 // pred_region
        _
      $region64: #{decoder_forward.10} parent=59 // pred_fallthru
        _
    $region60: #{decoder_forward.10} parent=5 // pred_fallthru
      _
    %p2132 = scmp.le.s32.totalorder 2, %s16
    // Predicated region
    $region65: #{decoder_forward.10} parent=5 // pred_check
      %p2133 = pneg %p2132
    $region66: #{decoder_forward.10} parent=5 // pred_check_branch
      %2135 = sbr.rel (%p2133) target = $region68
    $region67: #{decoder_forward.10} parent=5 // pred_region
      %s2136 = ssub.s32 %s16, 2
      // Predicated region
      $region69: #{decoder_forward.10} parent=67 // pred_check
        %p2137 = pneg %p281
      $region70: #{decoder_forward.10} parent=67 // pred_check_branch
        %2139 = sbr.rel (%p2137) target = $region72
      $region71: #{decoder_forward.10} parent=67 // pred_region
        %p2140 = scmp.lt.s32.totalorder %s27, 1
        %s2141 = scalar_select %p2140, %s27, 1
        %p2142 = scmp.lt.s32.totalorder %s28, 0
        %s2143 = scalar_select %p2142, %s28, 0
        %s2144 = sadd.s32 %s2143, %s2141
        %s2145 = smul.addr %s2144, 4
        %s2146 = scalar_lea.vmem %s10, %s2145
      $region72: #{decoder_forward.10} parent=67 // pred_fallthru
        _
    $region68: #{decoder_forward.10} parent=5 // pred_fallthru
      _
  $region6: #{decoder_forward.10} parent=0 // loop_footer
    %s20 = sadd.s32 1, %s16
  $region7: #{decoder_forward.10} parent=0 // loop_footer_branch
    %15 = sbr.rel target = $region3
  $region8: #{decoder_forward.10} parent=0 // loop_exit
    _

// kernel: decoder_forward.7
$region0: #{decoder_forward.7}
  #allocation0 [shape = 'u32[]', space=smem, size = 0x4, offset = 0x4, fixed_abs, tag = 'smem constant byte address 0x4 - core index']
  #allocation1 [shape = 'u32[144,128]{1,0:T(1,128)}', space=vmem, size = 0x12000, scoped, tag = 'internal scratch']
  %s0 = inlined_call_operand.vmem [shape: bf16[2,8,128], index: 0, kind: input, shape index: {}, may-alias: {0,1}]
  %s1 = inlined_call_operand.vmem [shape: bf16[2,8,128], index: 1, kind: input, shape index: {}, may-alias: {0,1}]
  %s2 = inlined_call_operand.vmem [shape: bf16[128,128], index: 2, kind: input, shape index: {}]
  %s3 = inlined_call_operand.vmem [shape: f32[1,128], index: 3, kind: input, shape index: {}]
  %s4 = inlined_call_operand.vmem [shape: bf16[128,256], index: 4, kind: input, shape index: {}]
  %s5 = inlined_call_operand.hbm [shape: f32[1,256], index: 5, kind: input, shape index: {}]
  %s6 = inlined_call_operand.hbm [shape: bf16[128,128], index: 6, kind: input, shape index: {}]
  %s7 = inlined_call_operand.hbm [shape: f32[1,128], index: 7, kind: input, shape index: {}]
  %s8 = inlined_call_operand.hbm [shape: f32[1,128], index: 8, kind: input, shape index: {}]
  %s9 = inlined_call_operand.hbm [shape: f32[1,128], index: 9, kind: input, shape index: {}]
  %s10 = inlined_call_operand.vmem [shape: bf16[2,8,128], index: 10, kind: output, shape index: {}]
  %s11 = sld [smem:[#allocation0]]
  $region93: #{decoder_forward.7} parent=0
    _
  %s13 = ssub.s32 1, %s11
  %s14 = scalar_select 0, %s13, %s11
  $region1: #{decoder_forward.7} parent=0
    #allocation2 [shape = 'u8[1024]{0}', space=vmem, size = 0x400, scoped, tag = 'input window, operand 5, single buffered']
    #allocation3 [shape = 's32[2]{0}', space=sflag, size = 0x8, scoped, tag = 'scoped memory for decoder_forward.7']
    #allocation4 [shape = 'u8[32768]{0}', space=vmem, size = 0x8000, scoped, tag = 'input window, operand 6, single buffered']
    #allocation5 [shape = 's32[1]{0}', space=sflag, size = 0x4, scoped, tag = 'scoped memory for decoder_forward.7']
    #allocation6 [shape = 'u8[512]{0}', space=vmem, size = 0x400, scoped, tag = 'input window, operand 7, single buffered']
    #allocation7 [shape = 'u8[512]{0}', space=vmem, size = 0x400, scoped, tag = 'input window, operand 8, single buffered']
    #allocation8 [shape = 's32[1]{0}', space=sflag, size = 0x4, scoped, tag = 'scoped memory for decoder_forward.7']
    #allocation9 [shape = 'u8[512]{0}', space=vmem, size = 0x400, scoped, tag = 'input window, operand 9, single buffered']
    %15 = vsyncpa [#allocation3], 0
    %16 = vsyncpa [#allocation5], 0
    %17 = vsyncpa [#allocation8], 0
    loop: start=0, step=1, limit=4
    $region2: #{decoder_forward.7} parent=1 // loop_pre_header
      _
    $region3: #{decoder_forward.7} parent=1 // loop_header
      %s19 = sphi 0, %s23
      %p20 = scmp.ge.s32.totalorder %s19, 4
      %s26 = sphi 0, %s38
      %s27 = sphi 0, %s34
      %s28 = sphi 0, %s26
      %s29 = sphi 0, %s27
      %s30 = sphi 0, %s28
      %s31 = sphi 0, %s29
      %s43 = sphi 0, %s45
      %s46 = sphi 0, %s43
      %s47 = sphi 0, %s46
      %s63 = sphi 0, %s47
      %s69 = sphi 0, %s71
      %s72 = sphi 0, %s69
      %s73 = sphi 0, %s72
      %s89 = sphi 0, %s73
      %s93 = sphi 0, %s93
      %s95 = sphi 0, %s93
      %s96 = sphi 0, %s95
      %s110 = sphi 0, %s96
      %s114 = sphi 0, %s114
      %s116 = sphi 0, %s114
      %s117 = sphi 0, %s116
      %s131 = sphi 0, %s117
      %s135 = sphi 0, %s135
      %s137 = sphi 0, %s135
      %s138 = sphi 0, %s137
      %s152 = sphi 0, %s138
      %s156 = sphi 0, %s156
      %s158 = sphi 0, %s156
      %s159 = sphi 0, %s158
      %s173 = sphi 0, %s159
      %s177 = sphi 0, %s177
      %s179 = sphi 0, %s177
      %s180 = sphi 0, %s179
      %s194 = sphi 0, %s180
      %s198 = sphi 0, %s198
      %s200 = sphi 0, %s198
      %s201 = sphi 0, %s200
      %s215 = sphi 0, %s201
      %s219 = sphi 0, %s219
      %s221 = sphi 0, %s219
      %s222 = sphi 0, %s221
      %s236 = sphi 0, %s222
      %s240 = sphi 0, %s240
      %s242 = sphi 0, %s240
      %s243 = sphi 0, %s242
      %s257 = sphi 0, %s243
      %s265 = sphi 0, %s267
      %s268 = sphi 0, %s265
      %s269 = sphi 0, %s268
      %s285 = sphi 0, %s269
    $region4: #{decoder_forward.7} parent=1 // loop_header_branch
      %22 = sbr.rel (%p20) target = $region8
    $region5: #{decoder_forward.7} parent=1 // loop_body
      %s24 = ssub.s32 %s19, 1
      %s25 = ssub.s32 %s19, 2
      %s32 = sadd.s32 1, %s27
      %p33 = scmp.ge.s32.totalorder %s32, 1
      %s34 = scalar_select %p33, 0, %s32
      %s35 = sadd.s32 1, %s26
      %s36 = scalar_select %p33, %s35, %s26
      %p37 = scmp.ge.s32.totalorder %s36, 2
      %s38 = scalar_select %p37, 0, %s36
      %s39 = ssub.s32 %s26, %s38
      %s40 = ssub.s32 %s27, %s34
      %s41 = sor.u32 %s39, %s40
      %p42 = scmp.eq.s32.totalorder %s41, 0
      %s44 = sadd.s32 %s43, 1
      %s45 = scalar_select %p42, %s43, %s44
      %p48 = pneg %p42
      %p49 = scmp.eq.s32.totalorder %s19, 1
      %p50 = por %p48, %p49
      %p51 = scmp.ne.s32.totalorder %s43, %s46
      %p52 = scmp.eq.s32.totalorder %s19, 0
      %p53 = por %p51, %p52
      %p54 = scmp.ne.s32.totalorder %s43, %s46
      %p55 = scmp.eq.s32.totalorder %s24, 1
      %p56 = por %p54, %p55
      %p57 = scmp.ne.s32.totalorder %s46, %s47
      %p58 = scmp.eq.s32.totalorder %s24, 0
      %p59 = por %p57, %p58
      %p60 = scmp.ne.s32.totalorder %s46, %s47
      %p61 = scmp.eq.s32.totalorder %s25, 1
      %p62 = por %p60, %p61
      %p64 = scmp.ne.s32.totalorder %s47, %s63
      %p65 = scmp.eq.s32.totalorder %s25, 0
      %p66 = por %p64, %p65
      %s67 = ssub.s32 %s26, %s38
      %p68 = scmp.eq.s32.totalorder %s67, 0
      %s70 = sadd.s32 %s69, 1
      %s71 = scalar_select %p68, %s69, %s70
      %p74 = pneg %p68
      %p75 = scmp.eq.s32.totalorder %s19, 1
      %p76 = por %p74, %p75
      %p77 = scmp.ne.s32.totalorder %s69, %s72
      %p78 = scmp.eq.s32.totalorder %s19, 0
      %p79 = por %p77, %p78
      %p80 = scmp.ne.s32.totalorder %s69, %s72
      %p81 = scmp.eq.s32.totalorder %s24, 1
      %p82 = por %p80, %p81
      %p83 = scmp.ne.s32.totalorder %s72, %s73
      %p84 = scmp.eq.s32.totalorder %s24, 0
      %p85 = por %p83, %p84
      %p86 = scmp.ne.s32.totalorder %s72, %s73
      %p87 = scmp.eq.s32.totalorder %s25, 1
      %p88 = por %p86, %p87
      %p90 = scmp.ne.s32.totalorder %s73, %s89
      %p91 = scmp.eq.s32.totalorder %s25, 0
      %p92 = por %p90, %p91
      %s94 = sadd.s32 %s93, 1
      %p97 = scmp.eq.s32.totalorder %s19, 1
      %p98 = scmp.ne.s32.totalorder %s93, %s95
      %p99 = scmp.eq.s32.totalorder %s19, 0
      %p100 = por %p98, %p99
      %p101 = scmp.ne.s32.totalorder %s93, %s95
      %p102 = scmp.eq.s32.totalorder %s24, 1
      %p103 = por %p101, %p102
      %p104 = scmp.ne.s32.totalorder %s95, %s96
      %p105 = scmp.eq.s32.totalorder %s24, 0
      %p106 = por %p104, %p105
      %p107 = scmp.ne.s32.totalorder %s95, %s96
      %p108 = scmp.eq.s32.totalorder %s25, 1
      %p109 = por %p107, %p108
      %p111 = scmp.ne.s32.totalorder %s96, %s110
      %p112 = scmp.eq.s32.totalorder %s25, 0
      %p113 = por %p111, %p112
      %s115 = sadd.s32 %s114, 1
      %p118 = scmp.eq.s32.totalorder %s19, 1
      %p119 = scmp.ne.s32.totalorder %s114, %s116
      %p120 = scmp.eq.s32.totalorder %s19, 0
      %p121 = por %p119, %p120
      %p122 = scmp.ne.s32.totalorder %s114, %s116
      %p123 = scmp.eq.s32.totalorder %s24, 1
      %p124 = por %p122, %p123
      %p125 = scmp.ne.s32.totalorder %s116, %s117
      %p126 = scmp.eq.s32.totalorder %s24, 0
      %p127 = por %p125, %p126
      %p128 = scmp.ne.s32.totalorder %s116, %s117
      %p129 = scmp.eq.s32.totalorder %s25, 1
      %p130 = por %p128, %p129
      %p132 = scmp.ne.s32.totalorder %s117, %s131
      %p133 = scmp.eq.s32.totalorder %s25, 0
      %p134 = por %p132, %p133
      %s136 = sadd.s32 %s135, 1
      %p139 = scmp.eq.s32.totalorder %s19, 1
      %p140 = scmp.ne.s32.totalorder %s135, %s137
      %p141 = scmp.eq.s32.totalorder %s19, 0
      %p142 = por %p140, %p141
      %p143 = scmp.ne.s32.totalorder %s135, %s137
      %p144 = scmp.eq.s32.totalorder %s24, 1
      %p145 = por %p143, %p144
      %p146 = scmp.ne.s32.totalorder %s137, %s138
      %p147 = scmp.eq.s32.totalorder %s24, 0
      %p148 = por %p146, %p147
      %p149 = scmp.ne.s32.totalorder %s137, %s138
      %p150 = scmp.eq.s32.totalorder %s25, 1
      %p151 = por %p149, %p150
      %p153 = scmp.ne.s32.totalorder %s138, %s152
      %p154 = scmp.eq.s32.totalorder %s25, 0
      %p155 = por %p153, %p154
      %s157 = sadd.s32 %s156, 1
      %p160 = scmp.eq.s32.totalorder %s19, 1
      %p161 = scmp.ne.s32.totalorder %s156, %s158
      %p162 = scmp.eq.s32.totalorder %s19, 0
      %p163 = por %p161, %p162
      %p164 = scmp.ne.s32.totalorder %s156, %s158
      %p165 = scmp.eq.s32.totalorder %s24, 1
      %p166 = por %p164, %p165
      %p167 = scmp.ne.s32.totalorder %s158, %s159
      %p168 = scmp.eq.s32.totalorder %s24, 0
      %p169 = por %p167, %p168
      %p170 = scmp.ne.s32.totalorder %s158, %s159
      %p171 = scmp.eq.s32.totalorder %s25, 1
      %p172 = por %p170, %p171
      %p174 = scmp.ne.s32.totalorder %s159, %s173
      %p175 = scmp.eq.s32.totalorder %s25, 0
      %p176 = por %p174, %p175
      %s178 = sadd.s32 %s177, 1
      %p181 = scmp.eq.s32.totalorder %s19, 1
      %p182 = scmp.ne.s32.totalorder %s177, %s179
      %p183 = scmp.eq.s32.totalorder %s19, 0
      %p184 = por %p182, %p183
      %p185 = scmp.ne.s32.totalorder %s177, %s179
      %p186 = scmp.eq.s32.totalorder %s24, 1
      %p187 = por %p185, %p186
      %p188 = scmp.ne.s32.totalorder %s179, %s180
      %p189 = scmp.eq.s32.totalorder %s24, 0
      %p190 = por %p188, %p189
      %p191 = scmp.ne.s32.totalorder %s179, %s180
      %p192 = scmp.eq.s32.totalorder %s25, 1
      %p193 = por %p191, %p192
      %p195 = scmp.ne.s32.totalorder %s180, %s194
      %p196 = scmp.eq.s32.totalorder %s25, 0
      %p197 = por %p195, %p196
      %s199 = sadd.s32 %s198, 1
      %p202 = scmp.eq.s32.totalorder %s19, 1
      %p203 = scmp.ne.s32.totalorder %s198, %s200
      %p204 = scmp.eq.s32.totalorder %s19, 0
      %p205 = por %p203, %p204
      %p206 = scmp.ne.s32.totalorder %s198, %s200
      %p207 = scmp.eq.s32.totalorder %s24, 1
      %p208 = por %p206, %p207
      %p209 = scmp.ne.s32.totalorder %s200, %s201
      %p210 = scmp.eq.s32.totalorder %s24, 0
      %p211 = por %p209, %p210
      %p212 = scmp.ne.s32.totalorder %s200, %s201
      %p213 = scmp.eq.s32.totalorder %s25, 1
      %p214 = por %p212, %p213
      %p216 = scmp.ne.s32.totalorder %s201, %s215
      %p217 = scmp.eq.s32.totalorder %s25, 0
      %p218 = por %p216, %p217
      %s220 = sadd.s32 %s219, 1
      %p223 = scmp.eq.s32.totalorder %s19, 1
      %p224 = scmp.ne.s32.totalorder %s219, %s221
      %p225 = scmp.eq.s32.totalorder %s19, 0
      %p226 = por %p224, %p225
      %p227 = scmp.ne.s32.totalorder %s219, %s221
      %p228 = scmp.eq.s32.totalorder %s24, 1
      %p229 = por %p227, %p228
      %p230 = scmp.ne.s32.totalorder %s221, %s222
      %p231 = scmp.eq.s32.totalorder %s24, 0
      %p232 = por %p230, %p231
      %p233 = scmp.ne.s32.totalorder %s221, %s222
      %p234 = scmp.eq.s32.totalorder %s25, 1
      %p235 = por %p233, %p234
      %p237 = scmp.ne.s32.totalorder %s222, %s236
      %p238 = scmp.eq.s32.totalorder %s25, 0
      %p239 = por %p237, %p238
      %s241 = sadd.s32 %s240, 1
      %p244 = scmp.eq.s32.totalorder %s19, 1
      %p245 = scmp.ne.s32.totalorder %s240, %s242
      %p246 = scmp.eq.s32.totalorder %s19, 0
      %p247 = por %p245, %p246
      %p248 = scmp.ne.s32.totalorder %s240, %s242
      %p249 = scmp.eq.s32.totalorder %s24, 1
      %p250 = por %p248, %p249
      %p251 = scmp.ne.s32.totalorder %s242, %s243
      %p252 = scmp.eq.s32.totalorder %s24, 0
      %p253 = por %p251, %p252
      %p254 = scmp.ne.s32.totalorder %s242, %s243
      %p255 = scmp.eq.s32.totalorder %s25, 1
      %p256 = por %p254, %p255
      %p258 = scmp.ne.s32.totalorder %s243, %s257
      %p259 = scmp.eq.s32.totalorder %s25, 0
      %p260 = por %p258, %p259
      %s261 = ssub.s32 %s26, %s38
      %s262 = ssub.s32 %s27, %s34
      %s263 = sor.u32 %s261, %s262
      %p264 = scmp.eq.s32.totalorder %s263, 0
      %s266 = sadd.s32 %s265, 1
      %s267 = scalar_select %p264, %s265, %s266
      %p270 = pneg %p264
      %p271 = scmp.eq.s32.totalorder %s19, 1
      %p272 = por %p270, %p271
      %p273 = scmp.ne.s32.totalorder %s265, %s268
      %p274 = scmp.eq.s32.totalorder %s19, 0
      %p275 = por %p273, %p274
      %p276 = scmp.ne.s32.totalorder %s265, %s268
      %p277 = scmp.eq.s32.totalorder %s24, 1
      %p278 = por %p276, %p277
      %p279 = scmp.ne.s32.totalorder %s268, %s269
      %p280 = scmp.eq.s32.totalorder %s24, 0
      %p281 = por %p279, %p280
      %p282 = scmp.ne.s32.totalorder %s268, %s269
      %p283 = scmp.eq.s32.totalorder %s25, 1
      %p284 = por %p282, %p283
      %p286 = scmp.ne.s32.totalorder %s269, %s285
      %p287 = scmp.eq.s32.totalorder %s25, 0
      %p288 = por %p286, %p287
      %p289 = scmp.le.s32.totalorder 1, %s19
      %p290 = scmp.lt.s32.totalorder %s19, 3
      %p291 = pnand %p289, %p290
      %p292 = pneg %p291
      // Predicated region
      $region9: #{decoder_forward.7} parent=5 // pred_check
        _
      $region10: #{decoder_forward.7} parent=5 // pred_check_branch
        %294 = sbr.rel (%p291) target = $region12
      $region11: #{decoder_forward.7} parent=5 // pred_region
        %s295 = ssub.s32 %s19, 1
        // Predicated region
        $region13: #{decoder_forward.7} parent=11 // pred_check
          %p296 = pneg %p106
        $region14: #{decoder_forward.7} parent=11 // pred_check_branch
          %298 = sbr.rel (%p296) target = $region16
        $region15: #{decoder_forward.7} parent=11 // pred_region
          _
        $region16: #{decoder_forward.7} parent=11 // pred_fallthru
          _
        // Predicated region
        $region17: #{decoder_forward.7} parent=11 // pred_check
          %p299 = pneg %p127
        $region18: #{decoder_forward.7} parent=11 // pred_check_branch
          %301 = sbr.rel (%p299) target = $region20
        $region19: #{decoder_forward.7} parent=11 // pred_region
          _
        $region20: #{decoder_forward.7} parent=11 // pred_fallthru
          _
        // Predicated region
        $region21: #{decoder_forward.7} parent=11 // pred_check
          %p302 = pneg %p148
        $region22: #{decoder_forward.7} parent=11 // pred_check_branch
          %304 = sbr.rel (%p302) target = $region24
        $region23: #{decoder_forward.7} parent=11 // pred_region
          _
        $region24: #{decoder_forward.7} parent=11 // pred_fallthru
          _
        // Predicated region
        $region25: #{decoder_forward.7} parent=11 // pred_check
          %p305 = pneg %p169
        $region26: #{decoder_forward.7} parent=11 // pred_check_branch
          %307 = sbr.rel (%p305) target = $region28
        $region27: #{decoder_forward.7} parent=11 // pred_region
          %s309 = ssub.s32 32, 32
          %310 = vsyncadd [#allocation3], %s309
          %s312 = sshll.u32 [#allocation2], 4
          %s313 = int_to_ptr.vmem [resolvable:$true] %s312
          %315 = dma.hbm_to_vmem [thread:$0]  %s5, 32, %s313, [#allocation3]
        $region28: #{decoder_forward.7} parent=11 // pred_fallthru
          _
        // Predicated region
        $region29: #{decoder_forward.7} parent=11 // pred_check
          %p316 = pneg %p190
        $region30: #{decoder_forward.7} parent=11 // pred_check_branch
          %318 = sbr.rel (%p316) target = $region32
        $region31: #{decoder_forward.7} parent=11 // pred_region
          %s320 = ssub.s32 1024, 1024
          %321 = vsyncadd [#allocation5], %s320
          %s322 = sshll.u32 [#allocation4], 4
          %s323 = int_to_ptr.vmem [resolvable:$true] %s322
          %328 = dma.hbm_to_vmem [thread:$0]  %s6, 1024, %s323, [#allocation5], 64, 64, 4
        $region32: #{decoder_forward.7} parent=11 // pred_fallthru
          _
        // Predicated region
        $region33: #{decoder_forward.7} parent=11 // pred_check
          %p329 = pneg %p211
        $region34: #{decoder_forward.7} parent=11 // pred_check_branch
          %331 = sbr.rel (%p329) target = $region36
        $region35: #{decoder_forward.7} parent=11 // pred_region
          %s333 = ssub.s32 16, 16
          %334 = vsyncadd [#allocation5], %s333
          %s336 = sshll.u32 [#allocation6], 4
          %s337 = int_to_ptr.vmem [resolvable:$true] %s336
          %339 = dma.hbm_to_vmem [thread:$0]  %s7, 16, %s337, [#allocation5]
        $region36: #{decoder_forward.7} parent=11 // pred_fallthru
          _
        // Predicated region
        $region37: #{decoder_forward.7} parent=11 // pred_check
          %p340 = pneg %p232
        $region38: #{decoder_forward.7} parent=11 // pred_check_branch
          %342 = sbr.rel (%p340) target = $region40
        $region39: #{decoder_forward.7} parent=11 // pred_region
          %s344 = ssub.s32 16, 16
          %345 = vsyncadd [#allocation8], %s344
          %s347 = sshll.u32 [#allocation7], 4
          %s348 = int_to_ptr.vmem [resolvable:$true] %s347
          %350 = dma.hbm_to_vmem [thread:$0]  %s8, 16, %s348, [#allocation8]
        $region40: #{decoder_forward.7} parent=11 // pred_fallthru
          _
        // Predicated region
        $region41: #{decoder_forward.7} parent=11 // pred_check
          %p351 = pneg %p253
        $region42: #{decoder_forward.7} parent=11 // pred_check_branch
          %353 = sbr.rel (%p351) target = $region44
        $region43: #{decoder_forward.7} parent=11 // pred_region
          %s355 = ssub.s32 16, 16
          %356 = vsyncadd [#allocation8], %s355
          %s358 = sshll.u32 [#allocation9], 4
          %s359 = int_to_ptr.vmem [resolvable:$true] %s358
          %361 = dma.hbm_to_vmem [thread:$0]  %s9, 16, %s359, [#allocation8]
        $region44: #{decoder_forward.7} parent=11 // pred_fallthru
          _
      $region12: #{decoder_forward.7} parent=5 // pred_fallthru
        _
      %p362 = scmp.lt.s32.totalorder %s19, 2
      // Predicated region
      $region45: #{decoder_forward.7} parent=5 // pred_check
        %p363 = pneg %p362
      $region46: #{decoder_forward.7} parent=5 // pred_check_branch
        %365 = sbr.rel (%p363) target = $region48
      $region47: #{decoder_forward.7} parent=5 // pred_region
        // Predicated region
        $region49: #{decoder_forward.7} parent=47 // pred_check
          %p366 = pneg %p53
        $region50: #{decoder_forward.7} parent=47 // pred_check_branch
          %368 = sbr.rel (%p366) target = $region52
        $region51: #{decoder_forward.7} parent=47 // pred_region
          %p369 = scmp.lt.s32.totalorder %s26, 1
          %s370 = scalar_select %p369, %s26, 1
          %p371 = scmp.lt.s32.totalorder %s27, 0
          %s372 = scalar_select %p371, %s27, 0
          %s373 = sadd.s32 %s372, %s370
          %s374 = smul.addr %s373, 4
          %s375 = scalar_lea.vmem %s0, %s374
        $region52: #{decoder_forward.7} parent=47 // pred_fallthru
          _
        // Predicated region
        $region53: #{decoder_forward.7} parent=47 // pred_check
          %p376 = pneg %p79
        $region54: #{decoder_forward.7} parent=47 // pred_check_branch
          %378 = sbr.rel (%p376) target = $region56
        $region55: #{decoder_forward.7} parent=47 // pred_region
          %p379 = scmp.lt.s32.totalorder %s26, 1
          %s380 = scalar_select %p379, %s26, 1
          %s381 = smul.addr %s380, 4
          %s382 = scalar_lea.vmem %s1, %s381
        $region56: #{decoder_forward.7} parent=47 // pred_fallthru
          _
      $region48: #{decoder_forward.7} parent=5 // pred_fallthru
        _
      %p383 = scmp.le.s32.totalorder 1, %s19
      %p384 = scmp.lt.s32.totalorder %s19, 3
      %p385 = pnand %p383, %p384
      %p386 = pneg %p385
      // Predicated region
      $region57: #{decoder_forward.7} parent=5 // pred_check
        _
      $region58: #{decoder_forward.7} parent=5 // pred_check_branch
        %388 = sbr.rel (%p385) target = $region60
      $region59: #{decoder_forward.7} parent=5 // pred_region
        %s389 = ssub.s32 %s19, 1
        // Predicated region
        $region61: #{decoder_forward.7} parent=59 // pred_check
          %p390 = pneg %p169
        $region62: #{decoder_forward.7} parent=59 // pred_check_branch
          %392 = sbr.rel (%p390) target = $region64
        $region63: #{decoder_forward.7} parent=59 // pred_region
          %393 = dma.done [#allocation3], 32
        $region64: #{decoder_forward.7} parent=59 // pred_fallthru
          _
        // Predicated region
        $region65: #{decoder_forward.7} parent=59 // pred_check
          %p394 = pneg %p190
        $region66: #{decoder_forward.7} parent=59 // pred_check_branch
          %396 = sbr.rel (%p394) target = $region68
        $region67: #{decoder_forward.7} parent=59 // pred_region
          %397 = dma.done [#allocation5], 1024
        $region68: #{decoder_forward.7} parent=59 // pred_fallthru
          _
        // Predicated region
        $region69: #{decoder_forward.7} parent=59 // pred_check
          %p398 = pneg %p211
        $region70: #{decoder_forward.7} parent=59 // pred_check_branch
          %400 = sbr.rel (%p398) target = $region72
        $region71: #{decoder_forward.7} parent=59 // pred_region
          %401 = dma.done [#allocation5], 16
        $region72: #{decoder_forward.7} parent=59 // pred_fallthru
          _
        // Predicated region
        $region73: #{decoder_forward.7} parent=59 // pred_check
          %p402 = pneg %p232
        $region74: #{decoder_forward.7} parent=59 // pred_check_branch
          %404 = sbr.rel (%p402) target = $region76
        $region75: #{decoder_forward.7} parent=59 // pred_region
          %405 = dma.done [#allocation8], 16
        $region76: #{decoder_forward.7} parent=59 // pred_fallthru
          _
        // Predicated region
        $region77: #{decoder_forward.7} parent=59 // pred_check
          %p406 = pneg %p253
        $region78: #{decoder_forward.7} parent=59 // pred_check_branch
          %408 = sbr.rel (%p406) target = $region80
        $region79: #{decoder_forward.7} parent=59 // pred_region
          %409 = dma.done [#allocation8], 16
        $region80: #{decoder_forward.7} parent=59 // pred_fallthru
          _
        %p410 = scmp.lt.s32.totalorder %s28, 1
        %s411 = scalar_select %p410, %s28, 1
        %p412 = scmp.lt.s32.totalorder %s29, 0
        %s413 = scalar_select %p412, %s29, 0
        %s414 = sadd.s32 %s413, %s411
        %s415 = smul.addr %s414, 4
        %s416 = scalar_lea.vmem %s0, %s415
        %p417 = pneg %p59
        %p418 = pneg %p56
        %p419 = scmp.lt.s32.totalorder %s28, 1
        %s420 = scalar_select %p419, %s28, 1
        %s421 = smul.addr %s420, 4
        %s422 = scalar_lea.vmem %s1, %s421
        %p423 = pneg %p85
        %p424 = pneg %p82
        %p425 = pneg %p106
        %p426 = pneg %p103
        %p427 = pneg %p127
        %p428 = pneg %p124
        %p429 = pneg %p148
        %p430 = pneg %p145
        %p431 = pneg %p169
        %p432 = pneg %p166
        %p433 = pneg %p190
        %p434 = pneg %p187
        %p435 = pneg %p211
        %p436 = pneg %p208
        %p437 = pneg %p232
        %p438 = pneg %p229
        %p439 = pneg %p253
        %p440 = pneg %p250
        %p441 = pneg %p281
        %p442 = pneg %p278
        %p443 = scmp.lt.s32.totalorder %s28, 1
        %s444 = scalar_select %p443, %s28, 1
        %p445 = scmp.lt.s32.totalorder %s29, 0
        %s446 = scalar_select %p445, %s29, 0
        %s447 = sadd.s32 %s446, %s444
        %s448 = smul.addr %s447, 4
        %s449 = scalar_lea.vmem %s10, %s448
        %p450 = scmp.lt.s32.totalorder %s28, 1
        %s451 = scalar_select %p450, %s28, 1
        %p452 = scmp.lt.s32.totalorder %s29, 0
        %s453 = scalar_select %p452, %s29, 0
        %s454 = sadd.s32 %s453, %s451
        %s455 = smul.addr %s454, 4
        %s456 = scalar_lea.vmem %s0, %s455
        %p457 = scmp.lt.s32.totalorder %s28, 1
        %s458 = scalar_select %p457, %s28, 1
        %s459 = smul.addr %s458, 4
        %s460 = scalar_lea.vmem %s1, %s459
        %p461 = scmp.lt.s32.totalorder %s28, 1
        %s462 = scalar_select %p461, %s28, 1
        %p463 = scmp.lt.s32.totalorder %s29, 0
        %s464 = scalar_select %p463, %s29, 0
        %s465 = sadd.s32 %s464, %s462
        %s466 = smul.addr %s465, 4
        %s467 = scalar_lea.vmem %s10, %s466
        %v469 = vld [vmem:[%s456] sm:$0xf]
        %v470 = vld [vmem:[%s460] sm:$0xf]
        %v471 = vld [vmem:[%s2] sm:$0xf]
        %v472 = vld [vmem:[%s2 + $0x4] sm:$0xf]
        %v473 = vld [vmem:[%s2 + $0x8] sm:$0xf]
        %v474 = vld [vmem:[%s2 + $0xc] sm:$0xf]
        %v475 = vld [vmem:[%s2 + $0x10] sm:$0xf]
        %v476 = vld [vmem:[%s2 + $0x14] sm:$0xf]
        %v477 = vld [vmem:[%s2 + $0x18] sm:$0xf]
        %v478 = vld [vmem:[%s2 + $0x1c] sm:$0xf]
        %v479 = vld [vmem:[%s2 + $0x20] sm:$0xf]
        %v480 = vld [vmem:[%s2 + $0x24] sm:$0xf]
        %v481 = vld [vmem:[%s2 + $0x28] sm:$0xf]
        %v482 = vld [vmem:[%s2 + $0x2c] sm:$0xf]
        %v483 = vld [vmem:[%s2 + $0x30] sm:$0xf]
        %v484 = vld [vmem:[%s2 + $0x34] sm:$0xf]
        %v485 = vld [vmem:[%s2 + $0x38] sm:$0xf]
        %v486 = vld [vmem:[%s2 + $0x3c] sm:$0xf]
        %v487 = vld [vmem:[%s3] sm:$0x1]
        %v489 = vlaneseq
        %v490 = vshrl.u32 %v489, 7
        %v491 = vsub.s32 0, %v490
        %v492 = vrot.slane %v487, %v491
        %v510 = vunpack.c.l.b16 %v471
        %v511 = vunpack.c.l.b16 %v472
        %v512 = vunpack.c.l.b16 %v473
        %v513 = vunpack.c.l.b16 %v474
        %v514 = vunpack.c.l.b16 %v475
        %v515 = vunpack.c.l.b16 %v476
        %v516 = vunpack.c.l.b16 %v477
        %v517 = vunpack.c.l.b16 %v478
        %v518 = vunpack.c.l.b16 %v479
        %v519 = vunpack.c.l.b16 %v480
        %v520 = vunpack.c.l.b16 %v481
        %v521 = vunpack.c.l.b16 %v482
        %v522 = vunpack.c.l.b16 %v483
        %v523 = vunpack.c.l.b16 %v484
        %v524 = vunpack.c.l.b16 %v485
        %v525 = vunpack.c.l.b16 %v486
        %v526 = vpack.c.b16 %v511, %v510
        %v527 = vpack.c.b16 %v513, %v512
        %v528 = vpack.c.b16 %v515, %v514
        %v529 = vpack.c.b16 %v517, %v516
        %v530 = vpack.c.b16 %v519, %v518
        %v531 = vpack.c.b16 %v521, %v520
        %v532 = vpack.c.b16 %v523, %v522
        %v533 = vpack.c.b16 %v525, %v524
        %542 = vmatprep.subr.bf16.mxu0 0
        %543 = vmatpush1.bf16.msra.mxu0 %v526
        %544 = vmatprep.subr.bf16.mxu0 0
        %545 = vmatpush1.bf16.msra.mxu0 %v527
        %546 = vmatprep.subr.bf16.mxu0 0
        %547 = vmatpush1.bf16.msra.mxu0 %v528
        %548 = vmatprep.subr.bf16.mxu0 0
        %549 = vmatpush1.bf16.msra.mxu0 %v529
        %550 = vmatprep.subr.bf16.mxu0 0
        %551 = vmatpush1.bf16.msra.mxu0 %v530
        %552 = vmatprep.subr.bf16.mxu0 0
        %553 = vmatpush1.bf16.msra.mxu0 %v531
        %554 = vmatprep.subr.bf16.mxu0 0
        %555 = vmatpush1.bf16.msra.mxu0 %v532
        %556 = vmatprep.subr.bf16.mxu0 0
        %557 = vmatpush1.bf16.msra.mxu0 %v533
        %558 = vmatprep.subr.bf16.mxu0 0
        %559 = vmatpush1.bf16.msra.mxu0 0
        %560 = vmatprep.subr.bf16.mxu0 0
        %561 = vmatpush1.bf16.msra.mxu0 0
        %562 = vmatprep.subr.bf16.mxu0 0
        %563 = vmatpush1.bf16.msra.mxu0 0
        %564 = vmatprep.subr.bf16.mxu0 0
        %565 = vmatpush1.bf16.msra.mxu0 0
        %566 = vmatprep.subr.bf16.mxu0 0
        %567 = vmatpush1.bf16.msra.mxu0 0
        %568 = vmatprep.subr.bf16.mxu0 0
        %569 = vmatpush1.bf16.msra.mxu0 0
        %570 = vmatprep.subr.bf16.mxu0 0
        %571 = vmatpush1.bf16.msra.mxu0 0
        %572 = vmatprep.subr.bf16.mxu0 0
        %573 = vmatpush1.bf16.msra.mxu0 0
        %574 = vmatprep.mubr.bf16.mxu0 0
        %575 = vmatmul.mubr.bf16.gmra.mrb[0].mxu0 %v469
        %v576 = vpop.f32.mrb[0].mxu0
        %v577 = vadd.f32 %v492, %v576
        %v578 = vpop.f32.mrb[0].mxu0
        %v579 = vpop.f32.mrb[0].mxu0
        %v580 = vpop.f32.mrb[0].mxu0
        %581 = vdwg.mxu0
        %v582 = vld [vmem:[%s4] sm:$0xff]
        %v583 = vld [vmem:[%s4 + $0x8] sm:$0xff]
        %v584 = vld [vmem:[%s4 + $0x10] sm:$0xff]
        %v585 = vld [vmem:[%s4 + $0x18] sm:$0xff]
        %v586 = vld [vmem:[%s4 + $0x20] sm:$0xff]
        %v587 = vld [vmem:[%s4 + $0x28] sm:$0xff]
        %v588 = vld [vmem:[%s4 + $0x30] sm:$0xff]
        %v589 = vld [vmem:[%s4 + $0x38] sm:$0xff]
        %v590 = vld [vmem:[%s4 + $0x40] sm:$0xff]
        %v591 = vld [vmem:[%s4 + $0x48] sm:$0xff]
        %v592 = vld [vmem:[%s4 + $0x50] sm:$0xff]
        %v593 = vld [vmem:[%s4 + $0x58] sm:$0xff]
        %v594 = vld [vmem:[%s4 + $0x60] sm:$0xff]
        %v595 = vld [vmem:[%s4 + $0x68] sm:$0xff]
        %v596 = vld [vmem:[%s4 + $0x70] sm:$0xff]
        %v597 = vld [vmem:[%s4 + $0x78] sm:$0xff]
        %v598 = vld [vmem:[#allocation2] sm:$0x3]
        %v600 = vlaneseq
        %v601 = vshrl.u32 %v600, 7
        %v602 = vsub.s32 0, %v601
        %v603 = vrot.slane %v598, %v602
        %v604 = vlaneseq
        %v605 = vshrl.u32 %v604, 7
        %v606 = vsub.s32 1, %v605
        %v607 = vrot.slane %v598, %v606
        %v626 = vunpack.c.l.b16 %v582
        %v627 = vunpack.c.h.b16 %v582
        %v628 = vunpack.c.l.b16 %v583
        %v629 = vunpack.c.h.b16 %v583
        %v630 = vunpack.c.l.b16 %v584
        %v631 = vunpack.c.h.b16 %v584
        %v632 = vunpack.c.l.b16 %v585
        %v633 = vunpack.c.h.b16 %v585
        %v634 = vunpack.c.l.b16 %v586
        %v635 = vunpack.c.h.b16 %v586
        %v636 = vunpack.c.l.b16 %v587
        %v637 = vunpack.c.h.b16 %v587
        %v638 = vunpack.c.l.b16 %v588
        %v639 = vunpack.c.h.b16 %v588
        %v640 = vunpack.c.l.b16 %v589
        %v641 = vunpack.c.h.b16 %v589
        %v642 = vunpack.c.l.b16 %v590
        %v643 = vunpack.c.h.b16 %v590
        %v644 = vunpack.c.l.b16 %v591
        %v645 = vunpack.c.h.b16 %v591
        %v646 = vunpack.c.l.b16 %v592
        %v647 = vunpack.c.h.b16 %v592
        %v648 = vunpack.c.l.b16 %v593
        %v649 = vunpack.c.h.b16 %v593
        %v650 = vunpack.c.l.b16 %v594
        %v651 = vunpack.c.h.b16 %v594
        %v652 = vunpack.c.l.b16 %v595
        %v653 = vunpack.c.h.b16 %v595
        %v654 = vunpack.c.l.b16 %v596
        %v655 = vunpack.c.h.b16 %v596
        %v656 = vunpack.c.l.b16 %v597
        %v657 = vunpack.c.h.b16 %v597
        %v658 = vpack.c.b16 %v628, %v626
        %v659 = vpack.c.b16 %v629, %v627
        %v660 = vpack.c.b16 %v632, %v630
        %v661 = vpack.c.b16 %v633, %v631
        %v662 = vpack.c.b16 %v636, %v634
        %v663 = vpack.c.b16 %v637, %v635
        %v664 = vpack.c.b16 %v640, %v638
        %v665 = vpack.c.b16 %v641, %v639
        %v666 = vpack.c.b16 %v644, %v642
        %v667 = vpack.c.b16 %v645, %v643
        %v668 = vpack.c.b16 %v648, %v646
        %v669 = vpack.c.b16 %v649, %v647
        %v670 = vpack.c.b16 %v652, %v650
        %v671 = vpack.c.b16 %v653, %v651
        %v672 = vpack.c.b16 %v656, %v654
        %v673 = vpack.c.b16 %v657, %v655
        %690 = vmatprep.subr.bf16.mxu0 %v659
        %691 = vmatpush1.bf16.msra.mxu0 %v658
        %692 = vmatprep.subr.bf16.mxu0 %v661
        %693 = vmatpush1.bf16.msra.mxu0 %v660
        %694 = vmatprep.subr.bf16.mxu0 %v663
        %695 = vmatpush1.bf16.msra.mxu0 %v662
        %696 = vmatprep.subr.bf16.mxu0 %v665
        %697 = vmatpush1.bf16.msra.mxu0 %v664
        %698 = vmatprep.subr.bf16.mxu0 %v667
        %699 = vmatpush1.bf16.msra.mxu0 %v666
        %700 = vmatprep.subr.bf16.mxu0 %v669
        %701 = vmatpush1.bf16.msra.mxu0 %v668
        %702 = vmatprep.subr.bf16.mxu0 %v671
        %703 = vmatpush1.bf16.msra.mxu0 %v670
        %704 = vmatprep.subr.bf16.mxu0 %v673
        %705 = vmatpush1.bf16.msra.mxu0 %v672
        %706 = vmatprep.subr.bf16.mxu0 0
        %707 = vmatpush1.bf16.msra.mxu0 0
        %708 = vmatprep.subr.bf16.mxu0 0
        %709 = vmatpush1.bf16.msra.mxu0 0
        %710 = vmatprep.subr.bf16.mxu0 0
        %711 = vmatpush1.bf16.msra.mxu0 0
        %712 = vmatprep.subr.bf16.mxu0 0
        %713 = vmatpush1.bf16.msra.mxu0 0
        %714 = vmatprep.subr.bf16.mxu0 0
        %715 = vmatpush1.bf16.msra.mxu0 0
        %716 = vmatprep.subr.bf16.mxu0 0
        %717 = vmatpush1.bf16.msra.mxu0 0
        %718 = vmatprep.subr.bf16.mxu0 0
        %719 = vmatpush1.bf16.msra.mxu0 0
        %720 = vmatprep.subr.bf16.mxu0 0
        %721 = vmatpush1.bf16.msra.mxu0 0
        %722 = vmatprep.mubr.bf16.mxu0 0
        %723 = vmatmul.mubr.bf16.gmra.mrb[0].mxu0 %v470
        %v724 = vpop.f32.mrb[0].mxu0
        %v725 = vadd.f32 %v603, %v724
        %v726 = vpop.f32.mrb[0].mxu0
        %v727 = vadd.f32 %v607, %v726
        %v728 = vpop.f32.mrb[0].mxu0
        %v729 = vpop.f32.mrb[0].mxu0
        %730 = vdwg.mxu0
        %732 = vrot.lane.b32.xlu0 %v577, 96
        %v733 = vpop.permute.xlu0 %732
        %734 = vrot.lane.b32.xlu0 %v577, 64
        %v735 = vpop.permute.xlu0 %734
        %736 = vrot.lane.b32.xlu0 %v577, 32
        %v737 = vpop.permute.xlu0 %736
        %739 = vrot.lane.b32.xlu0 %v725, 96
        %v740 = vpop.permute.xlu0 %739
        %742 = vrot.lane.b32.xlu0 %v725, 64
        %v743 = vpop.permute.xlu0 %742
        %745 = vrot.lane.b32.xlu0 %v725, 32
        %v746 = vpop.permute.xlu0 %745
        %749 = vrot.lane.b32.xlu0 %v727, 96
        %v750 = vpop.permute.xlu0 %749
        %752 = vrot.lane.b32.xlu0 %v727, 64
        %v753 = vpop.permute.xlu0 %752
        %755 = vrot.lane.b32.xlu0 %v727, 32
        %v756 = vpop.permute.xlu0 %755
        %758 = vxpose.xlu0.b32.start [1/16] %v725, 128
        %759 = vxpose.xlu0.b32.cont [2/16] 0.0, 128
        %760 = vxpose.xlu0.b32.cont [3/16] 0.0, 128
        %761 = vxpose.xlu0.b32.cont [4/16] 0.0, 128
        %762 = vxpose.xlu0.b32.cont [5/16] 0.0, 128
        %763 = vxpose.xlu0.b32.cont [6/16] 0.0, 128
        %764 = vxpose.xlu0.b32.cont [7/16] 0.0, 128
        %765 = vxpose.xlu0.b32.cont [8/16] 0.0, 128
        %766 = vxpose.xlu0.b32.cont [9/16] 0.0, 128
        %767 = vxpose.xlu0.b32.cont [10/16] 0.0, 128
        %768 = vxpose.xlu0.b32.cont [11/16] 0.0, 128
        %769 = vxpose.xlu0.b32.cont [12/16] 0.0, 128
        %770 = vxpose.xlu0.b32.cont [13/16] 0.0, 128
        %771 = vxpose.xlu0.b32.cont [14/16] 0.0, 128
        %772 = vxpose.xlu0.b32.cont [15/16] 0.0, 128
        %773 = vxpose.xlu0.b32.end [16/16] 0.0, 128
        %v774 = vpop.trf.xlu0
        %v775 = vpop.trf.xlu0
        %v776 = vpop.trf.xlu0
        %v777 = vpop.trf.xlu0
        %v778 = vpop.trf.xlu0
        %v779 = vpop.trf.xlu0
        %v780 = vpop.trf.xlu0
        %v781 = vpop.trf.xlu0
        %v782 = vpop.trf.xlu0
        %v783 = vpop.trf.xlu0
        %v784 = vpop.trf.xlu0
        %v785 = vpop.trf.xlu0
        %v786 = vpop.trf.xlu0
        %v787 = vpop.trf.xlu0
        %v788 = vpop.trf.xlu0
        %v789 = vpop.trf.xlu0
        %790 = vxpose.xlu0.b32.start [1/16] %v740, 128
        %791 = vxpose.xlu0.b32.cont [2/16] 0.0, 128
        %792 = vxpose.xlu0.b32.cont [3/16] 0.0, 128
        %793 = vxpose.xlu0.b32.cont [4/16] 0.0, 128
        %794 = vxpose.xlu0.b32.cont [5/16] 0.0, 128
        %795 = vxpose.xlu0.b32.cont [6/16] 0.0, 128
        %796 = vxpose.xlu0.b32.cont [7/16] 0.0, 128
        %797 = vxpose.xlu0.b32.cont [8/16] 0.0, 128
        %798 = vxpose.xlu0.b32.cont [9/16] 0.0, 128
        %799 = vxpose.xlu0.b32.cont [10/16] 0.0, 128
        %800 = vxpose.xlu0.b32.cont [11/16] 0.0, 128
        %801 = vxpose.xlu0.b32.cont [12/16] 0.0, 128
        %802 = vxpose.xlu0.b32.cont [13/16] 0.0, 128
        %803 = vxpose.xlu0.b32.cont [14/16] 0.0, 128
        %804 = vxpose.xlu0.b32.cont [15/16] 0.0, 128
        %805 = vxpose.xlu0.b32.end [16/16] 0.0, 128
        %v806 = vpop.trf.xlu0
        %v807 = vpop.trf.xlu0
        %v808 = vpop.trf.xlu0
        %v809 = vpop.trf.xlu0
        %v810 = vpop.trf.xlu0
        %v811 = vpop.trf.xlu0
        %v812 = vpop.trf.xlu0
        %v813 = vpop.trf.xlu0
        %v814 = vpop.trf.xlu0
        %v815 = vpop.trf.xlu0
        %v816 = vpop.trf.xlu0
        %v817 = vpop.trf.xlu0
        %v818 = vpop.trf.xlu0
        %v819 = vpop.trf.xlu0
        %v820 = vpop.trf.xlu0
        %v821 = vpop.trf.xlu0
        %822 = vxpose.xlu0.b32.start [1/16] %v743, 128
        %823 = vxpose.xlu0.b32.cont [2/16] 0.0, 128
        %824 = vxpose.xlu0.b32.cont [3/16] 0.0, 128
        %825 = vxpose.xlu0.b32.cont [4/16] 0.0, 128
        %826 = vxpose.xlu0.b32.cont [5/16] 0.0, 128
        %827 = vxpose.xlu0.b32.cont [6/16] 0.0, 128
        %828 = vxpose.xlu0.b32.cont [7/16] 0.0, 128
        %829 = vxpose.xlu0.b32.cont [8/16] 0.0, 128
        %830 = vxpose.xlu0.b32.cont [9/16] 0.0, 128
        %831 = vxpose.xlu0.b32.cont [10/16] 0.0, 128
        %832 = vxpose.xlu0.b32.cont [11/16] 0.0, 128
        %833 = vxpose.xlu0.b32.cont [12/16] 0.0, 128
        %834 = vxpose.xlu0.b32.cont [13/16] 0.0, 128
        %835 = vxpose.xlu0.b32.cont [14/16] 0.0, 128
        %836 = vxpose.xlu0.b32.cont [15/16] 0.0, 128
        %837 = vxpose.xlu0.b32.end [16/16] 0.0, 128
        %v838 = vpop.trf.xlu0
        %v839 = vpop.trf.xlu0
        %v840 = vpop.trf.xlu0
        %v841 = vpop.trf.xlu0
        %v842 = vpop.trf.xlu0
        %v843 = vpop.trf.xlu0
        %v844 = vpop.trf.xlu0
        %v845 = vpop.trf.xlu0
        %v846 = vpop.trf.xlu0
        %v847 = vpop.trf.xlu0
        %v848 = vpop.trf.xlu0
        %v849 = vpop.trf.xlu0
        %v850 = vpop.trf.xlu0
        %v851 = vpop.trf.xlu0
        %v852 = vpop.trf.xlu0
        %v853 = vpop.trf.xlu0
        %854 = vxpose.xlu0.b32.start [1/16] %v746, 128
        %855 = vxpose.xlu0.b32.cont [2/16] 0.0, 128
        %856 = vxpose.xlu0.b32.cont [3/16] 0.0, 128
        %857 = vxpose.xlu0.b32.cont [4/16] 0.0, 128
        %858 = vxpose.xlu0.b32.cont [5/16] 0.0, 128
        %859 = vxpose.xlu0.b32.cont [6/16] 0.0, 128
        %860 = vxpose.xlu0.b32.cont [7/16] 0.0, 128
        %861 = vxpose.xlu0.b32.cont [8/16] 0.0, 128
        %862 = vxpose.xlu0.b32.cont [9/16] 0.0, 128
        %863 = vxpose.xlu0.b32.cont [10/16] 0.0, 128
        %864 = vxpose.xlu0.b32.cont [11/16] 0.0, 128
        %865 = vxpose.xlu0.b32.cont [12/16] 0.0, 128
        %866 = vxpose.xlu0.b32.cont [13/16] 0.0, 128
        %867 = vxpose.xlu0.b32.cont [14/16] 0.0, 128
        %868 = vxpose.xlu0.b32.cont [15/16] 0.0, 128
        %869 = vxpose.xlu0.b32.end [16/16] 0.0, 128
        %v870 = vpop.trf.xlu0
        %v871 = vpop.trf.xlu0
        %v872 = vpop.trf.xlu0
        %v873 = vpop.trf.xlu0
        %v874 = vpop.trf.xlu0
        %v875 = vpop.trf.xlu0
        %v876 = vpop.trf.xlu0
        %v877 = vpop.trf.xlu0
        %v878 = vpop.trf.xlu0
        %v879 = vpop.trf.xlu0
        %v880 = vpop.trf.xlu0
        %v881 = vpop.trf.xlu0
        %v882 = vpop.trf.xlu0
        %v883 = vpop.trf.xlu0
        %v884 = vpop.trf.xlu0
        %v885 = vpop.trf.xlu0
        %vm886 = vcmask 261120
        %v887 = vsel %vm886, %v577, 0
        %889 = vmatprep.subr.mxu0 0.0
        %890 = vmatpush1.msra.mxu0 %v774
        %891 = vmatprep.subr.mxu0 0.0
        %892 = vmatpush1.msra.mxu0 %v775
        %893 = vmatprep.subr.mxu0 0.0
        %894 = vmatpush1.msra.mxu0 %v776
        %895 = vmatprep.subr.mxu0 0.0
        %896 = vmatpush1.msra.mxu0 %v777
        %897 = vmatprep.subr.mxu0 0.0
        %898 = vmatpush1.msra.mxu0 0.0
        %899 = vmatprep.subr.mxu0 0.0
        %900 = vmatpush1.msra.mxu0 0.0
        %901 = vmatprep.subr.mxu0 0.0
        %902 = vmatpush1.msra.mxu0 0.0
        %903 = vmatprep.subr.mxu0 0.0
        %904 = vmatpush1.msra.mxu0 0.0
        %905 = vmatprep.subr.mxu0 0.0
        %906 = vmatpush1.msra.mxu0 0.0
        %907 = vmatprep.subr.mxu0 0.0
        %908 = vmatpush1.msra.mxu0 0.0
        %909 = vmatprep.subr.mxu0 0.0
        %910 = vmatpush1.msra.mxu0 0.0
        %911 = vmatprep.subr.mxu0 0.0
        %912 = vmatpush1.msra.mxu0 0.0
        %913 = vmatprep.subr.mxu0 0.0
        %914 = vmatpush1.msra.mxu0 0.0
        %915 = vmatprep.subr.mxu0 0.0
        %916 = vmatpush1.msra.mxu0 0.0
        %917 = vmatprep.subr.mxu0 0.0
        %918 = vmatpush1.msra.mxu0 0.0
        %919 = vmatprep.subr.mxu0 0.0
        %920 = vmatpush1.msra.mxu0 0.0
        %921 = vmatprep.subr.mxu0 0.0
        %922 = vmatpush1.msra.mxu0 0.0
        %923 = vmatprep.subr.mxu0 0.0
        %924 = vmatpush1.msra.mxu0 0.0
        %925 = vmatprep.subr.mxu0 0.0
        %926 = vmatpush1.msra.mxu0 0.0
        %927 = vmatprep.subr.mxu0 0.0
        %928 = vmatpush1.msra.mxu0 0.0
        %929 = vmatprep.subr.mxu0 0.0
        %930 = vmatpush1.msra.mxu0 0.0
        %931 = vmatprep.subr.mxu0 0.0
        %932 = vmatpush1.msra.mxu0 0.0
        %933 = vmatprep.subr.mxu0 0.0
        %934 = vmatpush1.msra.mxu0 0.0
        %935 = vmatprep.subr.mxu0 0.0
        %936 = vmatpush1.msra.mxu0 0.0
        %937 = vmatprep.subr.mxu0 0.0
        %938 = vmatpush1.msra.mxu0 0.0
        %939 = vmatprep.subr.mxu0 0.0
        %940 = vmatpush1.msra.mxu0 0.0
        %941 = vmatprep.subr.mxu0 0.0
        %942 = vmatpush1.msra.mxu0 0.0
        %943 = vmatprep.subr.mxu0 0.0
        %944 = vmatpush1.msra.mxu0 0.0
        %945 = vmatprep.subr.mxu0 0.0
        %946 = vmatpush1.msra.mxu0 0.0
        %947 = vmatprep.subr.mxu0 0.0
        %948 = vmatpush1.msra.mxu0 0.0
        %949 = vmatprep.subr.mxu0 0.0
        %950 = vmatpush1.msra.mxu0 0.0
        %951 = vmatprep.subr.mxu0 0.0
        %952 = vmatpush1.msra.mxu0 0.0
        %953 = vmatprep.mubr.f32.mxu0 0.0
        %954 = vmatmul.mubr.f32.gmra.mrb[0].mxu0 %v887
        %v955 = vpop.f32.mrb[0].mxu0
        %v956 = vadd.f32 0.0, %v955
        %v957 = vpop.f32.mrb[0].mxu0
        %958 = vdwg.mxu0
        %v959 = vsel %vm886, %v733, 0
        %961 = vmatprep.subr.mxu0 0.0
        %962 = vmatpush1.msra.mxu0 %v806
        %963 = vmatprep.subr.mxu0 0.0
        %964 = vmatpush1.msra.mxu0 %v807
        %965 = vmatprep.subr.mxu0 0.0
        %966 = vmatpush1.msra.mxu0 %v808
        %967 = vmatprep.subr.mxu0 0.0
        %968 = vmatpush1.msra.mxu0 %v809
        %969 = vmatprep.subr.mxu0 0.0
        %970 = vmatpush1.msra.mxu0 0.0
        %971 = vmatprep.subr.mxu0 0.0
        %972 = vmatpush1.msra.mxu0 0.0
        %973 = vmatprep.subr.mxu0 0.0
        %974 = vmatpush1.msra.mxu0 0.0
        %975 = vmatprep.subr.mxu0 0.0
        %976 = vmatpush1.msra.mxu0 0.0
        %977 = vmatprep.subr.mxu0 0.0
        %978 = vmatpush1.msra.mxu0 0.0
        %979 = vmatprep.subr.mxu0 0.0
        %980 = vmatpush1.msra.mxu0 0.0
        %981 = vmatprep.subr.mxu0 0.0
        %982 = vmatpush1.msra.mxu0 0.0
        %983 = vmatprep.subr.mxu0 0.0
        %984 = vmatpush1.msra.mxu0 0.0
        %985 = vmatprep.subr.mxu0 0.0
        %986 = vmatpush1.msra.mxu0 0.0
        %987 = vmatprep.subr.mxu0 0.0
        %988 = vmatpush1.msra.mxu0 0.0
        %989 = vmatprep.subr.mxu0 0.0
        %990 = vmatpush1.msra.mxu0 0.0
        %991 = vmatprep.subr.mxu0 0.0
        %992 = vmatpush1.msra.mxu0 0.0
        %993 = vmatprep.subr.mxu0 0.0
        %994 = vmatpush1.msra.mxu0 0.0
        %995 = vmatprep.subr.mxu0 0.0
        %996 = vmatpush1.msra.mxu0 0.0
        %997 = vmatprep.subr.mxu0 0.0
        %998 = vmatpush1.msra.mxu0 0.0
        %999 = vmatprep.subr.mxu0 0.0
        %1000 = vmatpush1.msra.mxu0 0.0
        %1001 = vmatprep.subr.mxu0 0.0
        %1002 = vmatpush1.msra.mxu0 0.0
        %1003 = vmatprep.subr.mxu0 0.0
        %1004 = vmatpush1.msra.mxu0 0.0
        %1005 = vmatprep.subr.mxu0 0.0
        %1006 = vmatpush1.msra.mxu0 0.0
        %1007 = vmatprep.subr.mxu0 0.0
        %1008 = vmatpush1.msra.mxu0 0.0
        %1009 = vmatprep.subr.mxu0 0.0
        %1010 = vmatpush1.msra.mxu0 0.0
        %1011 = vmatprep.subr.mxu0 0.0
        %1012 = vmatpush1.msra.mxu0 0.0
        %1013 = vmatprep.subr.mxu0 0.0
        %1014 = vmatpush1.msra.mxu0 0.0
        %1015 = vmatprep.subr.mxu0 0.0
        %1016 = vmatpush1.msra.mxu0 0.0
        %1017 = vmatprep.subr.mxu0 0.0
        %1018 = vmatpush1.msra.mxu0 0.0
        %1019 = vmatprep.subr.mxu0 0.0
        %1020 = vmatpush1.msra.mxu0 0.0
        %1021 = vmatprep.subr.mxu0 0.0
        %1022 = vmatpush1.msra.mxu0 0.0
        %1023 = vmatprep.subr.mxu0 0.0
        %1024 = vmatpush1.msra.mxu0 0.0
        %1025 = vmatprep.mubr.f32.mxu0 0.0
        %1026 = vmatmul.mubr.f32.gmra.mrb[0].mxu0 %v959
        %v1027 = vpop.f32.mrb[0].mxu0
        %v1028 = vadd.f32 0.0, %v1027
        %v1029 = vpop.f32.mrb[0].mxu0
        %1030 = vdwg.mxu0
        %v1031 = vsel %vm886, %v735, 0
        %1033 = vmatprep.subr.mxu0 0.0
        %1034 = vmatpush1.msra.mxu0 %v838
        %1035 = vmatprep.subr.mxu0 0.0
        %1036 = vmatpush1.msra.mxu0 %v839
        %1037 = vmatprep.subr.mxu0 0.0
        %1038 = vmatpush1.msra.mxu0 %v840
        %1039 = vmatprep.subr.mxu0 0.0
        %1040 = vmatpush1.msra.mxu0 %v841
        %1041 = vmatprep.subr.mxu0 0.0
        %1042 = vmatpush1.msra.mxu0 0.0
        %1043 = vmatprep.subr.mxu0 0.0
        %1044 = vmatpush1.msra.mxu0 0.0
        %1045 = vmatprep.subr.mxu0 0.0
        %1046 = vmatpush1.msra.mxu0 0.0
        %1047 = vmatprep.subr.mxu0 0.0
        %1048 = vmatpush1.msra.mxu0 0.0
        %1049 = vmatprep.subr.mxu0 0.0
        %1050 = vmatpush1.msra.mxu0 0.0
        %1051 = vmatprep.subr.mxu0 0.0
        %1052 = vmatpush1.msra.mxu0 0.0
        %1053 = vmatprep.subr.mxu0 0.0
        %1054 = vmatpush1.msra.mxu0 0.0
        %1055 = vmatprep.subr.mxu0 0.0
        %1056 = vmatpush1.msra.mxu0 0.0
        %1057 = vmatprep.subr.mxu0 0.0
        %1058 = vmatpush1.msra.mxu0 0.0
        %1059 = vmatprep.subr.mxu0 0.0
        %1060 = vmatpush1.msra.mxu0 0.0
        %1061 = vmatprep.subr.mxu0 0.0
        %1062 = vmatpush1.msra.mxu0 0.0
        %1063 = vmatprep.subr.mxu0 0.0
        %1064 = vmatpush1.msra.mxu0 0.0
        %1065 = vmatprep.subr.mxu0 0.0
        %1066 = vmatpush1.msra.mxu0 0.0
        %1067 = vmatprep.subr.mxu0 0.0
        %1068 = vmatpush1.msra.mxu0 0.0
        %1069 = vmatprep.subr.mxu0 0.0
        %1070 = vmatpush1.msra.mxu0 0.0
        %1071 = vmatprep.subr.mxu0 0.0
        %1072 = vmatpush1.msra.mxu0 0.0
        %1073 = vmatprep.subr.mxu0 0.0
        %1074 = vmatpush1.msra.mxu0 0.0
        %1075 = vmatprep.subr.mxu0 0.0
        %1076 = vmatpush1.msra.mxu0 0.0
        %1077 = vmatprep.subr.mxu0 0.0
        %1078 = vmatpush1.msra.mxu0 0.0
        %1079 = vmatprep.subr.mxu0 0.0
        %1080 = vmatpush1.msra.mxu0 0.0
        %1081 = vmatprep.subr.mxu0 0.0
        %1082 = vmatpush1.msra.mxu0 0.0
        %1083 = vmatprep.subr.mxu0 0.0
        %1084 = vmatpush1.msra.mxu0 0.0
        %1085 = vmatprep.subr.mxu0 0.0
        %1086 = vmatpush1.msra.mxu0 0.0
        %1087 = vmatprep.subr.mxu0 0.0
        %1088 = vmatpush1.msra.mxu0 0.0
        %1089 = vmatprep.subr.mxu0 0.0
        %1090 = vmatpush1.msra.mxu0 0.0
        %1091 = vmatprep.subr.mxu0 0.0
        %1092 = vmatpush1.msra.mxu0 0.0
        %1093 = vmatprep.subr.mxu0 0.0
        %1094 = vmatpush1.msra.mxu0 0.0
        %1095 = vmatprep.subr.mxu0 0.0
        %1096 = vmatpush1.msra.mxu0 0.0
        %1097 = vmatprep.mubr.f32.mxu0 0.0
        %1098 = vmatmul.mubr.f32.gmra.mrb[0].mxu0 %v1031
        %v1099 = vpop.f32.mrb[0].mxu0
        %v1100 = vadd.f32 0.0, %v1099
        %v1101 = vpop.f32.mrb[0].mxu0
        %1102 = vdwg.mxu0
        %v1103 = vsel %vm886, %v737, 0
        %1105 = vmatprep.subr.mxu0 0.0
        %1106 = vmatpush1.msra.mxu0 %v870
        %1107 = vmatprep.subr.mxu0 0.0
        %1108 = vmatpush1.msra.mxu0 %v871
        %1109 = vmatprep.subr.mxu0 0.0
        %1110 = vmatpush1.msra.mxu0 %v872
        %1111 = vmatprep.subr.mxu0 0.0
        %1112 = vmatpush1.msra.mxu0 %v873
        %1113 = vmatprep.subr.mxu0 0.0
        %1114 = vmatpush1.msra.mxu0 0.0
        %1115 = vmatprep.subr.mxu0 0.0
        %1116 = vmatpush1.msra.mxu0 0.0
        %1117 = vmatprep.subr.mxu0 0.0
        %1118 = vmatpush1.msra.mxu0 0.0
        %1119 = vmatprep.subr.mxu0 0.0
        %1120 = vmatpush1.msra.mxu0 0.0
        %1121 = vmatprep.subr.mxu0 0.0
        %1122 = vmatpush1.msra.mxu0 0.0
        %1123 = vmatprep.subr.mxu0 0.0
        %1124 = vmatpush1.msra.mxu0 0.0
        %1125 = vmatprep.subr.mxu0 0.0
        %1126 = vmatpush1.msra.mxu0 0.0
        %1127 = vmatprep.subr.mxu0 0.0
        %1128 = vmatpush1.msra.mxu0 0.0
        %1129 = vmatprep.subr.mxu0 0.0
        %1130 = vmatpush1.msra.mxu0 0.0
        %1131 = vmatprep.subr.mxu0 0.0
        %1132 = vmatpush1.msra.mxu0 0.0
        %1133 = vmatprep.subr.mxu0 0.0
        %1134 = vmatpush1.msra.mxu0 0.0
        %1135 = vmatprep.subr.mxu0 0.0
        %1136 = vmatpush1.msra.mxu0 0.0
        %1137 = vmatprep.subr.mxu0 0.0
        %1138 = vmatpush1.msra.mxu0 0.0
        %1139 = vmatprep.subr.mxu0 0.0
        %1140 = vmatpush1.msra.mxu0 0.0
        %1141 = vmatprep.subr.mxu0 0.0
        %1142 = vmatpush1.msra.mxu0 0.0
        %1143 = vmatprep.subr.mxu0 0.0
        %1144 = vmatpush1.msra.mxu0 0.0
        %1145 = vmatprep.subr.mxu0 0.0
        %1146 = vmatpush1.msra.mxu0 0.0
        %1147 = vmatprep.subr.mxu0 0.0
        %1148 = vmatpush1.msra.mxu0 0.0
        %1149 = vmatprep.subr.mxu0 0.0
        %1150 = vmatpush1.msra.mxu0 0.0
        %1151 = vmatprep.subr.mxu0 0.0
        %1152 = vmatpush1.msra.mxu0 0.0
        %1153 = vmatprep.subr.mxu0 0.0
        %1154 = vmatpush1.msra.mxu0 0.0
        %1155 = vmatprep.subr.mxu0 0.0
        %1156 = vmatpush1.msra.mxu0 0.0
        %1157 = vmatprep.subr.mxu0 0.0
        %1158 = vmatpush1.msra.mxu0 0.0
        %1159 = vmatprep.subr.mxu0 0.0
        %1160 = vmatpush1.msra.mxu0 0.0
        %1161 = vmatprep.subr.mxu0 0.0
        %1162 = vmatpush1.msra.mxu0 0.0
        %1163 = vmatprep.subr.mxu0 0.0
        %1164 = vmatpush1.msra.mxu0 0.0
        %1165 = vmatprep.subr.mxu0 0.0
        %1166 = vmatpush1.msra.mxu0 0.0
        %1167 = vmatprep.subr.mxu0 0.0
        %1168 = vmatpush1.msra.mxu0 0.0
        %1169 = vmatprep.mubr.f32.mxu0 0.0
        %1170 = vmatmul.mubr.f32.gmra.mrb[0].mxu0 %v1103
        %v1171 = vpop.f32.mrb[0].mxu0
        %v1172 = vadd.f32 0.0, %v1171
        %v1173 = vpop.f32.mrb[0].mxu0
        %1174 = vdwg.mxu0
        %s1175 = smul.u32 %s29, 8
        %v1176 = vlaneseq
        %v1177 = vshrl.u32 %v1176, 7
        %v1178 = vstv %s1175
        %v1179 = vadd.s32 %v1178, %v1177
        %v1180 = vlaneseq
        %v1181 = vand.u32 %v1180, 127
        %vm1182 = vcmp.gt.s32.totalorder %v1181, %v1179
        %v1183 = vsel %vm1182, 1, 0
        %vm1184 = vcmp.eq.s32.totalorder %v1183, 1
        %v1185 = vsel %vm1184, -1e+09, %v956
        %v1186 = vsel %vm1184, -1e+09, %v1028
        %v1187 = vsel %vm1184, -1e+09, %v1100
        %v1188 = vsel %vm1184, -1e+09, %v1172
        %vm1189 = vcmask 64512
        %v1190 = vsel %vm1189, %v1185, -inf
        %1191 = vmax.xlane.f32.xlu0 %v1190
        %v1192 = vpop.xlane.xlu0 %1191
        %v1193 = vsel %vm1189, %v1186, -inf
        %1194 = vmax.xlane.f32.xlu0 %v1193
        %v1195 = vpop.xlane.xlu0 %1194
        %v1196 = vsel %vm1189, %v1187, -inf
        %1197 = vmax.xlane.f32.xlu0 %v1196
        %v1198 = vpop.xlane.xlu0 %1197
        %v1199 = vsel %vm1189, %v1188, -inf
        %1200 = vmax.xlane.f32.xlu0 %v1199
        %v1201 = vpop.xlane.xlu0 %1200
        %v1202 = vsub.f32 %v1185, %v1192
        %v1203 = vsub.f32 %v1186, %v1195
        %v1204 = vsub.f32 %v1187, %v1198
        %v1205 = vsub.f32 %v1188, %v1201
        %v1206 = vmul.f32 %v1202, 1.442695
        %v1207 = vpow.pop %v1206
        %v1208 = vmul.f32 %v1203, 1.442695
        %v1209 = vpow.pop %v1208
        %v1210 = vmul.f32 %v1204, 1.442695
        %v1211 = vpow.pop %v1210
        %v1212 = vmul.f32 %v1205, 1.442695
        %v1213 = vpow.pop %v1212
        %v1214 = vsel %vm1189, %v1207, 0.0
        %1215 = vadd.xlane.f32.xlu0 %v1214
        %v1216 = vpop.xlane.xlu0 %1215
        %v1217 = vsel %vm1189, %v1209, 0.0
        %1218 = vadd.xlane.f32.xlu0 %v1217
        %v1219 = vpop.xlane.xlu0 %1218
        %v1220 = vsel %vm1189, %v1211, 0.0
        %1221 = vadd.xlane.f32.xlu0 %v1220
        %v1222 = vpop.xlane.xlu0 %1221
        %v1223 = vsel %vm1189, %v1213, 0.0
        %1224 = vadd.xlane.f32.xlu0 %v1223
        %v1225 = vpop.xlane.xlu0 %1224
        %v1226 = vrcp.pop %v1216
        %v1227 = vmul.f32 %v1207, %v1226
        %v1228 = vrcp.pop %v1219
        %v1229 = vmul.f32 %v1209, %v1228
        %v1230 = vrcp.pop %v1222
        %v1231 = vmul.f32 %v1211, %v1230
        %v1232 = vrcp.pop %v1225
        %v1233 = vmul.f32 %v1213, %v1232
        %1234 = vxpose.xlu0.b32.start [1/16] %v727, 128
        %1235 = vxpose.xlu0.b32.cont [2/16] 0.0, 128
        %1236 = vxpose.xlu0.b32.cont [3/16] 0.0, 128
        %1237 = vxpose.xlu0.b32.cont [4/16] 0.0, 128
        %1238 = vxpose.xlu0.b32.cont [5/16] 0.0, 128
        %1239 = vxpose.xlu0.b32.cont [6/16] 0.0, 128
        %1240 = vxpose.xlu0.b32.cont [7/16] 0.0, 128
        %1241 = vxpose.xlu0.b32.cont [8/16] 0.0, 128
        %1242 = vxpose.xlu0.b32.cont [9/16] 0.0, 128
        %1243 = vxpose.xlu0.b32.cont [10/16] 0.0, 128
        %1244 = vxpose.xlu0.b32.cont [11/16] 0.0, 128
        %1245 = vxpose.xlu0.b32.cont [12/16] 0.0, 128
        %1246 = vxpose.xlu0.b32.cont [13/16] 0.0, 128
        %1247 = vxpose.xlu0.b32.cont [14/16] 0.0, 128
        %1248 = vxpose.xlu0.b32.cont [15/16] 0.0, 128
        %1249 = vxpose.xlu0.b32.end [16/16] 0.0, 128
        %v1250 = vpop.trf.xlu0
        %v1251 = vpop.trf.xlu0
        %v1252 = vpop.trf.xlu0
        %v1253 = vpop.trf.xlu0
        %v1254 = vpop.trf.xlu0
        %v1255 = vpop.trf.xlu0
        %v1256 = vpop.trf.xlu0
        %v1257 = vpop.trf.xlu0
        %v1258 = vpop.trf.xlu0
        %v1259 = vpop.trf.xlu0
        %v1260 = vpop.trf.xlu0
        %v1261 = vpop.trf.xlu0
        %v1262 = vpop.trf.xlu0
        %v1263 = vpop.trf.xlu0
        %v1264 = vpop.trf.xlu0
        %v1265 = vpop.trf.xlu0
        %1266 = vxpose.xlu0.b32.start [1/16] %v750, 128
        %1267 = vxpose.xlu0.b32.cont [2/16] 0.0, 128
        %1268 = vxpose.xlu0.b32.cont [3/16] 0.0, 128
        %1269 = vxpose.xlu0.b32.cont [4/16] 0.0, 128
        %1270 = vxpose.xlu0.b32.cont [5/16] 0.0, 128
        %1271 = vxpose.xlu0.b32.cont [6/16] 0.0, 128
        %1272 = vxpose.xlu0.b32.cont [7/16] 0.0, 128
        %1273 = vxpose.xlu0.b32.cont [8/16] 0.0, 128
        %1274 = vxpose.xlu0.b32.cont [9/16] 0.0, 128
        %1275 = vxpose.xlu0.b32.cont [10/16] 0.0, 128
        %1276 = vxpose.xlu0.b32.cont [11/16] 0.0, 128
        %1277 = vxpose.xlu0.b32.cont [12/16] 0.0, 128
        %1278 = vxpose.xlu0.b32.cont [13/16] 0.0, 128
        %1279 = vxpose.xlu0.b32.cont [14/16] 0.0, 128
        %1280 = vxpose.xlu0.b32.cont [15/16] 0.0, 128
        %1281 = vxpose.xlu0.b32.end [16/16] 0.0, 128
        %v1282 = vpop.trf.xlu0
        %v1283 = vpop.trf.xlu0
        %v1284 = vpop.trf.xlu0
        %v1285 = vpop.trf.xlu0
        %v1286 = vpop.trf.xlu0
        %v1287 = vpop.trf.xlu0
        %v1288 = vpop.trf.xlu0
        %v1289 = vpop.trf.xlu0
        %v1290 = vpop.trf.xlu0
        %v1291 = vpop.trf.xlu0
        %v1292 = vpop.trf.xlu0
        %v1293 = vpop.trf.xlu0
        %v1294 = vpop.trf.xlu0
        %v1295 = vpop.trf.xlu0
        %v1296 = vpop.trf.xlu0
        %v1297 = vpop.trf.xlu0
        %1298 = vxpose.xlu0.b32.start [1/16] %v753, 128
        %1299 = vxpose.xlu0.b32.cont [2/16] 0.0, 128
        %1300 = vxpose.xlu0.b32.cont [3/16] 0.0, 128
        %1301 = vxpose.xlu0.b32.cont [4/16] 0.0, 128
        %1302 = vxpose.xlu0.b32.cont [5/16] 0.0, 128
        %1303 = vxpose.xlu0.b32.cont [6/16] 0.0, 128
        %1304 = vxpose.xlu0.b32.cont [7/16] 0.0, 128
        %1305 = vxpose.xlu0.b32.cont [8/16] 0.0, 128
        %1306 = vxpose.xlu0.b32.cont [9/16] 0.0, 128
        %1307 = vxpose.xlu0.b32.cont [10/16] 0.0, 128
        %1308 = vxpose.xlu0.b32.cont [11/16] 0.0, 128
        %1309 = vxpose.xlu0.b32.cont [12/16] 0.0, 128
        %1310 = vxpose.xlu0.b32.cont [13/16] 0.0, 128
        %1311 = vxpose.xlu0.b32.cont [14/16] 0.0, 128
        %1312 = vxpose.xlu0.b32.cont [15/16] 0.0, 128
        %1313 = vxpose.xlu0.b32.end [16/16] 0.0, 128
        %v1314 = vpop.trf.xlu0
        %v1315 = vpop.trf.xlu0
        %v1316 = vpop.trf.xlu0
        %v1317 = vpop.trf.xlu0
        %v1318 = vpop.trf.xlu0
        %v1319 = vpop.trf.xlu0
        %v1320 = vpop.trf.xlu0
        %v1321 = vpop.trf.xlu0
        %v1322 = vpop.trf.xlu0
        %v1323 = vpop.trf.xlu0
        %v1324 = vpop.trf.xlu0
        %v1325 = vpop.trf.xlu0
        %v1326 = vpop.trf.xlu0
        %v1327 = vpop.trf.xlu0
        %v1328 = vpop.trf.xlu0
        %v1329 = vpop.trf.xlu0
        %1330 = vxpose.xlu0.b32.start [1/16] %v756, 128
        %1331 = vxpose.xlu0.b32.cont [2/16] 0.0, 128
        %1332 = vxpose.xlu0.b32.cont [3/16] 0.0, 128
        %1333 = vxpose.xlu0.b32.cont [4/16] 0.0, 128
        %1334 = vxpose.xlu0.b32.cont [5/16] 0.0, 128
        %1335 = vxpose.xlu0.b32.cont [6/16] 0.0, 128
        %1336 = vxpose.xlu0.b32.cont [7/16] 0.0, 128
        %1337 = vxpose.xlu0.b32.cont [8/16] 0.0, 128
        %1338 = vxpose.xlu0.b32.cont [9/16] 0.0, 128
        %1339 = vxpose.xlu0.b32.cont [10/16] 0.0, 128
        %1340 = vxpose.xlu0.b32.cont [11/16] 0.0, 128
        %1341 = vxpose.xlu0.b32.cont [12/16] 0.0, 128
        %1342 = vxpose.xlu0.b32.cont [13/16] 0.0, 128
        %1343 = vxpose.xlu0.b32.cont [14/16] 0.0, 128
        %1344 = vxpose.xlu0.b32.cont [15/16] 0.0, 128
        %1345 = vxpose.xlu0.b32.end [16/16] 0.0, 128
        %v1346 = vpop.trf.xlu0
        %v1347 = vpop.trf.xlu0
        %v1348 = vpop.trf.xlu0
        %v1349 = vpop.trf.xlu0
        %v1350 = vpop.trf.xlu0
        %v1351 = vpop.trf.xlu0
        %v1352 = vpop.trf.xlu0
        %v1353 = vpop.trf.xlu0
        %v1354 = vpop.trf.xlu0
        %v1355 = vpop.trf.xlu0
        %v1356 = vpop.trf.xlu0
        %v1357 = vpop.trf.xlu0
        %v1358 = vpop.trf.xlu0
        %v1359 = vpop.trf.xlu0
        %v1360 = vpop.trf.xlu0
        %v1361 = vpop.trf.xlu0
        %v1363 = vsel %vm1189, %v1250, 0
        %v1366 = vsel %vm1189, %v1251, 0
        %v1369 = vsel %vm1189, %v1252, 0
        %v1372 = vsel %vm1189, %v1253, 0
        %v1375 = vsel %vm1189, %v1227, 0
        %1377 = vmatprep.subr.mxu0 0.0
        %1378 = vmatpush1.xpose.msra.mxu0 %v1375
        %1379 = vmatprep.subr.mxu0 0.0
        %1380 = vmatpush1.xpose.msra.mxu0 0.0
        %1381 = vmatprep.subr.mxu0 0.0
        %1382 = vmatpush1.xpose.msra.mxu0 0.0
        %1383 = vmatprep.subr.mxu0 0.0
        %1384 = vmatpush1.xpose.msra.mxu0 0.0
        %1385 = vmatprep.subr.mxu0 0.0
        %1386 = vmatpush1.xpose.msra.mxu0 0.0
        %1387 = vmatprep.subr.mxu0 0.0
        %1388 = vmatpush1.xpose.msra.mxu0 0.0
        %1389 = vmatprep.subr.mxu0 0.0
        %1390 = vmatpush1.xpose.msra.mxu0 0.0
        %1391 = vmatprep.subr.mxu0 0.0
        %1392 = vmatpush1.xpose.msra.mxu0 0.0
        %1393 = vmatprep.subr.mxu0 0.0
        %1394 = vmatpush1.xpose.msra.mxu0 0.0
        %1395 = vmatprep.subr.mxu0 0.0
        %1396 = vmatpush1.xpose.msra.mxu0 0.0
        %1397 = vmatprep.subr.mxu0 0.0
        %1398 = vmatpush1.xpose.msra.mxu0 0.0
        %1399 = vmatprep.subr.mxu0 0.0
        %1400 = vmatpush1.xpose.msra.mxu0 0.0
        %1401 = vmatprep.subr.mxu0 0.0
        %1402 = vmatpush1.xpose.msra.mxu0 0.0
        %1403 = vmatprep.subr.mxu0 0.0
        %1404 = vmatpush1.xpose.msra.mxu0 0.0
        %1405 = vmatprep.subr.mxu0 0.0
        %1406 = vmatpush1.xpose.msra.mxu0 0.0
        %1407 = vmatprep.subr.mxu0 0.0
        %1408 = vmatpush1.xpose.msra.mxu0 0.0
        %1409 = vmatprep.subr.mxu0 0.0
        %1410 = vmatpush1.xpose.msra.mxu0 0.0
        %1411 = vmatprep.subr.mxu0 0.0
        %1412 = vmatpush1.xpose.msra.mxu0 0.0
        %1413 = vmatprep.subr.mxu0 0.0
        %1414 = vmatpush1.xpose.msra.mxu0 0.0
        %1415 = vmatprep.subr.mxu0 0.0
        %1416 = vmatpush1.xpose.msra.mxu0 0.0
        %1417 = vmatprep.subr.mxu0 0.0
        %1418 = vmatpush1.xpose.msra.mxu0 0.0
        %1419 = vmatprep.subr.mxu0 0.0
        %1420 = vmatpush1.xpose.msra.mxu0 0.0
        %1421 = vmatprep.subr.mxu0 0.0
        %1422 = vmatpush1.xpose.msra.mxu0 0.0
        %1423 = vmatprep.subr.mxu0 0.0
        %1424 = vmatpush1.xpose.msra.mxu0 0.0
        %1425 = vmatprep.subr.mxu0 0.0
        %1426 = vmatpush1.xpose.msra.mxu0 0.0
        %1427 = vmatprep.subr.mxu0 0.0
        %1428 = vmatpush1.xpose.msra.mxu0 0.0
        %1429 = vmatprep.subr.mxu0 0.0
        %1430 = vmatpush1.xpose.msra.mxu0 0.0
        %1431 = vmatprep.subr.mxu0 0.0
        %1432 = vmatpush1.xpose.msra.mxu0 0.0
        %1433 = vmatprep.subr.mxu0 0.0
        %1434 = vmatpush1.xpose.msra.mxu0 0.0
        %1435 = vmatprep.subr.mxu0 0.0
        %1436 = vmatpush1.xpose.msra.mxu0 0.0
        %1437 = vmatprep.subr.mxu0 0.0
        %1438 = vmatpush1.xpose.msra.mxu0 0.0
        %1439 = vmatprep.subr.mxu0 0.0
        %1440 = vmatpush1.xpose.msra.mxu0 0.0
        %1441 = vmatprep.mubr.f32.mxu0 0.0
        %1442 = vmatmul.mubr.f32.gmra.mrb[0].mxu0 %v1363
        %v1443 = vpop.f32.mrb[0].mxu0
        %v1444 = vadd.f32 0.0, %v1443
        %v1445 = vpop.f32.mrb[0].mxu0
        %1446 = vmatprep.mubr.f32.mxu0 0.0
        %1447 = vmatmul.mubr.f32.gmra.mrb[0].mxu0 %v1366
        %v1448 = vpop.f32.mrb[0].mxu0
        %v1449 = vadd.f32 0.0, %v1448
        %v1450 = vpop.f32.mrb[0].mxu0
        %1451 = vmatprep.mubr.f32.mxu0 0.0
        %1452 = vmatmul.mubr.f32.gmra.mrb[0].mxu0 %v1369
        %v1453 = vpop.f32.mrb[0].mxu0
        %v1454 = vadd.f32 0.0, %v1453
        %v1455 = vpop.f32.mrb[0].mxu0
        %1456 = vmatprep.mubr.f32.mxu0 0.0
        %1457 = vmatmul.mubr.f32.gmra.mrb[0].mxu0 %v1372
        %v1458 = vpop.f32.mrb[0].mxu0
        %v1459 = vadd.f32 0.0, %v1458
        %v1460 = vpop.f32.mrb[0].mxu0
        %1461 = vdwg.mxu0
        %v1463 = vsel %vm1189, %v1282, 0
        %v1466 = vsel %vm1189, %v1283, 0
        %v1469 = vsel %vm1189, %v1284, 0
        %v1472 = vsel %vm1189, %v1285, 0
        %v1475 = vsel %vm1189, %v1229, 0
        %1477 = vmatprep.subr.mxu0 0.0
        %1478 = vmatpush1.xpose.msra.mxu0 %v1475
        %1479 = vmatprep.subr.mxu0 0.0
        %1480 = vmatpush1.xpose.msra.mxu0 0.0
        %1481 = vmatprep.subr.mxu0 0.0
        %1482 = vmatpush1.xpose.msra.mxu0 0.0
        %1483 = vmatprep.subr.mxu0 0.0
        %1484 = vmatpush1.xpose.msra.mxu0 0.0
        %1485 = vmatprep.subr.mxu0 0.0
        %1486 = vmatpush1.xpose.msra.mxu0 0.0
        %1487 = vmatprep.subr.mxu0 0.0
        %1488 = vmatpush1.xpose.msra.mxu0 0.0
        %1489 = vmatprep.subr.mxu0 0.0
        %1490 = vmatpush1.xpose.msra.mxu0 0.0
        %1491 = vmatprep.subr.mxu0 0.0
        %1492 = vmatpush1.xpose.msra.mxu0 0.0
        %1493 = vmatprep.subr.mxu0 0.0
        %1494 = vmatpush1.xpose.msra.mxu0 0.0
        %1495 = vmatprep.subr.mxu0 0.0
        %1496 = vmatpush1.xpose.msra.mxu0 0.0
        %1497 = vmatprep.subr.mxu0 0.0
        %1498 = vmatpush1.xpose.msra.mxu0 0.0
        %1499 = vmatprep.subr.mxu0 0.0
        %1500 = vmatpush1.xpose.msra.mxu0 0.0
        %1501 = vmatprep.subr.mxu0 0.0
        %1502 = vmatpush1.xpose.msra.mxu0 0.0
        %1503 = vmatprep.subr.mxu0 0.0
        %1504 = vmatpush1.xpose.msra.mxu0 0.0
        %1505 = vmatprep.subr.mxu0 0.0
        %1506 = vmatpush1.xpose.msra.mxu0 0.0
        %1507 = vmatprep.subr.mxu0 0.0
        %1508 = vmatpush1.xpose.msra.mxu0 0.0
        %1509 = vmatprep.subr.mxu0 0.0
        %1510 = vmatpush1.xpose.msra.mxu0 0.0
        %1511 = vmatprep.subr.mxu0 0.0
        %1512 = vmatpush1.xpose.msra.mxu0 0.0
        %1513 = vmatprep.subr.mxu0 0.0
        %1514 = vmatpush1.xpose.msra.mxu0 0.0
        %1515 = vmatprep.subr.mxu0 0.0
        %1516 = vmatpush1.xpose.msra.mxu0 0.0
        %1517 = vmatprep.subr.mxu0 0.0
        %1518 = vmatpush1.xpose.msra.mxu0 0.0
        %1519 = vmatprep.subr.mxu0 0.0
        %1520 = vmatpush1.xpose.msra.mxu0 0.0
        %1521 = vmatprep.subr.mxu0 0.0
        %1522 = vmatpush1.xpose.msra.mxu0 0.0
        %1523 = vmatprep.subr.mxu0 0.0
        %1524 = vmatpush1.xpose.msra.mxu0 0.0
        %1525 = vmatprep.subr.mxu0 0.0
        %1526 = vmatpush1.xpose.msra.mxu0 0.0
        %1527 = vmatprep.subr.mxu0 0.0
        %1528 = vmatpush1.xpose.msra.mxu0 0.0
        %1529 = vmatprep.subr.mxu0 0.0
        %1530 = vmatpush1.xpose.msra.mxu0 0.0
        %1531 = vmatprep.subr.mxu0 0.0
        %1532 = vmatpush1.xpose.msra.mxu0 0.0
        %1533 = vmatprep.subr.mxu0 0.0
        %1534 = vmatpush1.xpose.msra.mxu0 0.0
        %1535 = vmatprep.subr.mxu0 0.0
        %1536 = vmatpush1.xpose.msra.mxu0 0.0
        %1537 = vmatprep.subr.mxu0 0.0
        %1538 = vmatpush1.xpose.msra.mxu0 0.0
        %1539 = vmatprep.subr.mxu0 0.0
        %1540 = vmatpush1.xpose.msra.mxu0 0.0
        %1541 = vmatprep.mubr.f32.mxu0 0.0
        %1542 = vmatmul.mubr.f32.gmra.mrb[0].mxu0 %v1463
        %v1543 = vpop.f32.mrb[0].mxu0
        %v1544 = vadd.f32 0.0, %v1543
        %v1545 = vpop.f32.mrb[0].mxu0
        %1546 = vmatprep.mubr.f32.mxu0 0.0
        %1547 = vmatmul.mubr.f32.gmra.mrb[0].mxu0 %v1466
        %v1548 = vpop.f32.mrb[0].mxu0
        %v1549 = vadd.f32 0.0, %v1548
        %v1550 = vpop.f32.mrb[0].mxu0
        %1551 = vmatprep.mubr.f32.mxu0 0.0
        %1552 = vmatmul.mubr.f32.gmra.mrb[0].mxu0 %v1469
        %v1553 = vpop.f32.mrb[0].mxu0
        %v1554 = vadd.f32 0.0, %v1553
        %v1555 = vpop.f32.mrb[0].mxu0
        %1556 = vmatprep.mubr.f32.mxu0 0.0
        %1557 = vmatmul.mubr.f32.gmra.mrb[0].mxu0 %v1472
        %v1558 = vpop.f32.mrb[0].mxu0
        %v1559 = vadd.f32 0.0, %v1558
        %v1560 = vpop.f32.mrb[0].mxu0
        %1561 = vdwg.mxu0
        %v1563 = vsel %vm1189, %v1314, 0
        %v1566 = vsel %vm1189, %v1315, 0
        %v1569 = vsel %vm1189, %v1316, 0
        %v1572 = vsel %vm1189, %v1317, 0
        %v1575 = vsel %vm1189, %v1231, 0
        %1577 = vmatprep.subr.mxu0 0.0
        %1578 = vmatpush1.xpose.msra.mxu0 %v1575
        %1579 = vmatprep.subr.mxu0 0.0
        %1580 = vmatpush1.xpose.msra.mxu0 0.0
        %1581 = vmatprep.subr.mxu0 0.0
        %1582 = vmatpush1.xpose.msra.mxu0 0.0
        %1583 = vmatprep.subr.mxu0 0.0
        %1584 = vmatpush1.xpose.msra.mxu0 0.0
        %1585 = vmatprep.subr.mxu0 0.0
        %1586 = vmatpush1.xpose.msra.mxu0 0.0
        %1587 = vmatprep.subr.mxu0 0.0
        %1588 = vmatpush1.xpose.msra.mxu0 0.0
        %1589 = vmatprep.subr.mxu0 0.0
        %1590 = vmatpush1.xpose.msra.mxu0 0.0
        %1591 = vmatprep.subr.mxu0 0.0
        %1592 = vmatpush1.xpose.msra.mxu0 0.0
        %1593 = vmatprep.subr.mxu0 0.0
        %1594 = vmatpush1.xpose.msra.mxu0 0.0
        %1595 = vmatprep.subr.mxu0 0.0
        %1596 = vmatpush1.xpose.msra.mxu0 0.0
        %1597 = vmatprep.subr.mxu0 0.0
        %1598 = vmatpush1.xpose.msra.mxu0 0.0
        %1599 = vmatprep.subr.mxu0 0.0
        %1600 = vmatpush1.xpose.msra.mxu0 0.0
        %1601 = vmatprep.subr.mxu0 0.0
        %1602 = vmatpush1.xpose.msra.mxu0 0.0
        %1603 = vmatprep.subr.mxu0 0.0
        %1604 = vmatpush1.xpose.msra.mxu0 0.0
        %1605 = vmatprep.subr.mxu0 0.0
        %1606 = vmatpush1.xpose.msra.mxu0 0.0
        %1607 = vmatprep.subr.mxu0 0.0
        %1608 = vmatpush1.xpose.msra.mxu0 0.0
        %1609 = vmatprep.subr.mxu0 0.0
        %1610 = vmatpush1.xpose.msra.mxu0 0.0
        %1611 = vmatprep.subr.mxu0 0.0
        %1612 = vmatpush1.xpose.msra.mxu0 0.0
        %1613 = vmatprep.subr.mxu0 0.0
        %1614 = vmatpush1.xpose.msra.mxu0 0.0
        %1615 = vmatprep.subr.mxu0 0.0
        %1616 = vmatpush1.xpose.msra.mxu0 0.0
        %1617 = vmatprep.subr.mxu0 0.0
        %1618 = vmatpush1.xpose.msra.mxu0 0.0
        %1619 = vmatprep.subr.mxu0 0.0
        %1620 = vmatpush1.xpose.msra.mxu0 0.0
        %1621 = vmatprep.subr.mxu0 0.0
        %1622 = vmatpush1.xpose.msra.mxu0 0.0
        %1623 = vmatprep.subr.mxu0 0.0
        %1624 = vmatpush1.xpose.msra.mxu0 0.0
        %1625 = vmatprep.subr.mxu0 0.0
        %1626 = vmatpush1.xpose.msra.mxu0 0.0
        %1627 = vmatprep.subr.mxu0 0.0
        %1628 = vmatpush1.xpose.msra.mxu0 0.0
        %1629 = vmatprep.subr.mxu0 0.0
        %1630 = vmatpush1.xpose.msra.mxu0 0.0
        %1631 = vmatprep.subr.mxu0 0.0
        %1632 = vmatpush1.xpose.msra.mxu0 0.0
        %1633 = vmatprep.subr.mxu0 0.0
        %1634 = vmatpush1.xpose.msra.mxu0 0.0
        %1635 = vmatprep.subr.mxu0 0.0
        %1636 = vmatpush1.xpose.msra.mxu0 0.0
        %1637 = vmatprep.subr.mxu0 0.0
        %1638 = vmatpush1.xpose.msra.mxu0 0.0
        %1639 = vmatprep.subr.mxu0 0.0
        %1640 = vmatpush1.xpose.msra.mxu0 0.0
        %1641 = vmatprep.mubr.f32.mxu0 0.0
        %1642 = vmatmul.mubr.f32.gmra.mrb[0].mxu0 %v1563
        %v1643 = vpop.f32.mrb[0].mxu0
        %v1644 = vadd.f32 0.0, %v1643
        %v1645 = vpop.f32.mrb[0].mxu0
        %1646 = vmatprep.mubr.f32.mxu0 0.0
        %1647 = vmatmul.mubr.f32.gmra.mrb[0].mxu0 %v1566
        %v1648 = vpop.f32.mrb[0].mxu0
        %v1649 = vadd.f32 0.0, %v1648
        %v1650 = vpop.f32.mrb[0].mxu0
        %1651 = vmatprep.mubr.f32.mxu0 0.0
        %1652 = vmatmul.mubr.f32.gmra.mrb[0].mxu0 %v1569
        %v1653 = vpop.f32.mrb[0].mxu0
        %v1654 = vadd.f32 0.0, %v1653
        %v1655 = vpop.f32.mrb[0].mxu0
        %1656 = vmatprep.mubr.f32.mxu0 0.0
        %1657 = vmatmul.mubr.f32.gmra.mrb[0].mxu0 %v1572
        %v1658 = vpop.f32.mrb[0].mxu0
        %v1659 = vadd.f32 0.0, %v1658
        %v1660 = vpop.f32.mrb[0].mxu0
        %1661 = vdwg.mxu0
        %v1663 = vsel %vm1189, %v1346, 0
        %v1666 = vsel %vm1189, %v1347, 0
        %v1669 = vsel %vm1189, %v1348, 0
        %v1672 = vsel %vm1189, %v1349, 0
        %v1675 = vsel %vm1189, %v1233, 0
        %1677 = vmatprep.subr.mxu0 0.0
        %1678 = vmatpush1.xpose.msra.mxu0 %v1675
        %1679 = vmatprep.subr.mxu0 0.0
        %1680 = vmatpush1.xpose.msra.mxu0 0.0
        %1681 = vmatprep.subr.mxu0 0.0
        %1682 = vmatpush1.xpose.msra.mxu0 0.0
        %1683 = vmatprep.subr.mxu0 0.0
        %1684 = vmatpush1.xpose.msra.mxu0 0.0
        %1685 = vmatprep.subr.mxu0 0.0
        %1686 = vmatpush1.xpose.msra.mxu0 0.0
        %1687 = vmatprep.subr.mxu0 0.0
        %1688 = vmatpush1.xpose.msra.mxu0 0.0
        %1689 = vmatprep.subr.mxu0 0.0
        %1690 = vmatpush1.xpose.msra.mxu0 0.0
        %1691 = vmatprep.subr.mxu0 0.0
        %1692 = vmatpush1.xpose.msra.mxu0 0.0
        %1693 = vmatprep.subr.mxu0 0.0
        %1694 = vmatpush1.xpose.msra.mxu0 0.0
        %1695 = vmatprep.subr.mxu0 0.0
        %1696 = vmatpush1.xpose.msra.mxu0 0.0
        %1697 = vmatprep.subr.mxu0 0.0
        %1698 = vmatpush1.xpose.msra.mxu0 0.0
        %1699 = vmatprep.subr.mxu0 0.0
        %1700 = vmatpush1.xpose.msra.mxu0 0.0
        %1701 = vmatprep.subr.mxu0 0.0
        %1702 = vmatpush1.xpose.msra.mxu0 0.0
        %1703 = vmatprep.subr.mxu0 0.0
        %1704 = vmatpush1.xpose.msra.mxu0 0.0
        %1705 = vmatprep.subr.mxu0 0.0
        %1706 = vmatpush1.xpose.msra.mxu0 0.0
        %1707 = vmatprep.subr.mxu0 0.0
        %1708 = vmatpush1.xpose.msra.mxu0 0.0
        %1709 = vmatprep.subr.mxu0 0.0
        %1710 = vmatpush1.xpose.msra.mxu0 0.0
        %1711 = vmatprep.subr.mxu0 0.0
        %1712 = vmatpush1.xpose.msra.mxu0 0.0
        %1713 = vmatprep.subr.mxu0 0.0
        %1714 = vmatpush1.xpose.msra.mxu0 0.0
        %1715 = vmatprep.subr.mxu0 0.0
        %1716 = vmatpush1.xpose.msra.mxu0 0.0
        %1717 = vmatprep.subr.mxu0 0.0
        %1718 = vmatpush1.xpose.msra.mxu0 0.0
        %1719 = vmatprep.subr.mxu0 0.0
        %1720 = vmatpush1.xpose.msra.mxu0 0.0
        %1721 = vmatprep.subr.mxu0 0.0
        %1722 = vmatpush1.xpose.msra.mxu0 0.0
        %1723 = vmatprep.subr.mxu0 0.0
        %1724 = vmatpush1.xpose.msra.mxu0 0.0
        %1725 = vmatprep.subr.mxu0 0.0
        %1726 = vmatpush1.xpose.msra.mxu0 0.0
        %1727 = vmatprep.subr.mxu0 0.0
        %1728 = vmatpush1.xpose.msra.mxu0 0.0
        %1729 = vmatprep.subr.mxu0 0.0
        %1730 = vmatpush1.xpose.msra.mxu0 0.0
        %1731 = vmatprep.subr.mxu0 0.0
        %1732 = vmatpush1.xpose.msra.mxu0 0.0
        %1733 = vmatprep.subr.mxu0 0.0
        %1734 = vmatpush1.xpose.msra.mxu0 0.0
        %1735 = vmatprep.subr.mxu0 0.0
        %1736 = vmatpush1.xpose.msra.mxu0 0.0
        %1737 = vmatprep.subr.mxu0 0.0
        %1738 = vmatpush1.xpose.msra.mxu0 0.0
        %1739 = vmatprep.subr.mxu0 0.0
        %1740 = vmatpush1.xpose.msra.mxu0 0.0
        %1741 = vmatprep.mubr.f32.mxu0 0.0
        %1742 = vmatmul.mubr.f32.gmra.mrb[0].mxu0 %v1663
        %v1743 = vpop.f32.mrb[0].mxu0
        %v1744 = vadd.f32 0.0, %v1743
        %v1745 = vpop.f32.mrb[0].mxu0
        %1746 = vmatprep.mubr.f32.mxu0 0.0
        %1747 = vmatmul.mubr.f32.gmra.mrb[0].mxu0 %v1666
        %v1748 = vpop.f32.mrb[0].mxu0
        %v1749 = vadd.f32 0.0, %v1748
        %v1750 = vpop.f32.mrb[0].mxu0
        %1751 = vmatprep.mubr.f32.mxu0 0.0
        %1752 = vmatmul.mubr.f32.gmra.mrb[0].mxu0 %v1669
        %v1753 = vpop.f32.mrb[0].mxu0
        %v1754 = vadd.f32 0.0, %v1753
        %v1755 = vpop.f32.mrb[0].mxu0
        %1756 = vmatprep.mubr.f32.mxu0 0.0
        %1757 = vmatmul.mubr.f32.gmra.mrb[0].mxu0 %v1672
        %v1758 = vpop.f32.mrb[0].mxu0
        %v1759 = vadd.f32 0.0, %v1758
        %v1760 = vpop.f32.mrb[0].mxu0
        %1761 = vdwg.mxu0
        %1762 = vxpose.xlu0.b32.start [1/16] %v1444, 128
        %1763 = vxpose.xlu0.b32.cont [2/16] %v1449, 128
        %1764 = vxpose.xlu0.b32.cont [3/16] %v1454, 128
        %1765 = vxpose.xlu0.b32.cont [4/16] %v1459, 128
        %1766 = vxpose.xlu0.b32.cont [5/16] 0.0, 128
        %1767 = vxpose.xlu0.b32.cont [6/16] 0.0, 128
        %1768 = vxpose.xlu0.b32.cont [7/16] 0.0, 128
        %1769 = vxpose.xlu0.b32.cont [8/16] 0.0, 128
        %1770 = vxpose.xlu0.b32.cont [9/16] 0.0, 128
        %1771 = vxpose.xlu0.b32.cont [10/16] 0.0, 128
        %1772 = vxpose.xlu0.b32.cont [11/16] 0.0, 128
        %1773 = vxpose.xlu0.b32.cont [12/16] 0.0, 128
        %1774 = vxpose.xlu0.b32.cont [13/16] 0.0, 128
        %1775 = vxpose.xlu0.b32.cont [14/16] 0.0, 128
        %1776 = vxpose.xlu0.b32.cont [15/16] 0.0, 128
        %1777 = vxpose.xlu0.b32.end [16/16] 0.0, 128
        %v1778 = vpop.trf.xlu0
        %v1779 = vpop.trf.xlu0
        %v1780 = vpop.trf.xlu0
        %v1781 = vpop.trf.xlu0
        %v1782 = vpop.trf.xlu0
        %v1783 = vpop.trf.xlu0
        %v1784 = vpop.trf.xlu0
        %v1785 = vpop.trf.xlu0
        %v1786 = vpop.trf.xlu0
        %v1787 = vpop.trf.xlu0
        %v1788 = vpop.trf.xlu0
        %v1789 = vpop.trf.xlu0
        %v1790 = vpop.trf.xlu0
        %v1791 = vpop.trf.xlu0
        %v1792 = vpop.trf.xlu0
        %v1793 = vpop.trf.xlu0
        %1794 = vxpose.xlu0.b32.start [1/16] %v1544, 128
        %1795 = vxpose.xlu0.b32.cont [2/16] %v1549, 128
        %1796 = vxpose.xlu0.b32.cont [3/16] %v1554, 128
        %1797 = vxpose.xlu0.b32.cont [4/16] %v1559, 128
        %1798 = vxpose.xlu0.b32.cont [5/16] 0.0, 128
        %1799 = vxpose.xlu0.b32.cont [6/16] 0.0, 128
        %1800 = vxpose.xlu0.b32.cont [7/16] 0.0, 128
        %1801 = vxpose.xlu0.b32.cont [8/16] 0.0, 128
        %1802 = vxpose.xlu0.b32.cont [9/16] 0.0, 128
        %1803 = vxpose.xlu0.b32.cont [10/16] 0.0, 128
        %1804 = vxpose.xlu0.b32.cont [11/16] 0.0, 128
        %1805 = vxpose.xlu0.b32.cont [12/16] 0.0, 128
        %1806 = vxpose.xlu0.b32.cont [13/16] 0.0, 128
        %1807 = vxpose.xlu0.b32.cont [14/16] 0.0, 128
        %1808 = vxpose.xlu0.b32.cont [15/16] 0.0, 128
        %1809 = vxpose.xlu0.b32.end [16/16] 0.0, 128
        %v1810 = vpop.trf.xlu0
        %v1811 = vpop.trf.xlu0
        %v1812 = vpop.trf.xlu0
        %v1813 = vpop.trf.xlu0
        %v1814 = vpop.trf.xlu0
        %v1815 = vpop.trf.xlu0
        %v1816 = vpop.trf.xlu0
        %v1817 = vpop.trf.xlu0
        %v1818 = vpop.trf.xlu0
        %v1819 = vpop.trf.xlu0
        %v1820 = vpop.trf.xlu0
        %v1821 = vpop.trf.xlu0
        %v1822 = vpop.trf.xlu0
        %v1823 = vpop.trf.xlu0
        %v1824 = vpop.trf.xlu0
        %v1825 = vpop.trf.xlu0
        %1826 = vxpose.xlu0.b32.start [1/16] %v1644, 128
        %1827 = vxpose.xlu0.b32.cont [2/16] %v1649, 128
        %1828 = vxpose.xlu0.b32.cont [3/16] %v1654, 128
        %1829 = vxpose.xlu0.b32.cont [4/16] %v1659, 128
        %1830 = vxpose.xlu0.b32.cont [5/16] 0.0, 128
        %1831 = vxpose.xlu0.b32.cont [6/16] 0.0, 128
        %1832 = vxpose.xlu0.b32.cont [7/16] 0.0, 128
        %1833 = vxpose.xlu0.b32.cont [8/16] 0.0, 128
        %1834 = vxpose.xlu0.b32.cont [9/16] 0.0, 128
        %1835 = vxpose.xlu0.b32.cont [10/16] 0.0, 128
        %1836 = vxpose.xlu0.b32.cont [11/16] 0.0, 128
        %1837 = vxpose.xlu0.b32.cont [12/16] 0.0, 128
        %1838 = vxpose.xlu0.b32.cont [13/16] 0.0, 128
        %1839 = vxpose.xlu0.b32.cont [14/16] 0.0, 128
        %1840 = vxpose.xlu0.b32.cont [15/16] 0.0, 128
        %1841 = vxpose.xlu0.b32.end [16/16] 0.0, 128
        %v1842 = vpop.trf.xlu0
        %v1843 = vpop.trf.xlu0
        %v1844 = vpop.trf.xlu0
        %v1845 = vpop.trf.xlu0
        %v1846 = vpop.trf.xlu0
        %v1847 = vpop.trf.xlu0
        %v1848 = vpop.trf.xlu0
        %v1849 = vpop.trf.xlu0
        %v1850 = vpop.trf.xlu0
        %v1851 = vpop.trf.xlu0
        %v1852 = vpop.trf.xlu0
        %v1853 = vpop.trf.xlu0
        %v1854 = vpop.trf.xlu0
        %v1855 = vpop.trf.xlu0
        %v1856 = vpop.trf.xlu0
        %v1857 = vpop.trf.xlu0
        %1858 = vxpose.xlu0.b32.start [1/16] %v1744, 128
        %1859 = vxpose.xlu0.b32.cont [2/16] %v1749, 128
        %1860 = vxpose.xlu0.b32.cont [3/16] %v1754, 128
        %1861 = vxpose.xlu0.b32.cont [4/16] %v1759, 128
        %1862 = vxpose.xlu0.b32.cont [5/16] 0.0, 128
        %1863 = vxpose.xlu0.b32.cont [6/16] 0.0, 128
        %1864 = vxpose.xlu0.b32.cont [7/16] 0.0, 128
        %1865 = vxpose.xlu0.b32.cont [8/16] 0.0, 128
        %1866 = vxpose.xlu0.b32.cont [9/16] 0.0, 128
        %1867 = vxpose.xlu0.b32.cont [10/16] 0.0, 128
        %1868 = vxpose.xlu0.b32.cont [11/16] 0.0, 128
        %1869 = vxpose.xlu0.b32.cont [12/16] 0.0, 128
        %1870 = vxpose.xlu0.b32.cont [13/16] 0.0, 128
        %1871 = vxpose.xlu0.b32.cont [14/16] 0.0, 128
        %1872 = vxpose.xlu0.b32.cont [15/16] 0.0, 128
        %1873 = vxpose.xlu0.b32.end [16/16] 0.0, 128
        %v1874 = vpop.trf.xlu0
        %v1875 = vpop.trf.xlu0
        %v1876 = vpop.trf.xlu0
        %v1877 = vpop.trf.xlu0
        %v1878 = vpop.trf.xlu0
        %v1879 = vpop.trf.xlu0
        %v1880 = vpop.trf.xlu0
        %v1881 = vpop.trf.xlu0
        %v1882 = vpop.trf.xlu0
        %v1883 = vpop.trf.xlu0
        %v1884 = vpop.trf.xlu0
        %v1885 = vpop.trf.xlu0
        %v1886 = vpop.trf.xlu0
        %v1887 = vpop.trf.xlu0
        %v1888 = vpop.trf.xlu0
        %v1889 = vpop.trf.xlu0
        %v1890 = vcombine.low %v1778, %v1842
        %v1891 = vcombine.high %v1778, %v1842
        %v1893 = vunpack.c.l.s4 1983009808
        %v1894 = vunpack.c.0.s8 %v1893
        %v1895 = vlaneseq
        %v1896 = vshrl.u32 %v1895, 7
        %v1897 = vsub.s32 %v1894, %v1896
        %v1898 = vrot.slane %v1890, %v1897
        %v1900 = vunpack.c.l.s4 1983009808
        %v1901 = vunpack.c.0.s8 %v1900
        %v1902 = vlaneseq
        %v1903 = vshrl.u32 %v1902, 7
        %v1904 = vsub.s32 %v1901, %v1903
        %v1905 = vrot.slane %v1891, %v1904
        %v1906 = vcombine.low %v1810, %v1874
        %v1907 = vcombine.high %v1810, %v1874
        %v1909 = vunpack.c.l.s4 1983009808
        %v1910 = vunpack.c.0.s8 %v1909
        %v1911 = vlaneseq
        %v1912 = vshrl.u32 %v1911, 7
        %v1913 = vsub.s32 %v1910, %v1912
        %v1914 = vrot.slane %v1906, %v1913
        %v1916 = vunpack.c.l.s4 1983009808
        %v1917 = vunpack.c.0.s8 %v1916
        %v1918 = vlaneseq
        %v1919 = vshrl.u32 %v1918, 7
        %v1920 = vsub.s32 %v1917, %v1919
        %v1921 = vrot.slane %v1907, %v1920
        %v1922 = vcombine.low %v1898, %v1914
        %v1923 = vcombine.high %v1898, %v1914
        %v1925 = vunpack.c.l.s4 1934713408
        %v1926 = vunpack.c.0.s8 %v1925
        %v1927 = vlaneseq
        %v1928 = vshrl.u32 %v1927, 7
        %v1929 = vsub.s32 %v1926, %v1928
        %v1930 = vrot.slane %v1922, %v1929
        %v1932 = vunpack.c.l.s4 1934713408
        %v1933 = vunpack.c.0.s8 %v1932
        %v1934 = vlaneseq
        %v1935 = vshrl.u32 %v1934, 7
        %v1936 = vsub.s32 %v1933, %v1935
        %v1937 = vrot.slane %v1923, %v1936
        %v1938 = vcombine.low %v1905, %v1921
        %v1939 = vcombine.high %v1905, %v1921
        %v1941 = vunpack.c.l.s4 1934713408
        %v1942 = vunpack.c.0.s8 %v1941
        %v1943 = vlaneseq
        %v1944 = vshrl.u32 %v1943, 7
        %v1945 = vsub.s32 %v1942, %v1944
        %v1946 = vrot.slane %v1938, %v1945
        %v1948 = vunpack.c.l.s4 1934713408
        %v1949 = vunpack.c.0.s8 %v1948
        %v1950 = vlaneseq
        %v1951 = vshrl.u32 %v1950, 7
        %v1952 = vsub.s32 %v1949, %v1951
        %v1953 = vrot.slane %v1939, %v1952
        %v1954 = vcombine.high %v1930, 0.0
        %v1955 = vcombine.high %v1937, 0.0
        %v1956 = vcombine.high %v1946, 0.0
        %v1957 = vcombine.high %v1953, 0.0
        %v1958 = vcombine.low %v1930, %v1937
        %v1960 = vunpack.c.l.s4 1983009808
        %v1961 = vunpack.c.0.s8 %v1960
        %v1962 = vlaneseq
        %v1963 = vshrl.u32 %v1962, 7
        %v1964 = vsub.s32 %v1961, %v1963
        %v1965 = vrot.slane %v1958, %v1964
        %v1966 = vcombine.low %v1954, %v1955
        %v1968 = vunpack.c.l.s4 1983009808
        %v1969 = vunpack.c.0.s8 %v1968
        %v1970 = vlaneseq
        %v1971 = vshrl.u32 %v1970, 7
        %v1972 = vsub.s32 %v1969, %v1971
        %v1973 = vrot.slane %v1966, %v1972
        %v1974 = vcombine.low %v1946, %v1953
        %v1976 = vunpack.c.l.s4 1983009808
        %v1977 = vunpack.c.0.s8 %v1976
        %v1978 = vlaneseq
        %v1979 = vshrl.u32 %v1978, 7
        %v1980 = vsub.s32 %v1977, %v1979
        %v1981 = vrot.slane %v1974, %v1980
        %v1982 = vcombine.low %v1956, %v1957
        %v1984 = vunpack.c.l.s4 1983009808
        %v1985 = vunpack.c.0.s8 %v1984
        %v1986 = vlaneseq
        %v1987 = vshrl.u32 %v1986, 7
        %v1988 = vsub.s32 %v1985, %v1987
        %v1989 = vrot.slane %v1982, %v1988
        %v1990 = vcombine.low %v1965, %v1973
        %v1991 = vcombine.high %v1965, %v1973
        %v1993 = vunpack.c.l.s4 1934713408
        %v1994 = vunpack.c.0.s8 %v1993
        %v1995 = vlaneseq
        %v1996 = vshrl.u32 %v1995, 7
        %v1997 = vsub.s32 %v1994, %v1996
        %v1998 = vrot.slane %v1990, %v1997
        %v2000 = vunpack.c.l.s4 1934713408
        %v2001 = vunpack.c.0.s8 %v2000
        %v2002 = vlaneseq
        %v2003 = vshrl.u32 %v2002, 7
        %v2004 = vsub.s32 %v2001, %v2003
        %v2005 = vrot.slane %v1991, %v2004
        %v2006 = vcombine.low %v1981, %v1989
        %v2007 = vcombine.high %v1981, %v1989
        %v2009 = vunpack.c.l.s4 1934713408
        %v2010 = vunpack.c.0.s8 %v2009
        %v2011 = vlaneseq
        %v2012 = vshrl.u32 %v2011, 7
        %v2013 = vsub.s32 %v2010, %v2012
        %v2014 = vrot.slane %v2006, %v2013
        %v2016 = vunpack.c.l.s4 1934713408
        %v2017 = vunpack.c.0.s8 %v2016
        %v2018 = vlaneseq
        %v2019 = vshrl.u32 %v2018, 7
        %v2020 = vsub.s32 %v2017, %v2019
        %v2021 = vrot.slane %v2007, %v2020
        %v2022 = vcombine.low %v1998, %v2014
        %v2023 = vcombine.high %v1998, %v2014
        %v2024 = vcombine.low %v2005, %v2021
        %v2025 = vcombine.high %v2005, %v2021
        %2027 = vrot.lane.b32.xlu0 %v2023, 32
        %v2028 = vpop.permute.xlu0 %2027
        %2031 = vrot.lane.b32.xlu0 %v2024, 64
        %v2032 = vpop.permute.xlu0 %2031
        %2035 = vrot.lane.b32.xlu0 %v2025, 96
        %v2036 = vpop.permute.xlu0 %2035
        %v2038 = vsel %vm886, %v2022, %v2028
        %vm2039 = vcmask 523264
        %v2040 = vsel %vm2039, %v2038, %v2032
        %vm2041 = vcmask 785408
        %v2042 = vsel %vm2041, %v2040, %v2036
        %v2043 = vpack.c.bf16 %v2042, %v2042
        %v2044 = vld [vmem:[#allocation4] sm:$0xf]
        %v2045 = vld [vmem:[#allocation4 + $0x4] sm:$0xf]
        %v2046 = vld [vmem:[#allocation4 + $0x8] sm:$0xf]
        %v2047 = vld [vmem:[#allocation4 + $0xc] sm:$0xf]
        %v2048 = vld [vmem:[#allocation4 + $0x10] sm:$0xf]
        %v2049 = vld [vmem:[#allocation4 + $0x14] sm:$0xf]
        %v2050 = vld [vmem:[#allocation4 + $0x18] sm:$0xf]
        %v2051 = vld [vmem:[#allocation4 + $0x1c] sm:$0xf]
        %v2052 = vld [vmem:[#allocation4 + $0x20] sm:$0xf]
        %v2053 = vld [vmem:[#allocation4 + $0x24] sm:$0xf]
        %v2054 = vld [vmem:[#allocation4 + $0x28] sm:$0xf]
        %v2055 = vld [vmem:[#allocation4 + $0x2c] sm:$0xf]
        %v2056 = vld [vmem:[#allocation4 + $0x30] sm:$0xf]
        %v2057 = vld [vmem:[#allocation4 + $0x34] sm:$0xf]
        %v2058 = vld [vmem:[#allocation4 + $0x38] sm:$0xf]
        %v2059 = vld [vmem:[#allocation4 + $0x3c] sm:$0xf]
        %v2060 = vld [vmem:[#allocation6] sm:$0x1]
        %v2062 = vlaneseq
        %v2063 = vshrl.u32 %v2062, 7
        %v2064 = vsub.s32 0, %v2063
        %v2065 = vrot.slane %v2060, %v2064
        %v2083 = vunpack.c.l.b16 %v2044
        %v2084 = vunpack.c.l.b16 %v2045
        %v2085 = vunpack.c.l.b16 %v2046
        %v2086 = vunpack.c.l.b16 %v2047
        %v2087 = vunpack.c.l.b16 %v2048
        %v2088 = vunpack.c.l.b16 %v2049
        %v2089 = vunpack.c.l.b16 %v2050
        %v2090 = vunpack.c.l.b16 %v2051
        %v2091 = vunpack.c.l.b16 %v2052
        %v2092 = vunpack.c.l.b16 %v2053
        %v2093 = vunpack.c.l.b16 %v2054
        %v2094 = vunpack.c.l.b16 %v2055
        %v2095 = vunpack.c.l.b16 %v2056
        %v2096 = vunpack.c.l.b16 %v2057
        %v2097 = vunpack.c.l.b16 %v2058
        %v2098 = vunpack.c.l.b16 %v2059
        %v2099 = vpack.c.b16 %v2084, %v2083
        %v2100 = vpack.c.b16 %v2086, %v2085
        %v2101 = vpack.c.b16 %v2088, %v2087
        %v2102 = vpack.c.b16 %v2090, %v2089
        %v2103 = vpack.c.b16 %v2092, %v2091
        %v2104 = vpack.c.b16 %v2094, %v2093
        %v2105 = vpack.c.b16 %v2096, %v2095
        %v2106 = vpack.c.b16 %v2098, %v2097
        %2115 = vmatprep.subr.bf16.mxu0 0
        %2116 = vmatpush1.bf16.msra.mxu0 %v2099
        %2117 = vmatprep.subr.bf16.mxu0 0
        %2118 = vmatpush1.bf16.msra.mxu0 %v2100
        %2119 = vmatprep.subr.bf16.mxu0 0
        %2120 = vmatpush1.bf16.msra.mxu0 %v2101
        %2121 = vmatprep.subr.bf16.mxu0 0
        %2122 = vmatpush1.bf16.msra.mxu0 %v2102
        %2123 = vmatprep.subr.bf16.mxu0 0
        %2124 = vmatpush1.bf16.msra.mxu0 %v2103
        %2125 = vmatprep.subr.bf16.mxu0 0
        %2126 = vmatpush1.bf16.msra.mxu0 %v2104
        %2127 = vmatprep.subr.bf16.mxu0 0
        %2128 = vmatpush1.bf16.msra.mxu0 %v2105
        %2129 = vmatprep.subr.bf16.mxu0 0
        %2130 = vmatpush1.bf16.msra.mxu0 %v2106
        %2131 = vmatprep.subr.bf16.mxu0 0
        %2132 = vmatpush1.bf16.msra.mxu0 0
        %2133 = vmatprep.subr.bf16.mxu0 0
        %2134 = vmatpush1.bf16.msra.mxu0 0
        %2135 = vmatprep.subr.bf16.mxu0 0
        %2136 = vmatpush1.bf16.msra.mxu0 0
        %2137 = vmatprep.subr.bf16.mxu0 0
        %2138 = vmatpush1.bf16.msra.mxu0 0
        %2139 = vmatprep.subr.bf16.mxu0 0
        %2140 = vmatpush1.bf16.msra.mxu0 0
        %2141 = vmatprep.subr.bf16.mxu0 0
        %2142 = vmatpush1.bf16.msra.mxu0 0
        %2143 = vmatprep.subr.bf16.mxu0 0
        %2144 = vmatpush1.bf16.msra.mxu0 0
        %2145 = vmatprep.subr.bf16.mxu0 0
        %2146 = vmatpush1.bf16.msra.mxu0 0
        %2147 = vmatprep.mubr.bf16.mxu0 0
        %2148 = vmatmul.mubr.bf16.gmra.mrb[0].mxu0 %v2043
        %v2149 = vpop.f32.mrb[0].mxu0
        %v2150 = vadd.f32 %v2065, %v2149
        %v2151 = vpop.f32.mrb[0].mxu0
        %v2152 = vpop.f32.mrb[0].mxu0
        %v2153 = vpop.f32.mrb[0].mxu0
        %2154 = vdwg.mxu0
        %v2155 = vunpack.c.l.bf16 %v469
        %v2156 = vadd.f32 %v2155, %v2150
        %2157 = vadd.xlane.f32.xlu0 %v2156
        %v2158 = vpop.xlane.xlu0 %2157
        %v2159 = vrcp.pop 128.0
        %v2160 = vmul.f32 %v2158, %v2159
        %v2161 = vsub.f32 %v2156, %v2160
        %v2162 = vmul.f32 %v2161, %v2161
        %2163 = vadd.xlane.f32.xlu0 %v2162
        %v2164 = vpop.xlane.xlu0 %2163
        %v2165 = vmul.f32 %v2164, %v2159
        %v2166 = vadd.f32 %v2165, 1e-05
        %v2167 = vrsqrt.pop %v2166
        %v2168 = vmul.f32 %v2161, %v2167
        %v2169 = vld [vmem:[#allocation7] sm:$0x1]
        %v2171 = vlaneseq
        %v2172 = vshrl.u32 %v2171, 7
        %v2173 = vsub.s32 0, %v2172
        %v2174 = vrot.slane %v2169, %v2173
        %v2176 = vmul.f32 %v2168, %v2174
        %v2177 = vld [vmem:[#allocation9] sm:$0x1]
        %v2179 = vlaneseq
        %v2180 = vshrl.u32 %v2179, 7
        %v2181 = vsub.s32 0, %v2180
        %v2182 = vrot.slane %v2177, %v2181
        %v2184 = vadd.f32 %v2176, %v2182
        %v2185 = vpack.c.bf16 %v2184, %v2184
        %2186 = vst [vmem:[%s467] sm:$0xf] %v2185
        %p2187 = scmp.lt.s32.totalorder %s28, 1
        %s2188 = scalar_select %p2187, %s28, 1
        %p2189 = scmp.lt.s32.totalorder %s29, 0
        %s2190 = scalar_select %p2189, %s29, 0
        %s2191 = sadd.s32 %s2190, %s2188
        %s2192 = smul.addr %s2191, 4
        %s2193 = scalar_lea.vmem %s10, %s2192
        // Predicated region
        $region81: #{decoder_forward.7} parent=59 // pred_check
          %p2194 = pneg %p278
        $region82: #{decoder_forward.7} parent=59 // pred_check_branch
          %2196 = sbr.rel (%p2194) target = $region84
        $region83: #{decoder_forward.7} parent=59 // pred_region
          _
        $region84: #{decoder_forward.7} parent=59 // pred_fallthru
          _
      $region60: #{decoder_forward.7} parent=5 // pred_fallthru
        _
      %p2197 = scmp.le.s32.totalorder 2, %s19
      // Predicated region
      $region85: #{decoder_forward.7} parent=5 // pred_check
        %p2198 = pneg %p2197
      $region86: #{decoder_forward.7} parent=5 // pred_check_branch
        %2200 = sbr.rel (%p2198) target = $region88
      $region87: #{decoder_forward.7} parent=5 // pred_region
        %s2201 = ssub.s32 %s19, 2
        // Predicated region
        $region89: #{decoder_forward.7} parent=87 // pred_check
          %p2202 = pneg %p284
        $region90: #{decoder_forward.7} parent=87 // pred_check_branch
          %2204 = sbr.rel (%p2202) target = $region92
        $region91: #{decoder_forward.7} parent=87 // pred_region
          %p2205 = scmp.lt.s32.totalorder %s30, 1
          %s2206 = scalar_select %p2205, %s30, 1
          %p2207 = scmp.lt.s32.totalorder %s31, 0
          %s2208 = scalar_select %p2207, %s31, 0
          %s2209 = sadd.s32 %s2208, %s2206
          %s2210 = smul.addr %s2209, 4
          %s2211 = scalar_lea.vmem %s10, %s2210
        $region92: #{decoder_forward.7} parent=87 // pred_fallthru
          _
      $region88: #{decoder_forward.7} parent=5 // pred_fallthru
        _
    $region6: #{decoder_forward.7} parent=1 // loop_footer
      %s23 = sadd.s32 1, %s19
    $region7: #{decoder_forward.7} parent=1 // loop_footer_branch
      %18 = sbr.rel target = $region3
    $region8: #{decoder_forward.7} parent=1 // loop_exit
      _
    %2212 = vsyncpa [#allocation3], 1
    %s2213 = scalar_lea.sflag [#allocation3], 1
    %2214 = vsyncpa %s2213, 1
    %2215 = vsyncpa [#allocation5], 1
    %2216 = vsyncpa [#allocation8], 1

// kernel: decoder_forward.8
$region0: #{decoder_forward.8}
  #allocation0 [shape = 'u32[]', space=smem, size = 0x4, offset = 0x4, fixed_abs, tag = 'smem constant byte address 0x4 - core index']
  #allocation1 [shape = 'u32[144,128]{1,0:T(1,128)}', space=vmem, size = 0x12000, scoped, tag = 'internal scratch']
  %s0 = inlined_call_operand.vmem [shape: bf16[2,8,128], index: 0, kind: input, shape index: {}]
  %s1 = inlined_call_operand.vmem [shape: bf16[2,16,128], index: 1, kind: input, shape index: {}]
  %s2 = inlined_call_operand.vmem [shape: bf16[128,128], index: 2, kind: input, shape index: {}]
  %s3 = inlined_call_operand.vmem [shape: f32[1,128], index: 3, kind: input, shape index: {}]
  %s4 = inlined_call_operand.vmem [shape: bf16[128,256], index: 4, kind: input, shape index: {}]
  %s5 = inlined_call_operand.vmem [shape: f32[1,256], index: 5, kind: input, shape index: {}]
  %s6 = inlined_call_operand.vmem [shape: bf16[128,128], index: 6, kind: input, shape index: {}]
  %s7 = inlined_call_operand.vmem [shape: f32[1,128], index: 7, kind: input, shape index: {}]
  %s8 = inlined_call_operand.vmem [shape: f32[1,128], index: 8, kind: input, shape index: {}]
  %s9 = inlined_call_operand.vmem [shape: f32[1,128], index: 9, kind: input, shape index: {}]
  %s10 = inlined_call_operand.vmem [shape: bf16[2,8,128], index: 10, kind: output, shape index: {}]
  %s11 = sld [smem:[#allocation0]]
  $region73: #{decoder_forward.8} parent=0
    _
  %s13 = ssub.s32 1, %s11
  %s14 = scalar_select 0, %s13, %s11
  loop: start=0, step=1, limit=4
  $region2: #{decoder_forward.8} parent=0 // loop_pre_header
    _
  $region3: #{decoder_forward.8} parent=0 // loop_header
    %s16 = sphi 0, %s20
    %p17 = scmp.ge.s32.totalorder %s16, 4
    %s23 = sphi 0, %s35
    %s24 = sphi 0, %s31
    %s25 = sphi 0, %s23
    %s26 = sphi 0, %s24
    %s27 = sphi 0, %s25
    %s28 = sphi 0, %s26
    %s40 = sphi 0, %s42
    %s43 = sphi 0, %s40
    %s44 = sphi 0, %s43
    %s60 = sphi 0, %s44
    %s66 = sphi 0, %s68
    %s69 = sphi 0, %s66
    %s70 = sphi 0, %s69
    %s86 = sphi 0, %s70
    %s90 = sphi 0, %s90
    %s92 = sphi 0, %s90
    %s93 = sphi 0, %s92
    %s107 = sphi 0, %s93
    %s111 = sphi 0, %s111
    %s113 = sphi 0, %s111
    %s114 = sphi 0, %s113
    %s128 = sphi 0, %s114
    %s132 = sphi 0, %s132
    %s134 = sphi 0, %s132
    %s135 = sphi 0, %s134
    %s149 = sphi 0, %s135
    %s153 = sphi 0, %s153
    %s155 = sphi 0, %s153
    %s156 = sphi 0, %s155
    %s170 = sphi 0, %s156
    %s174 = sphi 0, %s174
    %s176 = sphi 0, %s174
    %s177 = sphi 0, %s176
    %s191 = sphi 0, %s177
    %s195 = sphi 0, %s195
    %s197 = sphi 0, %s195
    %s198 = sphi 0, %s197
    %s212 = sphi 0, %s198
    %s216 = sphi 0, %s216
    %s218 = sphi 0, %s216
    %s219 = sphi 0, %s218
    %s233 = sphi 0, %s219
    %s237 = sphi 0, %s237
    %s239 = sphi 0, %s237
    %s240 = sphi 0, %s239
    %s254 = sphi 0, %s240
    %s262 = sphi 0, %s264
    %s265 = sphi 0, %s262
    %s266 = sphi 0, %s265
    %s282 = sphi 0, %s266
  $region4: #{decoder_forward.8} parent=0 // loop_header_branch
    %19 = sbr.rel (%p17) target = $region8
  $region5: #{decoder_forward.8} parent=0 // loop_body
    %s21 = ssub.s32 %s16, 1
    %s22 = ssub.s32 %s16, 2
    %s29 = sadd.s32 1, %s24
    %p30 = scmp.ge.s32.totalorder %s29, 1
    %s31 = scalar_select %p30, 0, %s29
    %s32 = sadd.s32 1, %s23
    %s33 = scalar_select %p30, %s32, %s23
    %p34 = scmp.ge.s32.totalorder %s33, 2
    %s35 = scalar_select %p34, 0, %s33
    %s36 = ssub.s32 %s23, %s35
    %s37 = ssub.s32 %s24, %s31
    %s38 = sor.u32 %s36, %s37
    %p39 = scmp.eq.s32.totalorder %s38, 0
    %s41 = sadd.s32 %s40, 1
    %s42 = scalar_select %p39, %s40, %s41
    %p45 = pneg %p39
    %p46 = scmp.eq.s32.totalorder %s16, 1
    %p47 = por %p45, %p46
    %p48 = scmp.ne.s32.totalorder %s40, %s43
    %p49 = scmp.eq.s32.totalorder %s16, 0
    %p50 = por %p48, %p49
    %p51 = scmp.ne.s32.totalorder %s40, %s43
    %p52 = scmp.eq.s32.totalorder %s21, 1
    %p53 = por %p51, %p52
    %p54 = scmp.ne.s32.totalorder %s43, %s44
    %p55 = scmp.eq.s32.totalorder %s21, 0
    %p56 = por %p54, %p55
    %p57 = scmp.ne.s32.totalorder %s43, %s44
    %p58 = scmp.eq.s32.totalorder %s22, 1
    %p59 = por %p57, %p58
    %p61 = scmp.ne.s32.totalorder %s44, %s60
    %p62 = scmp.eq.s32.totalorder %s22, 0
    %p63 = por %p61, %p62
    %s64 = ssub.s32 %s23, %s35
    %p65 = scmp.eq.s32.totalorder %s64, 0
    %s67 = sadd.s32 %s66, 1
    %s68 = scalar_select %p65, %s66, %s67
    %p71 = pneg %p65
    %p72 = scmp.eq.s32.totalorder %s16, 1
    %p73 = por %p71, %p72
    %p74 = scmp.ne.s32.totalorder %s66, %s69
    %p75 = scmp.eq.s32.totalorder %s16, 0
    %p76 = por %p74, %p75
    %p77 = scmp.ne.s32.totalorder %s66, %s69
    %p78 = scmp.eq.s32.totalorder %s21, 1
    %p79 = por %p77, %p78
    %p80 = scmp.ne.s32.totalorder %s69, %s70
    %p81 = scmp.eq.s32.totalorder %s21, 0
    %p82 = por %p80, %p81
    %p83 = scmp.ne.s32.totalorder %s69, %s70
    %p84 = scmp.eq.s32.totalorder %s22, 1
    %p85 = por %p83, %p84
    %p87 = scmp.ne.s32.totalorder %s70, %s86
    %p88 = scmp.eq.s32.totalorder %s22, 0
    %p89 = por %p87, %p88
    %s91 = sadd.s32 %s90, 1
    %p94 = scmp.eq.s32.totalorder %s16, 1
    %p95 = scmp.ne.s32.totalorder %s90, %s92
    %p96 = scmp.eq.s32.totalorder %s16, 0
    %p97 = por %p95, %p96
    %p98 = scmp.ne.s32.totalorder %s90, %s92
    %p99 = scmp.eq.s32.totalorder %s21, 1
    %p100 = por %p98, %p99
    %p101 = scmp.ne.s32.totalorder %s92, %s93
    %p102 = scmp.eq.s32.totalorder %s21, 0
    %p103 = por %p101, %p102
    %p104 = scmp.ne.s32.totalorder %s92, %s93
    %p105 = scmp.eq.s32.totalorder %s22, 1
    %p106 = por %p104, %p105
    %p108 = scmp.ne.s32.totalorder %s93, %s107
    %p109 = scmp.eq.s32.totalorder %s22, 0
    %p110 = por %p108, %p109
    %s112 = sadd.s32 %s111, 1
    %p115 = scmp.eq.s32.totalorder %s16, 1
    %p116 = scmp.ne.s32.totalorder %s111, %s113
    %p117 = scmp.eq.s32.totalorder %s16, 0
    %p118 = por %p116, %p117
    %p119 = scmp.ne.s32.totalorder %s111, %s113
    %p120 = scmp.eq.s32.totalorder %s21, 1
    %p121 = por %p119, %p120
    %p122 = scmp.ne.s32.totalorder %s113, %s114
    %p123 = scmp.eq.s32.totalorder %s21, 0
    %p124 = por %p122, %p123
    %p125 = scmp.ne.s32.totalorder %s113, %s114
    %p126 = scmp.eq.s32.totalorder %s22, 1
    %p127 = por %p125, %p126
    %p129 = scmp.ne.s32.totalorder %s114, %s128
    %p130 = scmp.eq.s32.totalorder %s22, 0
    %p131 = por %p129, %p130
    %s133 = sadd.s32 %s132, 1
    %p136 = scmp.eq.s32.totalorder %s16, 1
    %p137 = scmp.ne.s32.totalorder %s132, %s134
    %p138 = scmp.eq.s32.totalorder %s16, 0
    %p139 = por %p137, %p138
    %p140 = scmp.ne.s32.totalorder %s132, %s134
    %p141 = scmp.eq.s32.totalorder %s21, 1
    %p142 = por %p140, %p141
    %p143 = scmp.ne.s32.totalorder %s134, %s135
    %p144 = scmp.eq.s32.totalorder %s21, 0
    %p145 = por %p143, %p144
    %p146 = scmp.ne.s32.totalorder %s134, %s135
    %p147 = scmp.eq.s32.totalorder %s22, 1
    %p148 = por %p146, %p147
    %p150 = scmp.ne.s32.totalorder %s135, %s149
    %p151 = scmp.eq.s32.totalorder %s22, 0
    %p152 = por %p150, %p151
    %s154 = sadd.s32 %s153, 1
    %p157 = scmp.eq.s32.totalorder %s16, 1
    %p158 = scmp.ne.s32.totalorder %s153, %s155
    %p159 = scmp.eq.s32.totalorder %s16, 0
    %p160 = por %p158, %p159
    %p161 = scmp.ne.s32.totalorder %s153, %s155
    %p162 = scmp.eq.s32.totalorder %s21, 1
    %p163 = por %p161, %p162
    %p164 = scmp.ne.s32.totalorder %s155, %s156
    %p165 = scmp.eq.s32.totalorder %s21, 0
    %p166 = por %p164, %p165
    %p167 = scmp.ne.s32.totalorder %s155, %s156
    %p168 = scmp.eq.s32.totalorder %s22, 1
    %p169 = por %p167, %p168
    %p171 = scmp.ne.s32.totalorder %s156, %s170
    %p172 = scmp.eq.s32.totalorder %s22, 0
    %p173 = por %p171, %p172
    %s175 = sadd.s32 %s174, 1
    %p178 = scmp.eq.s32.totalorder %s16, 1
    %p179 = scmp.ne.s32.totalorder %s174, %s176
    %p180 = scmp.eq.s32.totalorder %s16, 0
    %p181 = por %p179, %p180
    %p182 = scmp.ne.s32.totalorder %s174, %s176
    %p183 = scmp.eq.s32.totalorder %s21, 1
    %p184 = por %p182, %p183
    %p185 = scmp.ne.s32.totalorder %s176, %s177
    %p186 = scmp.eq.s32.totalorder %s21, 0
    %p187 = por %p185, %p186
    %p188 = scmp.ne.s32.totalorder %s176, %s177
    %p189 = scmp.eq.s32.totalorder %s22, 1
    %p190 = por %p188, %p189
    %p192 = scmp.ne.s32.totalorder %s177, %s191
    %p193 = scmp.eq.s32.totalorder %s22, 0
    %p194 = por %p192, %p193
    %s196 = sadd.s32 %s195, 1
    %p199 = scmp.eq.s32.totalorder %s16, 1
    %p200 = scmp.ne.s32.totalorder %s195, %s197
    %p201 = scmp.eq.s32.totalorder %s16, 0
    %p202 = por %p200, %p201
    %p203 = scmp.ne.s32.totalorder %s195, %s197
    %p204 = scmp.eq.s32.totalorder %s21, 1
    %p205 = por %p203, %p204
    %p206 = scmp.ne.s32.totalorder %s197, %s198
    %p207 = scmp.eq.s32.totalorder %s21, 0
    %p208 = por %p206, %p207
    %p209 = scmp.ne.s32.totalorder %s197, %s198
    %p210 = scmp.eq.s32.totalorder %s22, 1
    %p211 = por %p209, %p210
    %p213 = scmp.ne.s32.totalorder %s198, %s212
    %p214 = scmp.eq.s32.totalorder %s22, 0
    %p215 = por %p213, %p214
    %s217 = sadd.s32 %s216, 1
    %p220 = scmp.eq.s32.totalorder %s16, 1
    %p221 = scmp.ne.s32.totalorder %s216, %s218
    %p222 = scmp.eq.s32.totalorder %s16, 0
    %p223 = por %p221, %p222
    %p224 = scmp.ne.s32.totalorder %s216, %s218
    %p225 = scmp.eq.s32.totalorder %s21, 1
    %p226 = por %p224, %p225
    %p227 = scmp.ne.s32.totalorder %s218, %s219
    %p228 = scmp.eq.s32.totalorder %s21, 0
    %p229 = por %p227, %p228
    %p230 = scmp.ne.s32.totalorder %s218, %s219
    %p231 = scmp.eq.s32.totalorder %s22, 1
    %p232 = por %p230, %p231
    %p234 = scmp.ne.s32.totalorder %s219, %s233
    %p235 = scmp.eq.s32.totalorder %s22, 0
    %p236 = por %p234, %p235
    %s238 = sadd.s32 %s237, 1
    %p241 = scmp.eq.s32.totalorder %s16, 1
    %p242 = scmp.ne.s32.totalorder %s237, %s239
    %p243 = scmp.eq.s32.totalorder %s16, 0
    %p244 = por %p242, %p243
    %p245 = scmp.ne.s32.totalorder %s237, %s239
    %p246 = scmp.eq.s32.totalorder %s21, 1
    %p247 = por %p245, %p246
    %p248 = scmp.ne.s32.totalorder %s239, %s240
    %p249 = scmp.eq.s32.totalorder %s21, 0
    %p250 = por %p248, %p249
    %p251 = scmp.ne.s32.totalorder %s239, %s240
    %p252 = scmp.eq.s32.totalorder %s22, 1
    %p253 = por %p251, %p252
    %p255 = scmp.ne.s32.totalorder %s240, %s254
    %p256 = scmp.eq.s32.totalorder %s22, 0
    %p257 = por %p255, %p256
    %s258 = ssub.s32 %s23, %s35
    %s259 = ssub.s32 %s24, %s31
    %s260 = sor.u32 %s258, %s259
    %p261 = scmp.eq.s32.totalorder %s260, 0
    %s263 = sadd.s32 %s262, 1
    %s264 = scalar_select %p261, %s262, %s263
    %p267 = pneg %p261
    %p268 = scmp.eq.s32.totalorder %s16, 1
    %p269 = por %p267, %p268
    %p270 = scmp.ne.s32.totalorder %s262, %s265
    %p271 = scmp.eq.s32.totalorder %s16, 0
    %p272 = por %p270, %p271
    %p273 = scmp.ne.s32.totalorder %s262, %s265
    %p274 = scmp.eq.s32.totalorder %s21, 1
    %p275 = por %p273, %p274
    %p276 = scmp.ne.s32.totalorder %s265, %s266
    %p277 = scmp.eq.s32.totalorder %s21, 0
    %p278 = por %p276, %p277
    %p279 = scmp.ne.s32.totalorder %s265, %s266
    %p280 = scmp.eq.s32.totalorder %s22, 1
    %p281 = por %p279, %p280
    %p283 = scmp.ne.s32.totalorder %s266, %s282
    %p284 = scmp.eq.s32.totalorder %s22, 0
    %p285 = por %p283, %p284
    %p286 = scmp.le.s32.totalorder 1, %s16
    %p287 = scmp.lt.s32.totalorder %s16, 3
    %p288 = pnand %p286, %p287
    %p289 = pneg %p288
    // Predicated region
    $region9: #{decoder_forward.8} parent=5 // pred_check
      _
    $region10: #{decoder_forward.8} parent=5 // pred_check_branch
      %291 = sbr.rel (%p288) target = $region12
    $region11: #{decoder_forward.8} parent=5 // pred_region
      %s292 = ssub.s32 %s16, 1
      // Predicated region
      $region13: #{decoder_forward.8} parent=11 // pred_check
        %p293 = pneg %p103
      $region14: #{decoder_forward.8} parent=11 // pred_check_branch
        %295 = sbr.rel (%p293) target = $region16
      $region15: #{decoder_forward.8} parent=11 // pred_region
        _
      $region16: #{decoder_forward.8} parent=11 // pred_fallthru
        _
      // Predicated region
      $region17: #{decoder_forward.8} parent=11 // pred_check
        %p296 = pneg %p124
      $region18: #{decoder_forward.8} parent=11 // pred_check_branch
        %298 = sbr.rel (%p296) target = $region20
      $region19: #{decoder_forward.8} parent=11 // pred_region
        _
      $region20: #{decoder_forward.8} parent=11 // pred_fallthru
        _
      // Predicated region
      $region21: #{decoder_forward.8} parent=11 // pred_check
        %p299 = pneg %p145
      $region22: #{decoder_forward.8} parent=11 // pred_check_branch
        %301 = sbr.rel (%p299) target = $region24
      $region23: #{decoder_forward.8} parent=11 // pred_region
        _
      $region24: #{decoder_forward.8} parent=11 // pred_fallthru
        _
      // Predicated region
      $region25: #{decoder_forward.8} parent=11 // pred_check
        %p302 = pneg %p166
      $region26: #{decoder_forward.8} parent=11 // pred_check_branch
        %304 = sbr.rel (%p302) target = $region28
      $region27: #{decoder_forward.8} parent=11 // pred_region
        _
      $region28: #{decoder_forward.8} parent=11 // pred_fallthru
        _
      // Predicated region
      $region29: #{decoder_forward.8} parent=11 // pred_check
        %p305 = pneg %p187
      $region30: #{decoder_forward.8} parent=11 // pred_check_branch
        %307 = sbr.rel (%p305) target = $region32
      $region31: #{decoder_forward.8} parent=11 // pred_region
        _
      $region32: #{decoder_forward.8} parent=11 // pred_fallthru
        _
      // Predicated region
      $region33: #{decoder_forward.8} parent=11 // pred_check
        %p308 = pneg %p208
      $region34: #{decoder_forward.8} parent=11 // pred_check_branch
        %310 = sbr.rel (%p308) target = $region36
      $region35: #{decoder_forward.8} parent=11 // pred_region
        _
      $region36: #{decoder_forward.8} parent=11 // pred_fallthru
        _
      // Predicated region
      $region37: #{decoder_forward.8} parent=11 // pred_check
        %p311 = pneg %p229
      $region38: #{decoder_forward.8} parent=11 // pred_check_branch
        %313 = sbr.rel (%p311) target = $region40
      $region39: #{decoder_forward.8} parent=11 // pred_region
        _
      $region40: #{decoder_forward.8} parent=11 // pred_fallthru
        _
      // Predicated region
      $region41: #{decoder_forward.8} parent=11 // pred_check
        %p314 = pneg %p250
      $region42: #{decoder_forward.8} parent=11 // pred_check_branch
        %316 = sbr.rel (%p314) target = $region44
      $region43: #{decoder_forward.8} parent=11 // pred_region
        _
      $region44: #{decoder_forward.8} parent=11 // pred_fallthru
        _
    $region12: #{decoder_forward.8} parent=5 // pred_fallthru
      _
    %p317 = scmp.lt.s32.totalorder %s16, 2
    // Predicated region
    $region45: #{decoder_forward.8} parent=5 // pred_check
      %p318 = pneg %p317
    $region46: #{decoder_forward.8} parent=5 // pred_check_branch
      %320 = sbr.rel (%p318) target = $region48
    $region47: #{decoder_forward.8} parent=5 // pred_region
      // Predicated region
      $region49: #{decoder_forward.8} parent=47 // pred_check
        %p321 = pneg %p50
      $region50: #{decoder_forward.8} parent=47 // pred_check_branch
        %323 = sbr.rel (%p321) target = $region52
      $region51: #{decoder_forward.8} parent=47 // pred_region
        %p324 = scmp.lt.s32.totalorder %s23, 1
        %s325 = scalar_select %p324, %s23, 1
        %p326 = scmp.lt.s32.totalorder %s24, 0
        %s327 = scalar_select %p326, %s24, 0
        %s328 = sadd.s32 %s327, %s325
        %s329 = smul.addr %s328, 4
        %s330 = scalar_lea.vmem %s0, %s329
      $region52: #{decoder_forward.8} parent=47 // pred_fallthru
        _
      // Predicated region
      $region53: #{decoder_forward.8} parent=47 // pred_check
        %p331 = pneg %p76
      $region54: #{decoder_forward.8} parent=47 // pred_check_branch
        %333 = sbr.rel (%p331) target = $region56
      $region55: #{decoder_forward.8} parent=47 // pred_region
        %p334 = scmp.lt.s32.totalorder %s23, 1
        %s335 = scalar_select %p334, %s23, 1
        %s336 = smul.addr %s335, 2
        %s337 = smul.addr %s336, 4
        %s338 = scalar_lea.vmem %s1, %s337
      $region56: #{decoder_forward.8} parent=47 // pred_fallthru
        _
    $region48: #{decoder_forward.8} parent=5 // pred_fallthru
      _
    %p339 = scmp.le.s32.totalorder 1, %s16
    %p340 = scmp.lt.s32.totalorder %s16, 3
    %p341 = pnand %p339, %p340
    %p342 = pneg %p341
    // Predicated region
    $region57: #{decoder_forward.8} parent=5 // pred_check
      _
    $region58: #{decoder_forward.8} parent=5 // pred_check_branch
      %344 = sbr.rel (%p341) target = $region60
    $region59: #{decoder_forward.8} parent=5 // pred_region
      %s345 = ssub.s32 %s16, 1
      %p346 = scmp.lt.s32.totalorder %s25, 1
      %s347 = scalar_select %p346, %s25, 1
      %p348 = scmp.lt.s32.totalorder %s26, 0
      %s349 = scalar_select %p348, %s26, 0
      %s350 = sadd.s32 %s349, %s347
      %s351 = smul.addr %s350, 4
      %s352 = scalar_lea.vmem %s0, %s351
      %p353 = pneg %p56
      %p354 = pneg %p53
      %p355 = scmp.lt.s32.totalorder %s25, 1
      %s356 = scalar_select %p355, %s25, 1
      %s357 = smul.addr %s356, 2
      %s358 = smul.addr %s357, 4
      %s359 = scalar_lea.vmem %s1, %s358
      %p360 = pneg %p82
      %p361 = pneg %p79
      %p362 = pneg %p103
      %p363 = pneg %p100
      %p364 = pneg %p124
      %p365 = pneg %p121
      %p366 = pneg %p145
      %p367 = pneg %p142
      %p368 = pneg %p166
      %p369 = pneg %p163
      %p370 = pneg %p187
      %p371 = pneg %p184
      %p372 = pneg %p208
      %p373 = pneg %p205
      %p374 = pneg %p229
      %p375 = pneg %p226
      %p376 = pneg %p250
      %p377 = pneg %p247
      %p378 = pneg %p278
      %p379 = pneg %p275
      %p380 = scmp.lt.s32.totalorder %s25, 1
      %s381 = scalar_select %p380, %s25, 1
      %p382 = scmp.lt.s32.totalorder %s26, 0
      %s383 = scalar_select %p382, %s26, 0
      %s384 = sadd.s32 %s383, %s381
      %s385 = smul.addr %s384, 4
      %s386 = scalar_lea.vmem %s10, %s385
      %p387 = scmp.lt.s32.totalorder %s25, 1
      %s388 = scalar_select %p387, %s25, 1
      %p389 = scmp.lt.s32.totalorder %s26, 0
      %s390 = scalar_select %p389, %s26, 0
      %s391 = sadd.s32 %s390, %s388
      %s392 = smul.addr %s391, 4
      %s393 = scalar_lea.vmem %s0, %s392
      %p394 = scmp.lt.s32.totalorder %s25, 1
      %s395 = scalar_select %p394, %s25, 1
      %s396 = smul.addr %s395, 2
      %s397 = smul.addr %s396, 4
      %s398 = scalar_lea.vmem %s1, %s397
      %p399 = scmp.lt.s32.totalorder %s25, 1
      %s400 = scalar_select %p399, %s25, 1
      %p401 = scmp.lt.s32.totalorder %s26, 0
      %s402 = scalar_select %p401, %s26, 0
      %s403 = sadd.s32 %s402, %s400
      %s404 = smul.addr %s403, 4
      %s405 = scalar_lea.vmem %s10, %s404
      %v407 = vld [vmem:[%s393] sm:$0xf]
      %v408 = vld [vmem:[%s398] sm:$0xf]
      %v409 = vld [vmem:[%s398 + $0x4] sm:$0xf]
      %v410 = vld [vmem:[%s2] sm:$0xf]
      %v411 = vld [vmem:[%s2 + $0x4] sm:$0xf]
      %v412 = vld [vmem:[%s2 + $0x8] sm:$0xf]
      %v413 = vld [vmem:[%s2 + $0xc] sm:$0xf]
      %v414 = vld [vmem:[%s2 + $0x10] sm:$0xf]
      %v415 = vld [vmem:[%s2 + $0x14] sm:$0xf]
      %v416 = vld [vmem:[%s2 + $0x18] sm:$0xf]
      %v417 = vld [vmem:[%s2 + $0x1c] sm:$0xf]
      %v418 = vld [vmem:[%s2 + $0x20] sm:$0xf]
      %v419 = vld [vmem:[%s2 + $0x24] sm:$0xf]
      %v420 = vld [vmem:[%s2 + $0x28] sm:$0xf]
      %v421 = vld [vmem:[%s2 + $0x2c] sm:$0xf]
      %v422 = vld [vmem:[%s2 + $0x30] sm:$0xf]
      %v423 = vld [vmem:[%s2 + $0x34] sm:$0xf]
      %v424 = vld [vmem:[%s2 + $0x38] sm:$0xf]
      %v425 = vld [vmem:[%s2 + $0x3c] sm:$0xf]
      %v426 = vld [vmem:[%s3] sm:$0x1]
      %v428 = vlaneseq
      %v429 = vshrl.u32 %v428, 7
      %v430 = vsub.s32 0, %v429
      %v431 = vrot.slane %v426, %v430
      %v449 = vunpack.c.l.b16 %v410
      %v450 = vunpack.c.l.b16 %v411
      %v451 = vunpack.c.l.b16 %v412
      %v452 = vunpack.c.l.b16 %v413
      %v453 = vunpack.c.l.b16 %v414
      %v454 = vunpack.c.l.b16 %v415
      %v455 = vunpack.c.l.b16 %v416
      %v456 = vunpack.c.l.b16 %v417
      %v457 = vunpack.c.l.b16 %v418
      %v458 = vunpack.c.l.b16 %v419
      %v459 = vunpack.c.l.b16 %v420
      %v460 = vunpack.c.l.b16 %v421
      %v461 = vunpack.c.l.b16 %v422
      %v462 = vunpack.c.l.b16 %v423
      %v463 = vunpack.c.l.b16 %v424
      %v464 = vunpack.c.l.b16 %v425
      %v465 = vpack.c.b16 %v450, %v449
      %v466 = vpack.c.b16 %v452, %v451
      %v467 = vpack.c.b16 %v454, %v453
      %v468 = vpack.c.b16 %v456, %v455
      %v469 = vpack.c.b16 %v458, %v457
      %v470 = vpack.c.b16 %v460, %v459
      %v471 = vpack.c.b16 %v462, %v461
      %v472 = vpack.c.b16 %v464, %v463
      %481 = vmatprep.subr.bf16.mxu0 0
      %482 = vmatpush1.bf16.msra.mxu0 %v465
      %483 = vmatprep.subr.bf16.mxu0 0
      %484 = vmatpush1.bf16.msra.mxu0 %v466
      %485 = vmatprep.subr.bf16.mxu0 0
      %486 = vmatpush1.bf16.msra.mxu0 %v467
      %487 = vmatprep.subr.bf16.mxu0 0
      %488 = vmatpush1.bf16.msra.mxu0 %v468
      %489 = vmatprep.subr.bf16.mxu0 0
      %490 = vmatpush1.bf16.msra.mxu0 %v469
      %491 = vmatprep.subr.bf16.mxu0 0
      %492 = vmatpush1.bf16.msra.mxu0 %v470
      %493 = vmatprep.subr.bf16.mxu0 0
      %494 = vmatpush1.bf16.msra.mxu0 %v471
      %495 = vmatprep.subr.bf16.mxu0 0
      %496 = vmatpush1.bf16.msra.mxu0 %v472
      %497 = vmatprep.subr.bf16.mxu0 0
      %498 = vmatpush1.bf16.msra.mxu0 0
      %499 = vmatprep.subr.bf16.mxu0 0
      %500 = vmatpush1.bf16.msra.mxu0 0
      %501 = vmatprep.subr.bf16.mxu0 0
      %502 = vmatpush1.bf16.msra.mxu0 0
      %503 = vmatprep.subr.bf16.mxu0 0
      %504 = vmatpush1.bf16.msra.mxu0 0
      %505 = vmatprep.subr.bf16.mxu0 0
      %506 = vmatpush1.bf16.msra.mxu0 0
      %507 = vmatprep.subr.bf16.mxu0 0
      %508 = vmatpush1.bf16.msra.mxu0 0
      %509 = vmatprep.subr.bf16.mxu0 0
      %510 = vmatpush1.bf16.msra.mxu0 0
      %511 = vmatprep.subr.bf16.mxu0 0
      %512 = vmatpush1.bf16.msra.mxu0 0
      %513 = vmatprep.mubr.bf16.mxu0 0
      %514 = vmatmul.mubr.bf16.gmra.mrb[0].mxu0 %v407
      %v515 = vpop.f32.mrb[0].mxu0
      %v516 = vadd.f32 %v431, %v515
      %v517 = vpop.f32.mrb[0].mxu0
      %v518 = vpop.f32.mrb[0].mxu0
      %v519 = vpop.f32.mrb[0].mxu0
      %520 = vdwg.mxu0
      %v521 = vld [vmem:[%s4] sm:$0xff]
      %v522 = vld [vmem:[%s4 + $0x8] sm:$0xff]
      %v523 = vld [vmem:[%s4 + $0x10] sm:$0xff]
      %v524 = vld [vmem:[%s4 + $0x18] sm:$0xff]
      %v525 = vld [vmem:[%s4 + $0x20] sm:$0xff]
      %v526 = vld [vmem:[%s4 + $0x28] sm:$0xff]
      %v527 = vld [vmem:[%s4 + $0x30] sm:$0xff]
      %v528 = vld [vmem:[%s4 + $0x38] sm:$0xff]
      %v529 = vld [vmem:[%s4 + $0x40] sm:$0xff]
      %v530 = vld [vmem:[%s4 + $0x48] sm:$0xff]
      %v531 = vld [vmem:[%s4 + $0x50] sm:$0xff]
      %v532 = vld [vmem:[%s4 + $0x58] sm:$0xff]
      %v533 = vld [vmem:[%s4 + $0x60] sm:$0xff]
      %v534 = vld [vmem:[%s4 + $0x68] sm:$0xff]
      %v535 = vld [vmem:[%s4 + $0x70] sm:$0xff]
      %v536 = vld [vmem:[%s4 + $0x78] sm:$0xff]
      %v537 = vld [vmem:[%s5] sm:$0x3]
      %v539 = vlaneseq
      %v540 = vshrl.u32 %v539, 7
      %v541 = vsub.s32 0, %v540
      %v542 = vrot.slane %v537, %v541
      %v543 = vlaneseq
      %v544 = vshrl.u32 %v543, 7
      %v545 = vsub.s32 1, %v544
      %v546 = vrot.slane %v537, %v545
      %v551 = vunpack.c.l.b16 %v408
      %v552 = vunpack.c.l.b16 %v409
      %v553 = vpack.c.b16 %v552, %v551
      %v571 = vunpack.c.l.b16 %v521
      %v572 = vunpack.c.h.b16 %v521
      %v573 = vunpack.c.l.b16 %v522
      %v574 = vunpack.c.h.b16 %v522
      %v575 = vunpack.c.l.b16 %v523
      %v576 = vunpack.c.h.b16 %v523
      %v577 = vunpack.c.l.b16 %v524
      %v578 = vunpack.c.h.b16 %v524
      %v579 = vunpack.c.l.b16 %v525
      %v580 = vunpack.c.h.b16 %v525
      %v581 = vunpack.c.l.b16 %v526
      %v582 = vunpack.c.h.b16 %v526
      %v583 = vunpack.c.l.b16 %v527
      %v584 = vunpack.c.h.b16 %v527
      %v585 = vunpack.c.l.b16 %v528
      %v586 = vunpack.c.h.b16 %v528
      %v587 = vunpack.c.l.b16 %v529
      %v588 = vunpack.c.h.b16 %v529
      %v589 = vunpack.c.l.b16 %v530
      %v590 = vunpack.c.h.b16 %v530
      %v591 = vunpack.c.l.b16 %v531
      %v592 = vunpack.c.h.b16 %v531
      %v593 = vunpack.c.l.b16 %v532
      %v594 = vunpack.c.h.b16 %v532
      %v595 = vunpack.c.l.b16 %v533
      %v596 = vunpack.c.h.b16 %v533
      %v597 = vunpack.c.l.b16 %v534
      %v598 = vunpack.c.h.b16 %v534
      %v599 = vunpack.c.l.b16 %v535
      %v600 = vunpack.c.h.b16 %v535
      %v601 = vunpack.c.l.b16 %v536
      %v602 = vunpack.c.h.b16 %v536
      %v603 = vpack.c.b16 %v573, %v571
      %v604 = vpack.c.b16 %v574, %v572
      %v605 = vpack.c.b16 %v577, %v575
      %v606 = vpack.c.b16 %v578, %v576
      %v607 = vpack.c.b16 %v581, %v579
      %v608 = vpack.c.b16 %v582, %v580
      %v609 = vpack.c.b16 %v585, %v583
      %v610 = vpack.c.b16 %v586, %v584
      %v611 = vpack.c.b16 %v589, %v587
      %v612 = vpack.c.b16 %v590, %v588
      %v613 = vpack.c.b16 %v593, %v591
      %v614 = vpack.c.b16 %v594, %v592
      %v615 = vpack.c.b16 %v597, %v595
      %v616 = vpack.c.b16 %v598, %v596
      %v617 = vpack.c.b16 %v601, %v599
      %v618 = vpack.c.b16 %v602, %v600
      %635 = vmatprep.subr.bf16.mxu0 %v604
      %636 = vmatpush1.bf16.msra.mxu0 %v603
      %637 = vmatprep.subr.bf16.mxu0 %v606
      %638 = vmatpush1.bf16.msra.mxu0 %v605
      %639 = vmatprep.subr.bf16.mxu0 %v608
      %640 = vmatpush1.bf16.msra.mxu0 %v607
      %641 = vmatprep.subr.bf16.mxu0 %v610
      %642 = vmatpush1.bf16.msra.mxu0 %v609
      %643 = vmatprep.subr.bf16.mxu0 %v612
      %644 = vmatpush1.bf16.msra.mxu0 %v611
      %645 = vmatprep.subr.bf16.mxu0 %v614
      %646 = vmatpush1.bf16.msra.mxu0 %v613
      %647 = vmatprep.subr.bf16.mxu0 %v616
      %648 = vmatpush1.bf16.msra.mxu0 %v615
      %649 = vmatprep.subr.bf16.mxu0 %v618
      %650 = vmatpush1.bf16.msra.mxu0 %v617
      %651 = vmatprep.subr.bf16.mxu0 0
      %652 = vmatpush1.bf16.msra.mxu0 0
      %653 = vmatprep.subr.bf16.mxu0 0
      %654 = vmatpush1.bf16.msra.mxu0 0
      %655 = vmatprep.subr.bf16.mxu0 0
      %656 = vmatpush1.bf16.msra.mxu0 0
      %657 = vmatprep.subr.bf16.mxu0 0
      %658 = vmatpush1.bf16.msra.mxu0 0
      %659 = vmatprep.subr.bf16.mxu0 0
      %660 = vmatpush1.bf16.msra.mxu0 0
      %661 = vmatprep.subr.bf16.mxu0 0
      %662 = vmatpush1.bf16.msra.mxu0 0
      %663 = vmatprep.subr.bf16.mxu0 0
      %664 = vmatpush1.bf16.msra.mxu0 0
      %665 = vmatprep.subr.bf16.mxu0 0
      %666 = vmatpush1.bf16.msra.mxu0 0
      %667 = vmatprep.mubr.bf16.mxu0 0
      %668 = vmatmul.mubr.bf16.gmra.mrb[0].mxu0 %v553
      %v669 = vpop.f32.mrb[0].mxu0
      %v670 = vadd.f32 %v542, %v669
      %v671 = vpop.f32.mrb[0].mxu0
      %v672 = vadd.f32 %v546, %v671
      %v673 = vpop.f32.mrb[0].mxu0
      %v674 = vadd.f32 %v542, %v673
      %v675 = vpop.f32.mrb[0].mxu0
      %v676 = vadd.f32 %v546, %v675
      %677 = vdwg.mxu0
      %679 = vrot.lane.b32.xlu0 %v516, 96
      %v680 = vpop.permute.xlu0 %679
      %681 = vrot.lane.b32.xlu0 %v516, 64
      %v682 = vpop.permute.xlu0 %681
      %683 = vrot.lane.b32.xlu0 %v516, 32
      %v684 = vpop.permute.xlu0 %683
      %687 = vrot.lane.b32.xlu0 %v670, 96
      %v688 = vpop.permute.xlu0 %687
      %689 = vrot.lane.b32.xlu0 %v674, 96
      %v690 = vpop.permute.xlu0 %689
      %693 = vrot.lane.b32.xlu0 %v670, 64
      %v694 = vpop.permute.xlu0 %693
      %695 = vrot.lane.b32.xlu0 %v674, 64
      %v696 = vpop.permute.xlu0 %695
      %699 = vrot.lane.b32.xlu0 %v670, 32
      %v700 = vpop.permute.xlu0 %699
      %701 = vrot.lane.b32.xlu0 %v674, 32
      %v702 = vpop.permute.xlu0 %701
      %707 = vrot.lane.b32.xlu0 %v672, 96
      %v708 = vpop.permute.xlu0 %707
      %709 = vrot.lane.b32.xlu0 %v676, 96
      %v710 = vpop.permute.xlu0 %709
      %713 = vrot.lane.b32.xlu0 %v672, 64
      %v714 = vpop.permute.xlu0 %713
      %715 = vrot.lane.b32.xlu0 %v676, 64
      %v716 = vpop.permute.xlu0 %715
      %719 = vrot.lane.b32.xlu0 %v672, 32
      %v720 = vpop.permute.xlu0 %719
      %721 = vrot.lane.b32.xlu0 %v676, 32
      %v722 = vpop.permute.xlu0 %721
      %725 = vxpose.xlu0.b32.start [1/16] %v670, 128
      %726 = vxpose.xlu0.b32.cont [2/16] %v674, 128
      %727 = vxpose.xlu0.b32.cont [3/16] 0.0, 128
      %728 = vxpose.xlu0.b32.cont [4/16] 0.0, 128
      %729 = vxpose.xlu0.b32.cont [5/16] 0.0, 128
      %730 = vxpose.xlu0.b32.cont [6/16] 0.0, 128
      %731 = vxpose.xlu0.b32.cont [7/16] 0.0, 128
      %732 = vxpose.xlu0.b32.cont [8/16] 0.0, 128
      %733 = vxpose.xlu0.b32.cont [9/16] 0.0, 128
      %734 = vxpose.xlu0.b32.cont [10/16] 0.0, 128
      %735 = vxpose.xlu0.b32.cont [11/16] 0.0, 128
      %736 = vxpose.xlu0.b32.cont [12/16] 0.0, 128
      %737 = vxpose.xlu0.b32.cont [13/16] 0.0, 128
      %738 = vxpose.xlu0.b32.cont [14/16] 0.0, 128
      %739 = vxpose.xlu0.b32.cont [15/16] 0.0, 128
      %740 = vxpose.xlu0.b32.end [16/16] 0.0, 128
      %v741 = vpop.trf.xlu0
      %v742 = vpop.trf.xlu0
      %v743 = vpop.trf.xlu0
      %v744 = vpop.trf.xlu0
      %v745 = vpop.trf.xlu0
      %v746 = vpop.trf.xlu0
      %v747 = vpop.trf.xlu0
      %v748 = vpop.trf.xlu0
      %v749 = vpop.trf.xlu0
      %v750 = vpop.trf.xlu0
      %v751 = vpop.trf.xlu0
      %v752 = vpop.trf.xlu0
      %v753 = vpop.trf.xlu0
      %v754 = vpop.trf.xlu0
      %v755 = vpop.trf.xlu0
      %v756 = vpop.trf.xlu0
      %757 = vxpose.xlu0.b32.start [1/16] %v688, 128
      %758 = vxpose.xlu0.b32.cont [2/16] %v690, 128
      %759 = vxpose.xlu0.b32.cont [3/16] 0.0, 128
      %760 = vxpose.xlu0.b32.cont [4/16] 0.0, 128
      %761 = vxpose.xlu0.b32.cont [5/16] 0.0, 128
      %762 = vxpose.xlu0.b32.cont [6/16] 0.0, 128
      %763 = vxpose.xlu0.b32.cont [7/16] 0.0, 128
      %764 = vxpose.xlu0.b32.cont [8/16] 0.0, 128
      %765 = vxpose.xlu0.b32.cont [9/16] 0.0, 128
      %766 = vxpose.xlu0.b32.cont [10/16] 0.0, 128
      %767 = vxpose.xlu0.b32.cont [11/16] 0.0, 128
      %768 = vxpose.xlu0.b32.cont [12/16] 0.0, 128
      %769 = vxpose.xlu0.b32.cont [13/16] 0.0, 128
      %770 = vxpose.xlu0.b32.cont [14/16] 0.0, 128
      %771 = vxpose.xlu0.b32.cont [15/16] 0.0, 128
      %772 = vxpose.xlu0.b32.end [16/16] 0.0, 128
      %v773 = vpop.trf.xlu0
      %v774 = vpop.trf.xlu0
      %v775 = vpop.trf.xlu0
      %v776 = vpop.trf.xlu0
      %v777 = vpop.trf.xlu0
      %v778 = vpop.trf.xlu0
      %v779 = vpop.trf.xlu0
      %v780 = vpop.trf.xlu0
      %v781 = vpop.trf.xlu0
      %v782 = vpop.trf.xlu0
      %v783 = vpop.trf.xlu0
      %v784 = vpop.trf.xlu0
      %v785 = vpop.trf.xlu0
      %v786 = vpop.trf.xlu0
      %v787 = vpop.trf.xlu0
      %v788 = vpop.trf.xlu0
      %789 = vxpose.xlu0.b32.start [1/16] %v694, 128
      %790 = vxpose.xlu0.b32.cont [2/16] %v696, 128
      %791 = vxpose.xlu0.b32.cont [3/16] 0.0, 128
      %792 = vxpose.xlu0.b32.cont [4/16] 0.0, 128
      %793 = vxpose.xlu0.b32.cont [5/16] 0.0, 128
      %794 = vxpose.xlu0.b32.cont [6/16] 0.0, 128
      %795 = vxpose.xlu0.b32.cont [7/16] 0.0, 128
      %796 = vxpose.xlu0.b32.cont [8/16] 0.0, 128
      %797 = vxpose.xlu0.b32.cont [9/16] 0.0, 128
      %798 = vxpose.xlu0.b32.cont [10/16] 0.0, 128
      %799 = vxpose.xlu0.b32.cont [11/16] 0.0, 128
      %800 = vxpose.xlu0.b32.cont [12/16] 0.0, 128
      %801 = vxpose.xlu0.b32.cont [13/16] 0.0, 128
      %802 = vxpose.xlu0.b32.cont [14/16] 0.0, 128
      %803 = vxpose.xlu0.b32.cont [15/16] 0.0, 128
      %804 = vxpose.xlu0.b32.end [16/16] 0.0, 128
      %v805 = vpop.trf.xlu0
      %v806 = vpop.trf.xlu0
      %v807 = vpop.trf.xlu0
      %v808 = vpop.trf.xlu0
      %v809 = vpop.trf.xlu0
      %v810 = vpop.trf.xlu0
      %v811 = vpop.trf.xlu0
      %v812 = vpop.trf.xlu0
      %v813 = vpop.trf.xlu0
      %v814 = vpop.trf.xlu0
      %v815 = vpop.trf.xlu0
      %v816 = vpop.trf.xlu0
      %v817 = vpop.trf.xlu0
      %v818 = vpop.trf.xlu0
      %v819 = vpop.trf.xlu0
      %v820 = vpop.trf.xlu0
      %821 = vxpose.xlu0.b32.start [1/16] %v700, 128
      %822 = vxpose.xlu0.b32.cont [2/16] %v702, 128
      %823 = vxpose.xlu0.b32.cont [3/16] 0.0, 128
      %824 = vxpose.xlu0.b32.cont [4/16] 0.0, 128
      %825 = vxpose.xlu0.b32.cont [5/16] 0.0, 128
      %826 = vxpose.xlu0.b32.cont [6/16] 0.0, 128
      %827 = vxpose.xlu0.b32.cont [7/16] 0.0, 128
      %828 = vxpose.xlu0.b32.cont [8/16] 0.0, 128
      %829 = vxpose.xlu0.b32.cont [9/16] 0.0, 128
      %830 = vxpose.xlu0.b32.cont [10/16] 0.0, 128
      %831 = vxpose.xlu0.b32.cont [11/16] 0.0, 128
      %832 = vxpose.xlu0.b32.cont [12/16] 0.0, 128
      %833 = vxpose.xlu0.b32.cont [13/16] 0.0, 128
      %834 = vxpose.xlu0.b32.cont [14/16] 0.0, 128
      %835 = vxpose.xlu0.b32.cont [15/16] 0.0, 128
      %836 = vxpose.xlu0.b32.end [16/16] 0.0, 128
      %v837 = vpop.trf.xlu0
      %v838 = vpop.trf.xlu0
      %v839 = vpop.trf.xlu0
      %v840 = vpop.trf.xlu0
      %v841 = vpop.trf.xlu0
      %v842 = vpop.trf.xlu0
      %v843 = vpop.trf.xlu0
      %v844 = vpop.trf.xlu0
      %v845 = vpop.trf.xlu0
      %v846 = vpop.trf.xlu0
      %v847 = vpop.trf.xlu0
      %v848 = vpop.trf.xlu0
      %v849 = vpop.trf.xlu0
      %v850 = vpop.trf.xlu0
      %v851 = vpop.trf.xlu0
      %v852 = vpop.trf.xlu0
      %vm853 = vcmask 261120
      %v854 = vsel %vm853, %v516, 0
      %856 = vmatprep.subr.mxu0 0.0
      %857 = vmatpush1.msra.mxu0 %v741
      %858 = vmatprep.subr.mxu0 0.0
      %859 = vmatpush1.msra.mxu0 %v742
      %860 = vmatprep.subr.mxu0 0.0
      %861 = vmatpush1.msra.mxu0 %v743
      %862 = vmatprep.subr.mxu0 0.0
      %863 = vmatpush1.msra.mxu0 %v744
      %864 = vmatprep.subr.mxu0 0.0
      %865 = vmatpush1.msra.mxu0 0.0
      %866 = vmatprep.subr.mxu0 0.0
      %867 = vmatpush1.msra.mxu0 0.0
      %868 = vmatprep.subr.mxu0 0.0
      %869 = vmatpush1.msra.mxu0 0.0
      %870 = vmatprep.subr.mxu0 0.0
      %871 = vmatpush1.msra.mxu0 0.0
      %872 = vmatprep.subr.mxu0 0.0
      %873 = vmatpush1.msra.mxu0 0.0
      %874 = vmatprep.subr.mxu0 0.0
      %875 = vmatpush1.msra.mxu0 0.0
      %876 = vmatprep.subr.mxu0 0.0
      %877 = vmatpush1.msra.mxu0 0.0
      %878 = vmatprep.subr.mxu0 0.0
      %879 = vmatpush1.msra.mxu0 0.0
      %880 = vmatprep.subr.mxu0 0.0
      %881 = vmatpush1.msra.mxu0 0.0
      %882 = vmatprep.subr.mxu0 0.0
      %883 = vmatpush1.msra.mxu0 0.0
      %884 = vmatprep.subr.mxu0 0.0
      %885 = vmatpush1.msra.mxu0 0.0
      %886 = vmatprep.subr.mxu0 0.0
      %887 = vmatpush1.msra.mxu0 0.0
      %888 = vmatprep.subr.mxu0 0.0
      %889 = vmatpush1.msra.mxu0 0.0
      %890 = vmatprep.subr.mxu0 0.0
      %891 = vmatpush1.msra.mxu0 0.0
      %892 = vmatprep.subr.mxu0 0.0
      %893 = vmatpush1.msra.mxu0 0.0
      %894 = vmatprep.subr.mxu0 0.0
      %895 = vmatpush1.msra.mxu0 0.0
      %896 = vmatprep.subr.mxu0 0.0
      %897 = vmatpush1.msra.mxu0 0.0
      %898 = vmatprep.subr.mxu0 0.0
      %899 = vmatpush1.msra.mxu0 0.0
      %900 = vmatprep.subr.mxu0 0.0
      %901 = vmatpush1.msra.mxu0 0.0
      %902 = vmatprep.subr.mxu0 0.0
      %903 = vmatpush1.msra.mxu0 0.0
      %904 = vmatprep.subr.mxu0 0.0
      %905 = vmatpush1.msra.mxu0 0.0
      %906 = vmatprep.subr.mxu0 0.0
      %907 = vmatpush1.msra.mxu0 0.0
      %908 = vmatprep.subr.mxu0 0.0
      %909 = vmatpush1.msra.mxu0 0.0
      %910 = vmatprep.subr.mxu0 0.0
      %911 = vmatpush1.msra.mxu0 0.0
      %912 = vmatprep.subr.mxu0 0.0
      %913 = vmatpush1.msra.mxu0 0.0
      %914 = vmatprep.subr.mxu0 0.0
      %915 = vmatpush1.msra.mxu0 0.0
      %916 = vmatprep.subr.mxu0 0.0
      %917 = vmatpush1.msra.mxu0 0.0
      %918 = vmatprep.subr.mxu0 0.0
      %919 = vmatpush1.msra.mxu0 0.0
      %920 = vmatprep.mubr.f32.mxu0 0.0
      %921 = vmatmul.mubr.f32.gmra.mrb[0].mxu0 %v854
      %v922 = vpop.f32.mrb[0].mxu0
      %v923 = vadd.f32 0.0, %v922
      %v924 = vpop.f32.mrb[0].mxu0
      %925 = vdwg.mxu0
      %v926 = vsel %vm853, %v680, 0
      %928 = vmatprep.subr.mxu0 0.0
      %929 = vmatpush1.msra.mxu0 %v773
      %930 = vmatprep.subr.mxu0 0.0
      %931 = vmatpush1.msra.mxu0 %v774
      %932 = vmatprep.subr.mxu0 0.0
      %933 = vmatpush1.msra.mxu0 %v775
      %934 = vmatprep.subr.mxu0 0.0
      %935 = vmatpush1.msra.mxu0 %v776
      %936 = vmatprep.subr.mxu0 0.0
      %937 = vmatpush1.msra.mxu0 0.0
      %938 = vmatprep.subr.mxu0 0.0
      %939 = vmatpush1.msra.mxu0 0.0
      %940 = vmatprep.subr.mxu0 0.0
      %941 = vmatpush1.msra.mxu0 0.0
      %942 = vmatprep.subr.mxu0 0.0
      %943 = vmatpush1.msra.mxu0 0.0
      %944 = vmatprep.subr.mxu0 0.0
      %945 = vmatpush1.msra.mxu0 0.0
      %946 = vmatprep.subr.mxu0 0.0
      %947 = vmatpush1.msra.mxu0 0.0
      %948 = vmatprep.subr.mxu0 0.0
      %949 = vmatpush1.msra.mxu0 0.0
      %950 = vmatprep.subr.mxu0 0.0
      %951 = vmatpush1.msra.mxu0 0.0
      %952 = vmatprep.subr.mxu0 0.0
      %953 = vmatpush1.msra.mxu0 0.0
      %954 = vmatprep.subr.mxu0 0.0
      %955 = vmatpush1.msra.mxu0 0.0
      %956 = vmatprep.subr.mxu0 0.0
      %957 = vmatpush1.msra.mxu0 0.0
      %958 = vmatprep.subr.mxu0 0.0
      %959 = vmatpush1.msra.mxu0 0.0
      %960 = vmatprep.subr.mxu0 0.0
      %961 = vmatpush1.msra.mxu0 0.0
      %962 = vmatprep.subr.mxu0 0.0
      %963 = vmatpush1.msra.mxu0 0.0
      %964 = vmatprep.subr.mxu0 0.0
      %965 = vmatpush1.msra.mxu0 0.0
      %966 = vmatprep.subr.mxu0 0.0
      %967 = vmatpush1.msra.mxu0 0.0
      %968 = vmatprep.subr.mxu0 0.0
      %969 = vmatpush1.msra.mxu0 0.0
      %970 = vmatprep.subr.mxu0 0.0
      %971 = vmatpush1.msra.mxu0 0.0
      %972 = vmatprep.subr.mxu0 0.0
      %973 = vmatpush1.msra.mxu0 0.0
      %974 = vmatprep.subr.mxu0 0.0
      %975 = vmatpush1.msra.mxu0 0.0
      %976 = vmatprep.subr.mxu0 0.0
      %977 = vmatpush1.msra.mxu0 0.0
      %978 = vmatprep.subr.mxu0 0.0
      %979 = vmatpush1.msra.mxu0 0.0
      %980 = vmatprep.subr.mxu0 0.0
      %981 = vmatpush1.msra.mxu0 0.0
      %982 = vmatprep.subr.mxu0 0.0
      %983 = vmatpush1.msra.mxu0 0.0
      %984 = vmatprep.subr.mxu0 0.0
      %985 = vmatpush1.msra.mxu0 0.0
      %986 = vmatprep.subr.mxu0 0.0
      %987 = vmatpush1.msra.mxu0 0.0
      %988 = vmatprep.subr.mxu0 0.0
      %989 = vmatpush1.msra.mxu0 0.0
      %990 = vmatprep.subr.mxu0 0.0
      %991 = vmatpush1.msra.mxu0 0.0
      %992 = vmatprep.mubr.f32.mxu0 0.0
      %993 = vmatmul.mubr.f32.gmra.mrb[0].mxu0 %v926
      %v994 = vpop.f32.mrb[0].mxu0
      %v995 = vadd.f32 0.0, %v994
      %v996 = vpop.f32.mrb[0].mxu0
      %997 = vdwg.mxu0
      %v998 = vsel %vm853, %v682, 0
      %1000 = vmatprep.subr.mxu0 0.0
      %1001 = vmatpush1.msra.mxu0 %v805
      %1002 = vmatprep.subr.mxu0 0.0
      %1003 = vmatpush1.msra.mxu0 %v806
      %1004 = vmatprep.subr.mxu0 0.0
      %1005 = vmatpush1.msra.mxu0 %v807
      %1006 = vmatprep.subr.mxu0 0.0
      %1007 = vmatpush1.msra.mxu0 %v808
      %1008 = vmatprep.subr.mxu0 0.0
      %1009 = vmatpush1.msra.mxu0 0.0
      %1010 = vmatprep.subr.mxu0 0.0
      %1011 = vmatpush1.msra.mxu0 0.0
      %1012 = vmatprep.subr.mxu0 0.0
      %1013 = vmatpush1.msra.mxu0 0.0
      %1014 = vmatprep.subr.mxu0 0.0
      %1015 = vmatpush1.msra.mxu0 0.0
      %1016 = vmatprep.subr.mxu0 0.0
      %1017 = vmatpush1.msra.mxu0 0.0
      %1018 = vmatprep.subr.mxu0 0.0
      %1019 = vmatpush1.msra.mxu0 0.0
      %1020 = vmatprep.subr.mxu0 0.0
      %1021 = vmatpush1.msra.mxu0 0.0
      %1022 = vmatprep.subr.mxu0 0.0
      %1023 = vmatpush1.msra.mxu0 0.0
      %1024 = vmatprep.subr.mxu0 0.0
      %1025 = vmatpush1.msra.mxu0 0.0
      %1026 = vmatprep.subr.mxu0 0.0
      %1027 = vmatpush1.msra.mxu0 0.0
      %1028 = vmatprep.subr.mxu0 0.0
      %1029 = vmatpush1.msra.mxu0 0.0
      %1030 = vmatprep.subr.mxu0 0.0
      %1031 = vmatpush1.msra.mxu0 0.0
      %1032 = vmatprep.subr.mxu0 0.0
      %1033 = vmatpush1.msra.mxu0 0.0
      %1034 = vmatprep.subr.mxu0 0.0
      %1035 = vmatpush1.msra.mxu0 0.0
      %1036 = vmatprep.subr.mxu0 0.0
      %1037 = vmatpush1.msra.mxu0 0.0
      %1038 = vmatprep.subr.mxu0 0.0
      %1039 = vmatpush1.msra.mxu0 0.0
      %1040 = vmatprep.subr.mxu0 0.0
      %1041 = vmatpush1.msra.mxu0 0.0
      %1042 = vmatprep.subr.mxu0 0.0
      %1043 = vmatpush1.msra.mxu0 0.0
      %1044 = vmatprep.subr.mxu0 0.0
      %1045 = vmatpush1.msra.mxu0 0.0
      %1046 = vmatprep.subr.mxu0 0.0
      %1047 = vmatpush1.msra.mxu0 0.0
      %1048 = vmatprep.subr.mxu0 0.0
      %1049 = vmatpush1.msra.mxu0 0.0
      %1050 = vmatprep.subr.mxu0 0.0
      %1051 = vmatpush1.msra.mxu0 0.0
      %1052 = vmatprep.subr.mxu0 0.0
      %1053 = vmatpush1.msra.mxu0 0.0
      %1054 = vmatprep.subr.mxu0 0.0
      %1055 = vmatpush1.msra.mxu0 0.0
      %1056 = vmatprep.subr.mxu0 0.0
      %1057 = vmatpush1.msra.mxu0 0.0
      %1058 = vmatprep.subr.mxu0 0.0
      %1059 = vmatpush1.msra.mxu0 0.0
      %1060 = vmatprep.subr.mxu0 0.0
      %1061 = vmatpush1.msra.mxu0 0.0
      %1062 = vmatprep.subr.mxu0 0.0
      %1063 = vmatpush1.msra.mxu0 0.0
      %1064 = vmatprep.mubr.f32.mxu0 0.0
      %1065 = vmatmul.mubr.f32.gmra.mrb[0].mxu0 %v998
      %v1066 = vpop.f32.mrb[0].mxu0
      %v1067 = vadd.f32 0.0, %v1066
      %v1068 = vpop.f32.mrb[0].mxu0
      %1069 = vdwg.mxu0
      %v1070 = vsel %vm853, %v684, 0
      %1072 = vmatprep.subr.mxu0 0.0
      %1073 = vmatpush1.msra.mxu0 %v837
      %1074 = vmatprep.subr.mxu0 0.0
      %1075 = vmatpush1.msra.mxu0 %v838
      %1076 = vmatprep.subr.mxu0 0.0
      %1077 = vmatpush1.msra.mxu0 %v839
      %1078 = vmatprep.subr.mxu0 0.0
      %1079 = vmatpush1.msra.mxu0 %v840
      %1080 = vmatprep.subr.mxu0 0.0
      %1081 = vmatpush1.msra.mxu0 0.0
      %1082 = vmatprep.subr.mxu0 0.0
      %1083 = vmatpush1.msra.mxu0 0.0
      %1084 = vmatprep.subr.mxu0 0.0
      %1085 = vmatpush1.msra.mxu0 0.0
      %1086 = vmatprep.subr.mxu0 0.0
      %1087 = vmatpush1.msra.mxu0 0.0
      %1088 = vmatprep.subr.mxu0 0.0
      %1089 = vmatpush1.msra.mxu0 0.0
      %1090 = vmatprep.subr.mxu0 0.0
      %1091 = vmatpush1.msra.mxu0 0.0
      %1092 = vmatprep.subr.mxu0 0.0
      %1093 = vmatpush1.msra.mxu0 0.0
      %1094 = vmatprep.subr.mxu0 0.0
      %1095 = vmatpush1.msra.mxu0 0.0
      %1096 = vmatprep.subr.mxu0 0.0
      %1097 = vmatpush1.msra.mxu0 0.0
      %1098 = vmatprep.subr.mxu0 0.0
      %1099 = vmatpush1.msra.mxu0 0.0
      %1100 = vmatprep.subr.mxu0 0.0
      %1101 = vmatpush1.msra.mxu0 0.0
      %1102 = vmatprep.subr.mxu0 0.0
      %1103 = vmatpush1.msra.mxu0 0.0
      %1104 = vmatprep.subr.mxu0 0.0
      %1105 = vmatpush1.msra.mxu0 0.0
      %1106 = vmatprep.subr.mxu0 0.0
      %1107 = vmatpush1.msra.mxu0 0.0
      %1108 = vmatprep.subr.mxu0 0.0
      %1109 = vmatpush1.msra.mxu0 0.0
      %1110 = vmatprep.subr.mxu0 0.0
      %1111 = vmatpush1.msra.mxu0 0.0
      %1112 = vmatprep.subr.mxu0 0.0
      %1113 = vmatpush1.msra.mxu0 0.0
      %1114 = vmatprep.subr.mxu0 0.0
      %1115 = vmatpush1.msra.mxu0 0.0
      %1116 = vmatprep.subr.mxu0 0.0
      %1117 = vmatpush1.msra.mxu0 0.0
      %1118 = vmatprep.subr.mxu0 0.0
      %1119 = vmatpush1.msra.mxu0 0.0
      %1120 = vmatprep.subr.mxu0 0.0
      %1121 = vmatpush1.msra.mxu0 0.0
      %1122 = vmatprep.subr.mxu0 0.0
      %1123 = vmatpush1.msra.mxu0 0.0
      %1124 = vmatprep.subr.mxu0 0.0
      %1125 = vmatpush1.msra.mxu0 0.0
      %1126 = vmatprep.subr.mxu0 0.0
      %1127 = vmatpush1.msra.mxu0 0.0
      %1128 = vmatprep.subr.mxu0 0.0
      %1129 = vmatpush1.msra.mxu0 0.0
      %1130 = vmatprep.subr.mxu0 0.0
      %1131 = vmatpush1.msra.mxu0 0.0
      %1132 = vmatprep.subr.mxu0 0.0
      %1133 = vmatpush1.msra.mxu0 0.0
      %1134 = vmatprep.subr.mxu0 0.0
      %1135 = vmatpush1.msra.mxu0 0.0
      %1136 = vmatprep.mubr.f32.mxu0 0.0
      %1137 = vmatmul.mubr.f32.gmra.mrb[0].mxu0 %v1070
      %v1138 = vpop.f32.mrb[0].mxu0
      %v1139 = vadd.f32 0.0, %v1138
      %v1140 = vpop.f32.mrb[0].mxu0
      %1141 = vdwg.mxu0
      %vm1142 = vcmask 130048
      %v1143 = vsel %vm1142, %v923, -inf
      %1144 = vmax.xlane.f32.xlu0 %v1143
      %v1145 = vpop.xlane.xlu0 %1144
      %v1146 = vsel %vm1142, %v995, -inf
      %1147 = vmax.xlane.f32.xlu0 %v1146
      %v1148 = vpop.xlane.xlu0 %1147
      %v1149 = vsel %vm1142, %v1067, -inf
      %1150 = vmax.xlane.f32.xlu0 %v1149
      %v1151 = vpop.xlane.xlu0 %1150
      %v1152 = vsel %vm1142, %v1139, -inf
      %1153 = vmax.xlane.f32.xlu0 %v1152
      %v1154 = vpop.xlane.xlu0 %1153
      %v1155 = vsub.f32 %v923, %v1145
      %v1156 = vsub.f32 %v995, %v1148
      %v1157 = vsub.f32 %v1067, %v1151
      %v1158 = vsub.f32 %v1139, %v1154
      %v1159 = vmul.f32 %v1155, 1.442695
      %v1160 = vpow.pop %v1159
      %v1161 = vmul.f32 %v1156, 1.442695
      %v1162 = vpow.pop %v1161
      %v1163 = vmul.f32 %v1157, 1.442695
      %v1164 = vpow.pop %v1163
      %v1165 = vmul.f32 %v1158, 1.442695
      %v1166 = vpow.pop %v1165
      %v1167 = vsel %vm1142, %v1160, 0.0
      %1168 = vadd.xlane.f32.xlu0 %v1167
      %v1169 = vpop.xlane.xlu0 %1168
      %v1170 = vsel %vm1142, %v1162, 0.0
      %1171 = vadd.xlane.f32.xlu0 %v1170
      %v1172 = vpop.xlane.xlu0 %1171
      %v1173 = vsel %vm1142, %v1164, 0.0
      %1174 = vadd.xlane.f32.xlu0 %v1173
      %v1175 = vpop.xlane.xlu0 %1174
      %v1176 = vsel %vm1142, %v1166, 0.0
      %1177 = vadd.xlane.f32.xlu0 %v1176
      %v1178 = vpop.xlane.xlu0 %1177
      %v1179 = vrcp.pop %v1169
      %v1180 = vmul.f32 %v1160, %v1179
      %v1181 = vrcp.pop %v1172
      %v1182 = vmul.f32 %v1162, %v1181
      %v1183 = vrcp.pop %v1175
      %v1184 = vmul.f32 %v1164, %v1183
      %v1185 = vrcp.pop %v1178
      %v1186 = vmul.f32 %v1166, %v1185
      %1187 = vxpose.xlu0.b32.start [1/16] %v672, 128
      %1188 = vxpose.xlu0.b32.cont [2/16] %v676, 128
      %1189 = vxpose.xlu0.b32.cont [3/16] 0.0, 128
      %1190 = vxpose.xlu0.b32.cont [4/16] 0.0, 128
      %1191 = vxpose.xlu0.b32.cont [5/16] 0.0, 128
      %1192 = vxpose.xlu0.b32.cont [6/16] 0.0, 128
      %1193 = vxpose.xlu0.b32.cont [7/16] 0.0, 128
      %1194 = vxpose.xlu0.b32.cont [8/16] 0.0, 128
      %1195 = vxpose.xlu0.b32.cont [9/16] 0.0, 128
      %1196 = vxpose.xlu0.b32.cont [10/16] 0.0, 128
      %1197 = vxpose.xlu0.b32.cont [11/16] 0.0, 128
      %1198 = vxpose.xlu0.b32.cont [12/16] 0.0, 128
      %1199 = vxpose.xlu0.b32.cont [13/16] 0.0, 128
      %1200 = vxpose.xlu0.b32.cont [14/16] 0.0, 128
      %1201 = vxpose.xlu0.b32.cont [15/16] 0.0, 128
      %1202 = vxpose.xlu0.b32.end [16/16] 0.0, 128
      %v1203 = vpop.trf.xlu0
      %v1204 = vpop.trf.xlu0
      %v1205 = vpop.trf.xlu0
      %v1206 = vpop.trf.xlu0
      %v1207 = vpop.trf.xlu0
      %v1208 = vpop.trf.xlu0
      %v1209 = vpop.trf.xlu0
      %v1210 = vpop.trf.xlu0
      %v1211 = vpop.trf.xlu0
      %v1212 = vpop.trf.xlu0
      %v1213 = vpop.trf.xlu0
      %v1214 = vpop.trf.xlu0
      %v1215 = vpop.trf.xlu0
      %v1216 = vpop.trf.xlu0
      %v1217 = vpop.trf.xlu0
      %v1218 = vpop.trf.xlu0
      %1219 = vxpose.xlu0.b32.start [1/16] %v708, 128
      %1220 = vxpose.xlu0.b32.cont [2/16] %v710, 128
      %1221 = vxpose.xlu0.b32.cont [3/16] 0.0, 128
      %1222 = vxpose.xlu0.b32.cont [4/16] 0.0, 128
      %1223 = vxpose.xlu0.b32.cont [5/16] 0.0, 128
      %1224 = vxpose.xlu0.b32.cont [6/16] 0.0, 128
      %1225 = vxpose.xlu0.b32.cont [7/16] 0.0, 128
      %1226 = vxpose.xlu0.b32.cont [8/16] 0.0, 128
      %1227 = vxpose.xlu0.b32.cont [9/16] 0.0, 128
      %1228 = vxpose.xlu0.b32.cont [10/16] 0.0, 128
      %1229 = vxpose.xlu0.b32.cont [11/16] 0.0, 128
      %1230 = vxpose.xlu0.b32.cont [12/16] 0.0, 128
      %1231 = vxpose.xlu0.b32.cont [13/16] 0.0, 128
      %1232 = vxpose.xlu0.b32.cont [14/16] 0.0, 128
      %1233 = vxpose.xlu0.b32.cont [15/16] 0.0, 128
      %1234 = vxpose.xlu0.b32.end [16/16] 0.0, 128
      %v1235 = vpop.trf.xlu0
      %v1236 = vpop.trf.xlu0
      %v1237 = vpop.trf.xlu0
      %v1238 = vpop.trf.xlu0
      %v1239 = vpop.trf.xlu0
      %v1240 = vpop.trf.xlu0
      %v1241 = vpop.trf.xlu0
      %v1242 = vpop.trf.xlu0
      %v1243 = vpop.trf.xlu0
      %v1244 = vpop.trf.xlu0
      %v1245 = vpop.trf.xlu0
      %v1246 = vpop.trf.xlu0
      %v1247 = vpop.trf.xlu0
      %v1248 = vpop.trf.xlu0
      %v1249 = vpop.trf.xlu0
      %v1250 = vpop.trf.xlu0
      %1251 = vxpose.xlu0.b32.start [1/16] %v714, 128
      %1252 = vxpose.xlu0.b32.cont [2/16] %v716, 128
      %1253 = vxpose.xlu0.b32.cont [3/16] 0.0, 128
      %1254 = vxpose.xlu0.b32.cont [4/16] 0.0, 128
      %1255 = vxpose.xlu0.b32.cont [5/16] 0.0, 128
      %1256 = vxpose.xlu0.b32.cont [6/16] 0.0, 128
      %1257 = vxpose.xlu0.b32.cont [7/16] 0.0, 128
      %1258 = vxpose.xlu0.b32.cont [8/16] 0.0, 128
      %1259 = vxpose.xlu0.b32.cont [9/16] 0.0, 128
      %1260 = vxpose.xlu0.b32.cont [10/16] 0.0, 128
      %1261 = vxpose.xlu0.b32.cont [11/16] 0.0, 128
      %1262 = vxpose.xlu0.b32.cont [12/16] 0.0, 128
      %1263 = vxpose.xlu0.b32.cont [13/16] 0.0, 128
      %1264 = vxpose.xlu0.b32.cont [14/16] 0.0, 128
      %1265 = vxpose.xlu0.b32.cont [15/16] 0.0, 128
      %1266 = vxpose.xlu0.b32.end [16/16] 0.0, 128
      %v1267 = vpop.trf.xlu0
      %v1268 = vpop.trf.xlu0
      %v1269 = vpop.trf.xlu0
      %v1270 = vpop.trf.xlu0
      %v1271 = vpop.trf.xlu0
      %v1272 = vpop.trf.xlu0
      %v1273 = vpop.trf.xlu0
      %v1274 = vpop.trf.xlu0
      %v1275 = vpop.trf.xlu0
      %v1276 = vpop.trf.xlu0
      %v1277 = vpop.trf.xlu0
      %v1278 = vpop.trf.xlu0
      %v1279 = vpop.trf.xlu0
      %v1280 = vpop.trf.xlu0
      %v1281 = vpop.trf.xlu0
      %v1282 = vpop.trf.xlu0
      %1283 = vxpose.xlu0.b32.start [1/16] %v720, 128
      %1284 = vxpose.xlu0.b32.cont [2/16] %v722, 128
      %1285 = vxpose.xlu0.b32.cont [3/16] 0.0, 128
      %1286 = vxpose.xlu0.b32.cont [4/16] 0.0, 128
      %1287 = vxpose.xlu0.b32.cont [5/16] 0.0, 128
      %1288 = vxpose.xlu0.b32.cont [6/16] 0.0, 128
      %1289 = vxpose.xlu0.b32.cont [7/16] 0.0, 128
      %1290 = vxpose.xlu0.b32.cont [8/16] 0.0, 128
      %1291 = vxpose.xlu0.b32.cont [9/16] 0.0, 128
      %1292 = vxpose.xlu0.b32.cont [10/16] 0.0, 128
      %1293 = vxpose.xlu0.b32.cont [11/16] 0.0, 128
      %1294 = vxpose.xlu0.b32.cont [12/16] 0.0, 128
      %1295 = vxpose.xlu0.b32.cont [13/16] 0.0, 128
      %1296 = vxpose.xlu0.b32.cont [14/16] 0.0, 128
      %1297 = vxpose.xlu0.b32.cont [15/16] 0.0, 128
      %1298 = vxpose.xlu0.b32.end [16/16] 0.0, 128
      %v1299 = vpop.trf.xlu0
      %v1300 = vpop.trf.xlu0
      %v1301 = vpop.trf.xlu0
      %v1302 = vpop.trf.xlu0
      %v1303 = vpop.trf.xlu0
      %v1304 = vpop.trf.xlu0
      %v1305 = vpop.trf.xlu0
      %v1306 = vpop.trf.xlu0
      %v1307 = vpop.trf.xlu0
      %v1308 = vpop.trf.xlu0
      %v1309 = vpop.trf.xlu0
      %v1310 = vpop.trf.xlu0
      %v1311 = vpop.trf.xlu0
      %v1312 = vpop.trf.xlu0
      %v1313 = vpop.trf.xlu0
      %v1314 = vpop.trf.xlu0
      %v1316 = vsel %vm1142, %v1203, 0
      %v1319 = vsel %vm1142, %v1204, 0
      %v1322 = vsel %vm1142, %v1205, 0
      %v1325 = vsel %vm1142, %v1206, 0
      %v1328 = vsel %vm1142, %v1180, 0
      %1330 = vmatprep.subr.mxu0 0.0
      %1331 = vmatpush1.xpose.msra.mxu0 %v1328
      %1332 = vmatprep.subr.mxu0 0.0
      %1333 = vmatpush1.xpose.msra.mxu0 0.0
      %1334 = vmatprep.subr.mxu0 0.0
      %1335 = vmatpush1.xpose.msra.mxu0 0.0
      %1336 = vmatprep.subr.mxu0 0.0
      %1337 = vmatpush1.xpose.msra.mxu0 0.0
      %1338 = vmatprep.subr.mxu0 0.0
      %1339 = vmatpush1.xpose.msra.mxu0 0.0
      %1340 = vmatprep.subr.mxu0 0.0
      %1341 = vmatpush1.xpose.msra.mxu0 0.0
      %1342 = vmatprep.subr.mxu0 0.0
      %1343 = vmatpush1.xpose.msra.mxu0 0.0
      %1344 = vmatprep.subr.mxu0 0.0
      %1345 = vmatpush1.xpose.msra.mxu0 0.0
      %1346 = vmatprep.subr.mxu0 0.0
      %1347 = vmatpush1.xpose.msra.mxu0 0.0
      %1348 = vmatprep.subr.mxu0 0.0
      %1349 = vmatpush1.xpose.msra.mxu0 0.0
      %1350 = vmatprep.subr.mxu0 0.0
      %1351 = vmatpush1.xpose.msra.mxu0 0.0
      %1352 = vmatprep.subr.mxu0 0.0
      %1353 = vmatpush1.xpose.msra.mxu0 0.0
      %1354 = vmatprep.subr.mxu0 0.0
      %1355 = vmatpush1.xpose.msra.mxu0 0.0
      %1356 = vmatprep.subr.mxu0 0.0
      %1357 = vmatpush1.xpose.msra.mxu0 0.0
      %1358 = vmatprep.subr.mxu0 0.0
      %1359 = vmatpush1.xpose.msra.mxu0 0.0
      %1360 = vmatprep.subr.mxu0 0.0
      %1361 = vmatpush1.xpose.msra.mxu0 0.0
      %1362 = vmatprep.subr.mxu0 0.0
      %1363 = vmatpush1.xpose.msra.mxu0 0.0
      %1364 = vmatprep.subr.mxu0 0.0
      %1365 = vmatpush1.xpose.msra.mxu0 0.0
      %1366 = vmatprep.subr.mxu0 0.0
      %1367 = vmatpush1.xpose.msra.mxu0 0.0
      %1368 = vmatprep.subr.mxu0 0.0
      %1369 = vmatpush1.xpose.msra.mxu0 0.0
      %1370 = vmatprep.subr.mxu0 0.0
      %1371 = vmatpush1.xpose.msra.mxu0 0.0
      %1372 = vmatprep.subr.mxu0 0.0
      %1373 = vmatpush1.xpose.msra.mxu0 0.0
      %1374 = vmatprep.subr.mxu0 0.0
      %1375 = vmatpush1.xpose.msra.mxu0 0.0
      %1376 = vmatprep.subr.mxu0 0.0
      %1377 = vmatpush1.xpose.msra.mxu0 0.0
      %1378 = vmatprep.subr.mxu0 0.0
      %1379 = vmatpush1.xpose.msra.mxu0 0.0
      %1380 = vmatprep.subr.mxu0 0.0
      %1381 = vmatpush1.xpose.msra.mxu0 0.0
      %1382 = vmatprep.subr.mxu0 0.0
      %1383 = vmatpush1.xpose.msra.mxu0 0.0
      %1384 = vmatprep.subr.mxu0 0.0
      %1385 = vmatpush1.xpose.msra.mxu0 0.0
      %1386 = vmatprep.subr.mxu0 0.0
      %1387 = vmatpush1.xpose.msra.mxu0 0.0
      %1388 = vmatprep.subr.mxu0 0.0
      %1389 = vmatpush1.xpose.msra.mxu0 0.0
      %1390 = vmatprep.subr.mxu0 0.0
      %1391 = vmatpush1.xpose.msra.mxu0 0.0
      %1392 = vmatprep.subr.mxu0 0.0
      %1393 = vmatpush1.xpose.msra.mxu0 0.0
      %1394 = vmatprep.mubr.f32.mxu0 0.0
      %1395 = vmatmul.mubr.f32.gmra.mrb[0].mxu0 %v1316
      %v1396 = vpop.f32.mrb[0].mxu0
      %v1397 = vadd.f32 0.0, %v1396
      %v1398 = vpop.f32.mrb[0].mxu0
      %1399 = vmatprep.mubr.f32.mxu0 0.0
      %1400 = vmatmul.mubr.f32.gmra.mrb[0].mxu0 %v1319
      %v1401 = vpop.f32.mrb[0].mxu0
      %v1402 = vadd.f32 0.0, %v1401
      %v1403 = vpop.f32.mrb[0].mxu0
      %1404 = vmatprep.mubr.f32.mxu0 0.0
      %1405 = vmatmul.mubr.f32.gmra.mrb[0].mxu0 %v1322
      %v1406 = vpop.f32.mrb[0].mxu0
      %v1407 = vadd.f32 0.0, %v1406
      %v1408 = vpop.f32.mrb[0].mxu0
      %1409 = vmatprep.mubr.f32.mxu0 0.0
      %1410 = vmatmul.mubr.f32.gmra.mrb[0].mxu0 %v1325
      %v1411 = vpop.f32.mrb[0].mxu0
      %v1412 = vadd.f32 0.0, %v1411
      %v1413 = vpop.f32.mrb[0].mxu0
      %1414 = vdwg.mxu0
      %v1416 = vsel %vm1142, %v1235, 0
      %v1419 = vsel %vm1142, %v1236, 0
      %v1422 = vsel %vm1142, %v1237, 0
      %v1425 = vsel %vm1142, %v1238, 0
      %v1428 = vsel %vm1142, %v1182, 0
      %1430 = vmatprep.subr.mxu0 0.0
      %1431 = vmatpush1.xpose.msra.mxu0 %v1428
      %1432 = vmatprep.subr.mxu0 0.0
      %1433 = vmatpush1.xpose.msra.mxu0 0.0
      %1434 = vmatprep.subr.mxu0 0.0
      %1435 = vmatpush1.xpose.msra.mxu0 0.0
      %1436 = vmatprep.subr.mxu0 0.0
      %1437 = vmatpush1.xpose.msra.mxu0 0.0
      %1438 = vmatprep.subr.mxu0 0.0
      %1439 = vmatpush1.xpose.msra.mxu0 0.0
      %1440 = vmatprep.subr.mxu0 0.0
      %1441 = vmatpush1.xpose.msra.mxu0 0.0
      %1442 = vmatprep.subr.mxu0 0.0
      %1443 = vmatpush1.xpose.msra.mxu0 0.0
      %1444 = vmatprep.subr.mxu0 0.0
      %1445 = vmatpush1.xpose.msra.mxu0 0.0
      %1446 = vmatprep.subr.mxu0 0.0
      %1447 = vmatpush1.xpose.msra.mxu0 0.0
      %1448 = vmatprep.subr.mxu0 0.0
      %1449 = vmatpush1.xpose.msra.mxu0 0.0
      %1450 = vmatprep.subr.mxu0 0.0
      %1451 = vmatpush1.xpose.msra.mxu0 0.0
      %1452 = vmatprep.subr.mxu0 0.0
      %1453 = vmatpush1.xpose.msra.mxu0 0.0
      %1454 = vmatprep.subr.mxu0 0.0
      %1455 = vmatpush1.xpose.msra.mxu0 0.0
      %1456 = vmatprep.subr.mxu0 0.0
      %1457 = vmatpush1.xpose.msra.mxu0 0.0
      %1458 = vmatprep.subr.mxu0 0.0
      %1459 = vmatpush1.xpose.msra.mxu0 0.0
      %1460 = vmatprep.subr.mxu0 0.0
      %1461 = vmatpush1.xpose.msra.mxu0 0.0
      %1462 = vmatprep.subr.mxu0 0.0
      %1463 = vmatpush1.xpose.msra.mxu0 0.0
      %1464 = vmatprep.subr.mxu0 0.0
      %1465 = vmatpush1.xpose.msra.mxu0 0.0
      %1466 = vmatprep.subr.mxu0 0.0
      %1467 = vmatpush1.xpose.msra.mxu0 0.0
      %1468 = vmatprep.subr.mxu0 0.0
      %1469 = vmatpush1.xpose.msra.mxu0 0.0
      %1470 = vmatprep.subr.mxu0 0.0
      %1471 = vmatpush1.xpose.msra.mxu0 0.0
      %1472 = vmatprep.subr.mxu0 0.0
      %1473 = vmatpush1.xpose.msra.mxu0 0.0
      %1474 = vmatprep.subr.mxu0 0.0
      %1475 = vmatpush1.xpose.msra.mxu0 0.0
      %1476 = vmatprep.subr.mxu0 0.0
      %1477 = vmatpush1.xpose.msra.mxu0 0.0
      %1478 = vmatprep.subr.mxu0 0.0
      %1479 = vmatpush1.xpose.msra.mxu0 0.0
      %1480 = vmatprep.subr.mxu0 0.0
      %1481 = vmatpush1.xpose.msra.mxu0 0.0
      %1482 = vmatprep.subr.mxu0 0.0
      %1483 = vmatpush1.xpose.msra.mxu0 0.0
      %1484 = vmatprep.subr.mxu0 0.0
      %1485 = vmatpush1.xpose.msra.mxu0 0.0
      %1486 = vmatprep.subr.mxu0 0.0
      %1487 = vmatpush1.xpose.msra.mxu0 0.0
      %1488 = vmatprep.subr.mxu0 0.0
      %1489 = vmatpush1.xpose.msra.mxu0 0.0
      %1490 = vmatprep.subr.mxu0 0.0
      %1491 = vmatpush1.xpose.msra.mxu0 0.0
      %1492 = vmatprep.subr.mxu0 0.0
      %1493 = vmatpush1.xpose.msra.mxu0 0.0
      %1494 = vmatprep.mubr.f32.mxu0 0.0
      %1495 = vmatmul.mubr.f32.gmra.mrb[0].mxu0 %v1416
      %v1496 = vpop.f32.mrb[0].mxu0
      %v1497 = vadd.f32 0.0, %v1496
      %v1498 = vpop.f32.mrb[0].mxu0
      %1499 = vmatprep.mubr.f32.mxu0 0.0
      %1500 = vmatmul.mubr.f32.gmra.mrb[0].mxu0 %v1419
      %v1501 = vpop.f32.mrb[0].mxu0
      %v1502 = vadd.f32 0.0, %v1501
      %v1503 = vpop.f32.mrb[0].mxu0
      %1504 = vmatprep.mubr.f32.mxu0 0.0
      %1505 = vmatmul.mubr.f32.gmra.mrb[0].mxu0 %v1422
      %v1506 = vpop.f32.mrb[0].mxu0
      %v1507 = vadd.f32 0.0, %v1506
      %v1508 = vpop.f32.mrb[0].mxu0
      %1509 = vmatprep.mubr.f32.mxu0 0.0
      %1510 = vmatmul.mubr.f32.gmra.mrb[0].mxu0 %v1425
      %v1511 = vpop.f32.mrb[0].mxu0
      %v1512 = vadd.f32 0.0, %v1511
      %v1513 = vpop.f32.mrb[0].mxu0
      %1514 = vdwg.mxu0
      %v1516 = vsel %vm1142, %v1267, 0
      %v1519 = vsel %vm1142, %v1268, 0
      %v1522 = vsel %vm1142, %v1269, 0
      %v1525 = vsel %vm1142, %v1270, 0
      %v1528 = vsel %vm1142, %v1184, 0
      %1530 = vmatprep.subr.mxu0 0.0
      %1531 = vmatpush1.xpose.msra.mxu0 %v1528
      %1532 = vmatprep.subr.mxu0 0.0
      %1533 = vmatpush1.xpose.msra.mxu0 0.0
      %1534 = vmatprep.subr.mxu0 0.0
      %1535 = vmatpush1.xpose.msra.mxu0 0.0
      %1536 = vmatprep.subr.mxu0 0.0
      %1537 = vmatpush1.xpose.msra.mxu0 0.0
      %1538 = vmatprep.subr.mxu0 0.0
      %1539 = vmatpush1.xpose.msra.mxu0 0.0
      %1540 = vmatprep.subr.mxu0 0.0
      %1541 = vmatpush1.xpose.msra.mxu0 0.0
      %1542 = vmatprep.subr.mxu0 0.0
      %1543 = vmatpush1.xpose.msra.mxu0 0.0
      %1544 = vmatprep.subr.mxu0 0.0
      %1545 = vmatpush1.xpose.msra.mxu0 0.0
      %1546 = vmatprep.subr.mxu0 0.0
      %1547 = vmatpush1.xpose.msra.mxu0 0.0
      %1548 = vmatprep.subr.mxu0 0.0
      %1549 = vmatpush1.xpose.msra.mxu0 0.0
      %1550 = vmatprep.subr.mxu0 0.0
      %1551 = vmatpush1.xpose.msra.mxu0 0.0
      %1552 = vmatprep.subr.mxu0 0.0
      %1553 = vmatpush1.xpose.msra.mxu0 0.0
      %1554 = vmatprep.subr.mxu0 0.0
      %1555 = vmatpush1.xpose.msra.mxu0 0.0
      %1556 = vmatprep.subr.mxu0 0.0
      %1557 = vmatpush1.xpose.msra.mxu0 0.0
      %1558 = vmatprep.subr.mxu0 0.0
      %1559 = vmatpush1.xpose.msra.mxu0 0.0
      %1560 = vmatprep.subr.mxu0 0.0
      %1561 = vmatpush1.xpose.msra.mxu0 0.0
      %1562 = vmatprep.subr.mxu0 0.0
      %1563 = vmatpush1.xpose.msra.mxu0 0.0
      %1564 = vmatprep.subr.mxu0 0.0
      %1565 = vmatpush1.xpose.msra.mxu0 0.0
      %1566 = vmatprep.subr.mxu0 0.0
      %1567 = vmatpush1.xpose.msra.mxu0 0.0
      %1568 = vmatprep.subr.mxu0 0.0
      %1569 = vmatpush1.xpose.msra.mxu0 0.0
      %1570 = vmatprep.subr.mxu0 0.0
      %1571 = vmatpush1.xpose.msra.mxu0 0.0
      %1572 = vmatprep.subr.mxu0 0.0
      %1573 = vmatpush1.xpose.msra.mxu0 0.0
      %1574 = vmatprep.subr.mxu0 0.0
      %1575 = vmatpush1.xpose.msra.mxu0 0.0
      %1576 = vmatprep.subr.mxu0 0.0
      %1577 = vmatpush1.xpose.msra.mxu0 0.0
      %1578 = vmatprep.subr.mxu0 0.0
      %1579 = vmatpush1.xpose.msra.mxu0 0.0
      %1580 = vmatprep.subr.mxu0 0.0
      %1581 = vmatpush1.xpose.msra.mxu0 0.0
      %1582 = vmatprep.subr.mxu0 0.0
      %1583 = vmatpush1.xpose.msra.mxu0 0.0
      %1584 = vmatprep.subr.mxu0 0.0
      %1585 = vmatpush1.xpose.msra.mxu0 0.0
      %1586 = vmatprep.subr.mxu0 0.0
      %1587 = vmatpush1.xpose.msra.mxu0 0.0
      %1588 = vmatprep.subr.mxu0 0.0
      %1589 = vmatpush1.xpose.msra.mxu0 0.0
      %1590 = vmatprep.subr.mxu0 0.0
      %1591 = vmatpush1.xpose.msra.mxu0 0.0
      %1592 = vmatprep.subr.mxu0 0.0
      %1593 = vmatpush1.xpose.msra.mxu0 0.0
      %1594 = vmatprep.mubr.f32.mxu0 0.0
      %1595 = vmatmul.mubr.f32.gmra.mrb[0].mxu0 %v1516
      %v1596 = vpop.f32.mrb[0].mxu0
      %v1597 = vadd.f32 0.0, %v1596
      %v1598 = vpop.f32.mrb[0].mxu0
      %1599 = vmatprep.mubr.f32.mxu0 0.0
      %1600 = vmatmul.mubr.f32.gmra.mrb[0].mxu0 %v1519
      %v1601 = vpop.f32.mrb[0].mxu0
      %v1602 = vadd.f32 0.0, %v1601
      %v1603 = vpop.f32.mrb[0].mxu0
      %1604 = vmatprep.mubr.f32.mxu0 0.0
      %1605 = vmatmul.mubr.f32.gmra.mrb[0].mxu0 %v1522
      %v1606 = vpop.f32.mrb[0].mxu0
      %v1607 = vadd.f32 0.0, %v1606
      %v1608 = vpop.f32.mrb[0].mxu0
      %1609 = vmatprep.mubr.f32.mxu0 0.0
      %1610 = vmatmul.mubr.f32.gmra.mrb[0].mxu0 %v1525
      %v1611 = vpop.f32.mrb[0].mxu0
      %v1612 = vadd.f32 0.0, %v1611
      %v1613 = vpop.f32.mrb[0].mxu0
      %1614 = vdwg.mxu0
      %v1616 = vsel %vm1142, %v1299, 0
      %v1619 = vsel %vm1142, %v1300, 0
      %v1622 = vsel %vm1142, %v1301, 0
      %v1625 = vsel %vm1142, %v1302, 0
      %v1628 = vsel %vm1142, %v1186, 0
      %1630 = vmatprep.subr.mxu0 0.0
      %1631 = vmatpush1.xpose.msra.mxu0 %v1628
      %1632 = vmatprep.subr.mxu0 0.0
      %1633 = vmatpush1.xpose.msra.mxu0 0.0
      %1634 = vmatprep.subr.mxu0 0.0
      %1635 = vmatpush1.xpose.msra.mxu0 0.0
      %1636 = vmatprep.subr.mxu0 0.0
      %1637 = vmatpush1.xpose.msra.mxu0 0.0
      %1638 = vmatprep.subr.mxu0 0.0
      %1639 = vmatpush1.xpose.msra.mxu0 0.0
      %1640 = vmatprep.subr.mxu0 0.0
      %1641 = vmatpush1.xpose.msra.mxu0 0.0
      %1642 = vmatprep.subr.mxu0 0.0
      %1643 = vmatpush1.xpose.msra.mxu0 0.0
      %1644 = vmatprep.subr.mxu0 0.0
      %1645 = vmatpush1.xpose.msra.mxu0 0.0
      %1646 = vmatprep.subr.mxu0 0.0
      %1647 = vmatpush1.xpose.msra.mxu0 0.0
      %1648 = vmatprep.subr.mxu0 0.0
      %1649 = vmatpush1.xpose.msra.mxu0 0.0
      %1650 = vmatprep.subr.mxu0 0.0
      %1651 = vmatpush1.xpose.msra.mxu0 0.0
      %1652 = vmatprep.subr.mxu0 0.0
      %1653 = vmatpush1.xpose.msra.mxu0 0.0
      %1654 = vmatprep.subr.mxu0 0.0
      %1655 = vmatpush1.xpose.msra.mxu0 0.0
      %1656 = vmatprep.subr.mxu0 0.0
      %1657 = vmatpush1.xpose.msra.mxu0 0.0
      %1658 = vmatprep.subr.mxu0 0.0
      %1659 = vmatpush1.xpose.msra.mxu0 0.0
      %1660 = vmatprep.subr.mxu0 0.0
      %1661 = vmatpush1.xpose.msra.mxu0 0.0
      %1662 = vmatprep.subr.mxu0 0.0
      %1663 = vmatpush1.xpose.msra.mxu0 0.0
      %1664 = vmatprep.subr.mxu0 0.0
      %1665 = vmatpush1.xpose.msra.mxu0 0.0
      %1666 = vmatprep.subr.mxu0 0.0
      %1667 = vmatpush1.xpose.msra.mxu0 0.0
      %1668 = vmatprep.subr.mxu0 0.0
      %1669 = vmatpush1.xpose.msra.mxu0 0.0
      %1670 = vmatprep.subr.mxu0 0.0
      %1671 = vmatpush1.xpose.msra.mxu0 0.0
      %1672 = vmatprep.subr.mxu0 0.0
      %1673 = vmatpush1.xpose.msra.mxu0 0.0
      %1674 = vmatprep.subr.mxu0 0.0
      %1675 = vmatpush1.xpose.msra.mxu0 0.0
      %1676 = vmatprep.subr.mxu0 0.0
      %1677 = vmatpush1.xpose.msra.mxu0 0.0
      %1678 = vmatprep.subr.mxu0 0.0
      %1679 = vmatpush1.xpose.msra.mxu0 0.0
      %1680 = vmatprep.subr.mxu0 0.0
      %1681 = vmatpush1.xpose.msra.mxu0 0.0
      %1682 = vmatprep.subr.mxu0 0.0
      %1683 = vmatpush1.xpose.msra.mxu0 0.0
      %1684 = vmatprep.subr.mxu0 0.0
      %1685 = vmatpush1.xpose.msra.mxu0 0.0
      %1686 = vmatprep.subr.mxu0 0.0
      %1687 = vmatpush1.xpose.msra.mxu0 0.0
      %1688 = vmatprep.subr.mxu0 0.0
      %1689 = vmatpush1.xpose.msra.mxu0 0.0
      %1690 = vmatprep.subr.mxu0 0.0
      %1691 = vmatpush1.xpose.msra.mxu0 0.0
      %1692 = vmatprep.subr.mxu0 0.0
      %1693 = vmatpush1.xpose.msra.mxu0 0.0
      %1694 = vmatprep.mubr.f32.mxu0 0.0
      %1695 = vmatmul.mubr.f32.gmra.mrb[0].mxu0 %v1616
      %v1696 = vpop.f32.mrb[0].mxu0
      %v1697 = vadd.f32 0.0, %v1696
      %v1698 = vpop.f32.mrb[0].mxu0
      %1699 = vmatprep.mubr.f32.mxu0 0.0
      %1700 = vmatmul.mubr.f32.gmra.mrb[0].mxu0 %v1619
      %v1701 = vpop.f32.mrb[0].mxu0
      %v1702 = vadd.f32 0.0, %v1701
      %v1703 = vpop.f32.mrb[0].mxu0
      %1704 = vmatprep.mubr.f32.mxu0 0.0
      %1705 = vmatmul.mubr.f32.gmra.mrb[0].mxu0 %v1622
      %v1706 = vpop.f32.mrb[0].mxu0
      %v1707 = vadd.f32 0.0, %v1706
      %v1708 = vpop.f32.mrb[0].mxu0
      %1709 = vmatprep.mubr.f32.mxu0 0.0
      %1710 = vmatmul.mubr.f32.gmra.mrb[0].mxu0 %v1625
      %v1711 = vpop.f32.mrb[0].mxu0
      %v1712 = vadd.f32 0.0, %v1711
      %v1713 = vpop.f32.mrb[0].mxu0
      %1714 = vdwg.mxu0
      %1715 = vxpose.xlu0.b32.start [1/16] %v1397, 128
      %1716 = vxpose.xlu0.b32.cont [2/16] %v1402, 128
      %1717 = vxpose.xlu0.b32.cont [3/16] %v1407, 128
      %1718 = vxpose.xlu0.b32.cont [4/16] %v1412, 128
      %1719 = vxpose.xlu0.b32.cont [5/16] 0.0, 128
      %1720 = vxpose.xlu0.b32.cont [6/16] 0.0, 128
      %1721 = vxpose.xlu0.b32.cont [7/16] 0.0, 128
      %1722 = vxpose.xlu0.b32.cont [8/16] 0.0, 128
      %1723 = vxpose.xlu0.b32.cont [9/16] 0.0, 128
      %1724 = vxpose.xlu0.b32.cont [10/16] 0.0, 128
      %1725 = vxpose.xlu0.b32.cont [11/16] 0.0, 128
      %1726 = vxpose.xlu0.b32.cont [12/16] 0.0, 128
      %1727 = vxpose.xlu0.b32.cont [13/16] 0.0, 128
      %1728 = vxpose.xlu0.b32.cont [14/16] 0.0, 128
      %1729 = vxpose.xlu0.b32.cont [15/16] 0.0, 128
      %1730 = vxpose.xlu0.b32.end [16/16] 0.0, 128
      %v1731 = vpop.trf.xlu0
      %v1732 = vpop.trf.xlu0
      %v1733 = vpop.trf.xlu0
      %v1734 = vpop.trf.xlu0
      %v1735 = vpop.trf.xlu0
      %v1736 = vpop.trf.xlu0
      %v1737 = vpop.trf.xlu0
      %v1738 = vpop.trf.xlu0
      %v1739 = vpop.trf.xlu0
      %v1740 = vpop.trf.xlu0
      %v1741 = vpop.trf.xlu0
      %v1742 = vpop.trf.xlu0
      %v1743 = vpop.trf.xlu0
      %v1744 = vpop.trf.xlu0
      %v1745 = vpop.trf.xlu0
      %v1746 = vpop.trf.xlu0
      %1747 = vxpose.xlu0.b32.start [1/16] %v1497, 128
      %1748 = vxpose.xlu0.b32.cont [2/16] %v1502, 128
      %1749 = vxpose.xlu0.b32.cont [3/16] %v1507, 128
      %1750 = vxpose.xlu0.b32.cont [4/16] %v1512, 128
      %1751 = vxpose.xlu0.b32.cont [5/16] 0.0, 128
      %1752 = vxpose.xlu0.b32.cont [6/16] 0.0, 128
      %1753 = vxpose.xlu0.b32.cont [7/16] 0.0, 128
      %1754 = vxpose.xlu0.b32.cont [8/16] 0.0, 128
      %1755 = vxpose.xlu0.b32.cont [9/16] 0.0, 128
      %1756 = vxpose.xlu0.b32.cont [10/16] 0.0, 128
      %1757 = vxpose.xlu0.b32.cont [11/16] 0.0, 128
      %1758 = vxpose.xlu0.b32.cont [12/16] 0.0, 128
      %1759 = vxpose.xlu0.b32.cont [13/16] 0.0, 128
      %1760 = vxpose.xlu0.b32.cont [14/16] 0.0, 128
      %1761 = vxpose.xlu0.b32.cont [15/16] 0.0, 128
      %1762 = vxpose.xlu0.b32.end [16/16] 0.0, 128
      %v1763 = vpop.trf.xlu0
      %v1764 = vpop.trf.xlu0
      %v1765 = vpop.trf.xlu0
      %v1766 = vpop.trf.xlu0
      %v1767 = vpop.trf.xlu0
      %v1768 = vpop.trf.xlu0
      %v1769 = vpop.trf.xlu0
      %v1770 = vpop.trf.xlu0
      %v1771 = vpop.trf.xlu0
      %v1772 = vpop.trf.xlu0
      %v1773 = vpop.trf.xlu0
      %v1774 = vpop.trf.xlu0
      %v1775 = vpop.trf.xlu0
      %v1776 = vpop.trf.xlu0
      %v1777 = vpop.trf.xlu0
      %v1778 = vpop.trf.xlu0
      %1779 = vxpose.xlu0.b32.start [1/16] %v1597, 128
      %1780 = vxpose.xlu0.b32.cont [2/16] %v1602, 128
      %1781 = vxpose.xlu0.b32.cont [3/16] %v1607, 128
      %1782 = vxpose.xlu0.b32.cont [4/16] %v1612, 128
      %1783 = vxpose.xlu0.b32.cont [5/16] 0.0, 128
      %1784 = vxpose.xlu0.b32.cont [6/16] 0.0, 128
      %1785 = vxpose.xlu0.b32.cont [7/16] 0.0, 128
      %1786 = vxpose.xlu0.b32.cont [8/16] 0.0, 128
      %1787 = vxpose.xlu0.b32.cont [9/16] 0.0, 128
      %1788 = vxpose.xlu0.b32.cont [10/16] 0.0, 128
      %1789 = vxpose.xlu0.b32.cont [11/16] 0.0, 128
      %1790 = vxpose.xlu0.b32.cont [12/16] 0.0, 128
      %1791 = vxpose.xlu0.b32.cont [13/16] 0.0, 128
      %1792 = vxpose.xlu0.b32.cont [14/16] 0.0, 128
      %1793 = vxpose.xlu0.b32.cont [15/16] 0.0, 128
      %1794 = vxpose.xlu0.b32.end [16/16] 0.0, 128
      %v1795 = vpop.trf.xlu0
      %v1796 = vpop.trf.xlu0
      %v1797 = vpop.trf.xlu0
      %v1798 = vpop.trf.xlu0
      %v1799 = vpop.trf.xlu0
      %v1800 = vpop.trf.xlu0
      %v1801 = vpop.trf.xlu0
      %v1802 = vpop.trf.xlu0
      %v1803 = vpop.trf.xlu0
      %v1804 = vpop.trf.xlu0
      %v1805 = vpop.trf.xlu0
      %v1806 = vpop.trf.xlu0
      %v1807 = vpop.trf.xlu0
      %v1808 = vpop.trf.xlu0
      %v1809 = vpop.trf.xlu0
      %v1810 = vpop.trf.xlu0
      %1811 = vxpose.xlu0.b32.start [1/16] %v1697, 128
      %1812 = vxpose.xlu0.b32.cont [2/16] %v1702, 128
      %1813 = vxpose.xlu0.b32.cont [3/16] %v1707, 128
      %1814 = vxpose.xlu0.b32.cont [4/16] %v1712, 128
      %1815 = vxpose.xlu0.b32.cont [5/16] 0.0, 128
      %1816 = vxpose.xlu0.b32.cont [6/16] 0.0, 128
      %1817 = vxpose.xlu0.b32.cont [7/16] 0.0, 128
      %1818 = vxpose.xlu0.b32.cont [8/16] 0.0, 128
      %1819 = vxpose.xlu0.b32.cont [9/16] 0.0, 128
      %1820 = vxpose.xlu0.b32.cont [10/16] 0.0, 128
      %1821 = vxpose.xlu0.b32.cont [11/16] 0.0, 128
      %1822 = vxpose.xlu0.b32.cont [12/16] 0.0, 128
      %1823 = vxpose.xlu0.b32.cont [13/16] 0.0, 128
      %1824 = vxpose.xlu0.b32.cont [14/16] 0.0, 128
      %1825 = vxpose.xlu0.b32.cont [15/16] 0.0, 128
      %1826 = vxpose.xlu0.b32.end [16/16] 0.0, 128
      %v1827 = vpop.trf.xlu0
      %v1828 = vpop.trf.xlu0
      %v1829 = vpop.trf.xlu0
      %v1830 = vpop.trf.xlu0
      %v1831 = vpop.trf.xlu0
      %v1832 = vpop.trf.xlu0
      %v1833 = vpop.trf.xlu0
      %v1834 = vpop.trf.xlu0
      %v1835 = vpop.trf.xlu0
      %v1836 = vpop.trf.xlu0
      %v1837 = vpop.trf.xlu0
      %v1838 = vpop.trf.xlu0
      %v1839 = vpop.trf.xlu0
      %v1840 = vpop.trf.xlu0
      %v1841 = vpop.trf.xlu0
      %v1842 = vpop.trf.xlu0
      %v1843 = vcombine.low %v1731, %v1795
      %v1844 = vcombine.high %v1731, %v1795
      %v1846 = vunpack.c.l.s4 1983009808
      %v1847 = vunpack.c.0.s8 %v1846
      %v1848 = vlaneseq
      %v1849 = vshrl.u32 %v1848, 7
      %v1850 = vsub.s32 %v1847, %v1849
      %v1851 = vrot.slane %v1843, %v1850
      %v1853 = vunpack.c.l.s4 1983009808
      %v1854 = vunpack.c.0.s8 %v1853
      %v1855 = vlaneseq
      %v1856 = vshrl.u32 %v1855, 7
      %v1857 = vsub.s32 %v1854, %v1856
      %v1858 = vrot.slane %v1844, %v1857
      %v1859 = vcombine.low %v1763, %v1827
      %v1860 = vcombine.high %v1763, %v1827
      %v1862 = vunpack.c.l.s4 1983009808
      %v1863 = vunpack.c.0.s8 %v1862
      %v1864 = vlaneseq
      %v1865 = vshrl.u32 %v1864, 7
      %v1866 = vsub.s32 %v1863, %v1865
      %v1867 = vrot.slane %v1859, %v1866
      %v1869 = vunpack.c.l.s4 1983009808
      %v1870 = vunpack.c.0.s8 %v1869
      %v1871 = vlaneseq
      %v1872 = vshrl.u32 %v1871, 7
      %v1873 = vsub.s32 %v1870, %v1872
      %v1874 = vrot.slane %v1860, %v1873
      %v1875 = vcombine.low %v1851, %v1867
      %v1876 = vcombine.high %v1851, %v1867
      %v1878 = vunpack.c.l.s4 1934713408
      %v1879 = vunpack.c.0.s8 %v1878
      %v1880 = vlaneseq
      %v1881 = vshrl.u32 %v1880, 7
      %v1882 = vsub.s32 %v1879, %v1881
      %v1883 = vrot.slane %v1875, %v1882
      %v1885 = vunpack.c.l.s4 1934713408
      %v1886 = vunpack.c.0.s8 %v1885
      %v1887 = vlaneseq
      %v1888 = vshrl.u32 %v1887, 7
      %v1889 = vsub.s32 %v1886, %v1888
      %v1890 = vrot.slane %v1876, %v1889
      %v1891 = vcombine.low %v1858, %v1874
      %v1892 = vcombine.high %v1858, %v1874
      %v1894 = vunpack.c.l.s4 1934713408
      %v1895 = vunpack.c.0.s8 %v1894
      %v1896 = vlaneseq
      %v1897 = vshrl.u32 %v1896, 7
      %v1898 = vsub.s32 %v1895, %v1897
      %v1899 = vrot.slane %v1891, %v1898
      %v1901 = vunpack.c.l.s4 1934713408
      %v1902 = vunpack.c.0.s8 %v1901
      %v1903 = vlaneseq
      %v1904 = vshrl.u32 %v1903, 7
      %v1905 = vsub.s32 %v1902, %v1904
      %v1906 = vrot.slane %v1892, %v1905
      %v1907 = vcombine.high %v1883, 0.0
      %v1908 = vcombine.high %v1890, 0.0
      %v1909 = vcombine.high %v1899, 0.0
      %v1910 = vcombine.high %v1906, 0.0
      %v1911 = vcombine.low %v1883, %v1890
      %v1913 = vunpack.c.l.s4 1983009808
      %v1914 = vunpack.c.0.s8 %v1913
      %v1915 = vlaneseq
      %v1916 = vshrl.u32 %v1915, 7
      %v1917 = vsub.s32 %v1914, %v1916
      %v1918 = vrot.slane %v1911, %v1917
      %v1919 = vcombine.low %v1907, %v1908
      %v1921 = vunpack.c.l.s4 1983009808
      %v1922 = vunpack.c.0.s8 %v1921
      %v1923 = vlaneseq
      %v1924 = vshrl.u32 %v1923, 7
      %v1925 = vsub.s32 %v1922, %v1924
      %v1926 = vrot.slane %v1919, %v1925
      %v1927 = vcombine.low %v1899, %v1906
      %v1929 = vunpack.c.l.s4 1983009808
      %v1930 = vunpack.c.0.s8 %v1929
      %v1931 = vlaneseq
      %v1932 = vshrl.u32 %v1931, 7
      %v1933 = vsub.s32 %v1930, %v1932
      %v1934 = vrot.slane %v1927, %v1933
      %v1935 = vcombine.low %v1909, %v1910
      %v1937 = vunpack.c.l.s4 1983009808
      %v1938 = vunpack.c.0.s8 %v1937
      %v1939 = vlaneseq
      %v1940 = vshrl.u32 %v1939, 7
      %v1941 = vsub.s32 %v1938, %v1940
      %v1942 = vrot.slane %v1935, %v1941
      %v1943 = vcombine.low %v1918, %v1926
      %v1944 = vcombine.high %v1918, %v1926
      %v1946 = vunpack.c.l.s4 1934713408
      %v1947 = vunpack.c.0.s8 %v1946
      %v1948 = vlaneseq
      %v1949 = vshrl.u32 %v1948, 7
      %v1950 = vsub.s32 %v1947, %v1949
      %v1951 = vrot.slane %v1943, %v1950
      %v1953 = vunpack.c.l.s4 1934713408
      %v1954 = vunpack.c.0.s8 %v1953
      %v1955 = vlaneseq
      %v1956 = vshrl.u32 %v1955, 7
      %v1957 = vsub.s32 %v1954, %v1956
      %v1958 = vrot.slane %v1944, %v1957
      %v1959 = vcombine.low %v1934, %v1942
      %v1960 = vcombine.high %v1934, %v1942
      %v1962 = vunpack.c.l.s4 1934713408
      %v1963 = vunpack.c.0.s8 %v1962
      %v1964 = vlaneseq
      %v1965 = vshrl.u32 %v1964, 7
      %v1966 = vsub.s32 %v1963, %v1965
      %v1967 = vrot.slane %v1959, %v1966
      %v1969 = vunpack.c.l.s4 1934713408
      %v1970 = vunpack.c.0.s8 %v1969
      %v1971 = vlaneseq
      %v1972 = vshrl.u32 %v1971, 7
      %v1973 = vsub.s32 %v1970, %v1972
      %v1974 = vrot.slane %v1960, %v1973
      %v1975 = vcombine.low %v1951, %v1967
      %v1976 = vcombine.high %v1951, %v1967
      %v1977 = vcombine.low %v1958, %v1974
      %v1978 = vcombine.high %v1958, %v1974
      %1980 = vrot.lane.b32.xlu0 %v1976, 32
      %v1981 = vpop.permute.xlu0 %1980
      %1984 = vrot.lane.b32.xlu0 %v1977, 64
      %v1985 = vpop.permute.xlu0 %1984
      %1988 = vrot.lane.b32.xlu0 %v1978, 96
      %v1989 = vpop.permute.xlu0 %1988
      %v1991 = vsel %vm853, %v1975, %v1981
      %vm1992 = vcmask 523264
      %v1993 = vsel %vm1992, %v1991, %v1985
      %vm1994 = vcmask 785408
      %v1995 = vsel %vm1994, %v1993, %v1989
      %v1996 = vpack.c.bf16 %v1995, %v1995
      %v1997 = vld [vmem:[%s6] sm:$0xf]
      %v1998 = vld [vmem:[%s6 + $0x4] sm:$0xf]
      %v1999 = vld [vmem:[%s6 + $0x8] sm:$0xf]
      %v2000 = vld [vmem:[%s6 + $0xc] sm:$0xf]
      %v2001 = vld [vmem:[%s6 + $0x10] sm:$0xf]
      %v2002 = vld [vmem:[%s6 + $0x14] sm:$0xf]
      %v2003 = vld [vmem:[%s6 + $0x18] sm:$0xf]
      %v2004 = vld [vmem:[%s6 + $0x1c] sm:$0xf]
      %v2005 = vld [vmem:[%s6 + $0x20] sm:$0xf]
      %v2006 = vld [vmem:[%s6 + $0x24] sm:$0xf]
      %v2007 = vld [vmem:[%s6 + $0x28] sm:$0xf]
      %v2008 = vld [vmem:[%s6 + $0x2c] sm:$0xf]
      %v2009 = vld [vmem:[%s6 + $0x30] sm:$0xf]
      %v2010 = vld [vmem:[%s6 + $0x34] sm:$0xf]
      %v2011 = vld [vmem:[%s6 + $0x38] sm:$0xf]
      %v2012 = vld [vmem:[%s6 + $0x3c] sm:$0xf]
      %v2013 = vld [vmem:[%s7] sm:$0x1]
      %v2015 = vlaneseq
      %v2016 = vshrl.u32 %v2015, 7
      %v2017 = vsub.s32 0, %v2016
      %v2018 = vrot.slane %v2013, %v2017
      %v2036 = vunpack.c.l.b16 %v1997
      %v2037 = vunpack.c.l.b16 %v1998
      %v2038 = vunpack.c.l.b16 %v1999
      %v2039 = vunpack.c.l.b16 %v2000
      %v2040 = vunpack.c.l.b16 %v2001
      %v2041 = vunpack.c.l.b16 %v2002
      %v2042 = vunpack.c.l.b16 %v2003
      %v2043 = vunpack.c.l.b16 %v2004
      %v2044 = vunpack.c.l.b16 %v2005
      %v2045 = vunpack.c.l.b16 %v2006
      %v2046 = vunpack.c.l.b16 %v2007
      %v2047 = vunpack.c.l.b16 %v2008
      %v2048 = vunpack.c.l.b16 %v2009
      %v2049 = vunpack.c.l.b16 %v2010
      %v2050 = vunpack.c.l.b16 %v2011
      %v2051 = vunpack.c.l.b16 %v2012
      %v2052 = vpack.c.b16 %v2037, %v2036
      %v2053 = vpack.c.b16 %v2039, %v2038
      %v2054 = vpack.c.b16 %v2041, %v2040
      %v2055 = vpack.c.b16 %v2043, %v2042
      %v2056 = vpack.c.b16 %v2045, %v2044
      %v2057 = vpack.c.b16 %v2047, %v2046
      %v2058 = vpack.c.b16 %v2049, %v2048
      %v2059 = vpack.c.b16 %v2051, %v2050
      %2068 = vmatprep.subr.bf16.mxu0 0
      %2069 = vmatpush1.bf16.msra.mxu0 %v2052
      %2070 = vmatprep.subr.bf16.mxu0 0
      %2071 = vmatpush1.bf16.msra.mxu0 %v2053
      %2072 = vmatprep.subr.bf16.mxu0 0
      %2073 = vmatpush1.bf16.msra.mxu0 %v2054
      %2074 = vmatprep.subr.bf16.mxu0 0
      %2075 = vmatpush1.bf16.msra.mxu0 %v2055
      %2076 = vmatprep.subr.bf16.mxu0 0
      %2077 = vmatpush1.bf16.msra.mxu0 %v2056
      %2078 = vmatprep.subr.bf16.mxu0 0
      %2079 = vmatpush1.bf16.msra.mxu0 %v2057
      %2080 = vmatprep.subr.bf16.mxu0 0
      %2081 = vmatpush1.bf16.msra.mxu0 %v2058
      %2082 = vmatprep.subr.bf16.mxu0 0
      %2083 = vmatpush1.bf16.msra.mxu0 %v2059
      %2084 = vmatprep.subr.bf16.mxu0 0
      %2085 = vmatpush1.bf16.msra.mxu0 0
      %2086 = vmatprep.subr.bf16.mxu0 0
      %2087 = vmatpush1.bf16.msra.mxu0 0
      %2088 = vmatprep.subr.bf16.mxu0 0
      %2089 = vmatpush1.bf16.msra.mxu0 0
      %2090 = vmatprep.subr.bf16.mxu0 0
      %2091 = vmatpush1.bf16.msra.mxu0 0
      %2092 = vmatprep.subr.bf16.mxu0 0
      %2093 = vmatpush1.bf16.msra.mxu0 0
      %2094 = vmatprep.subr.bf16.mxu0 0
      %2095 = vmatpush1.bf16.msra.mxu0 0
      %2096 = vmatprep.subr.bf16.mxu0 0
      %2097 = vmatpush1.bf16.msra.mxu0 0
      %2098 = vmatprep.subr.bf16.mxu0 0
      %2099 = vmatpush1.bf16.msra.mxu0 0
      %2100 = vmatprep.mubr.bf16.mxu0 0
      %2101 = vmatmul.mubr.bf16.gmra.mrb[0].mxu0 %v1996
      %v2102 = vpop.f32.mrb[0].mxu0
      %v2103 = vadd.f32 %v2018, %v2102
      %v2104 = vpop.f32.mrb[0].mxu0
      %v2105 = vpop.f32.mrb[0].mxu0
      %v2106 = vpop.f32.mrb[0].mxu0
      %2107 = vdwg.mxu0
      %v2108 = vunpack.c.l.bf16 %v407
      %v2109 = vadd.f32 %v2108, %v2103
      %2110 = vadd.xlane.f32.xlu0 %v2109
      %v2111 = vpop.xlane.xlu0 %2110
      %v2112 = vrcp.pop 128.0
      %v2113 = vmul.f32 %v2111, %v2112
      %v2114 = vsub.f32 %v2109, %v2113
      %v2115 = vmul.f32 %v2114, %v2114
      %2116 = vadd.xlane.f32.xlu0 %v2115
      %v2117 = vpop.xlane.xlu0 %2116
      %v2118 = vmul.f32 %v2117, %v2112
      %v2119 = vadd.f32 %v2118, 1e-05
      %v2120 = vrsqrt.pop %v2119
      %v2121 = vmul.f32 %v2114, %v2120
      %v2122 = vld [vmem:[%s8] sm:$0x1]
      %v2124 = vlaneseq
      %v2125 = vshrl.u32 %v2124, 7
      %v2126 = vsub.s32 0, %v2125
      %v2127 = vrot.slane %v2122, %v2126
      %v2129 = vmul.f32 %v2121, %v2127
      %v2130 = vld [vmem:[%s9] sm:$0x1]
      %v2132 = vlaneseq
      %v2133 = vshrl.u32 %v2132, 7
      %v2134 = vsub.s32 0, %v2133
      %v2135 = vrot.slane %v2130, %v2134
      %v2137 = vadd.f32 %v2129, %v2135
      %v2138 = vpack.c.bf16 %v2137, %v2137
      %2139 = vst [vmem:[%s405] sm:$0xf] %v2138
      %p2140 = scmp.lt.s32.totalorder %s25, 1
      %s2141 = scalar_select %p2140, %s25, 1
      %p2142 = scmp.lt.s32.totalorder %s26, 0
      %s2143 = scalar_select %p2142, %s26, 0
      %s2144 = sadd.s32 %s2143, %s2141
      %s2145 = smul.addr %s2144, 4
      %s2146 = scalar_lea.vmem %s10, %s2145
      // Predicated region
      $region61: #{decoder_forward.8} parent=59 // pred_check
        %p2147 = pneg %p275
      $region62: #{decoder_forward.8} parent=59 // pred_check_branch
        %2149 = sbr.rel (%p2147) target = $region64
      $region63: #{decoder_forward.8} parent=59 // pred_region
        _
      $region64: #{decoder_forward.8} parent=59 // pred_fallthru
        _
    $region60: #{decoder_forward.8} parent=5 // pred_fallthru
      _
    %p2150 = scmp.le.s32.totalorder 2, %s16
    // Predicated region
    $region65: #{decoder_forward.8} parent=5 // pred_check
      %p2151 = pneg %p2150
    $region66: #{decoder_forward.8} parent=5 // pred_check_branch
      %2153 = sbr.rel (%p2151) target = $region68
    $region67: #{decoder_forward.8} parent=5 // pred_region
      %s2154 = ssub.s32 %s16, 2
      // Predicated region
      $region69: #{decoder_forward.8} parent=67 // pred_check
        %p2155 = pneg %p281
      $region70: #{decoder_forward.8} parent=67 // pred_check_branch
        %2157 = sbr.rel (%p2155) target = $region72
      $region71: #{decoder_forward.8} parent=67 // pred_region
        %p2158 = scmp.lt.s32.totalorder %s27, 1
        %s2159 = scalar_select %p2158, %s27, 1
        %p2160 = scmp.lt.s32.totalorder %s28, 0
        %s2161 = scalar_select %p2160, %s28, 0
        %s2162 = sadd.s32 %s2161, %s2159
        %s2163 = smul.addr %s2162, 4
        %s2164 = scalar_lea.vmem %s10, %s2163
      $region72: #{decoder_forward.8} parent=67 // pred_fallthru
        _
    $region68: #{decoder_forward.8} parent=5 // pred_fallthru
      _
  $region6: #{decoder_forward.8} parent=0 // loop_footer
    %s20 = sadd.s32 1, %s16
  $region7: #{decoder_forward.8} parent=0 // loop_footer_branch
    %15 = sbr.rel target = $region3
  $region8: #{decoder_forward.8} parent=0 // loop_exit
    _

// kernel: decoder_forward.13
$region0: #{decoder_forward.13}
  #allocation0 [shape = 'u32[]', space=smem, size = 0x4, offset = 0x4, fixed_abs, tag = 'smem constant byte address 0x4 - core index']
  #allocation1 [shape = 'u32[144,128]{1,0:T(1,128)}', space=vmem, size = 0x12000, scoped, tag = 'internal scratch']
  %s0 = inlined_call_operand.vmem [shape: bf16[16,128], index: 0, kind: input, shape index: {}]
  %s1 = inlined_call_operand.vmem [shape: f32[1,128], index: 1, kind: input, shape index: {}]
  %s2 = inlined_call_operand.vmem [shape: f32[1,128], index: 2, kind: input, shape index: {}]
  %s3 = inlined_call_operand.hbm [shape: f32[16,128], index: 3, kind: output, shape index: {}]
  %s4 = sld [smem:[#allocation0]]
  $region22: #{decoder_forward.13} parent=0
    _
  %s6 = ssub.s32 1, %s4
  %s7 = scalar_select 0, %s6, %s4
  $region1: #{decoder_forward.13} parent=0
    #allocation2 [shape = 'u8[8192]{0}', space=vmem, size = 0x2000, scoped, tag = 'output window, operand 0, single buffered']
    #allocation3 [shape = 's32[1]{0}', space=sflag, size = 0x4, scoped, tag = 'scoped memory for decoder_forward.13']
    %8 = vsyncpa [#allocation3], 0
    // Predicated region
    $region2: #{decoder_forward.13} parent=1 // pred_check
      _
    $region3: #{decoder_forward.13} parent=1 // pred_check_branch
      %10 = sbr.rel (0) target = $region5
    $region4: #{decoder_forward.13} parent=1 // pred_region
      _
    $region5: #{decoder_forward.13} parent=1 // pred_fallthru
      _
    // Predicated region
    $region6: #{decoder_forward.13} parent=1 // pred_check
      _
    $region7: #{decoder_forward.13} parent=1 // pred_check_branch
      %12 = sbr.rel (0) target = $region9
    $region8: #{decoder_forward.13} parent=1 // pred_region
      _
    $region9: #{decoder_forward.13} parent=1 // pred_fallthru
      _
    // Predicated region
    $region10: #{decoder_forward.13} parent=1 // pred_check
      _
    $region11: #{decoder_forward.13} parent=1 // pred_check_branch
      %14 = sbr.rel (0) target = $region13
    $region12: #{decoder_forward.13} parent=1 // pred_region
      _
    $region13: #{decoder_forward.13} parent=1 // pred_fallthru
      _
    %v15 = vld [vmem:[%s0] sm:$0xf]
    %v16 = vld [vmem:[%s0 + $0x4] sm:$0xf]
    %v17 = vunpack.c.l.bf16 %v15
    %v18 = vunpack.c.l.bf16 %v16
    %19 = vadd.xlane.f32.xlu0 %v17
    %v20 = vpop.xlane.xlu0 %19
    %21 = vadd.xlane.f32.xlu0 %v18
    %v22 = vpop.xlane.xlu0 %21
    %v23 = vrcp.pop 128.0
    %v24 = vmul.f32 %v20, %v23
    %v25 = vmul.f32 %v22, %v23
    %v26 = vsub.f32 %v17, %v24
    %v27 = vsub.f32 %v18, %v25
    %v28 = vmul.f32 %v26, %v26
    %v29 = vmul.f32 %v27, %v27
    %30 = vadd.xlane.f32.xlu0 %v28
    %v31 = vpop.xlane.xlu0 %30
    %32 = vadd.xlane.f32.xlu0 %v29
    %v33 = vpop.xlane.xlu0 %32
    %v34 = vmul.f32 %v31, %v23
    %v35 = vmul.f32 %v33, %v23
    %v36 = vadd.f32 %v34, 1e-05
    %v37 = vadd.f32 %v35, 1e-05
    %v38 = vrsqrt.pop %v36
    %v39 = vrsqrt.pop %v37
    %v40 = vmul.f32 %v26, %v38
    %v41 = vmul.f32 %v27, %v39
    %v42 = vld [vmem:[%s1] sm:$0x1]
    %v44 = vlaneseq
    %v45 = vshrl.u32 %v44, 7
    %v46 = vsub.s32 0, %v45
    %v47 = vrot.slane %v42, %v46
    %v49 = vmul.f32 %v40, %v47
    %v50 = vmul.f32 %v41, %v47
    %v51 = vld [vmem:[%s2] sm:$0x1]
    %v53 = vlaneseq
    %v54 = vshrl.u32 %v53, 7
    %v55 = vsub.s32 0, %v54
    %v56 = vrot.slane %v51, %v55
    %v58 = vadd.f32 %v49, %v56
    %v59 = vadd.f32 %v50, %v56
    %60 = vst [vmem:[#allocation2] sm:$0xff] %v58
    %61 = vst [vmem:[#allocation2 + $0x8] sm:$0xff] %v59
    // Predicated region
    $region14: #{decoder_forward.13} parent=1 // pred_check
      _
    $region15: #{decoder_forward.13} parent=1 // pred_check_branch
      %63 = sbr.rel (0) target = $region17
    $region16: #{decoder_forward.13} parent=1 // pred_region
      %s65 = ssub.s32 256, 256
      %66 = vsyncadd [#allocation3], %s65
      %s67 = sshll.u32 [#allocation2], 4
      %s68 = int_to_ptr.vmem [resolvable:$true] %s67
      %73 = dma.vmem_to_hbm [thread:$0]  %s68, 256, %s3, [#allocation3], 128, 128, 8
    $region17: #{decoder_forward.13} parent=1 // pred_fallthru
      _
    // Predicated region
    $region18: #{decoder_forward.13} parent=1 // pred_check
      _
    $region19: #{decoder_forward.13} parent=1 // pred_check_branch
      %75 = sbr.rel (0) target = $region21
    $region20: #{decoder_forward.13} parent=1 // pred_region
      %76 = dma.done [#allocation3], 256
    $region21: #{decoder_forward.13} parent=1 // pred_fallthru
      _
    %77 = vsyncpa [#allocation3], 1

</llo_original>
